<compile_context>
chip_gen: v7x
topology: tpu7x:2x2x1
jax: 0.10.0
libtpu: 0.0.40
codegen_flags: <defaults>
</compile_context>

<pallas_src>
import functools

import jax
import jax.numpy as jnp
from jax.experimental import pallas as pl
from jax.experimental.pallas import tpu as pltpu

BF16 = jnp.bfloat16
F32 = jnp.float32


def _round_up(x, m):
    return ((x + m - 1) // m) * m


# --------------------------------------------------------------------------
# Kernel 1: fused node2edge
#   x = MLP_n2e(x_in); e0 = H @ x
#   attn[e,n] = relu(x[n]@W1x + e0[e]@W1e + b1) @ w2 + b2
#   w = softmax(attn*H, axis=node) * H ; edges = w @ x
# --------------------------------------------------------------------------
def _node2edge_kernel(x_ref, hinc_ref, w1_ref, b1_ref, w2_ref, b2_ref,
                      w1ax_ref, w1ae_ref, b1a_ref, w2a_ref, b2a_ref, o_ref):
    x_in = x_ref[...]                                            # [N, Din] bf16
    h = jnp.dot(x_in, w1_ref[...],
                preferred_element_type=jnp.float32) + b1_ref[...]
    h = jnp.maximum(h, 0.0).astype(BF16)
    x = jnp.dot(h, w2_ref[...],
                preferred_element_type=jnp.float32) + b2_ref[...]  # [N, 64] f32
    xb = x.astype(BF16)

    Hf = hinc_ref[...]                                           # [E, N] f32
    Hb = Hf.astype(BF16)
    edge_init = jnp.dot(Hb, xb, preferred_element_type=jnp.float32)  # [E, 64]

    # split-W1 attention: no [E, N, 128] concat ever built.
    xa = jnp.dot(xb, w1ax_ref[...],
                 preferred_element_type=jnp.float32)             # [N, 32]
    ea = jnp.dot(edge_init.astype(BF16), w1ae_ref[...],
                 preferred_element_type=jnp.float32)             # [E, 32]
    hattn = jnp.maximum(ea[:, None, :] + xa[None, :, :] + b1a_ref[...][None],
                        0.0)                                     # [E, N, 32]
    attn = jnp.sum(hattn * w2a_ref[...][None], axis=-1) + b2a_ref[...]  # [E, N]

    # softmax over node axis of (attn * H), then re-mask with H (matches torch).
    logits = attn * Hf
    m = jnp.max(logits, axis=1, keepdims=True)
    e = jnp.exp(logits - m)
    s = jnp.sum(e, axis=1, keepdims=True)
    w = e * pl.reciprocal(s, approx=True) * Hf
    edges = jnp.dot(w.astype(BF16), xb, preferred_element_type=jnp.float32)
    o_ref[...] = edges.astype(o_ref.dtype)


def node2edge(x, H, p):
    """x: [B, N, D] bf16, H: [E, N] f32 -> edge features [B, E, 64] bf16."""
    B, N, D = x.shape
    E = H.shape[0]
    hdim = p["w2"].shape[-1]
    return pl.pallas_call(
        _node2edge_kernel,
        out_shape=jax.ShapeDtypeStruct((B, E, hdim), BF16),
        grid_spec=pltpu.PrefetchScalarGridSpec(
            num_scalar_prefetch=0,
            grid=(B,),
            in_specs=[
                pl.BlockSpec((None, N, D), lambda b: (b, 0, 0)),
                pl.BlockSpec((E, N), lambda b: (0, 0)),
                pl.BlockSpec(p["w1"].shape, lambda b: (0, 0)),
                pl.BlockSpec(p["b1"].shape, lambda b: (0, 0)),
                pl.BlockSpec(p["w2"].shape, lambda b: (0, 0)),
                pl.BlockSpec(p["b2"].shape, lambda b: (0, 0)),
                pl.BlockSpec(p["w1ax"].shape, lambda b: (0, 0)),
                pl.BlockSpec(p["w1ae"].shape, lambda b: (0, 0)),
                pl.BlockSpec(p["b1a"].shape, lambda b: (0, 0)),
                pl.BlockSpec(p["w2a"].shape, lambda b: (0, 0)),
                pl.BlockSpec(p["b2a"].shape, lambda b: (0, 0)),
            ],
            out_specs=pl.BlockSpec((None, E, hdim), lambda b: (b, 0, 0)),
        ),
        compiler_params=pltpu.CompilerParams(
            dimension_semantics=("parallel",)),
    )(x, H, p["w1"], p["b1"], p["w2"], p["b2"],
      p["w1ax"], p["w1ae"], p["b1a"], p["w2a"], p["b2a"])


# --------------------------------------------------------------------------
# Kernel 2: fused MLP_dict_softmax MLPs (init MLP + merged dist/factor MLPs)
#   output is padded to 128 lanes (cols 0..T-1 = dist logits, col T = factor).
# --------------------------------------------------------------------------
def _dictsm_mlp_kernel(x_ref, w1i_ref, b1i_ref, w2i_ref, b2i_ref,
                       w1c_ref, b1c_ref, w2c_ref, b2c_ref, o_ref):
    x = x_ref[...]                                               # [tm, 64] bf16
    h0 = jnp.maximum(jnp.dot(x, w1i_ref[...],
                             preferred_element_type=jnp.float32)
                     + b1i_ref[...], 0.0).astype(BF16)
    xi = (jnp.dot(h0, w2i_ref[...], preferred_element_type=jnp.float32)
          + b2i_ref[...]).astype(BF16)
    h1 = jnp.maximum(jnp.dot(xi, w1c_ref[...],
                             preferred_element_type=jnp.float32)
                     + b1c_ref[...], 0.0).astype(BF16)
    o = jnp.dot(h1, w2c_ref[...], preferred_element_type=jnp.float32) \
        + b2c_ref[...]
    o_ref[...] = o.astype(o_ref.dtype)


def dictsm_mlp(x, p):
    """x: [B, E, 64] bf16 -> [B, E, 128] f32 (padded logits)."""
    B, E, D = x.shape
    m = B * E
    xf = x.reshape(m, D)
    pad_out = p["w2c"].shape[-1]
    tm = min(256, max(8, _round_up(-(-m // 2), 8)))   # >=2 grid steps when possible
    mp = _round_up(m, tm)
    if mp != m:
        xf = jnp.pad(xf, ((0, mp - m), (0, 0)))
    out = pl.pallas_call(
        _dictsm_mlp_kernel,
        out_shape=jax.ShapeDtypeStruct((mp, pad_out), jnp.float32),
        grid_spec=pltpu.PrefetchScalarGridSpec(
            num_scalar_prefetch=0,
            grid=(mp // tm,),
            in_specs=[
                pl.BlockSpec((tm, D), lambda i: (i, 0)),
                pl.BlockSpec(p["w1i"].shape, lambda i: (0, 0)),
                pl.BlockSpec(p["b1i"].shape, lambda i: (0, 0)),
                pl.BlockSpec(p["w2i"].shape, lambda i: (0, 0)),
                pl.BlockSpec(p["b2i"].shape, lambda i: (0, 0)),
                pl.BlockSpec(p["w1c"].shape, lambda i: (0, 0)),
                pl.BlockSpec(p["b1c"].shape, lambda i: (0, 0)),
                pl.BlockSpec(p["w2c"].shape, lambda i: (0, 0)),
                pl.BlockSpec(p["b2c"].shape, lambda i: (0, 0)),
            ],
            out_specs=pl.BlockSpec((tm, pad_out), lambda i: (i, 0)),
        ),
        compiler_params=pltpu.CompilerParams(
            dimension_semantics=("parallel",)),
    )(xf, p["w1i"], p["b1i"], p["w2i"], p["b2i"],
      p["w1c"], p["b1c"], p["w2c"], p["b2c"])
    return out[:m].reshape(B, E, pad_out)


def dict_softmax_apply(x, p, key, edge_types, tau=0.5, eps=1e-10):
    out = dictsm_mlp(x, p)
    logits = out[..., :edge_types]
    factor_logit = out[..., edge_types:edge_types + 1]
    # gumbel-softmax glue (tiny tensors) stays in plain JAX.
    U = jax.random.uniform(key, logits.shape, jnp.float32)
    gumbel = -jnp.log(eps - jnp.log(U + eps))
    y = (logits + gumbel) / tau
    distribution = jax.nn.softmax(y, axis=-1)
    factor = jax.nn.sigmoid(factor_logit)
    return factor * distribution, distribution


# --------------------------------------------------------------------------
# Kernel 3: fused edge2node (edge aggregation) + trailing 2-layer MLP
#   edges = H@ori ; acc = sum_i dist[:,i] * MLP_i(edges)
#   nf = [H^T@acc , ori] / N ; out = MLP_trail(nf)      (concat via split-W1)
# --------------------------------------------------------------------------
def _edge2node_kernel(dist_ref, hinc_ref, hinct_ref, ori_ref,
                      w1s_ref, b1s_ref, w2s_ref, b2s_ref,
                      w1m_ref, b1m_ref, w2m_ref, b2m_ref, o_ref,
                      *, edge_types, inv_n):
    Hb = hinc_ref[...]                                           # [E, N] bf16
    Htb = hinct_ref[...]                                         # [N, E] bf16
    ori = ori_ref[...]                                           # [N, D] bf16
    D = ori.shape[-1]

    edges = jnp.dot(Hb, ori, preferred_element_type=jnp.float32)  # [E, D]
    edges_b = edges.astype(BF16)
    dist = dist_ref[...]                                         # [E, T] f32

    acc = jnp.zeros_like(edges)
    for i in range(edge_types):                                  # static unroll
        hi = jnp.maximum(jnp.dot(edges_b, w1s_ref[i],
                                 preferred_element_type=jnp.float32)
                         + b1s_ref[i], 0.0)
        yi = jnp.dot(hi.astype(BF16), w2s_ref[i],
                     preferred_element_type=jnp.float32) + b2s_ref[i]
        acc = acc + dist[:, i:i + 1] * yi

    node_acc = jnp.dot(Htb, acc.astype(BF16),
                       preferred_element_type=jnp.float32)       # [N, D]

    # trailing MLP on cat([node_acc, ori]) / N, with W1 split (no in-kernel concat)
    in1 = (node_acc * inv_n).astype(BF16)
    in2 = (ori.astype(jnp.float32) * inv_n).astype(BF16)
    hm = jnp.dot(in1, w1m_ref[:D, :], preferred_element_type=jnp.float32) \
        + jnp.dot(in2, w1m_ref[D:, :], preferred_element_type=jnp.float32) \
        + b1m_ref[...]
    hm = jnp.maximum(hm, 0.0).astype(BF16)
    out = jnp.dot(hm, w2m_ref[...],
                  preferred_element_type=jnp.float32) + b2m_ref[...]
    o_ref[...] = out.astype(o_ref.dtype)


def edge2node_mlp(dist, H_b, Ht_b, ori, agg_p, mlp_p, edge_types, out_dtype):
    B, E, T = dist.shape
    _, N, D = ori.shape
    dout = mlp_p["w2"].shape[-1]
    kernel = functools.partial(_edge2node_kernel,
                               edge_types=edge_types, inv_n=1.0 / N)
    return pl.pallas_call(
        kernel,
        out_shape=jax.ShapeDtypeStruct((B, N, dout), out_dtype),
        grid_spec=pltpu.PrefetchScalarGridSpec(
            num_scalar_prefetch=0,
            grid=(B,),
            in_specs=[
                pl.BlockSpec((None, E, T), lambda b: (b, 0, 0)),
                pl.BlockSpec((E, N), lambda b: (0, 0)),
                pl.BlockSpec((N, E), lambda b: (0, 0)),
                pl.BlockSpec((None, N, D), lambda b: (b, 0, 0)),
                pl.BlockSpec(agg_p["w1s"].shape, lambda b: (0, 0, 0)),
                pl.BlockSpec(agg_p["b1s"].shape, lambda b: (0, 0, 0)),
                pl.BlockSpec(agg_p["w2s"].shape, lambda b: (0, 0, 0)),
                pl.BlockSpec(agg_p["b2s"].shape, lambda b: (0, 0, 0)),
                pl.BlockSpec(mlp_p["w1"].shape, lambda b: (0, 0)),
                pl.BlockSpec(mlp_p["b1"].shape, lambda b: (0, 0)),
                pl.BlockSpec(mlp_p["w2"].shape, lambda b: (0, 0)),
                pl.BlockSpec(mlp_p["b2"].shape, lambda b: (0, 0)),
            ],
            out_specs=pl.BlockSpec((None, N, dout), lambda b: (b, 0, 0)),
        ),
        compiler_params=pltpu.CompilerParams(
            dimension_semantics=("parallel",)),
    )(dist, H_b, Ht_b, ori,
      agg_p["w1s"], agg_p["b1s"], agg_p["w2s"], agg_p["b2s"],
      mlp_p["w1"], mlp_p["b1"], mlp_p["w2"], mlp_p["b2"])


# --------------------------------------------------------------------------
# Parameter construction (deterministic, synthetic, kernel-ready layout)
# --------------------------------------------------------------------------
def _raw_mlp(key, din, hidden, dout):
    k1, k2, k3, k4 = jax.random.split(key, 4)
    w1 = jax.random.normal(k1, (din, hidden), F32) / jnp.sqrt(din)
    b1 = jax.random.normal(k2, (hidden,), F32) * 0.01
    w2 = jax.random.normal(k3, (hidden, dout), F32) / jnp.sqrt(hidden)
    b2 = jax.random.normal(k4, (dout,), F32) * 0.01
    return w1, b1, w2, b2


def make_mlp2_params(key, din, hid, dout):
    w1, b1, w2, b2 = _raw_mlp(key, din, hid, dout)
    return {"w1": w1.astype(BF16), "b1": b1.reshape(1, -1),
            "w2": w2.astype(BF16), "b2": b2.reshape(1, -1)}


def make_node2edge_params(key, h_dim, hdim_extend):
    kn, ka = jax.random.split(key)
    w1, b1, w2, b2 = _raw_mlp(kn, h_dim, 256, hdim_extend)
    wa1, ba1, wa2, ba2 = _raw_mlp(ka, hdim_extend * 2, 32, 1)
    return {
        "w1": w1.astype(BF16), "b1": b1.reshape(1, -1),
        "w2": w2.astype(BF16), "b2": b2.reshape(1, -1),
        "w1ax": wa1[:hdim_extend].astype(BF16),   # node half of attention W1
        "w1ae": wa1[hdim_extend:].astype(BF16),   # edge half of attention W1
        "b1a": ba1.reshape(1, -1),
        "w2a": wa2.reshape(1, -1),                # [1, 32] f32
        "b2a": ba2.reshape(1, 1),
    }


def make_dict_softmax_params(key, din, hid, edge_types, pad=128):
    ki, kd, kf = jax.random.split(key, 3)
    w1i, b1i, w2i, b2i = _raw_mlp(ki, din, hid, din)
    w1d, b1d, w2d, b2d = _raw_mlp(kd, din, hid, edge_types)
    w1f, b1f, w2f, b2f = _raw_mlp(kf, din, hid, 1)
    # merge dist + factor MLPs: concat hidden, block-diag second layer,
    # pad output columns to 128 lanes for lane-dense stores.
    w1c = jnp.concatenate([w1d, w1f], axis=1)
    b1c = jnp.concatenate([b1d, b1f])
    w2c = jnp.zeros((2 * hid, pad), F32)
    w2c = w2c.at[:hid, :edge_types].set(w2d)
    w2c = w2c.at[hid:, edge_types].set(w2f[:, 0])
    b2c = jnp.zeros((pad,), F32)
    b2c = b2c.at[:edge_types].set(b2d)
    b2c = b2c.at[edge_types].set(b2f[0])
    return {
        "w1i": w1i.astype(BF16), "b1i": b1i.reshape(1, -1),
        "w2i": w2i.astype(BF16), "b2i": b2i.reshape(1, -1),
        "w1c": w1c.astype(BF16), "b1c": b1c.reshape(1, -1),
        "w2c": w2c.astype(BF16), "b2c": b2c.reshape(1, -1),
    }


def make_edge_agg_params(key, h_dim, edge_types):
    keys = jax.random.split(key, edge_types)
    w1s, b1s, w2s, b2s = [], [], [], []
    for i in range(edge_types):
        w1, b1, w2, b2 = _raw_mlp(keys[i], h_dim, 128, h_dim)
        w1s.append(w1); b1s.append(b1.reshape(1, -1))
        w2s.append(w2); b2s.append(b2.reshape(1, -1))
    return {
        "w1s": jnp.stack(w1s).astype(BF16),   # [T, h, 128]
        "b1s": jnp.stack(b1s),                # [T, 1, 128] f32
        "w2s": jnp.stack(w2s).astype(BF16),   # [T, 128, h]
        "b2s": jnp.stack(b2s),                # [T, 1, h]  f32
    }


def build_params(key, h_dim=64, bottleneck_dim=128, nmp_layers=2, edge_types=5):
    hdim_extend = 64
    keys = iter(jax.random.split(key, 64))
    nk = lambda: next(keys)
    return {
        "nmp_layers": nmp_layers,
        "edge_types": edge_types,
        "node2edge": [make_node2edge_params(nk(), h_dim, hdim_extend)
                      for _ in range(nmp_layers)],
        "nmp_mlp_start": make_dict_softmax_params(nk(), hdim_extend, 128,
                                                  edge_types),
        "nmp_mlp1": [make_mlp2_params(nk(), h_dim * 2, 128, h_dim)
                     for _ in range(nmp_layers - 1)],
        "nmp_mlp2": [make_dict_softmax_params(nk(), hdim_extend, 128, edge_types)
                     for _ in range(nmp_layers - 1)],
        "nmp_mlp_end": make_mlp2_params(nk(), h_dim * 2, 128, bottleneck_dim),
        "edge_agg": [make_edge_agg_params(nk(), h_dim, edge_types)
                     for _ in range(nmp_layers)],
    }


# --------------------------------------------------------------------------
# Module forward
# --------------------------------------------------------------------------
def ms_hgnn_forward(params, h_states, key):
    B, N, _ = h_states.shape
    E = N * N
    edge_types = params["edge_types"]
    nmp_layers = params["nmp_layers"]

    cols = jnp.arange(E) % N
    rows = jnp.arange(E) // N
    H = (jax.nn.one_hot(cols, N, dtype=F32)
         + jax.nn.one_hot(rows, N, dtype=F32))      # [E, N], shared over batch
    H_b = H.astype(BF16)
    Ht_b = H.T.astype(BF16)

    keys = iter(jax.random.split(key, nmp_layers))

    x = h_states.astype(BF16)
    ef = node2edge(x, H, params["node2edge"][0])                    # [B,E,64]
    edge_feat, factors = dict_softmax_apply(ef, params["nmp_mlp_start"],
                                            next(keys), edge_types)
    node_feat = x
    idx = 0
    for l in range(nmp_layers - 1):
        node_feat = edge2node_mlp(edge_feat, H_b, Ht_b, node_feat,
                                  params["edge_agg"][idx],
                                  params["nmp_mlp1"][l],
                                  edge_types, out_dtype=BF16)       # [B,N,64]
        idx += 1
        ef = node2edge(node_feat, H, params["node2edge"][idx])
        edge_feat, _ = dict_softmax_apply(ef, params["nmp_mlp2"][l],
                                          next(keys), edge_types)
    node_out = edge2node_mlp(edge_feat, H_b, Ht_b, node_feat,
                             params["edge_agg"][idx],
                             params["nmp_mlp_end"],
                             edge_types, out_dtype=F32)             # [B,N,128]
    return node_out, factors


if __name__ == "__main__":
    key = jax.random.PRNGKey(0)
    kp, kx, kn = jax.random.split(key, 3)

    B, N, h_dim = 2, 4, 64        # batch, actors, hidden dim (h_dim fixed at 64)
    nmp_layers = 2
    edge_types = 5                # dataset != 'nba'
    bottleneck_dim = 128

    params = build_params(kp, h_dim=h_dim, bottleneck_dim=bottleneck_dim,
                          nmp_layers=nmp_layers, edge_types=edge_types)
    h_states = jax.random.normal(kx, (B, N, h_dim), F32)

    fwd = jax.jit(functools.partial(ms_hgnn_forward, params))
    node_feat, factors = fwd(h_states, kn)
    jax.block_until_ready((node_feat, factors))

    assert node_feat.shape == (B, N, bottleneck_dim)
    assert factors.shape == (B, N * N, edge_types)
    assert bool(jnp.all(jnp.isfinite(node_feat)))
    assert bool(jnp.all(jnp.isfinite(factors)))
    print("KERNEL_OK")
</pallas_src>

<mosaic_0001>
module attributes {stable_mosaic.version = 11 : i64} {
  func.func @_edge2node_kernel(%arg0: i32, %arg1: memref<1x16x5xf32, #tpu.memory_space<vmem>>, %arg2: memref<16x4xbf16, #tpu.memory_space<vmem>>, %arg3: memref<4x16xbf16, #tpu.memory_space<vmem>>, %arg4: memref<1x4x64xbf16, #tpu.memory_space<vmem>>, %arg5: memref<5x64x128xbf16, #tpu.memory_space<vmem>>, %arg6: memref<5x1x128xf32, #tpu.memory_space<vmem>>, %arg7: memref<5x128x64xbf16, #tpu.memory_space<vmem>>, %arg8: memref<5x1x64xf32, #tpu.memory_space<vmem>>, %arg9: memref<128x128xbf16, #tpu.memory_space<vmem>>, %arg10: memref<1x128xf32, #tpu.memory_space<vmem>>, %arg11: memref<128x128xbf16, #tpu.memory_space<vmem>>, %arg12: memref<1x128xf32, #tpu.memory_space<vmem>>, %arg13: memref<1x4x128xf32, #tpu.memory_space<vmem>>) attributes {dimension_semantics = [#tpu.dimension_semantics<parallel>], iteration_bounds = array<i64: 2>, scalar_prefetch = 0 : i64, scratch_operands = 0 : i64, tpu.core_type = #tpu.core_type<tc>, window_params = [{transform_indices = @transform_0, window_bounds = array<i64: 1, 16, 5>}, {pipeline_mode = #tpu.pipeline_mode<synchronous>, transform_indices = @transform_1, window_bounds = array<i64: 16, 4>}, {pipeline_mode = #tpu.pipeline_mode<synchronous>, transform_indices = @transform_2, window_bounds = array<i64: 4, 16>}, {transform_indices = @transform_3, window_bounds = array<i64: 1, 4, 64>}, {pipeline_mode = #tpu.pipeline_mode<synchronous>, transform_indices = @transform_4, window_bounds = array<i64: 5, 64, 128>}, {pipeline_mode = #tpu.pipeline_mode<synchronous>, transform_indices = @transform_5, window_bounds = array<i64: 5, 1, 128>}, {pipeline_mode = #tpu.pipeline_mode<synchronous>, transform_indices = @transform_6, window_bounds = array<i64: 5, 128, 64>}, {pipeline_mode = #tpu.pipeline_mode<synchronous>, transform_indices = @transform_7, window_bounds = array<i64: 5, 1, 64>}, {pipeline_mode = #tpu.pipeline_mode<synchronous>, transform_indices = @transform_8, window_bounds = array<i64: 128, 128>}, {pipeline_mode = #tpu.pipeline_mode<synchronous>, transform_indices = @transform_9, window_bounds = array<i64: 1, 128>}, {pipeline_mode = #tpu.pipeline_mode<synchronous>, transform_indices = @transform_10, window_bounds = array<i64: 128, 128>}, {pipeline_mode = #tpu.pipeline_mode<synchronous>, transform_indices = @transform_11, window_bounds = array<i64: 1, 128>}, {transform_indices = @transform_12, window_bounds = array<i64: 1, 4, 128>}]} {
    %c0 = arith.constant 0 : index
    %c0_0 = arith.constant 0 : index
    %0 = vector.load %arg2[%c0, %c0_0] : memref<16x4xbf16, #tpu.memory_space<vmem>>, vector<16x4xbf16>
    %c0_1 = arith.constant 0 : index
    %c0_2 = arith.constant 0 : index
    %1 = vector.load %arg3[%c0_1, %c0_2] : memref<4x16xbf16, #tpu.memory_space<vmem>>, vector<4x16xbf16>
    %c0_3 = arith.constant 0 : index
    %c0_4 = arith.constant 0 : index
    %c0_5 = arith.constant 0 : index
    %2 = vector.load %arg4[%c0_3, %c0_4, %c0_5] : memref<1x4x64xbf16, #tpu.memory_space<vmem>>, vector<1x4x64xbf16>
    %3 = vector.shape_cast %2 : vector<1x4x64xbf16> to vector<4x64xbf16>
    %cst = arith.constant dense<0.000000e+00> : vector<16x64xf32>
    %4 = tpu.matmul %0, %3, %cst {dimension_numbers = #tpu.dot_dimension_numbers<[1], [0], [0], [1], [0, 0, 1, 1], [], []>} : vector<16x4xbf16>, vector<4x64xbf16>, vector<16x64xf32> -> vector<16x64xf32>
    %5 = arith.truncf %4 : vector<16x64xf32> to vector<16x64xbf16>
    %c0_6 = arith.constant 0 : index
    %c0_7 = arith.constant 0 : index
    %c0_8 = arith.constant 0 : index
    %6 = vector.load %arg1[%c0_6, %c0_7, %c0_8] : memref<1x16x5xf32, #tpu.memory_space<vmem>>, vector<1x16x5xf32>
    %7 = vector.shape_cast %6 : vector<1x16x5xf32> to vector<16x5xf32>
    %cst_9 = arith.constant 0.000000e+00 : f32
    %8 = vector.broadcast %cst_9 : f32 to vector<16x64xf32>
    %c0_10 = arith.constant 0 : index
    %c0_11 = arith.constant 0 : index
    %c0_12 = arith.constant 0 : index
    %9 = vector.load %arg5[%c0_10, %c0_11, %c0_12] : memref<5x64x128xbf16, #tpu.memory_space<vmem>>, vector<1x64x128xbf16>
    %10 = vector.shape_cast %9 : vector<1x64x128xbf16> to vector<64x128xbf16>
    %cst_13 = arith.constant dense<0.000000e+00> : vector<16x128xf32>
    %11 = tpu.matmul %5, %10, %cst_13 {dimension_numbers = #tpu.dot_dimension_numbers<[1], [0], [0], [1], [0, 0, 1, 1], [], []>} : vector<16x64xbf16>, vector<64x128xbf16>, vector<16x128xf32> -> vector<16x128xf32>
    %c0_14 = arith.constant 0 : index
    %c0_15 = arith.constant 0 : index
    %c0_16 = arith.constant 0 : index
    %12 = vector.load %arg6[%c0_14, %c0_15, %c0_16] : memref<5x1x128xf32, #tpu.memory_space<vmem>>, vector<1x1x128xf32>
    %13 = vector.shape_cast %12 : vector<1x1x128xf32> to vector<1x128xf32>
    %14 = vector.broadcast %13 : vector<1x128xf32> to vector<16x128xf32>
    %15 = arith.addf %11, %14 : vector<16x128xf32>
    %cst_17 = arith.constant 0.000000e+00 : f32
    %16 = vector.broadcast %cst_17 : f32 to vector<16x128xf32>
    %17 = arith.maximumf %15, %16 : vector<16x128xf32>
    %18 = arith.truncf %17 : vector<16x128xf32> to vector<16x128xbf16>
    %c0_18 = arith.constant 0 : index
    %c0_19 = arith.constant 0 : index
    %c0_20 = arith.constant 0 : index
    %19 = vector.load %arg7[%c0_18, %c0_19, %c0_20] : memref<5x128x64xbf16, #tpu.memory_space<vmem>>, vector<1x128x64xbf16>
    %20 = vector.shape_cast %19 : vector<1x128x64xbf16> to vector<128x64xbf16>
    %cst_21 = arith.constant dense<0.000000e+00> : vector<16x64xf32>
    %21 = tpu.matmul %18, %20, %cst_21 {dimension_numbers = #tpu.dot_dimension_numbers<[1], [0], [0], [1], [0, 0, 1, 1], [], []>} : vector<16x128xbf16>, vector<128x64xbf16>, vector<16x64xf32> -> vector<16x64xf32>
    %c0_22 = arith.constant 0 : index
    %c0_23 = arith.constant 0 : index
    %c0_24 = arith.constant 0 : index
    %22 = vector.load %arg8[%c0_22, %c0_23, %c0_24] : memref<5x1x64xf32, #tpu.memory_space<vmem>>, vector<1x1x64xf32>
    %23 = vector.shape_cast %22 : vector<1x1x64xf32> to vector<1x64xf32>
    %24 = vector.broadcast %23 : vector<1x64xf32> to vector<16x64xf32>
    %25 = arith.addf %21, %24 : vector<16x64xf32>
    %26 = vector.extract_strided_slice %7 {offsets = [0, 0], sizes = [16, 1], strides = [1, 1]} : vector<16x5xf32> to vector<16x1xf32>
    %27 = vector.broadcast %26 : vector<16x1xf32> to vector<16x64xf32>
    %28 = arith.mulf %27, %25 : vector<16x64xf32>
    %29 = arith.addf %8, %28 : vector<16x64xf32>
    %c1 = arith.constant 1 : index
    %c0_25 = arith.constant 0 : index
    %c0_26 = arith.constant 0 : index
    %30 = vector.load %arg5[%c1, %c0_25, %c0_26] : memref<5x64x128xbf16, #tpu.memory_space<vmem>>, vector<1x64x128xbf16>
    %31 = vector.shape_cast %30 : vector<1x64x128xbf16> to vector<64x128xbf16>
    %cst_27 = arith.constant dense<0.000000e+00> : vector<16x128xf32>
    %32 = tpu.matmul %5, %31, %cst_27 {dimension_numbers = #tpu.dot_dimension_numbers<[1], [0], [0], [1], [0, 0, 1, 1], [], []>} : vector<16x64xbf16>, vector<64x128xbf16>, vector<16x128xf32> -> vector<16x128xf32>
    %c1_28 = arith.constant 1 : index
    %c0_29 = arith.constant 0 : index
    %c0_30 = arith.constant 0 : index
    %33 = vector.load %arg6[%c1_28, %c0_29, %c0_30] : memref<5x1x128xf32, #tpu.memory_space<vmem>>, vector<1x1x128xf32>
    %34 = vector.shape_cast %33 : vector<1x1x128xf32> to vector<1x128xf32>
    %35 = vector.broadcast %34 : vector<1x128xf32> to vector<16x128xf32>
    %36 = arith.addf %32, %35 : vector<16x128xf32>
    %cst_31 = arith.constant 0.000000e+00 : f32
    %37 = vector.broadcast %cst_31 : f32 to vector<16x128xf32>
    %38 = arith.maximumf %36, %37 : vector<16x128xf32>
    %39 = arith.truncf %38 : vector<16x128xf32> to vector<16x128xbf16>
    %c1_32 = arith.constant 1 : index
    %c0_33 = arith.constant 0 : index
    %c0_34 = arith.constant 0 : index
    %40 = vector.load %arg7[%c1_32, %c0_33, %c0_34] : memref<5x128x64xbf16, #tpu.memory_space<vmem>>, vector<1x128x64xbf16>
    %41 = vector.shape_cast %40 : vector<1x128x64xbf16> to vector<128x64xbf16>
    %cst_35 = arith.constant dense<0.000000e+00> : vector<16x64xf32>
    %42 = tpu.matmul %39, %41, %cst_35 {dimension_numbers = #tpu.dot_dimension_numbers<[1], [0], [0], [1], [0, 0, 1, 1], [], []>} : vector<16x128xbf16>, vector<128x64xbf16>, vector<16x64xf32> -> vector<16x64xf32>
    %c1_36 = arith.constant 1 : index
    %c0_37 = arith.constant 0 : index
    %c0_38 = arith.constant 0 : index
    %43 = vector.load %arg8[%c1_36, %c0_37, %c0_38] : memref<5x1x64xf32, #tpu.memory_space<vmem>>, vector<1x1x64xf32>
    %44 = vector.shape_cast %43 : vector<1x1x64xf32> to vector<1x64xf32>
    %45 = vector.broadcast %44 : vector<1x64xf32> to vector<16x64xf32>
    %46 = arith.addf %42, %45 : vector<16x64xf32>
    %47 = vector.extract_strided_slice %7 {offsets = [0, 1], sizes = [16, 1], strides = [1, 1]} : vector<16x5xf32> to vector<16x1xf32>
    %48 = vector.broadcast %47 : vector<16x1xf32> to vector<16x64xf32>
    %49 = arith.mulf %48, %46 : vector<16x64xf32>
    %50 = arith.addf %29, %49 : vector<16x64xf32>
    %c2 = arith.constant 2 : index
    %c0_39 = arith.constant 0 : index
    %c0_40 = arith.constant 0 : index
    %51 = vector.load %arg5[%c2, %c0_39, %c0_40] : memref<5x64x128xbf16, #tpu.memory_space<vmem>>, vector<1x64x128xbf16>
    %52 = vector.shape_cast %51 : vector<1x64x128xbf16> to vector<64x128xbf16>
    %cst_41 = arith.constant dense<0.000000e+00> : vector<16x128xf32>
    %53 = tpu.matmul %5, %52, %cst_41 {dimension_numbers = #tpu.dot_dimension_numbers<[1], [0], [0], [1], [0, 0, 1, 1], [], []>} : vector<16x64xbf16>, vector<64x128xbf16>, vector<16x128xf32> -> vector<16x128xf32>
    %c2_42 = arith.constant 2 : index
    %c0_43 = arith.constant 0 : index
    %c0_44 = arith.constant 0 : index
    %54 = vector.load %arg6[%c2_42, %c0_43, %c0_44] : memref<5x1x128xf32, #tpu.memory_space<vmem>>, vector<1x1x128xf32>
    %55 = vector.shape_cast %54 : vector<1x1x128xf32> to vector<1x128xf32>
    %56 = vector.broadcast %55 : vector<1x128xf32> to vector<16x128xf32>
    %57 = arith.addf %53, %56 : vector<16x128xf32>
    %cst_45 = arith.constant 0.000000e+00 : f32
    %58 = vector.broadcast %cst_45 : f32 to vector<16x128xf32>
    %59 = arith.maximumf %57, %58 : vector<16x128xf32>
    %60 = arith.truncf %59 : vector<16x128xf32> to vector<16x128xbf16>
    %c2_46 = arith.constant 2 : index
    %c0_47 = arith.constant 0 : index
    %c0_48 = arith.constant 0 : index
    %61 = vector.load %arg7[%c2_46, %c0_47, %c0_48] : memref<5x128x64xbf16, #tpu.memory_space<vmem>>, vector<1x128x64xbf16>
    %62 = vector.shape_cast %61 : vector<1x128x64xbf16> to vector<128x64xbf16>
    %cst_49 = arith.constant dense<0.000000e+00> : vector<16x64xf32>
    %63 = tpu.matmul %60, %62, %cst_49 {dimension_numbers = #tpu.dot_dimension_numbers<[1], [0], [0], [1], [0, 0, 1, 1], [], []>} : vector<16x128xbf16>, vector<128x64xbf16>, vector<16x64xf32> -> vector<16x64xf32>
    %c2_50 = arith.constant 2 : index
    %c0_51 = arith.constant 0 : index
    %c0_52 = arith.constant 0 : index
    %64 = vector.load %arg8[%c2_50, %c0_51, %c0_52] : memref<5x1x64xf32, #tpu.memory_space<vmem>>, vector<1x1x64xf32>
    %65 = vector.shape_cast %64 : vector<1x1x64xf32> to vector<1x64xf32>
    %66 = vector.broadcast %65 : vector<1x64xf32> to vector<16x64xf32>
    %67 = arith.addf %63, %66 : vector<16x64xf32>
    %68 = vector.extract_strided_slice %7 {offsets = [0, 2], sizes = [16, 1], strides = [1, 1]} : vector<16x5xf32> to vector<16x1xf32>
    %69 = vector.broadcast %68 : vector<16x1xf32> to vector<16x64xf32>
    %70 = arith.mulf %69, %67 : vector<16x64xf32>
    %71 = arith.addf %50, %70 : vector<16x64xf32>
    %c3 = arith.constant 3 : index
    %c0_53 = arith.constant 0 : index
    %c0_54 = arith.constant 0 : index
    %72 = vector.load %arg5[%c3, %c0_53, %c0_54] : memref<5x64x128xbf16, #tpu.memory_space<vmem>>, vector<1x64x128xbf16>
    %73 = vector.shape_cast %72 : vector<1x64x128xbf16> to vector<64x128xbf16>
    %cst_55 = arith.constant dense<0.000000e+00> : vector<16x128xf32>
    %74 = tpu.matmul %5, %73, %cst_55 {dimension_numbers = #tpu.dot_dimension_numbers<[1], [0], [0], [1], [0, 0, 1, 1], [], []>} : vector<16x64xbf16>, vector<64x128xbf16>, vector<16x128xf32> -> vector<16x128xf32>
    %c3_56 = arith.constant 3 : index
    %c0_57 = arith.constant 0 : index
    %c0_58 = arith.constant 0 : index
    %75 = vector.load %arg6[%c3_56, %c0_57, %c0_58] : memref<5x1x128xf32, #tpu.memory_space<vmem>>, vector<1x1x128xf32>
    %76 = vector.shape_cast %75 : vector<1x1x128xf32> to vector<1x128xf32>
    %77 = vector.broadcast %76 : vector<1x128xf32> to vector<16x128xf32>
    %78 = arith.addf %74, %77 : vector<16x128xf32>
    %cst_59 = arith.constant 0.000000e+00 : f32
    %79 = vector.broadcast %cst_59 : f32 to vector<16x128xf32>
    %80 = arith.maximumf %78, %79 : vector<16x128xf32>
    %81 = arith.truncf %80 : vector<16x128xf32> to vector<16x128xbf16>
    %c3_60 = arith.constant 3 : index
    %c0_61 = arith.constant 0 : index
    %c0_62 = arith.constant 0 : index
    %82 = vector.load %arg7[%c3_60, %c0_61, %c0_62] : memref<5x128x64xbf16, #tpu.memory_space<vmem>>, vector<1x128x64xbf16>
    %83 = vector.shape_cast %82 : vector<1x128x64xbf16> to vector<128x64xbf16>
    %cst_63 = arith.constant dense<0.000000e+00> : vector<16x64xf32>
    %84 = tpu.matmul %81, %83, %cst_63 {dimension_numbers = #tpu.dot_dimension_numbers<[1], [0], [0], [1], [0, 0, 1, 1], [], []>} : vector<16x128xbf16>, vector<128x64xbf16>, vector<16x64xf32> -> vector<16x64xf32>
    %c3_64 = arith.constant 3 : index
    %c0_65 = arith.constant 0 : index
    %c0_66 = arith.constant 0 : index
    %85 = vector.load %arg8[%c3_64, %c0_65, %c0_66] : memref<5x1x64xf32, #tpu.memory_space<vmem>>, vector<1x1x64xf32>
    %86 = vector.shape_cast %85 : vector<1x1x64xf32> to vector<1x64xf32>
    %87 = vector.broadcast %86 : vector<1x64xf32> to vector<16x64xf32>
    %88 = arith.addf %84, %87 : vector<16x64xf32>
    %89 = vector.extract_strided_slice %7 {offsets = [0, 3], sizes = [16, 1], strides = [1, 1]} : vector<16x5xf32> to vector<16x1xf32>
    %90 = vector.broadcast %89 : vector<16x1xf32> to vector<16x64xf32>
    %91 = arith.mulf %90, %88 : vector<16x64xf32>
    %92 = arith.addf %71, %91 : vector<16x64xf32>
    %c4 = arith.constant 4 : index
    %c0_67 = arith.constant 0 : index
    %c0_68 = arith.constant 0 : index
    %93 = vector.load %arg5[%c4, %c0_67, %c0_68] : memref<5x64x128xbf16, #tpu.memory_space<vmem>>, vector<1x64x128xbf16>
    %94 = vector.shape_cast %93 : vector<1x64x128xbf16> to vector<64x128xbf16>
    %cst_69 = arith.constant dense<0.000000e+00> : vector<16x128xf32>
    %95 = tpu.matmul %5, %94, %cst_69 {dimension_numbers = #tpu.dot_dimension_numbers<[1], [0], [0], [1], [0, 0, 1, 1], [], []>} : vector<16x64xbf16>, vector<64x128xbf16>, vector<16x128xf32> -> vector<16x128xf32>
    %c4_70 = arith.constant 4 : index
    %c0_71 = arith.constant 0 : index
    %c0_72 = arith.constant 0 : index
    %96 = vector.load %arg6[%c4_70, %c0_71, %c0_72] : memref<5x1x128xf32, #tpu.memory_space<vmem>>, vector<1x1x128xf32>
    %97 = vector.shape_cast %96 : vector<1x1x128xf32> to vector<1x128xf32>
    %98 = vector.broadcast %97 : vector<1x128xf32> to vector<16x128xf32>
    %99 = arith.addf %95, %98 : vector<16x128xf32>
    %cst_73 = arith.constant 0.000000e+00 : f32
    %100 = vector.broadcast %cst_73 : f32 to vector<16x128xf32>
    %101 = arith.maximumf %99, %100 : vector<16x128xf32>
    %102 = arith.truncf %101 : vector<16x128xf32> to vector<16x128xbf16>
    %c4_74 = arith.constant 4 : index
    %c0_75 = arith.constant 0 : index
    %c0_76 = arith.constant 0 : index
    %103 = vector.load %arg7[%c4_74, %c0_75, %c0_76] : memref<5x128x64xbf16, #tpu.memory_space<vmem>>, vector<1x128x64xbf16>
    %104 = vector.shape_cast %103 : vector<1x128x64xbf16> to vector<128x64xbf16>
    %cst_77 = arith.constant dense<0.000000e+00> : vector<16x64xf32>
    %105 = tpu.matmul %102, %104, %cst_77 {dimension_numbers = #tpu.dot_dimension_numbers<[1], [0], [0], [1], [0, 0, 1, 1], [], []>} : vector<16x128xbf16>, vector<128x64xbf16>, vector<16x64xf32> -> vector<16x64xf32>
    %c4_78 = arith.constant 4 : index
    %c0_79 = arith.constant 0 : index
    %c0_80 = arith.constant 0 : index
    %106 = vector.load %arg8[%c4_78, %c0_79, %c0_80] : memref<5x1x64xf32, #tpu.memory_space<vmem>>, vector<1x1x64xf32>
    %107 = vector.shape_cast %106 : vector<1x1x64xf32> to vector<1x64xf32>
    %108 = vector.broadcast %107 : vector<1x64xf32> to vector<16x64xf32>
    %109 = arith.addf %105, %108 : vector<16x64xf32>
    %110 = vector.extract_strided_slice %7 {offsets = [0, 4], sizes = [16, 1], strides = [1, 1]} : vector<16x5xf32> to vector<16x1xf32>
    %111 = vector.broadcast %110 : vector<16x1xf32> to vector<16x64xf32>
    %112 = arith.mulf %111, %109 : vector<16x64xf32>
    %113 = arith.addf %92, %112 : vector<16x64xf32>
    %114 = arith.truncf %113 : vector<16x64xf32> to vector<16x64xbf16>
    %cst_81 = arith.constant dense<0.000000e+00> : vector<4x64xf32>
    %115 = tpu.matmul %1, %114, %cst_81 {dimension_numbers = #tpu.dot_dimension_numbers<[1], [0], [0], [1], [0, 0, 1, 1], [], []>} : vector<4x16xbf16>, vector<16x64xbf16>, vector<4x64xf32> -> vector<4x64xf32>
    %cst_82 = arith.constant 2.500000e-01 : f32
    %116 = vector.broadcast %cst_82 : f32 to vector<4x64xf32>
    %117 = arith.mulf %115, %116 : vector<4x64xf32>
    %118 = arith.truncf %117 : vector<4x64xf32> to vector<4x64xbf16>
    %119 = arith.extf %3 : vector<4x64xbf16> to vector<4x64xf32>
    %cst_83 = arith.constant 2.500000e-01 : f32
    %120 = vector.broadcast %cst_83 : f32 to vector<4x64xf32>
    %121 = arith.mulf %119, %120 : vector<4x64xf32>
    %122 = arith.truncf %121 : vector<4x64xf32> to vector<4x64xbf16>
    %c0_84 = arith.constant 0 : index
    %c0_85 = arith.constant 0 : index
    %123 = vector.load %arg9[%c0_84, %c0_85] : memref<128x128xbf16, #tpu.memory_space<vmem>>, vector<64x128xbf16>
    %cst_86 = arith.constant dense<0.000000e+00> : vector<4x128xf32>
    %124 = tpu.matmul %118, %123, %cst_86 {dimension_numbers = #tpu.dot_dimension_numbers<[1], [0], [0], [1], [0, 0, 1, 1], [], []>} : vector<4x64xbf16>, vector<64x128xbf16>, vector<4x128xf32> -> vector<4x128xf32>
    %c64 = arith.constant 64 : index
    %c0_87 = arith.constant 0 : index
    %125 = vector.load %arg9[%c64, %c0_87] : memref<128x128xbf16, #tpu.memory_space<vmem>>, vector<64x128xbf16>
    %cst_88 = arith.constant dense<0.000000e+00> : vector<4x128xf32>
    %126 = tpu.matmul %122, %125, %cst_88 {dimension_numbers = #tpu.dot_dimension_numbers<[1], [0], [0], [1], [0, 0, 1, 1], [], []>} : vector<4x64xbf16>, vector<64x128xbf16>, vector<4x128xf32> -> vector<4x128xf32>
    %127 = arith.addf %124, %126 : vector<4x128xf32>
    %c0_89 = arith.constant 0 : index
    %c0_90 = arith.constant 0 : index
    %128 = vector.load %arg10[%c0_89, %c0_90] : memref<1x128xf32, #tpu.memory_space<vmem>>, vector<1x128xf32>
    %129 = vector.broadcast %128 : vector<1x128xf32> to vector<4x128xf32>
    %130 = arith.addf %127, %129 : vector<4x128xf32>
    %cst_91 = arith.constant 0.000000e+00 : f32
    %131 = vector.broadcast %cst_91 : f32 to vector<4x128xf32>
    %132 = arith.maximumf %130, %131 : vector<4x128xf32>
    %133 = arith.truncf %132 : vector<4x128xf32> to vector<4x128xbf16>
    %c0_92 = arith.constant 0 : index
    %c0_93 = arith.constant 0 : index
    %134 = vector.load %arg11[%c0_92, %c0_93] : memref<128x128xbf16, #tpu.memory_space<vmem>>, vector<128x128xbf16>
    %cst_94 = arith.constant dense<0.000000e+00> : vector<4x128xf32>
    %135 = tpu.matmul %133, %134, %cst_94 {dimension_numbers = #tpu.dot_dimension_numbers<[1], [0], [0], [1], [0, 0, 1, 1], [], []>} : vector<4x128xbf16>, vector<128x128xbf16>, vector<4x128xf32> -> vector<4x128xf32>
    %c0_95 = arith.constant 0 : index
    %c0_96 = arith.constant 0 : index
    %136 = vector.load %arg12[%c0_95, %c0_96] : memref<1x128xf32, #tpu.memory_space<vmem>>, vector<1x128xf32>
    %137 = vector.broadcast %136 : vector<1x128xf32> to vector<4x128xf32>
    %138 = arith.addf %135, %137 : vector<4x128xf32>
    %c0_97 = arith.constant 0 : index
    %c0_98 = arith.constant 0 : index
    %c0_99 = arith.constant 0 : index
    %139 = vector.load %arg13[%c0_97, %c0_98, %c0_99] : memref<1x4x128xf32, #tpu.memory_space<vmem>>, vector<1x4x128xf32>
    %140 = vector.shape_cast %139 : vector<1x4x128xf32> to vector<4x128xf32>
    %141 = vector.shape_cast %138 : vector<4x128xf32> to vector<1x4x128xf32>
    tpu.vector_store %arg13[%c0_97, %c0_98, %c0_99], %141 {strides = array<i32>} : memref<1x4x128xf32, #tpu.memory_space<vmem>>, vector<1x4x128xf32>,
    return
  }
  func.func @transform_0(%arg0: i32) -> (i32, i32, i32) {
    %c0_i32 = arith.constant 0 : i32
    %c0_i32_0 = arith.constant 0 : i32
    %c0_i32_1 = arith.constant 0 : i32
    return %arg0, %c0_i32, %c0_i32_0 : i32, i32, i32
  }
  func.func @transform_1(%arg0: i32) -> (i32, i32) {
    %c0_i32 = arith.constant 0 : i32
    %c0_i32_0 = arith.constant 0 : i32
    %c0_i32_1 = arith.constant 0 : i32
    return %c0_i32, %c0_i32_0 : i32, i32
  }
  func.func @transform_2(%arg0: i32) -> (i32, i32) {
    %c0_i32 = arith.constant 0 : i32
    %c0_i32_0 = arith.constant 0 : i32
    %c0_i32_1 = arith.constant 0 : i32
    return %c0_i32, %c0_i32_0 : i32, i32
  }
  func.func @transform_3(%arg0: i32) -> (i32, i32, i32) {
    %c0_i32 = arith.constant 0 : i32
    %c0_i32_0 = arith.constant 0 : i32
    %c0_i32_1 = arith.constant 0 : i32
    return %arg0, %c0_i32, %c0_i32_0 : i32, i32, i32
  }
  func.func @transform_4(%arg0: i32) -> (i32, i32, i32) {
    %c0_i32 = arith.constant 0 : i32
    %c0_i32_0 = arith.constant 0 : i32
    %c0_i32_1 = arith.constant 0 : i32
    %c0_i32_2 = arith.constant 0 : i32
    return %c0_i32, %c0_i32_0, %c0_i32_1 : i32, i32, i32
  }
  func.func @transform_5(%arg0: i32) -> (i32, i32, i32) {
    %c0_i32 = arith.constant 0 : i32
    %c0_i32_0 = arith.constant 0 : i32
    %c0_i32_1 = arith.constant 0 : i32
    %c0_i32_2 = arith.constant 0 : i32
    return %c0_i32, %c0_i32_0, %c0_i32_1 : i32, i32, i32
  }
  func.func @transform_6(%arg0: i32) -> (i32, i32, i32) {
    %c0_i32 = arith.constant 0 : i32
    %c0_i32_0 = arith.constant 0 : i32
    %c0_i32_1 = arith.constant 0 : i32
    %c0_i32_2 = arith.constant 0 : i32
    return %c0_i32, %c0_i32_0, %c0_i32_1 : i32, i32, i32
  }
  func.func @transform_7(%arg0: i32) -> (i32, i32, i32) {
    %c0_i32 = arith.constant 0 : i32
    %c0_i32_0 = arith.constant 0 : i32
    %c0_i32_1 = arith.constant 0 : i32
    %c0_i32_2 = arith.constant 0 : i32
    return %c0_i32, %c0_i32_0, %c0_i32_1 : i32, i32, i32
  }
  func.func @transform_8(%arg0: i32) -> (i32, i32) {
    %c0_i32 = arith.constant 0 : i32
    %c0_i32_0 = arith.constant 0 : i32
    %c0_i32_1 = arith.constant 0 : i32
    return %c0_i32, %c0_i32_0 : i32, i32
  }
  func.func @transform_9(%arg0: i32) -> (i32, i32) {
    %c0_i32 = arith.constant 0 : i32
    %c0_i32_0 = arith.constant 0 : i32
    %c0_i32_1 = arith.constant 0 : i32
    return %c0_i32, %c0_i32_0 : i32, i32
  }
  func.func @transform_10(%arg0: i32) -> (i32, i32) {
    %c0_i32 = arith.constant 0 : i32
    %c0_i32_0 = arith.constant 0 : i32
    %c0_i32_1 = arith.constant 0 : i32
    return %c0_i32, %c0_i32_0 : i32, i32
  }
  func.func @transform_11(%arg0: i32) -> (i32, i32) {
    %c0_i32 = arith.constant 0 : i32
    %c0_i32_0 = arith.constant 0 : i32
    %c0_i32_1 = arith.constant 0 : i32
    return %c0_i32, %c0_i32_0 : i32, i32
  }
  func.func @transform_12(%arg0: i32) -> (i32, i32, i32) {
    %c0_i32 = arith.constant 0 : i32
    %c0_i32_0 = arith.constant 0 : i32
    %c0_i32_1 = arith.constant 0 : i32
    return %arg0, %c0_i32, %c0_i32_0 : i32, i32, i32
  }
}

module attributes {stable_mosaic.version = 11 : i64} {
  func.func @_node2edge_kernel(%arg0: i32, %arg1: memref<1x4x64xbf16, #tpu.memory_space<vmem>>, %arg2: memref<16x4xf32, #tpu.memory_space<vmem>>, %arg3: memref<64x256xbf16, #tpu.memory_space<vmem>>, %arg4: memref<1x256xf32, #tpu.memory_space<vmem>>, %arg5: memref<256x64xbf16, #tpu.memory_space<vmem>>, %arg6: memref<1x64xf32, #tpu.memory_space<vmem>>, %arg7: memref<64x32xbf16, #tpu.memory_space<vmem>>, %arg8: memref<64x32xbf16, #tpu.memory_space<vmem>>, %arg9: memref<1x32xf32, #tpu.memory_space<vmem>>, %arg10: memref<1x32xf32, #tpu.memory_space<vmem>>, %arg11: memref<1x1xf32, #tpu.memory_space<vmem>>, %arg12: memref<1x16x64xbf16, #tpu.memory_space<vmem>>) attributes {dimension_semantics = [#tpu.dimension_semantics<parallel>], iteration_bounds = array<i64: 2>, scalar_prefetch = 0 : i64, scratch_operands = 0 : i64, tpu.core_type = #tpu.core_type<tc>, window_params = [{transform_indices = @transform_0, window_bounds = array<i64: 1, 4, 64>}, {pipeline_mode = #tpu.pipeline_mode<synchronous>, transform_indices = @transform_1, window_bounds = array<i64: 16, 4>}, {pipeline_mode = #tpu.pipeline_mode<synchronous>, transform_indices = @transform_2, window_bounds = array<i64: 64, 256>}, {pipeline_mode = #tpu.pipeline_mode<synchronous>, transform_indices = @transform_3, window_bounds = array<i64: 1, 256>}, {pipeline_mode = #tpu.pipeline_mode<synchronous>, transform_indices = @transform_4, window_bounds = array<i64: 256, 64>}, {pipeline_mode = #tpu.pipeline_mode<synchronous>, transform_indices = @transform_5, window_bounds = array<i64: 1, 64>}, {pipeline_mode = #tpu.pipeline_mode<synchronous>, transform_indices = @transform_6, window_bounds = array<i64: 64, 32>}, {pipeline_mode = #tpu.pipeline_mode<synchronous>, transform_indices = @transform_7, window_bounds = array<i64: 64, 32>}, {pipeline_mode = #tpu.pipeline_mode<synchronous>, transform_indices = @transform_8, window_bounds = array<i64: 1, 32>}, {pipeline_mode = #tpu.pipeline_mode<synchronous>, transform_indices = @transform_9, window_bounds = array<i64: 1, 32>}, {pipeline_mode = #tpu.pipeline_mode<synchronous>, transform_indices = @transform_10, window_bounds = array<i64: 1, 1>}, {transform_indices = @transform_11, window_bounds = array<i64: 1, 16, 64>}]} {
    %c0 = arith.constant 0 : index
    %c0_0 = arith.constant 0 : index
    %c0_1 = arith.constant 0 : index
    %0 = vector.load %arg1[%c0, %c0_0, %c0_1] : memref<1x4x64xbf16, #tpu.memory_space<vmem>>, vector<1x4x64xbf16>
    %1 = vector.shape_cast %0 : vector<1x4x64xbf16> to vector<4x64xbf16>
    %c0_2 = arith.constant 0 : index
    %c0_3 = arith.constant 0 : index
    %2 = vector.load %arg3[%c0_2, %c0_3] : memref<64x256xbf16, #tpu.memory_space<vmem>>, vector<64x256xbf16>
    %cst = arith.constant dense<0.000000e+00> : vector<4x256xf32>
    %3 = tpu.matmul %1, %2, %cst {dimension_numbers = #tpu.dot_dimension_numbers<[1], [0], [0], [1], [0, 0, 1, 1], [], []>} : vector<4x64xbf16>, vector<64x256xbf16>, vector<4x256xf32> -> vector<4x256xf32>
    %c0_4 = arith.constant 0 : index
    %c0_5 = arith.constant 0 : index
    %4 = vector.load %arg4[%c0_4, %c0_5] : memref<1x256xf32, #tpu.memory_space<vmem>>, vector<1x256xf32>
    %5 = vector.broadcast %4 : vector<1x256xf32> to vector<4x256xf32>
    %6 = arith.addf %3, %5 : vector<4x256xf32>
    %cst_6 = arith.constant 0.000000e+00 : f32
    %7 = vector.broadcast %cst_6 : f32 to vector<4x256xf32>
    %8 = arith.maximumf %6, %7 : vector<4x256xf32>
    %9 = arith.truncf %8 : vector<4x256xf32> to vector<4x256xbf16>
    %c0_7 = arith.constant 0 : index
    %c0_8 = arith.constant 0 : index
    %10 = vector.load %arg5[%c0_7, %c0_8] : memref<256x64xbf16, #tpu.memory_space<vmem>>, vector<256x64xbf16>
    %cst_9 = arith.constant dense<0.000000e+00> : vector<4x64xf32>
    %11 = tpu.matmul %9, %10, %cst_9 {dimension_numbers = #tpu.dot_dimension_numbers<[1], [0], [0], [1], [0, 0, 1, 1], [], []>} : vector<4x256xbf16>, vector<256x64xbf16>, vector<4x64xf32> -> vector<4x64xf32>
    %c0_10 = arith.constant 0 : index
    %c0_11 = arith.constant 0 : index
    %12 = vector.load %arg6[%c0_10, %c0_11] : memref<1x64xf32, #tpu.memory_space<vmem>>, vector<1x64xf32>
    %13 = vector.broadcast %12 : vector<1x64xf32> to vector<4x64xf32>
    %14 = arith.addf %11, %13 : vector<4x64xf32>
    %15 = arith.truncf %14 : vector<4x64xf32> to vector<4x64xbf16>
    %c0_12 = arith.constant 0 : index
    %c0_13 = arith.constant 0 : index
    %16 = vector.load %arg2[%c0_12, %c0_13] : memref<16x4xf32, #tpu.memory_space<vmem>>, vector<16x4xf32>
    %17 = arith.truncf %16 : vector<16x4xf32> to vector<16x4xbf16>
    %cst_14 = arith.constant dense<0.000000e+00> : vector<16x64xf32>
    %18 = tpu.matmul %17, %15, %cst_14 {dimension_numbers = #tpu.dot_dimension_numbers<[1], [0], [0], [1], [0, 0, 1, 1], [], []>} : vector<16x4xbf16>, vector<4x64xbf16>, vector<16x64xf32> -> vector<16x64xf32>
    %c0_15 = arith.constant 0 : index
    %c0_16 = arith.constant 0 : index
    %19 = vector.load %arg7[%c0_15, %c0_16] : memref<64x32xbf16, #tpu.memory_space<vmem>>, vector<64x32xbf16>
    %cst_17 = arith.constant dense<0.000000e+00> : vector<4x32xf32>
    %20 = tpu.matmul %15, %19, %cst_17 {dimension_numbers = #tpu.dot_dimension_numbers<[1], [0], [0], [1], [0, 0, 1, 1], [], []>} : vector<4x64xbf16>, vector<64x32xbf16>, vector<4x32xf32> -> vector<4x32xf32>
    %21 = arith.truncf %18 : vector<16x64xf32> to vector<16x64xbf16>
    %c0_18 = arith.constant 0 : index
    %c0_19 = arith.constant 0 : index
    %22 = vector.load %arg8[%c0_18, %c0_19] : memref<64x32xbf16, #tpu.memory_space<vmem>>, vector<64x32xbf16>
    %cst_20 = arith.constant dense<0.000000e+00> : vector<16x32xf32>
    %23 = tpu.matmul %21, %22, %cst_20 {dimension_numbers = #tpu.dot_dimension_numbers<[1], [0], [0], [1], [0, 0, 1, 1], [], []>} : vector<16x64xbf16>, vector<64x32xbf16>, vector<16x32xf32> -> vector<16x32xf32>
    %24 = vector.shape_cast %23 : vector<16x32xf32> to vector<16x1x32xf32>
    %25 = vector.shape_cast %20 : vector<4x32xf32> to vector<1x4x32xf32>
    %26 = vector.broadcast %24 : vector<16x1x32xf32> to vector<16x4x32xf32>
    %27 = vector.broadcast %25 : vector<1x4x32xf32> to vector<16x4x32xf32>
    %28 = arith.addf %26, %27 : vector<16x4x32xf32>
    %c0_21 = arith.constant 0 : index
    %c0_22 = arith.constant 0 : index
    %29 = vector.load %arg9[%c0_21, %c0_22] : memref<1x32xf32, #tpu.memory_space<vmem>>, vector<1x32xf32>
    %30 = vector.shape_cast %29 : vector<1x32xf32> to vector<1x1x32xf32>
    %31 = vector.broadcast %30 : vector<1x1x32xf32> to vector<16x4x32xf32>
    %32 = arith.addf %28, %31 : vector<16x4x32xf32>
    %cst_23 = arith.constant 0.000000e+00 : f32
    %33 = vector.broadcast %cst_23 : f32 to vector<16x4x32xf32>
    %34 = arith.maximumf %32, %33 : vector<16x4x32xf32>
    %c0_24 = arith.constant 0 : index
    %c0_25 = arith.constant 0 : index
    %35 = vector.load %arg10[%c0_24, %c0_25] : memref<1x32xf32, #tpu.memory_space<vmem>>, vector<1x32xf32>
    %36 = vector.shape_cast %35 : vector<1x32xf32> to vector<1x1x32xf32>
    %37 = vector.broadcast %36 : vector<1x1x32xf32> to vector<16x4x32xf32>
    %38 = arith.mulf %34, %37 : vector<16x4x32xf32>
    %cst_26 = arith.constant dense<0.000000e+00> : vector<16x4xf32>
    %39 = vector.multi_reduction <add>, %38, %cst_26 [2] : vector<16x4x32xf32> to vector<16x4xf32>
    %c0_27 = arith.constant 0 : index
    %c0_28 = arith.constant 0 : index
    %40 = vector.load %arg11[%c0_27, %c0_28] : memref<1x1xf32, #tpu.memory_space<vmem>>, vector<1x1xf32>
    %41 = vector.broadcast %40 : vector<1x1xf32> to vector<16x4xf32>
    %42 = arith.addf %39, %41 : vector<16x4xf32>
    %43 = arith.mulf %42, %16 : vector<16x4xf32>
    %cst_29 = arith.constant dense<0xFF800000> : vector<16xf32>
    %44 = vector.multi_reduction <maximumf>, %43, %cst_29 [1] : vector<16x4xf32> to vector<16xf32>
    %45 = vector.shape_cast %44 : vector<16xf32> to vector<16x1xf32>
    %46 = vector.broadcast %45 : vector<16x1xf32> to vector<16x4xf32>
    %47 = arith.subf %43, %46 : vector<16x4xf32>
    %48 = math.exp %47 : vector<16x4xf32>
    %cst_30 = arith.constant dense<0.000000e+00> : vector<16xf32>
    %49 = vector.multi_reduction <add>, %48, %cst_30 [1] : vector<16x4xf32> to vector<16xf32>
    %50 = vector.shape_cast %49 : vector<16xf32> to vector<16x1xf32>
    %51 = tpu.reciprocal %50 {approx = true} : vector<16x1xf32> -> vector<16x1xf32>
    %52 = vector.broadcast %51 : vector<16x1xf32> to vector<16x4xf32>
    %53 = arith.mulf %48, %52 : vector<16x4xf32>
    %54 = arith.mulf %53, %16 : vector<16x4xf32>
    %55 = arith.truncf %54 : vector<16x4xf32> to vector<16x4xbf16>
    %cst_31 = arith.constant dense<0.000000e+00> : vector<16x64xf32>
    %56 = tpu.matmul %55, %15, %cst_31 {dimension_numbers = #tpu.dot_dimension_numbers<[1], [0], [0], [1], [0, 0, 1, 1], [], []>} : vector<16x4xbf16>, vector<4x64xbf16>, vector<16x64xf32> -> vector<16x64xf32>
    %57 = arith.truncf %56 : vector<16x64xf32> to vector<16x64xbf16>
    %c0_32 = arith.constant 0 : index
    %c0_33 = arith.constant 0 : index
    %c0_34 = arith.constant 0 : index
    %58 = vector.load %arg12[%c0_32, %c0_33, %c0_34] : memref<1x16x64xbf16, #tpu.memory_space<vmem>>, vector<1x16x64xbf16>
    %59 = vector.shape_cast %58 : vector<1x16x64xbf16> to vector<16x64xbf16>
    %60 = vector.shape_cast %57 : vector<16x64xbf16> to vector<1x16x64xbf16>
    tpu.vector_store %arg12[%c0_32, %c0_33, %c0_34], %60 {strides = array<i32>} : memref<1x16x64xbf16, #tpu.memory_space<vmem>>, vector<1x16x64xbf16>,
    return
  }
  func.func @transform_0(%arg0: i32) -> (i32, i32, i32) {
    %c0_i32 = arith.constant 0 : i32
    %c0_i32_0 = arith.constant 0 : i32
    %c0_i32_1 = arith.constant 0 : i32
    return %arg0, %c0_i32, %c0_i32_0 : i32, i32, i32
  }
  func.func @transform_1(%arg0: i32) -> (i32, i32) {
    %c0_i32 = arith.constant 0 : i32
    %c0_i32_0 = arith.constant 0 : i32
    %c0_i32_1 = arith.constant 0 : i32
    return %c0_i32, %c0_i32_0 : i32, i32
  }
  func.func @transform_2(%arg0: i32) -> (i32, i32) {
    %c0_i32 = arith.constant 0 : i32
    %c0_i32_0 = arith.constant 0 : i32
    %c0_i32_1 = arith.constant 0 : i32
    return %c0_i32, %c0_i32_0 : i32, i32
  }
  func.func @transform_3(%arg0: i32) -> (i32, i32) {
    %c0_i32 = arith.constant 0 : i32
    %c0_i32_0 = arith.constant 0 : i32
    %c0_i32_1 = arith.constant 0 : i32
    return %c0_i32, %c0_i32_0 : i32, i32
  }
  func.func @transform_4(%arg0: i32) -> (i32, i32) {
    %c0_i32 = arith.constant 0 : i32
    %c0_i32_0 = arith.constant 0 : i32
    %c0_i32_1 = arith.constant 0 : i32
    return %c0_i32, %c0_i32_0 : i32, i32
  }
  func.func @transform_5(%arg0: i32) -> (i32, i32) {
    %c0_i32 = arith.constant 0 : i32
    %c0_i32_0 = arith.constant 0 : i32
    %c0_i32_1 = arith.constant 0 : i32
    return %c0_i32, %c0_i32_0 : i32, i32
  }
  func.func @transform_6(%arg0: i32) -> (i32, i32) {
    %c0_i32 = arith.constant 0 : i32
    %c0_i32_0 = arith.constant 0 : i32
    %c0_i32_1 = arith.constant 0 : i32
    return %c0_i32, %c0_i32_0 : i32, i32
  }
  func.func @transform_7(%arg0: i32) -> (i32, i32) {
    %c0_i32 = arith.constant 0 : i32
    %c0_i32_0 = arith.constant 0 : i32
    %c0_i32_1 = arith.constant 0 : i32
    return %c0_i32, %c0_i32_0 : i32, i32
  }
  func.func @transform_8(%arg0: i32) -> (i32, i32) {
    %c0_i32 = arith.constant 0 : i32
    %c0_i32_0 = arith.constant 0 : i32
    %c0_i32_1 = arith.constant 0 : i32
    return %c0_i32, %c0_i32_0 : i32, i32
  }
  func.func @transform_9(%arg0: i32) -> (i32, i32) {
    %c0_i32 = arith.constant 0 : i32
    %c0_i32_0 = arith.constant 0 : i32
    %c0_i32_1 = arith.constant 0 : i32
    return %c0_i32, %c0_i32_0 : i32, i32
  }
  func.func @transform_10(%arg0: i32) -> (i32, i32) {
    %c0_i32 = arith.constant 0 : i32
    %c0_i32_0 = arith.constant 0 : i32
    %c0_i32_1 = arith.constant 0 : i32
    return %c0_i32, %c0_i32_0 : i32, i32
  }
  func.func @transform_11(%arg0: i32) -> (i32, i32, i32) {
    %c0_i32 = arith.constant 0 : i32
    %c0_i32_0 = arith.constant 0 : i32
    %c0_i32_1 = arith.constant 0 : i32
    return %arg0, %c0_i32, %c0_i32_0 : i32, i32, i32
  }
}

module attributes {stable_mosaic.version = 11 : i64} {
  func.func @_dictsm_mlp_kernel(%arg0: i32, %arg1: memref<16x64xbf16, #tpu.memory_space<vmem>>, %arg2: memref<64x128xbf16, #tpu.memory_space<vmem>>, %arg3: memref<1x128xf32, #tpu.memory_space<vmem>>, %arg4: memref<128x64xbf16, #tpu.memory_space<vmem>>, %arg5: memref<1x64xf32, #tpu.memory_space<vmem>>, %arg6: memref<64x256xbf16, #tpu.memory_space<vmem>>, %arg7: memref<1x256xf32, #tpu.memory_space<vmem>>, %arg8: memref<256x128xbf16, #tpu.memory_space<vmem>>, %arg9: memref<1x128xf32, #tpu.memory_space<vmem>>, %arg10: memref<16x128xf32, #tpu.memory_space<vmem>>) attributes {dimension_semantics = [#tpu.dimension_semantics<parallel>], iteration_bounds = array<i64: 2>, scalar_prefetch = 0 : i64, scratch_operands = 0 : i64, tpu.core_type = #tpu.core_type<tc>, window_params = [{transform_indices = @transform_0, window_bounds = array<i64: 16, 64>}, {pipeline_mode = #tpu.pipeline_mode<synchronous>, transform_indices = @transform_1, window_bounds = array<i64: 64, 128>}, {pipeline_mode = #tpu.pipeline_mode<synchronous>, transform_indices = @transform_2, window_bounds = array<i64: 1, 128>}, {pipeline_mode = #tpu.pipeline_mode<synchronous>, transform_indices = @transform_3, window_bounds = array<i64: 128, 64>}, {pipeline_mode = #tpu.pipeline_mode<synchronous>, transform_indices = @transform_4, window_bounds = array<i64: 1, 64>}, {pipeline_mode = #tpu.pipeline_mode<synchronous>, transform_indices = @transform_5, window_bounds = array<i64: 64, 256>}, {pipeline_mode = #tpu.pipeline_mode<synchronous>, transform_indices = @transform_6, window_bounds = array<i64: 1, 256>}, {pipeline_mode = #tpu.pipeline_mode<synchronous>, transform_indices = @transform_7, window_bounds = array<i64: 256, 128>}, {pipeline_mode = #tpu.pipeline_mode<synchronous>, transform_indices = @transform_8, window_bounds = array<i64: 1, 128>}, {transform_indices = @transform_9, window_bounds = array<i64: 16, 128>}]} {
    %c0 = arith.constant 0 : index
    %c0_0 = arith.constant 0 : index
    %0 = vector.load %arg1[%c0, %c0_0] : memref<16x64xbf16, #tpu.memory_space<vmem>>, vector<16x64xbf16>
    %c0_1 = arith.constant 0 : index
    %c0_2 = arith.constant 0 : index
    %1 = vector.load %arg2[%c0_1, %c0_2] : memref<64x128xbf16, #tpu.memory_space<vmem>>, vector<64x128xbf16>
    %cst = arith.constant dense<0.000000e+00> : vector<16x128xf32>
    %2 = tpu.matmul %0, %1, %cst {dimension_numbers = #tpu.dot_dimension_numbers<[1], [0], [0], [1], [0, 0, 1, 1], [], []>} : vector<16x64xbf16>, vector<64x128xbf16>, vector<16x128xf32> -> vector<16x128xf32>
    %c0_3 = arith.constant 0 : index
    %c0_4 = arith.constant 0 : index
    %3 = vector.load %arg3[%c0_3, %c0_4] : memref<1x128xf32, #tpu.memory_space<vmem>>, vector<1x128xf32>
    %4 = vector.broadcast %3 : vector<1x128xf32> to vector<16x128xf32>
    %5 = arith.addf %2, %4 : vector<16x128xf32>
    %cst_5 = arith.constant 0.000000e+00 : f32
    %6 = vector.broadcast %cst_5 : f32 to vector<16x128xf32>
    %7 = arith.maximumf %5, %6 : vector<16x128xf32>
    %8 = arith.truncf %7 : vector<16x128xf32> to vector<16x128xbf16>
    %c0_6 = arith.constant 0 : index
    %c0_7 = arith.constant 0 : index
    %9 = vector.load %arg4[%c0_6, %c0_7] : memref<128x64xbf16, #tpu.memory_space<vmem>>, vector<128x64xbf16>
    %cst_8 = arith.constant dense<0.000000e+00> : vector<16x64xf32>
    %10 = tpu.matmul %8, %9, %cst_8 {dimension_numbers = #tpu.dot_dimension_numbers<[1], [0], [0], [1], [0, 0, 1, 1], [], []>} : vector<16x128xbf16>, vector<128x64xbf16>, vector<16x64xf32> -> vector<16x64xf32>
    %c0_9 = arith.constant 0 : index
    %c0_10 = arith.constant 0 : index
    %11 = vector.load %arg5[%c0_9, %c0_10] : memref<1x64xf32, #tpu.memory_space<vmem>>, vector<1x64xf32>
    %12 = vector.broadcast %11 : vector<1x64xf32> to vector<16x64xf32>
    %13 = arith.addf %10, %12 : vector<16x64xf32>
    %14 = arith.truncf %13 : vector<16x64xf32> to vector<16x64xbf16>
    %c0_11 = arith.constant 0 : index
    %c0_12 = arith.constant 0 : index
    %15 = vector.load %arg6[%c0_11, %c0_12] : memref<64x256xbf16, #tpu.memory_space<vmem>>, vector<64x256xbf16>
    %cst_13 = arith.constant dense<0.000000e+00> : vector<16x256xf32>
    %16 = tpu.matmul %14, %15, %cst_13 {dimension_numbers = #tpu.dot_dimension_numbers<[1], [0], [0], [1], [0, 0, 1, 1], [], []>} : vector<16x64xbf16>, vector<64x256xbf16>, vector<16x256xf32> -> vector<16x256xf32>
    %c0_14 = arith.constant 0 : index
    %c0_15 = arith.constant 0 : index
    %17 = vector.load %arg7[%c0_14, %c0_15] : memref<1x256xf32, #tpu.memory_space<vmem>>, vector<1x256xf32>
    %18 = vector.broadcast %17 : vector<1x256xf32> to vector<16x256xf32>
    %19 = arith.addf %16, %18 : vector<16x256xf32>
    %cst_16 = arith.constant 0.000000e+00 : f32
    %20 = vector.broadcast %cst_16 : f32 to vector<16x256xf32>
    %21 = arith.maximumf %19, %20 : vector<16x256xf32>
    %22 = arith.truncf %21 : vector<16x256xf32> to vector<16x256xbf16>
    %c0_17 = arith.constant 0 : index
    %c0_18 = arith.constant 0 : index
    %23 = vector.load %arg8[%c0_17, %c0_18] : memref<256x128xbf16, #tpu.memory_space<vmem>>, vector<256x128xbf16>
    %cst_19 = arith.constant dense<0.000000e+00> : vector<16x128xf32>
    %24 = tpu.matmul %22, %23, %cst_19 {dimension_numbers = #tpu.dot_dimension_numbers<[1], [0], [0], [1], [0, 0, 1, 1], [], []>} : vector<16x256xbf16>, vector<256x128xbf16>, vector<16x128xf32> -> vector<16x128xf32>
    %c0_20 = arith.constant 0 : index
    %c0_21 = arith.constant 0 : index
    %25 = vector.load %arg9[%c0_20, %c0_21] : memref<1x128xf32, #tpu.memory_space<vmem>>, vector<1x128xf32>
    %26 = vector.broadcast %25 : vector<1x128xf32> to vector<16x128xf32>
    %27 = arith.addf %24, %26 : vector<16x128xf32>
    %c0_22 = arith.constant 0 : index
    %c0_23 = arith.constant 0 : index
    %28 = vector.load %arg10[%c0_22, %c0_23] : memref<16x128xf32, #tpu.memory_space<vmem>>, vector<16x128xf32>
    tpu.vector_store %arg10[%c0_22, %c0_23], %27 {strides = array<i32>} : memref<16x128xf32, #tpu.memory_space<vmem>>, vector<16x128xf32>,
    return
  }
  func.func @transform_0(%arg0: i32) -> (i32, i32) {
    %c0_i32 = arith.constant 0 : i32
    %c0_i32_0 = arith.constant 0 : i32
    return %arg0, %c0_i32 : i32, i32
  }
  func.func @transform_1(%arg0: i32) -> (i32, i32) {
    %c0_i32 = arith.constant 0 : i32
    %c0_i32_0 = arith.constant 0 : i32
    %c0_i32_1 = arith.constant 0 : i32
    return %c0_i32, %c0_i32_0 : i32, i32
  }
  func.func @transform_2(%arg0: i32) -> (i32, i32) {
    %c0_i32 = arith.constant 0 : i32
    %c0_i32_0 = arith.constant 0 : i32
    %c0_i32_1 = arith.constant 0 : i32
    return %c0_i32, %c0_i32_0 : i32, i32
  }
  func.func @transform_3(%arg0: i32) -> (i32, i32) {
    %c0_i32 = arith.constant 0 : i32
    %c0_i32_0 = arith.constant 0 : i32
    %c0_i32_1 = arith.constant 0 : i32
    return %c0_i32, %c0_i32_0 : i32, i32
  }
  func.func @transform_4(%arg0: i32) -> (i32, i32) {
    %c0_i32 = arith.constant 0 : i32
    %c0_i32_0 = arith.constant 0 : i32
    %c0_i32_1 = arith.constant 0 : i32
    return %c0_i32, %c0_i32_0 : i32, i32
  }
  func.func @transform_5(%arg0: i32) -> (i32, i32) {
    %c0_i32 = arith.constant 0 : i32
    %c0_i32_0 = arith.constant 0 : i32
    %c0_i32_1 = arith.constant 0 : i32
    return %c0_i32, %c0_i32_0 : i32, i32
  }
  func.func @transform_6(%arg0: i32) -> (i32, i32) {
    %c0_i32 = arith.constant 0 : i32
    %c0_i32_0 = arith.constant 0 : i32
    %c0_i32_1 = arith.constant 0 : i32
    return %c0_i32, %c0_i32_0 : i32, i32
  }
  func.func @transform_7(%arg0: i32) -> (i32, i32) {
    %c0_i32 = arith.constant 0 : i32
    %c0_i32_0 = arith.constant 0 : i32
    %c0_i32_1 = arith.constant 0 : i32
    return %c0_i32, %c0_i32_0 : i32, i32
  }
  func.func @transform_8(%arg0: i32) -> (i32, i32) {
    %c0_i32 = arith.constant 0 : i32
    %c0_i32_0 = arith.constant 0 : i32
    %c0_i32_1 = arith.constant 0 : i32
    return %c0_i32, %c0_i32_0 : i32, i32
  }
  func.func @transform_9(%arg0: i32) -> (i32, i32) {
    %c0_i32 = arith.constant 0 : i32
    %c0_i32_0 = arith.constant 0 : i32
    return %arg0, %c0_i32 : i32, i32
  }
}

module attributes {stable_mosaic.version = 11 : i64} {
  func.func @_edge2node_kernel(%arg0: i32, %arg1: memref<1x16x5xf32, #tpu.memory_space<vmem>>, %arg2: memref<16x4xbf16, #tpu.memory_space<vmem>>, %arg3: memref<4x16xbf16, #tpu.memory_space<vmem>>, %arg4: memref<1x4x64xbf16, #tpu.memory_space<vmem>>, %arg5: memref<5x64x128xbf16, #tpu.memory_space<vmem>>, %arg6: memref<5x1x128xf32, #tpu.memory_space<vmem>>, %arg7: memref<5x128x64xbf16, #tpu.memory_space<vmem>>, %arg8: memref<5x1x64xf32, #tpu.memory_space<vmem>>, %arg9: memref<128x128xbf16, #tpu.memory_space<vmem>>, %arg10: memref<1x128xf32, #tpu.memory_space<vmem>>, %arg11: memref<128x64xbf16, #tpu.memory_space<vmem>>, %arg12: memref<1x64xf32, #tpu.memory_space<vmem>>, %arg13: memref<1x4x64xbf16, #tpu.memory_space<vmem>>) attributes {dimension_semantics = [#tpu.dimension_semantics<parallel>], iteration_bounds = array<i64: 2>, scalar_prefetch = 0 : i64, scratch_operands = 0 : i64, tpu.core_type = #tpu.core_type<tc>, window_params = [{transform_indices = @transform_0, window_bounds = array<i64: 1, 16, 5>}, {pipeline_mode = #tpu.pipeline_mode<synchronous>, transform_indices = @transform_1, window_bounds = array<i64: 16, 4>}, {pipeline_mode = #tpu.pipeline_mode<synchronous>, transform_indices = @transform_2, window_bounds = array<i64: 4, 16>}, {transform_indices = @transform_3, window_bounds = array<i64: 1, 4, 64>}, {pipeline_mode = #tpu.pipeline_mode<synchronous>, transform_indices = @transform_4, window_bounds = array<i64: 5, 64, 128>}, {pipeline_mode = #tpu.pipeline_mode<synchronous>, transform_indices = @transform_5, window_bounds = array<i64: 5, 1, 128>}, {pipeline_mode = #tpu.pipeline_mode<synchronous>, transform_indices = @transform_6, window_bounds = array<i64: 5, 128, 64>}, {pipeline_mode = #tpu.pipeline_mode<synchronous>, transform_indices = @transform_7, window_bounds = array<i64: 5, 1, 64>}, {pipeline_mode = #tpu.pipeline_mode<synchronous>, transform_indices = @transform_8, window_bounds = array<i64: 128, 128>}, {pipeline_mode = #tpu.pipeline_mode<synchronous>, transform_indices = @transform_9, window_bounds = array<i64: 1, 128>}, {pipeline_mode = #tpu.pipeline_mode<synchronous>, transform_indices = @transform_10, window_bounds = array<i64: 128, 64>}, {pipeline_mode = #tpu.pipeline_mode<synchronous>, transform_indices = @transform_11, window_bounds = array<i64: 1, 64>}, {transform_indices = @transform_12, window_bounds = array<i64: 1, 4, 64>}]} {
    %c0 = arith.constant 0 : index
    %c0_0 = arith.constant 0 : index
    %0 = vector.load %arg2[%c0, %c0_0] : memref<16x4xbf16, #tpu.memory_space<vmem>>, vector<16x4xbf16>
    %c0_1 = arith.constant 0 : index
    %c0_2 = arith.constant 0 : index
    %1 = vector.load %arg3[%c0_1, %c0_2] : memref<4x16xbf16, #tpu.memory_space<vmem>>, vector<4x16xbf16>
    %c0_3 = arith.constant 0 : index
    %c0_4 = arith.constant 0 : index
    %c0_5 = arith.constant 0 : index
    %2 = vector.load %arg4[%c0_3, %c0_4, %c0_5] : memref<1x4x64xbf16, #tpu.memory_space<vmem>>, vector<1x4x64xbf16>
    %3 = vector.shape_cast %2 : vector<1x4x64xbf16> to vector<4x64xbf16>
    %cst = arith.constant dense<0.000000e+00> : vector<16x64xf32>
    %4 = tpu.matmul %0, %3, %cst {dimension_numbers = #tpu.dot_dimension_numbers<[1], [0], [0], [1], [0, 0, 1, 1], [], []>} : vector<16x4xbf16>, vector<4x64xbf16>, vector<16x64xf32> -> vector<16x64xf32>
    %5 = arith.truncf %4 : vector<16x64xf32> to vector<16x64xbf16>
    %c0_6 = arith.constant 0 : index
    %c0_7 = arith.constant 0 : index
    %c0_8 = arith.constant 0 : index
    %6 = vector.load %arg1[%c0_6, %c0_7, %c0_8] : memref<1x16x5xf32, #tpu.memory_space<vmem>>, vector<1x16x5xf32>
    %7 = vector.shape_cast %6 : vector<1x16x5xf32> to vector<16x5xf32>
    %cst_9 = arith.constant 0.000000e+00 : f32
    %8 = vector.broadcast %cst_9 : f32 to vector<16x64xf32>
    %c0_10 = arith.constant 0 : index
    %c0_11 = arith.constant 0 : index
    %c0_12 = arith.constant 0 : index
    %9 = vector.load %arg5[%c0_10, %c0_11, %c0_12] : memref<5x64x128xbf16, #tpu.memory_space<vmem>>, vector<1x64x128xbf16>
    %10 = vector.shape_cast %9 : vector<1x64x128xbf16> to vector<64x128xbf16>
    %cst_13 = arith.constant dense<0.000000e+00> : vector<16x128xf32>
    %11 = tpu.matmul %5, %10, %cst_13 {dimension_numbers = #tpu.dot_dimension_numbers<[1], [0], [0], [1], [0, 0, 1, 1], [], []>} : vector<16x64xbf16>, vector<64x128xbf16>, vector<16x128xf32> -> vector<16x128xf32>
    %c0_14 = arith.constant 0 : index
    %c0_15 = arith.constant 0 : index
    %c0_16 = arith.constant 0 : index
    %12 = vector.load %arg6[%c0_14, %c0_15, %c0_16] : memref<5x1x128xf32, #tpu.memory_space<vmem>>, vector<1x1x128xf32>
    %13 = vector.shape_cast %12 : vector<1x1x128xf32> to vector<1x128xf32>
    %14 = vector.broadcast %13 : vector<1x128xf32> to vector<16x128xf32>
    %15 = arith.addf %11, %14 : vector<16x128xf32>
    %cst_17 = arith.constant 0.000000e+00 : f32
    %16 = vector.broadcast %cst_17 : f32 to vector<16x128xf32>
    %17 = arith.maximumf %15, %16 : vector<16x128xf32>
    %18 = arith.truncf %17 : vector<16x128xf32> to vector<16x128xbf16>
    %c0_18 = arith.constant 0 : index
    %c0_19 = arith.constant 0 : index
    %c0_20 = arith.constant 0 : index
    %19 = vector.load %arg7[%c0_18, %c0_19, %c0_20] : memref<5x128x64xbf16, #tpu.memory_space<vmem>>, vector<1x128x64xbf16>
    %20 = vector.shape_cast %19 : vector<1x128x64xbf16> to vector<128x64xbf16>
    %cst_21 = arith.constant dense<0.000000e+00> : vector<16x64xf32>
    %21 = tpu.matmul %18, %20, %cst_21 {dimension_numbers = #tpu.dot_dimension_numbers<[1], [0], [0], [1], [0, 0, 1, 1], [], []>} : vector<16x128xbf16>, vector<128x64xbf16>, vector<16x64xf32> -> vector<16x64xf32>
    %c0_22 = arith.constant 0 : index
    %c0_23 = arith.constant 0 : index
    %c0_24 = arith.constant 0 : index
    %22 = vector.load %arg8[%c0_22, %c0_23, %c0_24] : memref<5x1x64xf32, #tpu.memory_space<vmem>>, vector<1x1x64xf32>
    %23 = vector.shape_cast %22 : vector<1x1x64xf32> to vector<1x64xf32>
    %24 = vector.broadcast %23 : vector<1x64xf32> to vector<16x64xf32>
    %25 = arith.addf %21, %24 : vector<16x64xf32>
    %26 = vector.extract_strided_slice %7 {offsets = [0, 0], sizes = [16, 1], strides = [1, 1]} : vector<16x5xf32> to vector<16x1xf32>
    %27 = vector.broadcast %26 : vector<16x1xf32> to vector<16x64xf32>
    %28 = arith.mulf %27, %25 : vector<16x64xf32>
    %29 = arith.addf %8, %28 : vector<16x64xf32>
    %c1 = arith.constant 1 : index
    %c0_25 = arith.constant 0 : index
    %c0_26 = arith.constant 0 : index
    %30 = vector.load %arg5[%c1, %c0_25, %c0_26] : memref<5x64x128xbf16, #tpu.memory_space<vmem>>, vector<1x64x128xbf16>
    %31 = vector.shape_cast %30 : vector<1x64x128xbf16> to vector<64x128xbf16>
    %cst_27 = arith.constant dense<0.000000e+00> : vector<16x128xf32>
    %32 = tpu.matmul %5, %31, %cst_27 {dimension_numbers = #tpu.dot_dimension_numbers<[1], [0], [0], [1], [0, 0, 1, 1], [], []>} : vector<16x64xbf16>, vector<64x128xbf16>, vector<16x128xf32> -> vector<16x128xf32>
    %c1_28 = arith.constant 1 : index
    %c0_29 = arith.constant 0 : index
    %c0_30 = arith.constant 0 : index
    %33 = vector.load %arg6[%c1_28, %c0_29, %c0_30] : memref<5x1x128xf32, #tpu.memory_space<vmem>>, vector<1x1x128xf32>
    %34 = vector.shape_cast %33 : vector<1x1x128xf32> to vector<1x128xf32>
    %35 = vector.broadcast %34 : vector<1x128xf32> to vector<16x128xf32>
    %36 = arith.addf %32, %35 : vector<16x128xf32>
    %cst_31 = arith.constant 0.000000e+00 : f32
    %37 = vector.broadcast %cst_31 : f32 to vector<16x128xf32>
    %38 = arith.maximumf %36, %37 : vector<16x128xf32>
    %39 = arith.truncf %38 : vector<16x128xf32> to vector<16x128xbf16>
    %c1_32 = arith.constant 1 : index
    %c0_33 = arith.constant 0 : index
    %c0_34 = arith.constant 0 : index
    %40 = vector.load %arg7[%c1_32, %c0_33, %c0_34] : memref<5x128x64xbf16, #tpu.memory_space<vmem>>, vector<1x128x64xbf16>
    %41 = vector.shape_cast %40 : vector<1x128x64xbf16> to vector<128x64xbf16>
    %cst_35 = arith.constant dense<0.000000e+00> : vector<16x64xf32>
    %42 = tpu.matmul %39, %41, %cst_35 {dimension_numbers = #tpu.dot_dimension_numbers<[1], [0], [0], [1], [0, 0, 1, 1], [], []>} : vector<16x128xbf16>, vector<128x64xbf16>, vector<16x64xf32> -> vector<16x64xf32>
    %c1_36 = arith.constant 1 : index
    %c0_37 = arith.constant 0 : index
    %c0_38 = arith.constant 0 : index
    %43 = vector.load %arg8[%c1_36, %c0_37, %c0_38] : memref<5x1x64xf32, #tpu.memory_space<vmem>>, vector<1x1x64xf32>
    %44 = vector.shape_cast %43 : vector<1x1x64xf32> to vector<1x64xf32>
    %45 = vector.broadcast %44 : vector<1x64xf32> to vector<16x64xf32>
    %46 = arith.addf %42, %45 : vector<16x64xf32>
    %47 = vector.extract_strided_slice %7 {offsets = [0, 1], sizes = [16, 1], strides = [1, 1]} : vector<16x5xf32> to vector<16x1xf32>
    %48 = vector.broadcast %47 : vector<16x1xf32> to vector<16x64xf32>
    %49 = arith.mulf %48, %46 : vector<16x64xf32>
    %50 = arith.addf %29, %49 : vector<16x64xf32>
    %c2 = arith.constant 2 : index
    %c0_39 = arith.constant 0 : index
    %c0_40 = arith.constant 0 : index
    %51 = vector.load %arg5[%c2, %c0_39, %c0_40] : memref<5x64x128xbf16, #tpu.memory_space<vmem>>, vector<1x64x128xbf16>
    %52 = vector.shape_cast %51 : vector<1x64x128xbf16> to vector<64x128xbf16>
    %cst_41 = arith.constant dense<0.000000e+00> : vector<16x128xf32>
    %53 = tpu.matmul %5, %52, %cst_41 {dimension_numbers = #tpu.dot_dimension_numbers<[1], [0], [0], [1], [0, 0, 1, 1], [], []>} : vector<16x64xbf16>, vector<64x128xbf16>, vector<16x128xf32> -> vector<16x128xf32>
    %c2_42 = arith.constant 2 : index
    %c0_43 = arith.constant 0 : index
    %c0_44 = arith.constant 0 : index
    %54 = vector.load %arg6[%c2_42, %c0_43, %c0_44] : memref<5x1x128xf32, #tpu.memory_space<vmem>>, vector<1x1x128xf32>
    %55 = vector.shape_cast %54 : vector<1x1x128xf32> to vector<1x128xf32>
    %56 = vector.broadcast %55 : vector<1x128xf32> to vector<16x128xf32>
    %57 = arith.addf %53, %56 : vector<16x128xf32>
    %cst_45 = arith.constant 0.000000e+00 : f32
    %58 = vector.broadcast %cst_45 : f32 to vector<16x128xf32>
    %59 = arith.maximumf %57, %58 : vector<16x128xf32>
    %60 = arith.truncf %59 : vector<16x128xf32> to vector<16x128xbf16>
    %c2_46 = arith.constant 2 : index
    %c0_47 = arith.constant 0 : index
    %c0_48 = arith.constant 0 : index
    %61 = vector.load %arg7[%c2_46, %c0_47, %c0_48] : memref<5x128x64xbf16, #tpu.memory_space<vmem>>, vector<1x128x64xbf16>
    %62 = vector.shape_cast %61 : vector<1x128x64xbf16> to vector<128x64xbf16>
    %cst_49 = arith.constant dense<0.000000e+00> : vector<16x64xf32>
    %63 = tpu.matmul %60, %62, %cst_49 {dimension_numbers = #tpu.dot_dimension_numbers<[1], [0], [0], [1], [0, 0, 1, 1], [], []>} : vector<16x128xbf16>, vector<128x64xbf16>, vector<16x64xf32> -> vector<16x64xf32>
    %c2_50 = arith.constant 2 : index
    %c0_51 = arith.constant 0 : index
    %c0_52 = arith.constant 0 : index
    %64 = vector.load %arg8[%c2_50, %c0_51, %c0_52] : memref<5x1x64xf32, #tpu.memory_space<vmem>>, vector<1x1x64xf32>
    %65 = vector.shape_cast %64 : vector<1x1x64xf32> to vector<1x64xf32>
    %66 = vector.broadcast %65 : vector<1x64xf32> to vector<16x64xf32>
    %67 = arith.addf %63, %66 : vector<16x64xf32>
    %68 = vector.extract_strided_slice %7 {offsets = [0, 2], sizes = [16, 1], strides = [1, 1]} : vector<16x5xf32> to vector<16x1xf32>
    %69 = vector.broadcast %68 : vector<16x1xf32> to vector<16x64xf32>
    %70 = arith.mulf %69, %67 : vector<16x64xf32>
    %71 = arith.addf %50, %70 : vector<16x64xf32>
    %c3 = arith.constant 3 : index
    %c0_53 = arith.constant 0 : index
    %c0_54 = arith.constant 0 : index
    %72 = vector.load %arg5[%c3, %c0_53, %c0_54] : memref<5x64x128xbf16, #tpu.memory_space<vmem>>, vector<1x64x128xbf16>
    %73 = vector.shape_cast %72 : vector<1x64x128xbf16> to vector<64x128xbf16>
    %cst_55 = arith.constant dense<0.000000e+00> : vector<16x128xf32>
    %74 = tpu.matmul %5, %73, %cst_55 {dimension_numbers = #tpu.dot_dimension_numbers<[1], [0], [0], [1], [0, 0, 1, 1], [], []>} : vector<16x64xbf16>, vector<64x128xbf16>, vector<16x128xf32> -> vector<16x128xf32>
    %c3_56 = arith.constant 3 : index
    %c0_57 = arith.constant 0 : index
    %c0_58 = arith.constant 0 : index
    %75 = vector.load %arg6[%c3_56, %c0_57, %c0_58] : memref<5x1x128xf32, #tpu.memory_space<vmem>>, vector<1x1x128xf32>
    %76 = vector.shape_cast %75 : vector<1x1x128xf32> to vector<1x128xf32>
    %77 = vector.broadcast %76 : vector<1x128xf32> to vector<16x128xf32>
    %78 = arith.addf %74, %77 : vector<16x128xf32>
    %cst_59 = arith.constant 0.000000e+00 : f32
    %79 = vector.broadcast %cst_59 : f32 to vector<16x128xf32>
    %80 = arith.maximumf %78, %79 : vector<16x128xf32>
    %81 = arith.truncf %80 : vector<16x128xf32> to vector<16x128xbf16>
    %c3_60 = arith.constant 3 : index
    %c0_61 = arith.constant 0 : index
    %c0_62 = arith.constant 0 : index
    %82 = vector.load %arg7[%c3_60, %c0_61, %c0_62] : memref<5x128x64xbf16, #tpu.memory_space<vmem>>, vector<1x128x64xbf16>
    %83 = vector.shape_cast %82 : vector<1x128x64xbf16> to vector<128x64xbf16>
    %cst_63 = arith.constant dense<0.000000e+00> : vector<16x64xf32>
    %84 = tpu.matmul %81, %83, %cst_63 {dimension_numbers = #tpu.dot_dimension_numbers<[1], [0], [0], [1], [0, 0, 1, 1], [], []>} : vector<16x128xbf16>, vector<128x64xbf16>, vector<16x64xf32> -> vector<16x64xf32>
    %c3_64 = arith.constant 3 : index
    %c0_65 = arith.constant 0 : index
    %c0_66 = arith.constant 0 : index
    %85 = vector.load %arg8[%c3_64, %c0_65, %c0_66] : memref<5x1x64xf32, #tpu.memory_space<vmem>>, vector<1x1x64xf32>
    %86 = vector.shape_cast %85 : vector<1x1x64xf32> to vector<1x64xf32>
    %87 = vector.broadcast %86 : vector<1x64xf32> to vector<16x64xf32>
    %88 = arith.addf %84, %87 : vector<16x64xf32>
    %89 = vector.extract_strided_slice %7 {offsets = [0, 3], sizes = [16, 1], strides = [1, 1]} : vector<16x5xf32> to vector<16x1xf32>
    %90 = vector.broadcast %89 : vector<16x1xf32> to vector<16x64xf32>
    %91 = arith.mulf %90, %88 : vector<16x64xf32>
    %92 = arith.addf %71, %91 : vector<16x64xf32>
    %c4 = arith.constant 4 : index
    %c0_67 = arith.constant 0 : index
    %c0_68 = arith.constant 0 : index
    %93 = vector.load %arg5[%c4, %c0_67, %c0_68] : memref<5x64x128xbf16, #tpu.memory_space<vmem>>, vector<1x64x128xbf16>
    %94 = vector.shape_cast %93 : vector<1x64x128xbf16> to vector<64x128xbf16>
    %cst_69 = arith.constant dense<0.000000e+00> : vector<16x128xf32>
    %95 = tpu.matmul %5, %94, %cst_69 {dimension_numbers = #tpu.dot_dimension_numbers<[1], [0], [0], [1], [0, 0, 1, 1], [], []>} : vector<16x64xbf16>, vector<64x128xbf16>, vector<16x128xf32> -> vector<16x128xf32>
    %c4_70 = arith.constant 4 : index
    %c0_71 = arith.constant 0 : index
    %c0_72 = arith.constant 0 : index
    %96 = vector.load %arg6[%c4_70, %c0_71, %c0_72] : memref<5x1x128xf32, #tpu.memory_space<vmem>>, vector<1x1x128xf32>
    %97 = vector.shape_cast %96 : vector<1x1x128xf32> to vector<1x128xf32>
    %98 = vector.broadcast %97 : vector<1x128xf32> to vector<16x128xf32>
    %99 = arith.addf %95, %98 : vector<16x128xf32>
    %cst_73 = arith.constant 0.000000e+00 : f32
    %100 = vector.broadcast %cst_73 : f32 to vector<16x128xf32>
    %101 = arith.maximumf %99, %100 : vector<16x128xf32>
    %102 = arith.truncf %101 : vector<16x128xf32> to vector<16x128xbf16>
    %c4_74 = arith.constant 4 : index
    %c0_75 = arith.constant 0 : index
    %c0_76 = arith.constant 0 : index
    %103 = vector.load %arg7[%c4_74, %c0_75, %c0_76] : memref<5x128x64xbf16, #tpu.memory_space<vmem>>, vector<1x128x64xbf16>
    %104 = vector.shape_cast %103 : vector<1x128x64xbf16> to vector<128x64xbf16>
    %cst_77 = arith.constant dense<0.000000e+00> : vector<16x64xf32>
    %105 = tpu.matmul %102, %104, %cst_77 {dimension_numbers = #tpu.dot_dimension_numbers<[1], [0], [0], [1], [0, 0, 1, 1], [], []>} : vector<16x128xbf16>, vector<128x64xbf16>, vector<16x64xf32> -> vector<16x64xf32>
    %c4_78 = arith.constant 4 : index
    %c0_79 = arith.constant 0 : index
    %c0_80 = arith.constant 0 : index
    %106 = vector.load %arg8[%c4_78, %c0_79, %c0_80] : memref<5x1x64xf32, #tpu.memory_space<vmem>>, vector<1x1x64xf32>
    %107 = vector.shape_cast %106 : vector<1x1x64xf32> to vector<1x64xf32>
    %108 = vector.broadcast %107 : vector<1x64xf32> to vector<16x64xf32>
    %109 = arith.addf %105, %108 : vector<16x64xf32>
    %110 = vector.extract_strided_slice %7 {offsets = [0, 4], sizes = [16, 1], strides = [1, 1]} : vector<16x5xf32> to vector<16x1xf32>
    %111 = vector.broadcast %110 : vector<16x1xf32> to vector<16x64xf32>
    %112 = arith.mulf %111, %109 : vector<16x64xf32>
    %113 = arith.addf %92, %112 : vector<16x64xf32>
    %114 = arith.truncf %113 : vector<16x64xf32> to vector<16x64xbf16>
    %cst_81 = arith.constant dense<0.000000e+00> : vector<4x64xf32>
    %115 = tpu.matmul %1, %114, %cst_81 {dimension_numbers = #tpu.dot_dimension_numbers<[1], [0], [0], [1], [0, 0, 1, 1], [], []>} : vector<4x16xbf16>, vector<16x64xbf16>, vector<4x64xf32> -> vector<4x64xf32>
    %cst_82 = arith.constant 2.500000e-01 : f32
    %116 = vector.broadcast %cst_82 : f32 to vector<4x64xf32>
    %117 = arith.mulf %115, %116 : vector<4x64xf32>
    %118 = arith.truncf %117 : vector<4x64xf32> to vector<4x64xbf16>
    %119 = arith.extf %3 : vector<4x64xbf16> to vector<4x64xf32>
    %cst_83 = arith.constant 2.500000e-01 : f32
    %120 = vector.broadcast %cst_83 : f32 to vector<4x64xf32>
    %121 = arith.mulf %119, %120 : vector<4x64xf32>
    %122 = arith.truncf %121 : vector<4x64xf32> to vector<4x64xbf16>
    %c0_84 = arith.constant 0 : index
    %c0_85 = arith.constant 0 : index
    %123 = vector.load %arg9[%c0_84, %c0_85] : memref<128x128xbf16, #tpu.memory_space<vmem>>, vector<64x128xbf16>
    %cst_86 = arith.constant dense<0.000000e+00> : vector<4x128xf32>
    %124 = tpu.matmul %118, %123, %cst_86 {dimension_numbers = #tpu.dot_dimension_numbers<[1], [0], [0], [1], [0, 0, 1, 1], [], []>} : vector<4x64xbf16>, vector<64x128xbf16>, vector<4x128xf32> -> vector<4x128xf32>
    %c64 = arith.constant 64 : index
    %c0_87 = arith.constant 0 : index
    %125 = vector.load %arg9[%c64, %c0_87] : memref<128x128xbf16, #tpu.memory_space<vmem>>, vector<64x128xbf16>
    %cst_88 = arith.constant dense<0.000000e+00> : vector<4x128xf32>
    %126 = tpu.matmul %122, %125, %cst_88 {dimension_numbers = #tpu.dot_dimension_numbers<[1], [0], [0], [1], [0, 0, 1, 1], [], []>} : vector<4x64xbf16>, vector<64x128xbf16>, vector<4x128xf32> -> vector<4x128xf32>
    %127 = arith.addf %124, %126 : vector<4x128xf32>
    %c0_89 = arith.constant 0 : index
    %c0_90 = arith.constant 0 : index
    %128 = vector.load %arg10[%c0_89, %c0_90] : memref<1x128xf32, #tpu.memory_space<vmem>>, vector<1x128xf32>
    %129 = vector.broadcast %128 : vector<1x128xf32> to vector<4x128xf32>
    %130 = arith.addf %127, %129 : vector<4x128xf32>
    %cst_91 = arith.constant 0.000000e+00 : f32
    %131 = vector.broadcast %cst_91 : f32 to vector<4x128xf32>
    %132 = arith.maximumf %130, %131 : vector<4x128xf32>
    %133 = arith.truncf %132 : vector<4x128xf32> to vector<4x128xbf16>
    %c0_92 = arith.constant 0 : index
    %c0_93 = arith.constant 0 : index
    %134 = vector.load %arg11[%c0_92, %c0_93] : memref<128x64xbf16, #tpu.memory_space<vmem>>, vector<128x64xbf16>
    %cst_94 = arith.constant dense<0.000000e+00> : vector<4x64xf32>
    %135 = tpu.matmul %133, %134, %cst_94 {dimension_numbers = #tpu.dot_dimension_numbers<[1], [0], [0], [1], [0, 0, 1, 1], [], []>} : vector<4x128xbf16>, vector<128x64xbf16>, vector<4x64xf32> -> vector<4x64xf32>
    %c0_95 = arith.constant 0 : index
    %c0_96 = arith.constant 0 : index
    %136 = vector.load %arg12[%c0_95, %c0_96] : memref<1x64xf32, #tpu.memory_space<vmem>>, vector<1x64xf32>
    %137 = vector.broadcast %136 : vector<1x64xf32> to vector<4x64xf32>
    %138 = arith.addf %135, %137 : vector<4x64xf32>
    %139 = arith.truncf %138 : vector<4x64xf32> to vector<4x64xbf16>
    %c0_97 = arith.constant 0 : index
    %c0_98 = arith.constant 0 : index
    %c0_99 = arith.constant 0 : index
    %140 = vector.load %arg13[%c0_97, %c0_98, %c0_99] : memref<1x4x64xbf16, #tpu.memory_space<vmem>>, vector<1x4x64xbf16>
    %141 = vector.shape_cast %140 : vector<1x4x64xbf16> to vector<4x64xbf16>
    %142 = vector.shape_cast %139 : vector<4x64xbf16> to vector<1x4x64xbf16>
    tpu.vector_store %arg13[%c0_97, %c0_98, %c0_99], %142 {strides = array<i32>} : memref<1x4x64xbf16, #tpu.memory_space<vmem>>, vector<1x4x64xbf16>,
    return
  }
  func.func @transform_0(%arg0: i32) -> (i32, i32, i32) {
    %c0_i32 = arith.constant 0 : i32
    %c0_i32_0 = arith.constant 0 : i32
    %c0_i32_1 = arith.constant 0 : i32
    return %arg0, %c0_i32, %c0_i32_0 : i32, i32, i32
  }
  func.func @transform_1(%arg0: i32) -> (i32, i32) {
    %c0_i32 = arith.constant 0 : i32
    %c0_i32_0 = arith.constant 0 : i32
    %c0_i32_1 = arith.constant 0 : i32
    return %c0_i32, %c0_i32_0 : i32, i32
  }
  func.func @transform_2(%arg0: i32) -> (i32, i32) {
    %c0_i32 = arith.constant 0 : i32
    %c0_i32_0 = arith.constant 0 : i32
    %c0_i32_1 = arith.constant 0 : i32
    return %c0_i32, %c0_i32_0 : i32, i32
  }
  func.func @transform_3(%arg0: i32) -> (i32, i32, i32) {
    %c0_i32 = arith.constant 0 : i32
    %c0_i32_0 = arith.constant 0 : i32
    %c0_i32_1 = arith.constant 0 : i32
    return %arg0, %c0_i32, %c0_i32_0 : i32, i32, i32
  }
  func.func @transform_4(%arg0: i32) -> (i32, i32, i32) {
    %c0_i32 = arith.constant 0 : i32
    %c0_i32_0 = arith.constant 0 : i32
    %c0_i32_1 = arith.constant 0 : i32
    %c0_i32_2 = arith.constant 0 : i32
    return %c0_i32, %c0_i32_0, %c0_i32_1 : i32, i32, i32
  }
  func.func @transform_5(%arg0: i32) -> (i32, i32, i32) {
    %c0_i32 = arith.constant 0 : i32
    %c0_i32_0 = arith.constant 0 : i32
    %c0_i32_1 = arith.constant 0 : i32
    %c0_i32_2 = arith.constant 0 : i32
    return %c0_i32, %c0_i32_0, %c0_i32_1 : i32, i32, i32
  }
  func.func @transform_6(%arg0: i32) -> (i32, i32, i32) {
    %c0_i32 = arith.constant 0 : i32
    %c0_i32_0 = arith.constant 0 : i32
    %c0_i32_1 = arith.constant 0 : i32
    %c0_i32_2 = arith.constant 0 : i32
    return %c0_i32, %c0_i32_0, %c0_i32_1 : i32, i32, i32
  }
  func.func @transform_7(%arg0: i32) -> (i32, i32, i32) {
    %c0_i32 = arith.constant 0 : i32
    %c0_i32_0 = arith.constant 0 : i32
    %c0_i32_1 = arith.constant 0 : i32
    %c0_i32_2 = arith.constant 0 : i32
    return %c0_i32, %c0_i32_0, %c0_i32_1 : i32, i32, i32
  }
  func.func @transform_8(%arg0: i32) -> (i32, i32) {
    %c0_i32 = arith.constant 0 : i32
    %c0_i32_0 = arith.constant 0 : i32
    %c0_i32_1 = arith.constant 0 : i32
    return %c0_i32, %c0_i32_0 : i32, i32
  }
  func.func @transform_9(%arg0: i32) -> (i32, i32) {
    %c0_i32 = arith.constant 0 : i32
    %c0_i32_0 = arith.constant 0 : i32
    %c0_i32_1 = arith.constant 0 : i32
    return %c0_i32, %c0_i32_0 : i32, i32
  }
  func.func @transform_10(%arg0: i32) -> (i32, i32) {
    %c0_i32 = arith.constant 0 : i32
    %c0_i32_0 = arith.constant 0 : i32
    %c0_i32_1 = arith.constant 0 : i32
    return %c0_i32, %c0_i32_0 : i32, i32
  }
  func.func @transform_11(%arg0: i32) -> (i32, i32) {
    %c0_i32 = arith.constant 0 : i32
    %c0_i32_0 = arith.constant 0 : i32
    %c0_i32_1 = arith.constant 0 : i32
    return %c0_i32, %c0_i32_0 : i32, i32
  }
  func.func @transform_12(%arg0: i32) -> (i32, i32, i32) {
    %c0_i32 = arith.constant 0 : i32
    %c0_i32_0 = arith.constant 0 : i32
    %c0_i32_1 = arith.constant 0 : i32
    return %arg0, %c0_i32, %c0_i32_0 : i32, i32, i32
  }
}

</mosaic_0001>

<llo_original>
// kernel: ms_hgnn_forward.9
$region0: #{ms_hgnn_forward.9}
  #allocation0 [shape = 'u32[]', space=smem, size = 0x4, offset = 0x4, fixed_abs, tag = 'smem constant byte address 0x4 - core index']
  #allocation1 [shape = 'u32[144,128]{1,0:T(1,128)}', space=vmem, size = 0x12000, scoped, tag = 'internal scratch']
  %s0 = inlined_call_operand.vmem [shape: bf16[32,64], index: 0, kind: input, shape index: {}]
  %s1 = inlined_call_operand.vmem [shape: bf16[64,128], index: 1, kind: input, shape index: {}]
  %s2 = inlined_call_operand.vmem [shape: f32[1,128], index: 2, kind: input, shape index: {}]
  %s3 = inlined_call_operand.vmem [shape: bf16[128,64], index: 3, kind: input, shape index: {}]
  %s4 = inlined_call_operand.vmem [shape: f32[1,64], index: 4, kind: input, shape index: {}]
  %s5 = inlined_call_operand.vmem [shape: bf16[64,256], index: 5, kind: input, shape index: {}]
  %s6 = inlined_call_operand.vmem [shape: f32[1,256], index: 6, kind: input, shape index: {}]
  %s7 = inlined_call_operand.vmem [shape: bf16[256,128], index: 7, kind: input, shape index: {}]
  %s8 = inlined_call_operand.vmem [shape: f32[1,128], index: 8, kind: input, shape index: {}]
  %s9 = inlined_call_operand.vmem [shape: f32[32,128], index: 9, kind: output, shape index: {}]
  %s10 = sld [smem:[#allocation0]]
  $region69: #{ms_hgnn_forward.9} parent=0
    _
  %s12 = ssub.s32 1, %s10
  %s13 = scalar_select 0, %s12, %s10
  loop: start=0, step=1, limit=4
  $region2: #{ms_hgnn_forward.9} parent=0 // loop_pre_header
    _
  $region3: #{ms_hgnn_forward.9} parent=0 // loop_header
    %s15 = sphi 0, %s19
    %p16 = scmp.ge.s32.totalorder %s15, 4
    %s25 = sphi 0, %s27
    %s28 = sphi 0, %s25
    %s29 = sphi 0, %s28
    %s45 = sphi 0, %s29
    %s49 = sphi 0, %s49
    %s51 = sphi 0, %s49
    %s52 = sphi 0, %s51
    %s66 = sphi 0, %s52
    %s70 = sphi 0, %s70
    %s72 = sphi 0, %s70
    %s73 = sphi 0, %s72
    %s87 = sphi 0, %s73
    %s91 = sphi 0, %s91
    %s93 = sphi 0, %s91
    %s94 = sphi 0, %s93
    %s108 = sphi 0, %s94
    %s112 = sphi 0, %s112
    %s114 = sphi 0, %s112
    %s115 = sphi 0, %s114
    %s129 = sphi 0, %s115
    %s133 = sphi 0, %s133
    %s135 = sphi 0, %s133
    %s136 = sphi 0, %s135
    %s150 = sphi 0, %s136
    %s154 = sphi 0, %s154
    %s156 = sphi 0, %s154
    %s157 = sphi 0, %s156
    %s171 = sphi 0, %s157
    %s175 = sphi 0, %s175
    %s177 = sphi 0, %s175
    %s178 = sphi 0, %s177
    %s192 = sphi 0, %s178
    %s196 = sphi 0, %s196
    %s198 = sphi 0, %s196
    %s199 = sphi 0, %s198
    %s213 = sphi 0, %s199
    %s219 = sphi 0, %s221
    %s222 = sphi 0, %s219
    %s223 = sphi 0, %s222
    %s239 = sphi 0, %s223
  $region4: #{ms_hgnn_forward.9} parent=0 // loop_header_branch
    %18 = sbr.rel (%p16) target = $region8
  $region5: #{ms_hgnn_forward.9} parent=0 // loop_body
    %s20 = ssub.s32 %s15, 1
    %s21 = ssub.s32 %s15, 2
    %s22 = sadd.s32 %s15, 1
    %s23 = ssub.s32 %s15, %s22
    %p24 = scmp.eq.s32.totalorder %s23, 0
    %s26 = sadd.s32 %s25, 1
    %s27 = scalar_select %p24, %s25, %s26
    %p30 = pneg %p24
    %p31 = scmp.eq.s32.totalorder %s15, 1
    %p32 = por %p30, %p31
    %p33 = scmp.ne.s32.totalorder %s25, %s28
    %p34 = scmp.eq.s32.totalorder %s15, 0
    %p35 = por %p33, %p34
    %p36 = scmp.ne.s32.totalorder %s25, %s28
    %p37 = scmp.eq.s32.totalorder %s20, 1
    %p38 = por %p36, %p37
    %p39 = scmp.ne.s32.totalorder %s28, %s29
    %p40 = scmp.eq.s32.totalorder %s20, 0
    %p41 = por %p39, %p40
    %p42 = scmp.ne.s32.totalorder %s28, %s29
    %p43 = scmp.eq.s32.totalorder %s21, 1
    %p44 = por %p42, %p43
    %p46 = scmp.ne.s32.totalorder %s29, %s45
    %p47 = scmp.eq.s32.totalorder %s21, 0
    %p48 = por %p46, %p47
    %s50 = sadd.s32 %s49, 1
    %p53 = scmp.eq.s32.totalorder %s15, 1
    %p54 = scmp.ne.s32.totalorder %s49, %s51
    %p55 = scmp.eq.s32.totalorder %s15, 0
    %p56 = por %p54, %p55
    %p57 = scmp.ne.s32.totalorder %s49, %s51
    %p58 = scmp.eq.s32.totalorder %s20, 1
    %p59 = por %p57, %p58
    %p60 = scmp.ne.s32.totalorder %s51, %s52
    %p61 = scmp.eq.s32.totalorder %s20, 0
    %p62 = por %p60, %p61
    %p63 = scmp.ne.s32.totalorder %s51, %s52
    %p64 = scmp.eq.s32.totalorder %s21, 1
    %p65 = por %p63, %p64
    %p67 = scmp.ne.s32.totalorder %s52, %s66
    %p68 = scmp.eq.s32.totalorder %s21, 0
    %p69 = por %p67, %p68
    %s71 = sadd.s32 %s70, 1
    %p74 = scmp.eq.s32.totalorder %s15, 1
    %p75 = scmp.ne.s32.totalorder %s70, %s72
    %p76 = scmp.eq.s32.totalorder %s15, 0
    %p77 = por %p75, %p76
    %p78 = scmp.ne.s32.totalorder %s70, %s72
    %p79 = scmp.eq.s32.totalorder %s20, 1
    %p80 = por %p78, %p79
    %p81 = scmp.ne.s32.totalorder %s72, %s73
    %p82 = scmp.eq.s32.totalorder %s20, 0
    %p83 = por %p81, %p82
    %p84 = scmp.ne.s32.totalorder %s72, %s73
    %p85 = scmp.eq.s32.totalorder %s21, 1
    %p86 = por %p84, %p85
    %p88 = scmp.ne.s32.totalorder %s73, %s87
    %p89 = scmp.eq.s32.totalorder %s21, 0
    %p90 = por %p88, %p89
    %s92 = sadd.s32 %s91, 1
    %p95 = scmp.eq.s32.totalorder %s15, 1
    %p96 = scmp.ne.s32.totalorder %s91, %s93
    %p97 = scmp.eq.s32.totalorder %s15, 0
    %p98 = por %p96, %p97
    %p99 = scmp.ne.s32.totalorder %s91, %s93
    %p100 = scmp.eq.s32.totalorder %s20, 1
    %p101 = por %p99, %p100
    %p102 = scmp.ne.s32.totalorder %s93, %s94
    %p103 = scmp.eq.s32.totalorder %s20, 0
    %p104 = por %p102, %p103
    %p105 = scmp.ne.s32.totalorder %s93, %s94
    %p106 = scmp.eq.s32.totalorder %s21, 1
    %p107 = por %p105, %p106
    %p109 = scmp.ne.s32.totalorder %s94, %s108
    %p110 = scmp.eq.s32.totalorder %s21, 0
    %p111 = por %p109, %p110
    %s113 = sadd.s32 %s112, 1
    %p116 = scmp.eq.s32.totalorder %s15, 1
    %p117 = scmp.ne.s32.totalorder %s112, %s114
    %p118 = scmp.eq.s32.totalorder %s15, 0
    %p119 = por %p117, %p118
    %p120 = scmp.ne.s32.totalorder %s112, %s114
    %p121 = scmp.eq.s32.totalorder %s20, 1
    %p122 = por %p120, %p121
    %p123 = scmp.ne.s32.totalorder %s114, %s115
    %p124 = scmp.eq.s32.totalorder %s20, 0
    %p125 = por %p123, %p124
    %p126 = scmp.ne.s32.totalorder %s114, %s115
    %p127 = scmp.eq.s32.totalorder %s21, 1
    %p128 = por %p126, %p127
    %p130 = scmp.ne.s32.totalorder %s115, %s129
    %p131 = scmp.eq.s32.totalorder %s21, 0
    %p132 = por %p130, %p131
    %s134 = sadd.s32 %s133, 1
    %p137 = scmp.eq.s32.totalorder %s15, 1
    %p138 = scmp.ne.s32.totalorder %s133, %s135
    %p139 = scmp.eq.s32.totalorder %s15, 0
    %p140 = por %p138, %p139
    %p141 = scmp.ne.s32.totalorder %s133, %s135
    %p142 = scmp.eq.s32.totalorder %s20, 1
    %p143 = por %p141, %p142
    %p144 = scmp.ne.s32.totalorder %s135, %s136
    %p145 = scmp.eq.s32.totalorder %s20, 0
    %p146 = por %p144, %p145
    %p147 = scmp.ne.s32.totalorder %s135, %s136
    %p148 = scmp.eq.s32.totalorder %s21, 1
    %p149 = por %p147, %p148
    %p151 = scmp.ne.s32.totalorder %s136, %s150
    %p152 = scmp.eq.s32.totalorder %s21, 0
    %p153 = por %p151, %p152
    %s155 = sadd.s32 %s154, 1
    %p158 = scmp.eq.s32.totalorder %s15, 1
    %p159 = scmp.ne.s32.totalorder %s154, %s156
    %p160 = scmp.eq.s32.totalorder %s15, 0
    %p161 = por %p159, %p160
    %p162 = scmp.ne.s32.totalorder %s154, %s156
    %p163 = scmp.eq.s32.totalorder %s20, 1
    %p164 = por %p162, %p163
    %p165 = scmp.ne.s32.totalorder %s156, %s157
    %p166 = scmp.eq.s32.totalorder %s20, 0
    %p167 = por %p165, %p166
    %p168 = scmp.ne.s32.totalorder %s156, %s157
    %p169 = scmp.eq.s32.totalorder %s21, 1
    %p170 = por %p168, %p169
    %p172 = scmp.ne.s32.totalorder %s157, %s171
    %p173 = scmp.eq.s32.totalorder %s21, 0
    %p174 = por %p172, %p173
    %s176 = sadd.s32 %s175, 1
    %p179 = scmp.eq.s32.totalorder %s15, 1
    %p180 = scmp.ne.s32.totalorder %s175, %s177
    %p181 = scmp.eq.s32.totalorder %s15, 0
    %p182 = por %p180, %p181
    %p183 = scmp.ne.s32.totalorder %s175, %s177
    %p184 = scmp.eq.s32.totalorder %s20, 1
    %p185 = por %p183, %p184
    %p186 = scmp.ne.s32.totalorder %s177, %s178
    %p187 = scmp.eq.s32.totalorder %s20, 0
    %p188 = por %p186, %p187
    %p189 = scmp.ne.s32.totalorder %s177, %s178
    %p190 = scmp.eq.s32.totalorder %s21, 1
    %p191 = por %p189, %p190
    %p193 = scmp.ne.s32.totalorder %s178, %s192
    %p194 = scmp.eq.s32.totalorder %s21, 0
    %p195 = por %p193, %p194
    %s197 = sadd.s32 %s196, 1
    %p200 = scmp.eq.s32.totalorder %s15, 1
    %p201 = scmp.ne.s32.totalorder %s196, %s198
    %p202 = scmp.eq.s32.totalorder %s15, 0
    %p203 = por %p201, %p202
    %p204 = scmp.ne.s32.totalorder %s196, %s198
    %p205 = scmp.eq.s32.totalorder %s20, 1
    %p206 = por %p204, %p205
    %p207 = scmp.ne.s32.totalorder %s198, %s199
    %p208 = scmp.eq.s32.totalorder %s20, 0
    %p209 = por %p207, %p208
    %p210 = scmp.ne.s32.totalorder %s198, %s199
    %p211 = scmp.eq.s32.totalorder %s21, 1
    %p212 = por %p210, %p211
    %p214 = scmp.ne.s32.totalorder %s199, %s213
    %p215 = scmp.eq.s32.totalorder %s21, 0
    %p216 = por %p214, %p215
    %s217 = ssub.s32 %s15, %s22
    %p218 = scmp.eq.s32.totalorder %s217, 0
    %s220 = sadd.s32 %s219, 1
    %s221 = scalar_select %p218, %s219, %s220
    %p224 = pneg %p218
    %p225 = scmp.eq.s32.totalorder %s15, 1
    %p226 = por %p224, %p225
    %p227 = scmp.ne.s32.totalorder %s219, %s222
    %p228 = scmp.eq.s32.totalorder %s15, 0
    %p229 = por %p227, %p228
    %p230 = scmp.ne.s32.totalorder %s219, %s222
    %p231 = scmp.eq.s32.totalorder %s20, 1
    %p232 = por %p230, %p231
    %p233 = scmp.ne.s32.totalorder %s222, %s223
    %p234 = scmp.eq.s32.totalorder %s20, 0
    %p235 = por %p233, %p234
    %p236 = scmp.ne.s32.totalorder %s222, %s223
    %p237 = scmp.eq.s32.totalorder %s21, 1
    %p238 = por %p236, %p237
    %p240 = scmp.ne.s32.totalorder %s223, %s239
    %p241 = scmp.eq.s32.totalorder %s21, 0
    %p242 = por %p240, %p241
    %p243 = scmp.le.s32.totalorder 1, %s15
    %p244 = scmp.lt.s32.totalorder %s15, 3
    %p245 = pnand %p243, %p244
    %p246 = pneg %p245
    // Predicated region
    $region9: #{ms_hgnn_forward.9} parent=5 // pred_check
      _
    $region10: #{ms_hgnn_forward.9} parent=5 // pred_check_branch
      %248 = sbr.rel (%p245) target = $region12
    $region11: #{ms_hgnn_forward.9} parent=5 // pred_region
      %s249 = ssub.s32 %s15, 1
      // Predicated region
      $region13: #{ms_hgnn_forward.9} parent=11 // pred_check
        %p250 = pneg %p62
      $region14: #{ms_hgnn_forward.9} parent=11 // pred_check_branch
        %252 = sbr.rel (%p250) target = $region16
      $region15: #{ms_hgnn_forward.9} parent=11 // pred_region
        _
      $region16: #{ms_hgnn_forward.9} parent=11 // pred_fallthru
        _
      // Predicated region
      $region17: #{ms_hgnn_forward.9} parent=11 // pred_check
        %p253 = pneg %p83
      $region18: #{ms_hgnn_forward.9} parent=11 // pred_check_branch
        %255 = sbr.rel (%p253) target = $region20
      $region19: #{ms_hgnn_forward.9} parent=11 // pred_region
        _
      $region20: #{ms_hgnn_forward.9} parent=11 // pred_fallthru
        _
      // Predicated region
      $region21: #{ms_hgnn_forward.9} parent=11 // pred_check
        %p256 = pneg %p104
      $region22: #{ms_hgnn_forward.9} parent=11 // pred_check_branch
        %258 = sbr.rel (%p256) target = $region24
      $region23: #{ms_hgnn_forward.9} parent=11 // pred_region
        _
      $region24: #{ms_hgnn_forward.9} parent=11 // pred_fallthru
        _
      // Predicated region
      $region25: #{ms_hgnn_forward.9} parent=11 // pred_check
        %p259 = pneg %p125
      $region26: #{ms_hgnn_forward.9} parent=11 // pred_check_branch
        %261 = sbr.rel (%p259) target = $region28
      $region27: #{ms_hgnn_forward.9} parent=11 // pred_region
        _
      $region28: #{ms_hgnn_forward.9} parent=11 // pred_fallthru
        _
      // Predicated region
      $region29: #{ms_hgnn_forward.9} parent=11 // pred_check
        %p262 = pneg %p146
      $region30: #{ms_hgnn_forward.9} parent=11 // pred_check_branch
        %264 = sbr.rel (%p262) target = $region32
      $region31: #{ms_hgnn_forward.9} parent=11 // pred_region
        _
      $region32: #{ms_hgnn_forward.9} parent=11 // pred_fallthru
        _
      // Predicated region
      $region33: #{ms_hgnn_forward.9} parent=11 // pred_check
        %p265 = pneg %p167
      $region34: #{ms_hgnn_forward.9} parent=11 // pred_check_branch
        %267 = sbr.rel (%p265) target = $region36
      $region35: #{ms_hgnn_forward.9} parent=11 // pred_region
        _
      $region36: #{ms_hgnn_forward.9} parent=11 // pred_fallthru
        _
      // Predicated region
      $region37: #{ms_hgnn_forward.9} parent=11 // pred_check
        %p268 = pneg %p188
      $region38: #{ms_hgnn_forward.9} parent=11 // pred_check_branch
        %270 = sbr.rel (%p268) target = $region40
      $region39: #{ms_hgnn_forward.9} parent=11 // pred_region
        _
      $region40: #{ms_hgnn_forward.9} parent=11 // pred_fallthru
        _
      // Predicated region
      $region41: #{ms_hgnn_forward.9} parent=11 // pred_check
        %p271 = pneg %p209
      $region42: #{ms_hgnn_forward.9} parent=11 // pred_check_branch
        %273 = sbr.rel (%p271) target = $region44
      $region43: #{ms_hgnn_forward.9} parent=11 // pred_region
        _
      $region44: #{ms_hgnn_forward.9} parent=11 // pred_fallthru
        _
    $region12: #{ms_hgnn_forward.9} parent=5 // pred_fallthru
      _
    %p274 = scmp.lt.s32.totalorder %s15, 2
    // Predicated region
    $region45: #{ms_hgnn_forward.9} parent=5 // pred_check
      %p275 = pneg %p274
    $region46: #{ms_hgnn_forward.9} parent=5 // pred_check_branch
      %277 = sbr.rel (%p275) target = $region48
    $region47: #{ms_hgnn_forward.9} parent=5 // pred_region
      // Predicated region
      $region49: #{ms_hgnn_forward.9} parent=47 // pred_check
        %p278 = pneg %p35
      $region50: #{ms_hgnn_forward.9} parent=47 // pred_check_branch
        %280 = sbr.rel (%p278) target = $region52
      $region51: #{ms_hgnn_forward.9} parent=47 // pred_region
        %s281 = smul.u32 2, %s15
        %p282 = scmp.lt.s32.totalorder %s281, 3
        %s283 = scalar_select %p282, %s281, 3
        %s284 = smul.addr %s283, 4
        %s285 = scalar_lea.vmem %s0, %s284
        %s286 = smul.u32 2, %s15
      $region52: #{ms_hgnn_forward.9} parent=47 // pred_fallthru
        _
    $region48: #{ms_hgnn_forward.9} parent=5 // pred_fallthru
      _
    %p287 = scmp.le.s32.totalorder 1, %s15
    %p288 = scmp.lt.s32.totalorder %s15, 3
    %p289 = pnand %p287, %p288
    %p290 = pneg %p289
    // Predicated region
    $region53: #{ms_hgnn_forward.9} parent=5 // pred_check
      _
    $region54: #{ms_hgnn_forward.9} parent=5 // pred_check_branch
      %292 = sbr.rel (%p289) target = $region56
    $region55: #{ms_hgnn_forward.9} parent=5 // pred_region
      %s293 = ssub.s32 %s15, 1
      %s294 = smul.u32 2, %s20
      %p295 = scmp.lt.s32.totalorder %s294, 3
      %s296 = scalar_select %p295, %s294, 3
      %s297 = smul.addr %s296, 4
      %s298 = scalar_lea.vmem %s0, %s297
      %p299 = pneg %p41
      %p300 = pneg %p38
      %p301 = pneg %p62
      %p302 = pneg %p59
      %p303 = pneg %p83
      %p304 = pneg %p80
      %p305 = pneg %p104
      %p306 = pneg %p101
      %p307 = pneg %p125
      %p308 = pneg %p122
      %p309 = pneg %p146
      %p310 = pneg %p143
      %p311 = pneg %p167
      %p312 = pneg %p164
      %p313 = pneg %p188
      %p314 = pneg %p185
      %p315 = pneg %p209
      %p316 = pneg %p206
      %p317 = pneg %p235
      %p318 = pneg %p232
      %s319 = smul.u32 2, %s20
      %p320 = scmp.lt.s32.totalorder %s319, 3
      %s321 = scalar_select %p320, %s319, 3
      %s322 = smul.addr %s321, 8
      %s323 = scalar_lea.vmem %s9, %s322
      %s324 = smul.u32 2, %s20
      %p325 = scmp.lt.s32.totalorder %s324, 3
      %s326 = scalar_select %p325, %s324, 3
      %s327 = smul.addr %s326, 4
      %s328 = scalar_lea.vmem %s0, %s327
      %s329 = smul.u32 2, %s20
      %s330 = smul.u32 2, %s20
      %p331 = scmp.lt.s32.totalorder %s330, 3
      %s332 = scalar_select %p331, %s330, 3
      %s333 = smul.addr %s332, 8
      %s334 = scalar_lea.vmem %s9, %s333
      %s335 = smul.u32 2, %s20
      %v337 = vld [vmem:[%s328] sm:$0xf]
      %v338 = vld [vmem:[%s328 + $0x4] sm:$0xf]
      %v339 = vld [vmem:[%s1] sm:$0xf]
      %v340 = vld [vmem:[%s1 + $0x4] sm:$0xf]
      %v341 = vld [vmem:[%s1 + $0x8] sm:$0xf]
      %v342 = vld [vmem:[%s1 + $0xc] sm:$0xf]
      %v343 = vld [vmem:[%s1 + $0x10] sm:$0xf]
      %v344 = vld [vmem:[%s1 + $0x14] sm:$0xf]
      %v345 = vld [vmem:[%s1 + $0x18] sm:$0xf]
      %v346 = vld [vmem:[%s1 + $0x1c] sm:$0xf]
      %v347 = vld [vmem:[%s2] sm:$0x1]
      %v349 = vlaneseq
      %v350 = vshrl.u32 %v349, 7
      %v351 = vsub.s32 0, %v350
      %v352 = vrot.slane %v347, %v351
      %v356 = vunpack.c.l.b16 %v337
      %v357 = vunpack.c.l.b16 %v338
      %v358 = vpack.c.b16 %v357, %v356
      %v367 = vunpack.c.l.b16 %v339
      %v368 = vunpack.c.l.b16 %v340
      %v369 = vunpack.c.l.b16 %v341
      %v370 = vunpack.c.l.b16 %v342
      %v371 = vunpack.c.l.b16 %v343
      %v372 = vunpack.c.l.b16 %v344
      %v373 = vunpack.c.l.b16 %v345
      %v374 = vunpack.c.l.b16 %v346
      %v375 = vpack.c.b16 %v368, %v367
      %v376 = vpack.c.b16 %v370, %v369
      %v377 = vpack.c.b16 %v372, %v371
      %v378 = vpack.c.b16 %v374, %v373
      %vm383 = vcmask 523264
      %v385 = vsel %vm383, %v358, 0
      %387 = vmatprep.subr.bf16.mxu0 0
      %388 = vmatpush1.bf16.msra.mxu0 %v375
      %389 = vmatprep.subr.bf16.mxu0 0
      %390 = vmatpush1.bf16.msra.mxu0 %v376
      %391 = vmatprep.subr.bf16.mxu0 0
      %392 = vmatpush1.bf16.msra.mxu0 %v377
      %393 = vmatprep.subr.bf16.mxu0 0
      %394 = vmatpush1.bf16.msra.mxu0 %v378
      %395 = vmatprep.subr.bf16.mxu0 0
      %396 = vmatpush1.bf16.msra.mxu0 0
      %397 = vmatprep.subr.bf16.mxu0 0
      %398 = vmatpush1.bf16.msra.mxu0 0
      %399 = vmatprep.subr.bf16.mxu0 0
      %400 = vmatpush1.bf16.msra.mxu0 0
      %401 = vmatprep.subr.bf16.mxu0 0
      %402 = vmatpush1.bf16.msra.mxu0 0
      %403 = vmatprep.subr.bf16.mxu0 0
      %404 = vmatpush1.bf16.msra.mxu0 0
      %405 = vmatprep.subr.bf16.mxu0 0
      %406 = vmatpush1.bf16.msra.mxu0 0
      %407 = vmatprep.subr.bf16.mxu0 0
      %408 = vmatpush1.bf16.msra.mxu0 0
      %409 = vmatprep.subr.bf16.mxu0 0
      %410 = vmatpush1.bf16.msra.mxu0 0
      %411 = vmatprep.subr.bf16.mxu0 0
      %412 = vmatpush1.bf16.msra.mxu0 0
      %413 = vmatprep.subr.bf16.mxu0 0
      %414 = vmatpush1.bf16.msra.mxu0 0
      %415 = vmatprep.subr.bf16.mxu0 0
      %416 = vmatpush1.bf16.msra.mxu0 0
      %417 = vmatprep.subr.bf16.mxu0 0
      %418 = vmatpush1.bf16.msra.mxu0 0
      %419 = vmatprep.mubr.bf16.mxu0 0
      %420 = vmatmul.mubr.bf16.gmra.mrb[0].mxu0 %v385
      %v421 = vpop.f32.mrb[0].mxu0
      %v422 = vadd.f32 %v352, %v421
      %v423 = vpop.f32.mrb[0].mxu0
      %v424 = vpop.f32.mrb[0].mxu0
      %v425 = vadd.f32 %v352, %v424
      %v426 = vpop.f32.mrb[0].mxu0
      %427 = vdwg.mxu0
      %v428 = vmax.f32 %v422, 0.0
      %v429 = vmax.f32 %v425, 0.0
      %v430 = vpack.c.bf16 %v429, %v428
      %v431 = vld [vmem:[%s3] sm:$0xf]
      %v432 = vld [vmem:[%s3 + $0x4] sm:$0xf]
      %v433 = vld [vmem:[%s3 + $0x8] sm:$0xf]
      %v434 = vld [vmem:[%s3 + $0xc] sm:$0xf]
      %v435 = vld [vmem:[%s3 + $0x10] sm:$0xf]
      %v436 = vld [vmem:[%s3 + $0x14] sm:$0xf]
      %v437 = vld [vmem:[%s3 + $0x18] sm:$0xf]
      %v438 = vld [vmem:[%s3 + $0x1c] sm:$0xf]
      %v439 = vld [vmem:[%s3 + $0x20] sm:$0xf]
      %v440 = vld [vmem:[%s3 + $0x24] sm:$0xf]
      %v441 = vld [vmem:[%s3 + $0x28] sm:$0xf]
      %v442 = vld [vmem:[%s3 + $0x2c] sm:$0xf]
      %v443 = vld [vmem:[%s3 + $0x30] sm:$0xf]
      %v444 = vld [vmem:[%s3 + $0x34] sm:$0xf]
      %v445 = vld [vmem:[%s3 + $0x38] sm:$0xf]
      %v446 = vld [vmem:[%s3 + $0x3c] sm:$0xf]
      %v447 = vld [vmem:[%s4] sm:$0x1]
      %v449 = vlaneseq
      %v450 = vshrl.u32 %v449, 7
      %v451 = vsub.s32 0, %v450
      %v452 = vrot.slane %v447, %v451
      %v470 = vunpack.c.l.b16 %v431
      %v471 = vunpack.c.l.b16 %v432
      %v472 = vunpack.c.l.b16 %v433
      %v473 = vunpack.c.l.b16 %v434
      %v474 = vunpack.c.l.b16 %v435
      %v475 = vunpack.c.l.b16 %v436
      %v476 = vunpack.c.l.b16 %v437
      %v477 = vunpack.c.l.b16 %v438
      %v478 = vunpack.c.l.b16 %v439
      %v479 = vunpack.c.l.b16 %v440
      %v480 = vunpack.c.l.b16 %v441
      %v481 = vunpack.c.l.b16 %v442
      %v482 = vunpack.c.l.b16 %v443
      %v483 = vunpack.c.l.b16 %v444
      %v484 = vunpack.c.l.b16 %v445
      %v485 = vunpack.c.l.b16 %v446
      %v486 = vpack.c.b16 %v471, %v470
      %v487 = vpack.c.b16 %v473, %v472
      %v488 = vpack.c.b16 %v475, %v474
      %v489 = vpack.c.b16 %v477, %v476
      %v490 = vpack.c.b16 %v479, %v478
      %v491 = vpack.c.b16 %v481, %v480
      %v492 = vpack.c.b16 %v483, %v482
      %v493 = vpack.c.b16 %v485, %v484
      %502 = vmatprep.subr.bf16.mxu0 0
      %503 = vmatpush1.bf16.msra.mxu0 %v486
      %504 = vmatprep.subr.bf16.mxu0 0
      %505 = vmatpush1.bf16.msra.mxu0 %v487
      %506 = vmatprep.subr.bf16.mxu0 0
      %507 = vmatpush1.bf16.msra.mxu0 %v488
      %508 = vmatprep.subr.bf16.mxu0 0
      %509 = vmatpush1.bf16.msra.mxu0 %v489
      %510 = vmatprep.subr.bf16.mxu0 0
      %511 = vmatpush1.bf16.msra.mxu0 %v490
      %512 = vmatprep.subr.bf16.mxu0 0
      %513 = vmatpush1.bf16.msra.mxu0 %v491
      %514 = vmatprep.subr.bf16.mxu0 0
      %515 = vmatpush1.bf16.msra.mxu0 %v492
      %516 = vmatprep.subr.bf16.mxu0 0
      %517 = vmatpush1.bf16.msra.mxu0 %v493
      %518 = vmatprep.subr.bf16.mxu0 0
      %519 = vmatpush1.bf16.msra.mxu0 0
      %520 = vmatprep.subr.bf16.mxu0 0
      %521 = vmatpush1.bf16.msra.mxu0 0
      %522 = vmatprep.subr.bf16.mxu0 0
      %523 = vmatpush1.bf16.msra.mxu0 0
      %524 = vmatprep.subr.bf16.mxu0 0
      %525 = vmatpush1.bf16.msra.mxu0 0
      %526 = vmatprep.subr.bf16.mxu0 0
      %527 = vmatpush1.bf16.msra.mxu0 0
      %528 = vmatprep.subr.bf16.mxu0 0
      %529 = vmatpush1.bf16.msra.mxu0 0
      %530 = vmatprep.subr.bf16.mxu0 0
      %531 = vmatpush1.bf16.msra.mxu0 0
      %532 = vmatprep.subr.bf16.mxu0 0
      %533 = vmatpush1.bf16.msra.mxu0 0
      %534 = vmatprep.mubr.bf16.mxu0 0
      %535 = vmatmul.mubr.bf16.gmra.mrb[0].mxu0 %v430
      %v536 = vpop.f32.mrb[0].mxu0
      %v537 = vadd.f32 %v452, %v536
      %v538 = vpop.f32.mrb[0].mxu0
      %v539 = vpop.f32.mrb[0].mxu0
      %v540 = vadd.f32 %v452, %v539
      %v541 = vpop.f32.mrb[0].mxu0
      %542 = vdwg.mxu0
      %v543 = vpack.c.bf16 %v540, %v537
      %v544 = vld [vmem:[%s5] sm:$0xff]
      %v545 = vld [vmem:[%s5 + $0x8] sm:$0xff]
      %v546 = vld [vmem:[%s5 + $0x10] sm:$0xff]
      %v547 = vld [vmem:[%s5 + $0x18] sm:$0xff]
      %v548 = vld [vmem:[%s5 + $0x20] sm:$0xff]
      %v549 = vld [vmem:[%s5 + $0x28] sm:$0xff]
      %v550 = vld [vmem:[%s5 + $0x30] sm:$0xff]
      %v551 = vld [vmem:[%s5 + $0x38] sm:$0xff]
      %v552 = vld [vmem:[%s6] sm:$0x3]
      %v554 = vlaneseq
      %v555 = vshrl.u32 %v554, 7
      %v556 = vsub.s32 0, %v555
      %v557 = vrot.slane %v552, %v556
      %v558 = vlaneseq
      %v559 = vshrl.u32 %v558, 7
      %v560 = vsub.s32 1, %v559
      %v561 = vrot.slane %v552, %v560
      %v572 = vunpack.c.l.b16 %v544
      %v573 = vunpack.c.h.b16 %v544
      %v574 = vunpack.c.l.b16 %v545
      %v575 = vunpack.c.h.b16 %v545
      %v576 = vunpack.c.l.b16 %v546
      %v577 = vunpack.c.h.b16 %v546
      %v578 = vunpack.c.l.b16 %v547
      %v579 = vunpack.c.h.b16 %v547
      %v580 = vunpack.c.l.b16 %v548
      %v581 = vunpack.c.h.b16 %v548
      %v582 = vunpack.c.l.b16 %v549
      %v583 = vunpack.c.h.b16 %v549
      %v584 = vunpack.c.l.b16 %v550
      %v585 = vunpack.c.h.b16 %v550
      %v586 = vunpack.c.l.b16 %v551
      %v587 = vunpack.c.h.b16 %v551
      %v588 = vpack.c.b16 %v574, %v572
      %v589 = vpack.c.b16 %v575, %v573
      %v590 = vpack.c.b16 %v578, %v576
      %v591 = vpack.c.b16 %v579, %v577
      %v592 = vpack.c.b16 %v582, %v580
      %v593 = vpack.c.b16 %v583, %v581
      %v594 = vpack.c.b16 %v586, %v584
      %v595 = vpack.c.b16 %v587, %v585
      %v605 = vsel %vm383, %v543, 0
      %607 = vmatprep.subr.bf16.mxu0 %v589
      %608 = vmatpush1.bf16.msra.mxu0 %v588
      %609 = vmatprep.subr.bf16.mxu0 %v591
      %610 = vmatpush1.bf16.msra.mxu0 %v590
      %611 = vmatprep.subr.bf16.mxu0 %v593
      %612 = vmatpush1.bf16.msra.mxu0 %v592
      %613 = vmatprep.subr.bf16.mxu0 %v595
      %614 = vmatpush1.bf16.msra.mxu0 %v594
      %615 = vmatprep.subr.bf16.mxu0 0
      %616 = vmatpush1.bf16.msra.mxu0 0
      %617 = vmatprep.subr.bf16.mxu0 0
      %618 = vmatpush1.bf16.msra.mxu0 0
      %619 = vmatprep.subr.bf16.mxu0 0
      %620 = vmatpush1.bf16.msra.mxu0 0
      %621 = vmatprep.subr.bf16.mxu0 0
      %622 = vmatpush1.bf16.msra.mxu0 0
      %623 = vmatprep.subr.bf16.mxu0 0
      %624 = vmatpush1.bf16.msra.mxu0 0
      %625 = vmatprep.subr.bf16.mxu0 0
      %626 = vmatpush1.bf16.msra.mxu0 0
      %627 = vmatprep.subr.bf16.mxu0 0
      %628 = vmatpush1.bf16.msra.mxu0 0
      %629 = vmatprep.subr.bf16.mxu0 0
      %630 = vmatpush1.bf16.msra.mxu0 0
      %631 = vmatprep.subr.bf16.mxu0 0
      %632 = vmatpush1.bf16.msra.mxu0 0
      %633 = vmatprep.subr.bf16.mxu0 0
      %634 = vmatpush1.bf16.msra.mxu0 0
      %635 = vmatprep.subr.bf16.mxu0 0
      %636 = vmatpush1.bf16.msra.mxu0 0
      %637 = vmatprep.subr.bf16.mxu0 0
      %638 = vmatpush1.bf16.msra.mxu0 0
      %639 = vmatprep.mubr.bf16.mxu0 0
      %640 = vmatmul.mubr.bf16.gmra.mrb[0].mxu0 %v605
      %v641 = vpop.f32.mrb[0].mxu0
      %v642 = vadd.f32 %v557, %v641
      %v643 = vpop.f32.mrb[0].mxu0
      %v644 = vadd.f32 %v561, %v643
      %v645 = vpop.f32.mrb[0].mxu0
      %v646 = vadd.f32 %v557, %v645
      %v647 = vpop.f32.mrb[0].mxu0
      %v648 = vadd.f32 %v561, %v647
      %649 = vdwg.mxu0
      %v650 = vmax.f32 %v642, 0.0
      %v651 = vmax.f32 %v644, 0.0
      %v652 = vmax.f32 %v646, 0.0
      %v653 = vmax.f32 %v648, 0.0
      %v654 = vpack.c.bf16 %v652, %v650
      %v655 = vpack.c.bf16 %v653, %v651
      %v656 = vld [vmem:[%s7] sm:$0xf]
      %v657 = vld [vmem:[%s7 + $0x4] sm:$0xf]
      %v658 = vld [vmem:[%s7 + $0x8] sm:$0xf]
      %v659 = vld [vmem:[%s7 + $0xc] sm:$0xf]
      %v660 = vld [vmem:[%s7 + $0x10] sm:$0xf]
      %v661 = vld [vmem:[%s7 + $0x14] sm:$0xf]
      %v662 = vld [vmem:[%s7 + $0x18] sm:$0xf]
      %v663 = vld [vmem:[%s7 + $0x1c] sm:$0xf]
      %v664 = vld [vmem:[%s7 + $0x20] sm:$0xf]
      %v665 = vld [vmem:[%s7 + $0x24] sm:$0xf]
      %v666 = vld [vmem:[%s7 + $0x28] sm:$0xf]
      %v667 = vld [vmem:[%s7 + $0x2c] sm:$0xf]
      %v668 = vld [vmem:[%s7 + $0x30] sm:$0xf]
      %v669 = vld [vmem:[%s7 + $0x34] sm:$0xf]
      %v670 = vld [vmem:[%s7 + $0x38] sm:$0xf]
      %v671 = vld [vmem:[%s7 + $0x3c] sm:$0xf]
      %v672 = vld [vmem:[%s7 + $0x40] sm:$0xf]
      %v673 = vld [vmem:[%s7 + $0x44] sm:$0xf]
      %v674 = vld [vmem:[%s7 + $0x48] sm:$0xf]
      %v675 = vld [vmem:[%s7 + $0x4c] sm:$0xf]
      %v676 = vld [vmem:[%s7 + $0x50] sm:$0xf]
      %v677 = vld [vmem:[%s7 + $0x54] sm:$0xf]
      %v678 = vld [vmem:[%s7 + $0x58] sm:$0xf]
      %v679 = vld [vmem:[%s7 + $0x5c] sm:$0xf]
      %v680 = vld [vmem:[%s7 + $0x60] sm:$0xf]
      %v681 = vld [vmem:[%s7 + $0x64] sm:$0xf]
      %v682 = vld [vmem:[%s7 + $0x68] sm:$0xf]
      %v683 = vld [vmem:[%s7 + $0x6c] sm:$0xf]
      %v684 = vld [vmem:[%s7 + $0x70] sm:$0xf]
      %v685 = vld [vmem:[%s7 + $0x74] sm:$0xf]
      %v686 = vld [vmem:[%s7 + $0x78] sm:$0xf]
      %v687 = vld [vmem:[%s7 + $0x7c] sm:$0xf]
      %v688 = vld [vmem:[%s8] sm:$0x1]
      %v690 = vlaneseq
      %v691 = vshrl.u32 %v690, 7
      %v692 = vsub.s32 0, %v691
      %v693 = vrot.slane %v688, %v692
      %v727 = vunpack.c.l.b16 %v656
      %v728 = vunpack.c.l.b16 %v657
      %v729 = vunpack.c.l.b16 %v658
      %v730 = vunpack.c.l.b16 %v659
      %v731 = vunpack.c.l.b16 %v660
      %v732 = vunpack.c.l.b16 %v661
      %v733 = vunpack.c.l.b16 %v662
      %v734 = vunpack.c.l.b16 %v663
      %v735 = vunpack.c.l.b16 %v664
      %v736 = vunpack.c.l.b16 %v665
      %v737 = vunpack.c.l.b16 %v666
      %v738 = vunpack.c.l.b16 %v667
      %v739 = vunpack.c.l.b16 %v668
      %v740 = vunpack.c.l.b16 %v669
      %v741 = vunpack.c.l.b16 %v670
      %v742 = vunpack.c.l.b16 %v671
      %v743 = vunpack.c.l.b16 %v672
      %v744 = vunpack.c.l.b16 %v673
      %v745 = vunpack.c.l.b16 %v674
      %v746 = vunpack.c.l.b16 %v675
      %v747 = vunpack.c.l.b16 %v676
      %v748 = vunpack.c.l.b16 %v677
      %v749 = vunpack.c.l.b16 %v678
      %v750 = vunpack.c.l.b16 %v679
      %v751 = vunpack.c.l.b16 %v680
      %v752 = vunpack.c.l.b16 %v681
      %v753 = vunpack.c.l.b16 %v682
      %v754 = vunpack.c.l.b16 %v683
      %v755 = vunpack.c.l.b16 %v684
      %v756 = vunpack.c.l.b16 %v685
      %v757 = vunpack.c.l.b16 %v686
      %v758 = vunpack.c.l.b16 %v687
      %v759 = vpack.c.b16 %v728, %v727
      %v760 = vpack.c.b16 %v730, %v729
      %v761 = vpack.c.b16 %v732, %v731
      %v762 = vpack.c.b16 %v734, %v733
      %v763 = vpack.c.b16 %v736, %v735
      %v764 = vpack.c.b16 %v738, %v737
      %v765 = vpack.c.b16 %v740, %v739
      %v766 = vpack.c.b16 %v742, %v741
      %v767 = vpack.c.b16 %v744, %v743
      %v768 = vpack.c.b16 %v746, %v745
      %v769 = vpack.c.b16 %v748, %v747
      %v770 = vpack.c.b16 %v750, %v749
      %v771 = vpack.c.b16 %v752, %v751
      %v772 = vpack.c.b16 %v754, %v753
      %v773 = vpack.c.b16 %v756, %v755
      %v774 = vpack.c.b16 %v758, %v757
      %791 = vmatprep.subr.bf16.mxu0 0
      %792 = vmatpush1.bf16.msra.mxu0 %v759
      %793 = vmatprep.subr.bf16.mxu0 0
      %794 = vmatpush1.bf16.msra.mxu0 %v760
      %795 = vmatprep.subr.bf16.mxu0 0
      %796 = vmatpush1.bf16.msra.mxu0 %v761
      %797 = vmatprep.subr.bf16.mxu0 0
      %798 = vmatpush1.bf16.msra.mxu0 %v762
      %799 = vmatprep.subr.bf16.mxu0 0
      %800 = vmatpush1.bf16.msra.mxu0 %v763
      %801 = vmatprep.subr.bf16.mxu0 0
      %802 = vmatpush1.bf16.msra.mxu0 %v764
      %803 = vmatprep.subr.bf16.mxu0 0
      %804 = vmatpush1.bf16.msra.mxu0 %v765
      %805 = vmatprep.subr.bf16.mxu0 0
      %806 = vmatpush1.bf16.msra.mxu0 %v766
      %807 = vmatprep.subr.bf16.mxu0 0
      %808 = vmatpush1.bf16.msra.mxu0 %v767
      %809 = vmatprep.subr.bf16.mxu0 0
      %810 = vmatpush1.bf16.msra.mxu0 %v768
      %811 = vmatprep.subr.bf16.mxu0 0
      %812 = vmatpush1.bf16.msra.mxu0 %v769
      %813 = vmatprep.subr.bf16.mxu0 0
      %814 = vmatpush1.bf16.msra.mxu0 %v770
      %815 = vmatprep.subr.bf16.mxu0 0
      %816 = vmatpush1.bf16.msra.mxu0 %v771
      %817 = vmatprep.subr.bf16.mxu0 0
      %818 = vmatpush1.bf16.msra.mxu0 %v772
      %819 = vmatprep.subr.bf16.mxu0 0
      %820 = vmatpush1.bf16.msra.mxu0 %v773
      %821 = vmatprep.subr.bf16.mxu0 0
      %822 = vmatpush1.bf16.msra.mxu0 %v774
      %823 = vmatprep.mubr.bf16.mxu0 %v655
      %824 = vmatmul.mubr.bf16.gmra.mrb[0].mxu0 %v654
      %v825 = vpop.f32.mrb[0].mxu0
      %v826 = vadd.f32 %v693, %v825
      %v827 = vpop.f32.mrb[0].mxu0
      %v828 = vpop.f32.mrb[0].mxu0
      %v829 = vadd.f32 %v693, %v828
      %v830 = vpop.f32.mrb[0].mxu0
      %831 = vdwg.mxu0
      %832 = vst [vmem:[%s334] sm:$0xff] %v826
      %833 = vst [vmem:[%s334 + $0x8] sm:$0xff] %v829
      %s834 = smul.u32 2, %s20
      %p835 = scmp.lt.s32.totalorder %s834, 3
      %s836 = scalar_select %p835, %s834, 3
      %s837 = smul.addr %s836, 8
      %s838 = scalar_lea.vmem %s9, %s837
      // Predicated region
      $region57: #{ms_hgnn_forward.9} parent=55 // pred_check
        %p839 = pneg %p232
      $region58: #{ms_hgnn_forward.9} parent=55 // pred_check_branch
        %841 = sbr.rel (%p839) target = $region60
      $region59: #{ms_hgnn_forward.9} parent=55 // pred_region
        %s842 = smul.u32 2, %s20
      $region60: #{ms_hgnn_forward.9} parent=55 // pred_fallthru
        _
    $region56: #{ms_hgnn_forward.9} parent=5 // pred_fallthru
      _
    %p843 = scmp.le.s32.totalorder 2, %s15
    // Predicated region
    $region61: #{ms_hgnn_forward.9} parent=5 // pred_check
      %p844 = pneg %p843
    $region62: #{ms_hgnn_forward.9} parent=5 // pred_check_branch
      %846 = sbr.rel (%p844) target = $region64
    $region63: #{ms_hgnn_forward.9} parent=5 // pred_region
      %s847 = ssub.s32 %s15, 2
      // Predicated region
      $region65: #{ms_hgnn_forward.9} parent=63 // pred_check
        %p848 = pneg %p238
      $region66: #{ms_hgnn_forward.9} parent=63 // pred_check_branch
        %850 = sbr.rel (%p848) target = $region68
      $region67: #{ms_hgnn_forward.9} parent=63 // pred_region
        %s851 = smul.u32 2, %s21
        %p852 = scmp.lt.s32.totalorder %s851, 3
        %s853 = scalar_select %p852, %s851, 3
        %s854 = smul.addr %s853, 8
        %s855 = scalar_lea.vmem %s9, %s854
      $region68: #{ms_hgnn_forward.9} parent=63 // pred_fallthru
        _
    $region64: #{ms_hgnn_forward.9} parent=5 // pred_fallthru
      _
  $region6: #{ms_hgnn_forward.9} parent=0 // loop_footer
    %s19 = sadd.s32 1, %s15
  $region7: #{ms_hgnn_forward.9} parent=0 // loop_footer_branch
    %14 = sbr.rel target = $region3
  $region8: #{ms_hgnn_forward.9} parent=0 // loop_exit
    _

// kernel: ms_hgnn_forward.13
$region0: #{ms_hgnn_forward.13}
  #allocation0 [shape = 'u32[]', space=smem, size = 0x4, offset = 0x4, fixed_abs, tag = 'smem constant byte address 0x4 - core index']
  #allocation1 [shape = 'u32[144,128]{1,0:T(1,128)}', space=vmem, size = 0x12000, scoped, tag = 'internal scratch']
  %s0 = inlined_call_operand.vmem [shape: f32[2,16,5], index: 0, kind: input, shape index: {}]
  %s1 = inlined_call_operand.vmem [shape: bf16[16,4], index: 1, kind: input, shape index: {}]
  %s2 = inlined_call_operand.vmem [shape: bf16[4,16], index: 2, kind: input, shape index: {}]
  %s3 = inlined_call_operand.vmem [shape: bf16[2,4,64], index: 3, kind: input, shape index: {}]
  %s4 = inlined_call_operand.vmem [shape: bf16[5,64,128], index: 4, kind: input, shape index: {}]
  %s5 = inlined_call_operand.vmem [shape: f32[5,1,128], index: 5, kind: input, shape index: {}]
  %s6 = inlined_call_operand.vmem [shape: bf16[5,128,64], index: 6, kind: input, shape index: {}]
  %s7 = inlined_call_operand.vmem [shape: f32[5,1,64], index: 7, kind: input, shape index: {}]
  %s8 = inlined_call_operand.vmem [shape: bf16[128,128], index: 8, kind: input, shape index: {}]
  %s9 = inlined_call_operand.vmem [shape: f32[1,128], index: 9, kind: input, shape index: {}]
  %s10 = inlined_call_operand.vmem [shape: bf16[128,128], index: 10, kind: input, shape index: {}]
  %s11 = inlined_call_operand.vmem [shape: f32[1,128], index: 11, kind: input, shape index: {}]
  %s12 = inlined_call_operand.hbm [shape: f32[2,4,128], index: 12, kind: output, shape index: {}]
  %s13 = sld [smem:[#allocation0]]
  $region81: #{ms_hgnn_forward.13} parent=0
    _
  %s15 = ssub.s32 1, %s13
  %s16 = scalar_select 0, %s15, %s13
  $region1: #{ms_hgnn_forward.13} parent=0
    #allocation2 [shape = 'u8[4096]{0}', space=vmem, size = 0x1000, scoped, tag = 'output window, operand 0']
    #allocation3 [shape = 's32[2]{0}', space=sflag, size = 0x8, scoped, tag = 'scoped memory for ms_hgnn_forward.13']
    %17 = vsyncpa [#allocation3], 0
    %s18 = scalar_lea.sflag [#allocation3], 1
    %19 = vsyncpa %s18, 0
    loop: start=0, step=1, limit=4
    $region2: #{ms_hgnn_forward.13} parent=1 // loop_pre_header
      _
    $region3: #{ms_hgnn_forward.13} parent=1 // loop_header
      %s21 = sphi 0, %s25
      %p22 = scmp.ge.s32.totalorder %s21, 4
      %s31 = sphi 0, %s33
      %s34 = sphi 0, %s31
      %s35 = sphi 0, %s34
      %s51 = sphi 0, %s35
      %s55 = sphi 0, %s55
      %s57 = sphi 0, %s55
      %s58 = sphi 0, %s57
      %s72 = sphi 0, %s58
      %s76 = sphi 0, %s76
      %s78 = sphi 0, %s76
      %s79 = sphi 0, %s78
      %s93 = sphi 0, %s79
      %s99 = sphi 0, %s101
      %s102 = sphi 0, %s99
      %s103 = sphi 0, %s102
      %s119 = sphi 0, %s103
      %s123 = sphi 0, %s123
      %s125 = sphi 0, %s123
      %s126 = sphi 0, %s125
      %s140 = sphi 0, %s126
      %s144 = sphi 0, %s144
      %s146 = sphi 0, %s144
      %s147 = sphi 0, %s146
      %s161 = sphi 0, %s147
      %s165 = sphi 0, %s165
      %s167 = sphi 0, %s165
      %s168 = sphi 0, %s167
      %s182 = sphi 0, %s168
      %s186 = sphi 0, %s186
      %s188 = sphi 0, %s186
      %s189 = sphi 0, %s188
      %s203 = sphi 0, %s189
      %s207 = sphi 0, %s207
      %s209 = sphi 0, %s207
      %s210 = sphi 0, %s209
      %s224 = sphi 0, %s210
      %s228 = sphi 0, %s228
      %s230 = sphi 0, %s228
      %s231 = sphi 0, %s230
      %s245 = sphi 0, %s231
      %s249 = sphi 0, %s249
      %s251 = sphi 0, %s249
      %s252 = sphi 0, %s251
      %s266 = sphi 0, %s252
      %s270 = sphi 0, %s270
      %s272 = sphi 0, %s270
      %s273 = sphi 0, %s272
      %s287 = sphi 0, %s273
      %s293 = sphi 0, %s295
      %s296 = sphi 0, %s293
      %s297 = sphi 0, %s296
      %s313 = sphi 0, %s297
    $region4: #{ms_hgnn_forward.13} parent=1 // loop_header_branch
      %24 = sbr.rel (%p22) target = $region8
    $region5: #{ms_hgnn_forward.13} parent=1 // loop_body
      %s26 = ssub.s32 %s21, 1
      %s27 = ssub.s32 %s21, 2
      %s28 = sadd.s32 %s21, 1
      %s29 = ssub.s32 %s21, %s28
      %p30 = scmp.eq.s32.totalorder %s29, 0
      %s32 = sadd.s32 %s31, 1
      %s33 = scalar_select %p30, %s31, %s32
      %p36 = pneg %p30
      %p37 = scmp.eq.s32.totalorder %s21, 1
      %p38 = por %p36, %p37
      %p39 = scmp.ne.s32.totalorder %s31, %s34
      %p40 = scmp.eq.s32.totalorder %s21, 0
      %p41 = por %p39, %p40
      %p42 = scmp.ne.s32.totalorder %s31, %s34
      %p43 = scmp.eq.s32.totalorder %s26, 1
      %p44 = por %p42, %p43
      %p45 = scmp.ne.s32.totalorder %s34, %s35
      %p46 = scmp.eq.s32.totalorder %s26, 0
      %p47 = por %p45, %p46
      %p48 = scmp.ne.s32.totalorder %s34, %s35
      %p49 = scmp.eq.s32.totalorder %s27, 1
      %p50 = por %p48, %p49
      %p52 = scmp.ne.s32.totalorder %s35, %s51
      %p53 = scmp.eq.s32.totalorder %s27, 0
      %p54 = por %p52, %p53
      %s56 = sadd.s32 %s55, 1
      %p59 = scmp.eq.s32.totalorder %s21, 1
      %p60 = scmp.ne.s32.totalorder %s55, %s57
      %p61 = scmp.eq.s32.totalorder %s21, 0
      %p62 = por %p60, %p61
      %p63 = scmp.ne.s32.totalorder %s55, %s57
      %p64 = scmp.eq.s32.totalorder %s26, 1
      %p65 = por %p63, %p64
      %p66 = scmp.ne.s32.totalorder %s57, %s58
      %p67 = scmp.eq.s32.totalorder %s26, 0
      %p68 = por %p66, %p67
      %p69 = scmp.ne.s32.totalorder %s57, %s58
      %p70 = scmp.eq.s32.totalorder %s27, 1
      %p71 = por %p69, %p70
      %p73 = scmp.ne.s32.totalorder %s58, %s72
      %p74 = scmp.eq.s32.totalorder %s27, 0
      %p75 = por %p73, %p74
      %s77 = sadd.s32 %s76, 1
      %p80 = scmp.eq.s32.totalorder %s21, 1
      %p81 = scmp.ne.s32.totalorder %s76, %s78
      %p82 = scmp.eq.s32.totalorder %s21, 0
      %p83 = por %p81, %p82
      %p84 = scmp.ne.s32.totalorder %s76, %s78
      %p85 = scmp.eq.s32.totalorder %s26, 1
      %p86 = por %p84, %p85
      %p87 = scmp.ne.s32.totalorder %s78, %s79
      %p88 = scmp.eq.s32.totalorder %s26, 0
      %p89 = por %p87, %p88
      %p90 = scmp.ne.s32.totalorder %s78, %s79
      %p91 = scmp.eq.s32.totalorder %s27, 1
      %p92 = por %p90, %p91
      %p94 = scmp.ne.s32.totalorder %s79, %s93
      %p95 = scmp.eq.s32.totalorder %s27, 0
      %p96 = por %p94, %p95
      %s97 = ssub.s32 %s21, %s28
      %p98 = scmp.eq.s32.totalorder %s97, 0
      %s100 = sadd.s32 %s99, 1
      %s101 = scalar_select %p98, %s99, %s100
      %p104 = pneg %p98
      %p105 = scmp.eq.s32.totalorder %s21, 1
      %p106 = por %p104, %p105
      %p107 = scmp.ne.s32.totalorder %s99, %s102
      %p108 = scmp.eq.s32.totalorder %s21, 0
      %p109 = por %p107, %p108
      %p110 = scmp.ne.s32.totalorder %s99, %s102
      %p111 = scmp.eq.s32.totalorder %s26, 1
      %p112 = por %p110, %p111
      %p113 = scmp.ne.s32.totalorder %s102, %s103
      %p114 = scmp.eq.s32.totalorder %s26, 0
      %p115 = por %p113, %p114
      %p116 = scmp.ne.s32.totalorder %s102, %s103
      %p117 = scmp.eq.s32.totalorder %s27, 1
      %p118 = por %p116, %p117
      %p120 = scmp.ne.s32.totalorder %s103, %s119
      %p121 = scmp.eq.s32.totalorder %s27, 0
      %p122 = por %p120, %p121
      %s124 = sadd.s32 %s123, 1
      %p127 = scmp.eq.s32.totalorder %s21, 1
      %p128 = scmp.ne.s32.totalorder %s123, %s125
      %p129 = scmp.eq.s32.totalorder %s21, 0
      %p130 = por %p128, %p129
      %p131 = scmp.ne.s32.totalorder %s123, %s125
      %p132 = scmp.eq.s32.totalorder %s26, 1
      %p133 = por %p131, %p132
      %p134 = scmp.ne.s32.totalorder %s125, %s126
      %p135 = scmp.eq.s32.totalorder %s26, 0
      %p136 = por %p134, %p135
      %p137 = scmp.ne.s32.totalorder %s125, %s126
      %p138 = scmp.eq.s32.totalorder %s27, 1
      %p139 = por %p137, %p138
      %p141 = scmp.ne.s32.totalorder %s126, %s140
      %p142 = scmp.eq.s32.totalorder %s27, 0
      %p143 = por %p141, %p142
      %s145 = sadd.s32 %s144, 1
      %p148 = scmp.eq.s32.totalorder %s21, 1
      %p149 = scmp.ne.s32.totalorder %s144, %s146
      %p150 = scmp.eq.s32.totalorder %s21, 0
      %p151 = por %p149, %p150
      %p152 = scmp.ne.s32.totalorder %s144, %s146
      %p153 = scmp.eq.s32.totalorder %s26, 1
      %p154 = por %p152, %p153
      %p155 = scmp.ne.s32.totalorder %s146, %s147
      %p156 = scmp.eq.s32.totalorder %s26, 0
      %p157 = por %p155, %p156
      %p158 = scmp.ne.s32.totalorder %s146, %s147
      %p159 = scmp.eq.s32.totalorder %s27, 1
      %p160 = por %p158, %p159
      %p162 = scmp.ne.s32.totalorder %s147, %s161
      %p163 = scmp.eq.s32.totalorder %s27, 0
      %p164 = por %p162, %p163
      %s166 = sadd.s32 %s165, 1
      %p169 = scmp.eq.s32.totalorder %s21, 1
      %p170 = scmp.ne.s32.totalorder %s165, %s167
      %p171 = scmp.eq.s32.totalorder %s21, 0
      %p172 = por %p170, %p171
      %p173 = scmp.ne.s32.totalorder %s165, %s167
      %p174 = scmp.eq.s32.totalorder %s26, 1
      %p175 = por %p173, %p174
      %p176 = scmp.ne.s32.totalorder %s167, %s168
      %p177 = scmp.eq.s32.totalorder %s26, 0
      %p178 = por %p176, %p177
      %p179 = scmp.ne.s32.totalorder %s167, %s168
      %p180 = scmp.eq.s32.totalorder %s27, 1
      %p181 = por %p179, %p180
      %p183 = scmp.ne.s32.totalorder %s168, %s182
      %p184 = scmp.eq.s32.totalorder %s27, 0
      %p185 = por %p183, %p184
      %s187 = sadd.s32 %s186, 1
      %p190 = scmp.eq.s32.totalorder %s21, 1
      %p191 = scmp.ne.s32.totalorder %s186, %s188
      %p192 = scmp.eq.s32.totalorder %s21, 0
      %p193 = por %p191, %p192
      %p194 = scmp.ne.s32.totalorder %s186, %s188
      %p195 = scmp.eq.s32.totalorder %s26, 1
      %p196 = por %p194, %p195
      %p197 = scmp.ne.s32.totalorder %s188, %s189
      %p198 = scmp.eq.s32.totalorder %s26, 0
      %p199 = por %p197, %p198
      %p200 = scmp.ne.s32.totalorder %s188, %s189
      %p201 = scmp.eq.s32.totalorder %s27, 1
      %p202 = por %p200, %p201
      %p204 = scmp.ne.s32.totalorder %s189, %s203
      %p205 = scmp.eq.s32.totalorder %s27, 0
      %p206 = por %p204, %p205
      %s208 = sadd.s32 %s207, 1
      %p211 = scmp.eq.s32.totalorder %s21, 1
      %p212 = scmp.ne.s32.totalorder %s207, %s209
      %p213 = scmp.eq.s32.totalorder %s21, 0
      %p214 = por %p212, %p213
      %p215 = scmp.ne.s32.totalorder %s207, %s209
      %p216 = scmp.eq.s32.totalorder %s26, 1
      %p217 = por %p215, %p216
      %p218 = scmp.ne.s32.totalorder %s209, %s210
      %p219 = scmp.eq.s32.totalorder %s26, 0
      %p220 = por %p218, %p219
      %p221 = scmp.ne.s32.totalorder %s209, %s210
      %p222 = scmp.eq.s32.totalorder %s27, 1
      %p223 = por %p221, %p222
      %p225 = scmp.ne.s32.totalorder %s210, %s224
      %p226 = scmp.eq.s32.totalorder %s27, 0
      %p227 = por %p225, %p226
      %s229 = sadd.s32 %s228, 1
      %p232 = scmp.eq.s32.totalorder %s21, 1
      %p233 = scmp.ne.s32.totalorder %s228, %s230
      %p234 = scmp.eq.s32.totalorder %s21, 0
      %p235 = por %p233, %p234
      %p236 = scmp.ne.s32.totalorder %s228, %s230
      %p237 = scmp.eq.s32.totalorder %s26, 1
      %p238 = por %p236, %p237
      %p239 = scmp.ne.s32.totalorder %s230, %s231
      %p240 = scmp.eq.s32.totalorder %s26, 0
      %p241 = por %p239, %p240
      %p242 = scmp.ne.s32.totalorder %s230, %s231
      %p243 = scmp.eq.s32.totalorder %s27, 1
      %p244 = por %p242, %p243
      %p246 = scmp.ne.s32.totalorder %s231, %s245
      %p247 = scmp.eq.s32.totalorder %s27, 0
      %p248 = por %p246, %p247
      %s250 = sadd.s32 %s249, 1
      %p253 = scmp.eq.s32.totalorder %s21, 1
      %p254 = scmp.ne.s32.totalorder %s249, %s251
      %p255 = scmp.eq.s32.totalorder %s21, 0
      %p256 = por %p254, %p255
      %p257 = scmp.ne.s32.totalorder %s249, %s251
      %p258 = scmp.eq.s32.totalorder %s26, 1
      %p259 = por %p257, %p258
      %p260 = scmp.ne.s32.totalorder %s251, %s252
      %p261 = scmp.eq.s32.totalorder %s26, 0
      %p262 = por %p260, %p261
      %p263 = scmp.ne.s32.totalorder %s251, %s252
      %p264 = scmp.eq.s32.totalorder %s27, 1
      %p265 = por %p263, %p264
      %p267 = scmp.ne.s32.totalorder %s252, %s266
      %p268 = scmp.eq.s32.totalorder %s27, 0
      %p269 = por %p267, %p268
      %s271 = sadd.s32 %s270, 1
      %p274 = scmp.eq.s32.totalorder %s21, 1
      %p275 = scmp.ne.s32.totalorder %s270, %s272
      %p276 = scmp.eq.s32.totalorder %s21, 0
      %p277 = por %p275, %p276
      %p278 = scmp.ne.s32.totalorder %s270, %s272
      %p279 = scmp.eq.s32.totalorder %s26, 1
      %p280 = por %p278, %p279
      %p281 = scmp.ne.s32.totalorder %s272, %s273
      %p282 = scmp.eq.s32.totalorder %s26, 0
      %p283 = por %p281, %p282
      %p284 = scmp.ne.s32.totalorder %s272, %s273
      %p285 = scmp.eq.s32.totalorder %s27, 1
      %p286 = por %p284, %p285
      %p288 = scmp.ne.s32.totalorder %s273, %s287
      %p289 = scmp.eq.s32.totalorder %s27, 0
      %p290 = por %p288, %p289
      %s291 = ssub.s32 %s21, %s28
      %p292 = scmp.eq.s32.totalorder %s291, 0
      %s294 = sadd.s32 %s293, 1
      %s295 = scalar_select %p292, %s293, %s294
      %p298 = pneg %p292
      %p299 = scmp.eq.s32.totalorder %s21, 1
      %p300 = por %p298, %p299
      %p301 = scmp.ne.s32.totalorder %s293, %s296
      %p302 = scmp.eq.s32.totalorder %s21, 0
      %p303 = por %p301, %p302
      %p304 = scmp.ne.s32.totalorder %s293, %s296
      %p305 = scmp.eq.s32.totalorder %s26, 1
      %p306 = por %p304, %p305
      %p307 = scmp.ne.s32.totalorder %s296, %s297
      %p308 = scmp.eq.s32.totalorder %s26, 0
      %p309 = por %p307, %p308
      %p310 = scmp.ne.s32.totalorder %s296, %s297
      %p311 = scmp.eq.s32.totalorder %s27, 1
      %p312 = por %p310, %p311
      %p314 = scmp.ne.s32.totalorder %s297, %s313
      %p315 = scmp.eq.s32.totalorder %s27, 0
      %p316 = por %p314, %p315
      %p317 = scmp.le.s32.totalorder 1, %s21
      %p318 = scmp.lt.s32.totalorder %s21, 3
      %p319 = pnand %p317, %p318
      %p320 = pneg %p319
      // Predicated region
      $region9: #{ms_hgnn_forward.13} parent=5 // pred_check
        _
      $region10: #{ms_hgnn_forward.13} parent=5 // pred_check_branch
        %322 = sbr.rel (%p319) target = $region12
      $region11: #{ms_hgnn_forward.13} parent=5 // pred_region
        %s323 = ssub.s32 %s21, 1
        // Predicated region
        $region13: #{ms_hgnn_forward.13} parent=11 // pred_check
          %p324 = pneg %p68
        $region14: #{ms_hgnn_forward.13} parent=11 // pred_check_branch
          %326 = sbr.rel (%p324) target = $region16
        $region15: #{ms_hgnn_forward.13} parent=11 // pred_region
          _
        $region16: #{ms_hgnn_forward.13} parent=11 // pred_fallthru
          _
        // Predicated region
        $region17: #{ms_hgnn_forward.13} parent=11 // pred_check
          %p327 = pneg %p89
        $region18: #{ms_hgnn_forward.13} parent=11 // pred_check_branch
          %329 = sbr.rel (%p327) target = $region20
        $region19: #{ms_hgnn_forward.13} parent=11 // pred_region
          _
        $region20: #{ms_hgnn_forward.13} parent=11 // pred_fallthru
          _
        // Predicated region
        $region21: #{ms_hgnn_forward.13} parent=11 // pred_check
          %p330 = pneg %p136
        $region22: #{ms_hgnn_forward.13} parent=11 // pred_check_branch
          %332 = sbr.rel (%p330) target = $region24
        $region23: #{ms_hgnn_forward.13} parent=11 // pred_region
          _
        $region24: #{ms_hgnn_forward.13} parent=11 // pred_fallthru
          _
        // Predicated region
        $region25: #{ms_hgnn_forward.13} parent=11 // pred_check
          %p333 = pneg %p157
        $region26: #{ms_hgnn_forward.13} parent=11 // pred_check_branch
          %335 = sbr.rel (%p333) target = $region28
        $region27: #{ms_hgnn_forward.13} parent=11 // pred_region
          _
        $region28: #{ms_hgnn_forward.13} parent=11 // pred_fallthru
          _
        // Predicated region
        $region29: #{ms_hgnn_forward.13} parent=11 // pred_check
          %p336 = pneg %p178
        $region30: #{ms_hgnn_forward.13} parent=11 // pred_check_branch
          %338 = sbr.rel (%p336) target = $region32
        $region31: #{ms_hgnn_forward.13} parent=11 // pred_region
          _
        $region32: #{ms_hgnn_forward.13} parent=11 // pred_fallthru
          _
        // Predicated region
        $region33: #{ms_hgnn_forward.13} parent=11 // pred_check
          %p339 = pneg %p199
        $region34: #{ms_hgnn_forward.13} parent=11 // pred_check_branch
          %341 = sbr.rel (%p339) target = $region36
        $region35: #{ms_hgnn_forward.13} parent=11 // pred_region
          _
        $region36: #{ms_hgnn_forward.13} parent=11 // pred_fallthru
          _
        // Predicated region
        $region37: #{ms_hgnn_forward.13} parent=11 // pred_check
          %p342 = pneg %p220
        $region38: #{ms_hgnn_forward.13} parent=11 // pred_check_branch
          %344 = sbr.rel (%p342) target = $region40
        $region39: #{ms_hgnn_forward.13} parent=11 // pred_region
          _
        $region40: #{ms_hgnn_forward.13} parent=11 // pred_fallthru
          _
        // Predicated region
        $region41: #{ms_hgnn_forward.13} parent=11 // pred_check
          %p345 = pneg %p241
        $region42: #{ms_hgnn_forward.13} parent=11 // pred_check_branch
          %347 = sbr.rel (%p345) target = $region44
        $region43: #{ms_hgnn_forward.13} parent=11 // pred_region
          _
        $region44: #{ms_hgnn_forward.13} parent=11 // pred_fallthru
          _
        // Predicated region
        $region45: #{ms_hgnn_forward.13} parent=11 // pred_check
          %p348 = pneg %p262
        $region46: #{ms_hgnn_forward.13} parent=11 // pred_check_branch
          %350 = sbr.rel (%p348) target = $region48
        $region47: #{ms_hgnn_forward.13} parent=11 // pred_region
          _
        $region48: #{ms_hgnn_forward.13} parent=11 // pred_fallthru
          _
        // Predicated region
        $region49: #{ms_hgnn_forward.13} parent=11 // pred_check
          %p351 = pneg %p283
        $region50: #{ms_hgnn_forward.13} parent=11 // pred_check_branch
          %353 = sbr.rel (%p351) target = $region52
        $region51: #{ms_hgnn_forward.13} parent=11 // pred_region
          _
        $region52: #{ms_hgnn_forward.13} parent=11 // pred_fallthru
          _
      $region12: #{ms_hgnn_forward.13} parent=5 // pred_fallthru
        _
      %p354 = scmp.lt.s32.totalorder %s21, 2
      // Predicated region
      $region53: #{ms_hgnn_forward.13} parent=5 // pred_check
        %p355 = pneg %p354
      $region54: #{ms_hgnn_forward.13} parent=5 // pred_check_branch
        %357 = sbr.rel (%p355) target = $region56
      $region55: #{ms_hgnn_forward.13} parent=5 // pred_region
        // Predicated region
        $region57: #{ms_hgnn_forward.13} parent=55 // pred_check
          %p358 = pneg %p41
        $region58: #{ms_hgnn_forward.13} parent=55 // pred_check_branch
          %360 = sbr.rel (%p358) target = $region60
        $region59: #{ms_hgnn_forward.13} parent=55 // pred_region
          %p361 = scmp.lt.s32.totalorder %s21, 1
          %s362 = scalar_select %p361, %s21, 1
          %s363 = smul.addr %s362, 2
          %s364 = smul.addr %s363, 8
          %s365 = scalar_lea.vmem %s0, %s364
        $region60: #{ms_hgnn_forward.13} parent=55 // pred_fallthru
          _
        // Predicated region
        $region61: #{ms_hgnn_forward.13} parent=55 // pred_check
          %p366 = pneg %p109
        $region62: #{ms_hgnn_forward.13} parent=55 // pred_check_branch
          %368 = sbr.rel (%p366) target = $region64
        $region63: #{ms_hgnn_forward.13} parent=55 // pred_region
          %p369 = scmp.lt.s32.totalorder %s21, 1
          %s370 = scalar_select %p369, %s21, 1
          %s371 = smul.addr %s370, 2
          %s372 = scalar_lea.vmem %s3, %s371
        $region64: #{ms_hgnn_forward.13} parent=55 // pred_fallthru
          _
      $region56: #{ms_hgnn_forward.13} parent=5 // pred_fallthru
        _
      %p373 = scmp.le.s32.totalorder 1, %s21
      %p374 = scmp.lt.s32.totalorder %s21, 3
      %p375 = pnand %p373, %p374
      %p376 = pneg %p375
      // Predicated region
      $region65: #{ms_hgnn_forward.13} parent=5 // pred_check
        _
      $region66: #{ms_hgnn_forward.13} parent=5 // pred_check_branch
        %378 = sbr.rel (%p375) target = $region68
      $region67: #{ms_hgnn_forward.13} parent=5 // pred_region
        %s379 = ssub.s32 %s21, 1
        %p380 = scmp.lt.s32.totalorder %s26, 1
        %s381 = scalar_select %p380, %s26, 1
        %s382 = smul.addr %s381, 2
        %s383 = smul.addr %s382, 8
        %s384 = scalar_lea.vmem %s0, %s383
        %p385 = pneg %p47
        %p386 = pneg %p44
        %p387 = pneg %p68
        %p388 = pneg %p65
        %p389 = pneg %p89
        %p390 = pneg %p86
        %p391 = scmp.lt.s32.totalorder %s26, 1
        %s392 = scalar_select %p391, %s26, 1
        %s393 = smul.addr %s392, 2
        %s394 = scalar_lea.vmem %s3, %s393
        %p395 = pneg %p115
        %p396 = pneg %p112
        %p397 = pneg %p136
        %p398 = pneg %p133
        %p399 = pneg %p157
        %p400 = pneg %p154
        %p401 = pneg %p178
        %p402 = pneg %p175
        %p403 = pneg %p199
        %p404 = pneg %p196
        %p405 = pneg %p220
        %p406 = pneg %p217
        %p407 = pneg %p241
        %p408 = pneg %p238
        %p409 = pneg %p262
        %p410 = pneg %p259
        %p411 = pneg %p283
        %p412 = pneg %p280
        %p413 = pneg %p309
        %p414 = pneg %p306
        %s415 = sand.u32 %s296, 1
        %s416 = scalar_lea.sflag [#allocation3], %s415
        %s417 = sand.u32 %s296, 1
        %s418 = smul.addr %s417, 4
        %s419 = scalar_lea.vmem [#allocation2], %s418
        %p420 = scmp.lt.s32.totalorder %s26, 1
        %s421 = scalar_select %p420, %s26, 1
        %s422 = smul.addr %s421, 2
        %s423 = smul.addr %s422, 8
        %s424 = scalar_lea.vmem %s0, %s423
        %p425 = scmp.lt.s32.totalorder %s26, 1
        %s426 = scalar_select %p425, %s26, 1
        %s427 = smul.addr %s426, 2
        %s428 = scalar_lea.vmem %s3, %s427
        %v430 = vld [vmem:[%s1] sm:$0xf]
        %v431 = vld [vmem:[%s1 + $0x4] sm:$0xf]
        %v432 = vld [vmem:[%s2] sm:$0x3]
        %v433 = vld [vmem:[%s428] sm:$0x3]
        %v436 = vunpack.c.l.b16 %v430
        %v437 = vunpack.c.l.b16 %v431
        %v438 = vpack.c.b16 %v437, %v436
        %vm439 = vcmask 31744
        %v441 = vsel %vm439, %v438, 0
        %vm443 = vcmask 1041408
        %v445 = vsel %vm443, %v433, 0
        %447 = vmatprep.subr.bf16.mxu0 0
        %448 = vmatpush1.bf16.msra.mxu0 %v445
        %449 = vmatprep.subr.bf16.mxu0 0
        %450 = vmatpush1.bf16.msra.mxu0 0
        %451 = vmatprep.subr.bf16.mxu0 0
        %452 = vmatpush1.bf16.msra.mxu0 0
        %453 = vmatprep.subr.bf16.mxu0 0
        %454 = vmatpush1.bf16.msra.mxu0 0
        %455 = vmatprep.subr.bf16.mxu0 0
        %456 = vmatpush1.bf16.msra.mxu0 0
        %457 = vmatprep.subr.bf16.mxu0 0
        %458 = vmatpush1.bf16.msra.mxu0 0
        %459 = vmatprep.subr.bf16.mxu0 0
        %460 = vmatpush1.bf16.msra.mxu0 0
        %461 = vmatprep.subr.bf16.mxu0 0
        %462 = vmatpush1.bf16.msra.mxu0 0
        %463 = vmatprep.subr.bf16.mxu0 0
        %464 = vmatpush1.bf16.msra.mxu0 0
        %465 = vmatprep.subr.bf16.mxu0 0
        %466 = vmatpush1.bf16.msra.mxu0 0
        %467 = vmatprep.subr.bf16.mxu0 0
        %468 = vmatpush1.bf16.msra.mxu0 0
        %469 = vmatprep.subr.bf16.mxu0 0
        %470 = vmatpush1.bf16.msra.mxu0 0
        %471 = vmatprep.subr.bf16.mxu0 0
        %472 = vmatpush1.bf16.msra.mxu0 0
        %473 = vmatprep.subr.bf16.mxu0 0
        %474 = vmatpush1.bf16.msra.mxu0 0
        %475 = vmatprep.subr.bf16.mxu0 0
        %476 = vmatpush1.bf16.msra.mxu0 0
        %477 = vmatprep.subr.bf16.mxu0 0
        %478 = vmatpush1.bf16.msra.mxu0 0
        %479 = vmatprep.mubr.bf16.mxu0 0
        %480 = vmatmul.mubr.bf16.gmra.mrb[0].mxu0 %v441
        %v481 = vpop.f32.mrb[0].mxu0
        %v482 = vadd.f32 0.0, %v481
        %v483 = vpop.f32.mrb[0].mxu0
        %v484 = vpop.f32.mrb[0].mxu0
        %v485 = vadd.f32 0.0, %v484
        %v486 = vpop.f32.mrb[0].mxu0
        %487 = vdwg.mxu0
        %v488 = vpack.c.bf16 %v485, %v482
        %v489 = vld [vmem:[%s424] sm:$0xff]
        %v490 = vld [vmem:[%s424 + $0x8] sm:$0xff]
        %v491 = vld [vmem:[%s4] sm:$0xf]
        %v492 = vld [vmem:[%s4 + $0x4] sm:$0xf]
        %v493 = vld [vmem:[%s4 + $0x8] sm:$0xf]
        %v494 = vld [vmem:[%s4 + $0xc] sm:$0xf]
        %v495 = vld [vmem:[%s4 + $0x10] sm:$0xf]
        %v496 = vld [vmem:[%s4 + $0x14] sm:$0xf]
        %v497 = vld [vmem:[%s4 + $0x18] sm:$0xf]
        %v498 = vld [vmem:[%s4 + $0x1c] sm:$0xf]
        %v499 = vld [vmem:[%s5] sm:$0x1]
        %v501 = vlaneseq
        %v502 = vshrl.u32 %v501, 7
        %v503 = vsub.s32 0, %v502
        %v504 = vrot.slane %v499, %v503
        %v514 = vunpack.c.l.b16 %v491
        %v515 = vunpack.c.l.b16 %v492
        %v516 = vunpack.c.l.b16 %v493
        %v517 = vunpack.c.l.b16 %v494
        %v518 = vunpack.c.l.b16 %v495
        %v519 = vunpack.c.l.b16 %v496
        %v520 = vunpack.c.l.b16 %v497
        %v521 = vunpack.c.l.b16 %v498
        %v522 = vpack.c.b16 %v515, %v514
        %v523 = vpack.c.b16 %v517, %v516
        %v524 = vpack.c.b16 %v519, %v518
        %v525 = vpack.c.b16 %v521, %v520
        %vm530 = vcmask 523264
        %v532 = vsel %vm530, %v488, 0
        %534 = vmatprep.subr.bf16.mxu0 0
        %535 = vmatpush1.bf16.msra.mxu0 %v522
        %536 = vmatprep.subr.bf16.mxu0 0
        %537 = vmatpush1.bf16.msra.mxu0 %v523
        %538 = vmatprep.subr.bf16.mxu0 0
        %539 = vmatpush1.bf16.msra.mxu0 %v524
        %540 = vmatprep.subr.bf16.mxu0 0
        %541 = vmatpush1.bf16.msra.mxu0 %v525
        %542 = vmatprep.subr.bf16.mxu0 0
        %543 = vmatpush1.bf16.msra.mxu0 0
        %544 = vmatprep.subr.bf16.mxu0 0
        %545 = vmatpush1.bf16.msra.mxu0 0
        %546 = vmatprep.subr.bf16.mxu0 0
        %547 = vmatpush1.bf16.msra.mxu0 0
        %548 = vmatprep.subr.bf16.mxu0 0
        %549 = vmatpush1.bf16.msra.mxu0 0
        %550 = vmatprep.subr.bf16.mxu0 0
        %551 = vmatpush1.bf16.msra.mxu0 0
        %552 = vmatprep.subr.bf16.mxu0 0
        %553 = vmatpush1.bf16.msra.mxu0 0
        %554 = vmatprep.subr.bf16.mxu0 0
        %555 = vmatpush1.bf16.msra.mxu0 0
        %556 = vmatprep.subr.bf16.mxu0 0
        %557 = vmatpush1.bf16.msra.mxu0 0
        %558 = vmatprep.subr.bf16.mxu0 0
        %559 = vmatpush1.bf16.msra.mxu0 0
        %560 = vmatprep.subr.bf16.mxu0 0
        %561 = vmatpush1.bf16.msra.mxu0 0
        %562 = vmatprep.subr.bf16.mxu0 0
        %563 = vmatpush1.bf16.msra.mxu0 0
        %564 = vmatprep.subr.bf16.mxu0 0
        %565 = vmatpush1.bf16.msra.mxu0 0
        %566 = vmatprep.mubr.bf16.mxu0 0
        %567 = vmatmul.mubr.bf16.gmra.mrb[0].mxu0 %v532
        %v568 = vpop.f32.mrb[0].mxu0
        %v569 = vadd.f32 %v504, %v568
        %v570 = vpop.f32.mrb[0].mxu0
        %v571 = vpop.f32.mrb[0].mxu0
        %v572 = vadd.f32 %v504, %v571
        %v573 = vpop.f32.mrb[0].mxu0
        %574 = vdwg.mxu0
        %v575 = vmax.f32 %v569, 0.0
        %v576 = vmax.f32 %v572, 0.0
        %v577 = vpack.c.bf16 %v576, %v575
        %v578 = vld [vmem:[%s6] sm:$0xf]
        %v579 = vld [vmem:[%s6 + $0x4] sm:$0xf]
        %v580 = vld [vmem:[%s6 + $0x8] sm:$0xf]
        %v581 = vld [vmem:[%s6 + $0xc] sm:$0xf]
        %v582 = vld [vmem:[%s6 + $0x10] sm:$0xf]
        %v583 = vld [vmem:[%s6 + $0x14] sm:$0xf]
        %v584 = vld [vmem:[%s6 + $0x18] sm:$0xf]
        %v585 = vld [vmem:[%s6 + $0x1c] sm:$0xf]
        %v586 = vld [vmem:[%s6 + $0x20] sm:$0xf]
        %v587 = vld [vmem:[%s6 + $0x24] sm:$0xf]
        %v588 = vld [vmem:[%s6 + $0x28] sm:$0xf]
        %v589 = vld [vmem:[%s6 + $0x2c] sm:$0xf]
        %v590 = vld [vmem:[%s6 + $0x30] sm:$0xf]
        %v591 = vld [vmem:[%s6 + $0x34] sm:$0xf]
        %v592 = vld [vmem:[%s6 + $0x38] sm:$0xf]
        %v593 = vld [vmem:[%s6 + $0x3c] sm:$0xf]
        %v594 = vld [vmem:[%s7] sm:$0x1]
        %v596 = vlaneseq
        %v597 = vshrl.u32 %v596, 7
        %v598 = vsub.s32 0, %v597
        %v599 = vrot.slane %v594, %v598
        %v617 = vunpack.c.l.b16 %v578
        %v618 = vunpack.c.l.b16 %v579
        %v619 = vunpack.c.l.b16 %v580
        %v620 = vunpack.c.l.b16 %v581
        %v621 = vunpack.c.l.b16 %v582
        %v622 = vunpack.c.l.b16 %v583
        %v623 = vunpack.c.l.b16 %v584
        %v624 = vunpack.c.l.b16 %v585
        %v625 = vunpack.c.l.b16 %v586
        %v626 = vunpack.c.l.b16 %v587
        %v627 = vunpack.c.l.b16 %v588
        %v628 = vunpack.c.l.b16 %v589
        %v629 = vunpack.c.l.b16 %v590
        %v630 = vunpack.c.l.b16 %v591
        %v631 = vunpack.c.l.b16 %v592
        %v632 = vunpack.c.l.b16 %v593
        %v633 = vpack.c.b16 %v618, %v617
        %v634 = vpack.c.b16 %v620, %v619
        %v635 = vpack.c.b16 %v622, %v621
        %v636 = vpack.c.b16 %v624, %v623
        %v637 = vpack.c.b16 %v626, %v625
        %v638 = vpack.c.b16 %v628, %v627
        %v639 = vpack.c.b16 %v630, %v629
        %v640 = vpack.c.b16 %v632, %v631
        %649 = vmatprep.subr.bf16.mxu0 0
        %650 = vmatpush1.bf16.msra.mxu0 %v633
        %651 = vmatprep.subr.bf16.mxu0 0
        %652 = vmatpush1.bf16.msra.mxu0 %v634
        %653 = vmatprep.subr.bf16.mxu0 0
        %654 = vmatpush1.bf16.msra.mxu0 %v635
        %655 = vmatprep.subr.bf16.mxu0 0
        %656 = vmatpush1.bf16.msra.mxu0 %v636
        %657 = vmatprep.subr.bf16.mxu0 0
        %658 = vmatpush1.bf16.msra.mxu0 %v637
        %659 = vmatprep.subr.bf16.mxu0 0
        %660 = vmatpush1.bf16.msra.mxu0 %v638
        %661 = vmatprep.subr.bf16.mxu0 0
        %662 = vmatpush1.bf16.msra.mxu0 %v639
        %663 = vmatprep.subr.bf16.mxu0 0
        %664 = vmatpush1.bf16.msra.mxu0 %v640
        %665 = vmatprep.subr.bf16.mxu0 0
        %666 = vmatpush1.bf16.msra.mxu0 0
        %667 = vmatprep.subr.bf16.mxu0 0
        %668 = vmatpush1.bf16.msra.mxu0 0
        %669 = vmatprep.subr.bf16.mxu0 0
        %670 = vmatpush1.bf16.msra.mxu0 0
        %671 = vmatprep.subr.bf16.mxu0 0
        %672 = vmatpush1.bf16.msra.mxu0 0
        %673 = vmatprep.subr.bf16.mxu0 0
        %674 = vmatpush1.bf16.msra.mxu0 0
        %675 = vmatprep.subr.bf16.mxu0 0
        %676 = vmatpush1.bf16.msra.mxu0 0
        %677 = vmatprep.subr.bf16.mxu0 0
        %678 = vmatpush1.bf16.msra.mxu0 0
        %679 = vmatprep.subr.bf16.mxu0 0
        %680 = vmatpush1.bf16.msra.mxu0 0
        %681 = vmatprep.mubr.bf16.mxu0 0
        %682 = vmatmul.mubr.bf16.gmra.mrb[0].mxu0 %v577
        %v683 = vpop.f32.mrb[0].mxu0
        %v684 = vadd.f32 %v599, %v683
        %v685 = vpop.f32.mrb[0].mxu0
        %v686 = vpop.f32.mrb[0].mxu0
        %v687 = vadd.f32 %v599, %v686
        %v688 = vpop.f32.mrb[0].mxu0
        %689 = vdwg.mxu0
        %691 = vset.pattern.permute.xlu0 0
        %692 = vperm.xlu0 %691, %v489
        %v693 = vpop.permute.xlu0 %692
        %696 = vset.pattern.permute.xlu0 0
        %697 = vperm.xlu0 %696, %v490
        %v698 = vpop.permute.xlu0 %697
        %v700 = vmul.f32 %v693, %v684
        %v701 = vmul.f32 %v698, %v687
        %v702 = vadd.f32 %v700, 0.0
        %v703 = vadd.f32 %v701, 0.0
        %s704 = scalar_lea.vmem %s4, 32
        %v705 = vld [vmem:[%s704] sm:$0xf]
        %v706 = vld [vmem:[%s704 + $0x4] sm:$0xf]
        %v707 = vld [vmem:[%s704 + $0x8] sm:$0xf]
        %v708 = vld [vmem:[%s704 + $0xc] sm:$0xf]
        %v709 = vld [vmem:[%s704 + $0x10] sm:$0xf]
        %v710 = vld [vmem:[%s704 + $0x14] sm:$0xf]
        %v711 = vld [vmem:[%s704 + $0x18] sm:$0xf]
        %v712 = vld [vmem:[%s704 + $0x1c] sm:$0xf]
        %s713 = scalar_lea.vmem %s5, 1
        %v714 = vld [vmem:[%s713] sm:$0x1]
        %v716 = vlaneseq
        %v717 = vshrl.u32 %v716, 7
        %v718 = vsub.s32 0, %v717
        %v719 = vrot.slane %v714, %v718
        %v729 = vunpack.c.l.b16 %v705
        %v730 = vunpack.c.l.b16 %v706
        %v731 = vunpack.c.l.b16 %v707
        %v732 = vunpack.c.l.b16 %v708
        %v733 = vunpack.c.l.b16 %v709
        %v734 = vunpack.c.l.b16 %v710
        %v735 = vunpack.c.l.b16 %v711
        %v736 = vunpack.c.l.b16 %v712
        %v737 = vpack.c.b16 %v730, %v729
        %v738 = vpack.c.b16 %v732, %v731
        %v739 = vpack.c.b16 %v734, %v733
        %v740 = vpack.c.b16 %v736, %v735
        %745 = vmatprep.subr.bf16.mxu0 0
        %746 = vmatpush1.bf16.msra.mxu0 %v737
        %747 = vmatprep.subr.bf16.mxu0 0
        %748 = vmatpush1.bf16.msra.mxu0 %v738
        %749 = vmatprep.subr.bf16.mxu0 0
        %750 = vmatpush1.bf16.msra.mxu0 %v739
        %751 = vmatprep.subr.bf16.mxu0 0
        %752 = vmatpush1.bf16.msra.mxu0 %v740
        %753 = vmatprep.subr.bf16.mxu0 0
        %754 = vmatpush1.bf16.msra.mxu0 0
        %755 = vmatprep.subr.bf16.mxu0 0
        %756 = vmatpush1.bf16.msra.mxu0 0
        %757 = vmatprep.subr.bf16.mxu0 0
        %758 = vmatpush1.bf16.msra.mxu0 0
        %759 = vmatprep.subr.bf16.mxu0 0
        %760 = vmatpush1.bf16.msra.mxu0 0
        %761 = vmatprep.subr.bf16.mxu0 0
        %762 = vmatpush1.bf16.msra.mxu0 0
        %763 = vmatprep.subr.bf16.mxu0 0
        %764 = vmatpush1.bf16.msra.mxu0 0
        %765 = vmatprep.subr.bf16.mxu0 0
        %766 = vmatpush1.bf16.msra.mxu0 0
        %767 = vmatprep.subr.bf16.mxu0 0
        %768 = vmatpush1.bf16.msra.mxu0 0
        %769 = vmatprep.subr.bf16.mxu0 0
        %770 = vmatpush1.bf16.msra.mxu0 0
        %771 = vmatprep.subr.bf16.mxu0 0
        %772 = vmatpush1.bf16.msra.mxu0 0
        %773 = vmatprep.subr.bf16.mxu0 0
        %774 = vmatpush1.bf16.msra.mxu0 0
        %775 = vmatprep.subr.bf16.mxu0 0
        %776 = vmatpush1.bf16.msra.mxu0 0
        %777 = vmatprep.mubr.bf16.mxu0 0
        %778 = vmatmul.mubr.bf16.gmra.mrb[0].mxu0 %v532
        %v779 = vpop.f32.mrb[0].mxu0
        %v780 = vadd.f32 %v719, %v779
        %v781 = vpop.f32.mrb[0].mxu0
        %v782 = vpop.f32.mrb[0].mxu0
        %v783 = vadd.f32 %v719, %v782
        %v784 = vpop.f32.mrb[0].mxu0
        %785 = vdwg.mxu0
        %v786 = vmax.f32 %v780, 0.0
        %v787 = vmax.f32 %v783, 0.0
        %v788 = vpack.c.bf16 %v787, %v786
        %s789 = scalar_lea.vmem %s6, 64
        %v790 = vld [vmem:[%s789] sm:$0xf]
        %v791 = vld [vmem:[%s789 + $0x4] sm:$0xf]
        %v792 = vld [vmem:[%s789 + $0x8] sm:$0xf]
        %v793 = vld [vmem:[%s789 + $0xc] sm:$0xf]
        %v794 = vld [vmem:[%s789 + $0x10] sm:$0xf]
        %v795 = vld [vmem:[%s789 + $0x14] sm:$0xf]
        %v796 = vld [vmem:[%s789 + $0x18] sm:$0xf]
        %v797 = vld [vmem:[%s789 + $0x1c] sm:$0xf]
        %v798 = vld [vmem:[%s789 + $0x20] sm:$0xf]
        %v799 = vld [vmem:[%s789 + $0x24] sm:$0xf]
        %v800 = vld [vmem:[%s789 + $0x28] sm:$0xf]
        %v801 = vld [vmem:[%s789 + $0x2c] sm:$0xf]
        %v802 = vld [vmem:[%s789 + $0x30] sm:$0xf]
        %v803 = vld [vmem:[%s789 + $0x34] sm:$0xf]
        %v804 = vld [vmem:[%s789 + $0x38] sm:$0xf]
        %v805 = vld [vmem:[%s789 + $0x3c] sm:$0xf]
        %s806 = scalar_lea.vmem %s7, 1
        %v807 = vld [vmem:[%s806] sm:$0x1]
        %v809 = vlaneseq
        %v810 = vshrl.u32 %v809, 7
        %v811 = vsub.s32 0, %v810
        %v812 = vrot.slane %v807, %v811
        %v830 = vunpack.c.l.b16 %v790
        %v831 = vunpack.c.l.b16 %v791
        %v832 = vunpack.c.l.b16 %v792
        %v833 = vunpack.c.l.b16 %v793
        %v834 = vunpack.c.l.b16 %v794
        %v835 = vunpack.c.l.b16 %v795
        %v836 = vunpack.c.l.b16 %v796
        %v837 = vunpack.c.l.b16 %v797
        %v838 = vunpack.c.l.b16 %v798
        %v839 = vunpack.c.l.b16 %v799
        %v840 = vunpack.c.l.b16 %v800
        %v841 = vunpack.c.l.b16 %v801
        %v842 = vunpack.c.l.b16 %v802
        %v843 = vunpack.c.l.b16 %v803
        %v844 = vunpack.c.l.b16 %v804
        %v845 = vunpack.c.l.b16 %v805
        %v846 = vpack.c.b16 %v831, %v830
        %v847 = vpack.c.b16 %v833, %v832
        %v848 = vpack.c.b16 %v835, %v834
        %v849 = vpack.c.b16 %v837, %v836
        %v850 = vpack.c.b16 %v839, %v838
        %v851 = vpack.c.b16 %v841, %v840
        %v852 = vpack.c.b16 %v843, %v842
        %v853 = vpack.c.b16 %v845, %v844
        %862 = vmatprep.subr.bf16.mxu0 0
        %863 = vmatpush1.bf16.msra.mxu0 %v846
        %864 = vmatprep.subr.bf16.mxu0 0
        %865 = vmatpush1.bf16.msra.mxu0 %v847
        %866 = vmatprep.subr.bf16.mxu0 0
        %867 = vmatpush1.bf16.msra.mxu0 %v848
        %868 = vmatprep.subr.bf16.mxu0 0
        %869 = vmatpush1.bf16.msra.mxu0 %v849
        %870 = vmatprep.subr.bf16.mxu0 0
        %871 = vmatpush1.bf16.msra.mxu0 %v850
        %872 = vmatprep.subr.bf16.mxu0 0
        %873 = vmatpush1.bf16.msra.mxu0 %v851
        %874 = vmatprep.subr.bf16.mxu0 0
        %875 = vmatpush1.bf16.msra.mxu0 %v852
        %876 = vmatprep.subr.bf16.mxu0 0
        %877 = vmatpush1.bf16.msra.mxu0 %v853
        %878 = vmatprep.subr.bf16.mxu0 0
        %879 = vmatpush1.bf16.msra.mxu0 0
        %880 = vmatprep.subr.bf16.mxu0 0
        %881 = vmatpush1.bf16.msra.mxu0 0
        %882 = vmatprep.subr.bf16.mxu0 0
        %883 = vmatpush1.bf16.msra.mxu0 0
        %884 = vmatprep.subr.bf16.mxu0 0
        %885 = vmatpush1.bf16.msra.mxu0 0
        %886 = vmatprep.subr.bf16.mxu0 0
        %887 = vmatpush1.bf16.msra.mxu0 0
        %888 = vmatprep.subr.bf16.mxu0 0
        %889 = vmatpush1.bf16.msra.mxu0 0
        %890 = vmatprep.subr.bf16.mxu0 0
        %891 = vmatpush1.bf16.msra.mxu0 0
        %892 = vmatprep.subr.bf16.mxu0 0
        %893 = vmatpush1.bf16.msra.mxu0 0
        %894 = vmatprep.mubr.bf16.mxu0 0
        %895 = vmatmul.mubr.bf16.gmra.mrb[0].mxu0 %v788
        %v896 = vpop.f32.mrb[0].mxu0
        %v897 = vadd.f32 %v812, %v896
        %v898 = vpop.f32.mrb[0].mxu0
        %v899 = vpop.f32.mrb[0].mxu0
        %v900 = vadd.f32 %v812, %v899
        %v901 = vpop.f32.mrb[0].mxu0
        %902 = vdwg.mxu0
        %903 = vset.pattern.permute.xlu0 1
        %904 = vperm.xlu0 %903, %v489
        %v905 = vpop.permute.xlu0 %904
        %907 = vset.pattern.permute.xlu0 1
        %908 = vperm.xlu0 %907, %v490
        %v909 = vpop.permute.xlu0 %908
        %v911 = vmul.f32 %v905, %v897
        %v912 = vmul.f32 %v909, %v900
        %v913 = vadd.f32 %v702, %v911
        %v914 = vadd.f32 %v703, %v912
        %s915 = scalar_lea.vmem %s4, 64
        %v916 = vld [vmem:[%s915] sm:$0xf]
        %v917 = vld [vmem:[%s915 + $0x4] sm:$0xf]
        %v918 = vld [vmem:[%s915 + $0x8] sm:$0xf]
        %v919 = vld [vmem:[%s915 + $0xc] sm:$0xf]
        %v920 = vld [vmem:[%s915 + $0x10] sm:$0xf]
        %v921 = vld [vmem:[%s915 + $0x14] sm:$0xf]
        %v922 = vld [vmem:[%s915 + $0x18] sm:$0xf]
        %v923 = vld [vmem:[%s915 + $0x1c] sm:$0xf]
        %s924 = scalar_lea.vmem %s5, 2
        %v925 = vld [vmem:[%s924] sm:$0x1]
        %v927 = vlaneseq
        %v928 = vshrl.u32 %v927, 7
        %v929 = vsub.s32 0, %v928
        %v930 = vrot.slane %v925, %v929
        %v940 = vunpack.c.l.b16 %v916
        %v941 = vunpack.c.l.b16 %v917
        %v942 = vunpack.c.l.b16 %v918
        %v943 = vunpack.c.l.b16 %v919
        %v944 = vunpack.c.l.b16 %v920
        %v945 = vunpack.c.l.b16 %v921
        %v946 = vunpack.c.l.b16 %v922
        %v947 = vunpack.c.l.b16 %v923
        %v948 = vpack.c.b16 %v941, %v940
        %v949 = vpack.c.b16 %v943, %v942
        %v950 = vpack.c.b16 %v945, %v944
        %v951 = vpack.c.b16 %v947, %v946
        %956 = vmatprep.subr.bf16.mxu0 0
        %957 = vmatpush1.bf16.msra.mxu0 %v948
        %958 = vmatprep.subr.bf16.mxu0 0
        %959 = vmatpush1.bf16.msra.mxu0 %v949
        %960 = vmatprep.subr.bf16.mxu0 0
        %961 = vmatpush1.bf16.msra.mxu0 %v950
        %962 = vmatprep.subr.bf16.mxu0 0
        %963 = vmatpush1.bf16.msra.mxu0 %v951
        %964 = vmatprep.subr.bf16.mxu0 0
        %965 = vmatpush1.bf16.msra.mxu0 0
        %966 = vmatprep.subr.bf16.mxu0 0
        %967 = vmatpush1.bf16.msra.mxu0 0
        %968 = vmatprep.subr.bf16.mxu0 0
        %969 = vmatpush1.bf16.msra.mxu0 0
        %970 = vmatprep.subr.bf16.mxu0 0
        %971 = vmatpush1.bf16.msra.mxu0 0
        %972 = vmatprep.subr.bf16.mxu0 0
        %973 = vmatpush1.bf16.msra.mxu0 0
        %974 = vmatprep.subr.bf16.mxu0 0
        %975 = vmatpush1.bf16.msra.mxu0 0
        %976 = vmatprep.subr.bf16.mxu0 0
        %977 = vmatpush1.bf16.msra.mxu0 0
        %978 = vmatprep.subr.bf16.mxu0 0
        %979 = vmatpush1.bf16.msra.mxu0 0
        %980 = vmatprep.subr.bf16.mxu0 0
        %981 = vmatpush1.bf16.msra.mxu0 0
        %982 = vmatprep.subr.bf16.mxu0 0
        %983 = vmatpush1.bf16.msra.mxu0 0
        %984 = vmatprep.subr.bf16.mxu0 0
        %985 = vmatpush1.bf16.msra.mxu0 0
        %986 = vmatprep.subr.bf16.mxu0 0
        %987 = vmatpush1.bf16.msra.mxu0 0
        %988 = vmatprep.mubr.bf16.mxu0 0
        %989 = vmatmul.mubr.bf16.gmra.mrb[0].mxu0 %v532
        %v990 = vpop.f32.mrb[0].mxu0
        %v991 = vadd.f32 %v930, %v990
        %v992 = vpop.f32.mrb[0].mxu0
        %v993 = vpop.f32.mrb[0].mxu0
        %v994 = vadd.f32 %v930, %v993
        %v995 = vpop.f32.mrb[0].mxu0
        %996 = vdwg.mxu0
        %v997 = vmax.f32 %v991, 0.0
        %v998 = vmax.f32 %v994, 0.0
        %v999 = vpack.c.bf16 %v998, %v997
        %s1000 = scalar_lea.vmem %s6, 128
        %v1001 = vld [vmem:[%s1000] sm:$0xf]
        %v1002 = vld [vmem:[%s1000 + $0x4] sm:$0xf]
        %v1003 = vld [vmem:[%s1000 + $0x8] sm:$0xf]
        %v1004 = vld [vmem:[%s1000 + $0xc] sm:$0xf]
        %v1005 = vld [vmem:[%s1000 + $0x10] sm:$0xf]
        %v1006 = vld [vmem:[%s1000 + $0x14] sm:$0xf]
        %v1007 = vld [vmem:[%s1000 + $0x18] sm:$0xf]
        %v1008 = vld [vmem:[%s1000 + $0x1c] sm:$0xf]
        %v1009 = vld [vmem:[%s1000 + $0x20] sm:$0xf]
        %v1010 = vld [vmem:[%s1000 + $0x24] sm:$0xf]
        %v1011 = vld [vmem:[%s1000 + $0x28] sm:$0xf]
        %v1012 = vld [vmem:[%s1000 + $0x2c] sm:$0xf]
        %v1013 = vld [vmem:[%s1000 + $0x30] sm:$0xf]
        %v1014 = vld [vmem:[%s1000 + $0x34] sm:$0xf]
        %v1015 = vld [vmem:[%s1000 + $0x38] sm:$0xf]
        %v1016 = vld [vmem:[%s1000 + $0x3c] sm:$0xf]
        %s1017 = scalar_lea.vmem %s7, 2
        %v1018 = vld [vmem:[%s1017] sm:$0x1]
        %v1020 = vlaneseq
        %v1021 = vshrl.u32 %v1020, 7
        %v1022 = vsub.s32 0, %v1021
        %v1023 = vrot.slane %v1018, %v1022
        %v1041 = vunpack.c.l.b16 %v1001
        %v1042 = vunpack.c.l.b16 %v1002
        %v1043 = vunpack.c.l.b16 %v1003
        %v1044 = vunpack.c.l.b16 %v1004
        %v1045 = vunpack.c.l.b16 %v1005
        %v1046 = vunpack.c.l.b16 %v1006
        %v1047 = vunpack.c.l.b16 %v1007
        %v1048 = vunpack.c.l.b16 %v1008
        %v1049 = vunpack.c.l.b16 %v1009
        %v1050 = vunpack.c.l.b16 %v1010
        %v1051 = vunpack.c.l.b16 %v1011
        %v1052 = vunpack.c.l.b16 %v1012
        %v1053 = vunpack.c.l.b16 %v1013
        %v1054 = vunpack.c.l.b16 %v1014
        %v1055 = vunpack.c.l.b16 %v1015
        %v1056 = vunpack.c.l.b16 %v1016
        %v1057 = vpack.c.b16 %v1042, %v1041
        %v1058 = vpack.c.b16 %v1044, %v1043
        %v1059 = vpack.c.b16 %v1046, %v1045
        %v1060 = vpack.c.b16 %v1048, %v1047
        %v1061 = vpack.c.b16 %v1050, %v1049
        %v1062 = vpack.c.b16 %v1052, %v1051
        %v1063 = vpack.c.b16 %v1054, %v1053
        %v1064 = vpack.c.b16 %v1056, %v1055
        %1073 = vmatprep.subr.bf16.mxu0 0
        %1074 = vmatpush1.bf16.msra.mxu0 %v1057
        %1075 = vmatprep.subr.bf16.mxu0 0
        %1076 = vmatpush1.bf16.msra.mxu0 %v1058
        %1077 = vmatprep.subr.bf16.mxu0 0
        %1078 = vmatpush1.bf16.msra.mxu0 %v1059
        %1079 = vmatprep.subr.bf16.mxu0 0
        %1080 = vmatpush1.bf16.msra.mxu0 %v1060
        %1081 = vmatprep.subr.bf16.mxu0 0
        %1082 = vmatpush1.bf16.msra.mxu0 %v1061
        %1083 = vmatprep.subr.bf16.mxu0 0
        %1084 = vmatpush1.bf16.msra.mxu0 %v1062
        %1085 = vmatprep.subr.bf16.mxu0 0
        %1086 = vmatpush1.bf16.msra.mxu0 %v1063
        %1087 = vmatprep.subr.bf16.mxu0 0
        %1088 = vmatpush1.bf16.msra.mxu0 %v1064
        %1089 = vmatprep.subr.bf16.mxu0 0
        %1090 = vmatpush1.bf16.msra.mxu0 0
        %1091 = vmatprep.subr.bf16.mxu0 0
        %1092 = vmatpush1.bf16.msra.mxu0 0
        %1093 = vmatprep.subr.bf16.mxu0 0
        %1094 = vmatpush1.bf16.msra.mxu0 0
        %1095 = vmatprep.subr.bf16.mxu0 0
        %1096 = vmatpush1.bf16.msra.mxu0 0
        %1097 = vmatprep.subr.bf16.mxu0 0
        %1098 = vmatpush1.bf16.msra.mxu0 0
        %1099 = vmatprep.subr.bf16.mxu0 0
        %1100 = vmatpush1.bf16.msra.mxu0 0
        %1101 = vmatprep.subr.bf16.mxu0 0
        %1102 = vmatpush1.bf16.msra.mxu0 0
        %1103 = vmatprep.subr.bf16.mxu0 0
        %1104 = vmatpush1.bf16.msra.mxu0 0
        %1105 = vmatprep.mubr.bf16.mxu0 0
        %1106 = vmatmul.mubr.bf16.gmra.mrb[0].mxu0 %v999
        %v1107 = vpop.f32.mrb[0].mxu0
        %v1108 = vadd.f32 %v1023, %v1107
        %v1109 = vpop.f32.mrb[0].mxu0
        %v1110 = vpop.f32.mrb[0].mxu0
        %v1111 = vadd.f32 %v1023, %v1110
        %v1112 = vpop.f32.mrb[0].mxu0
        %1113 = vdwg.mxu0
        %1114 = vset.pattern.permute.xlu0 2
        %1115 = vperm.xlu0 %1114, %v489
        %v1116 = vpop.permute.xlu0 %1115
        %1118 = vset.pattern.permute.xlu0 2
        %1119 = vperm.xlu0 %1118, %v490
        %v1120 = vpop.permute.xlu0 %1119
        %v1122 = vmul.f32 %v1116, %v1108
        %v1123 = vmul.f32 %v1120, %v1111
        %v1124 = vadd.f32 %v913, %v1122
        %v1125 = vadd.f32 %v914, %v1123
        %s1126 = scalar_lea.vmem %s4, 96
        %v1127 = vld [vmem:[%s1126] sm:$0xf]
        %v1128 = vld [vmem:[%s1126 + $0x4] sm:$0xf]
        %v1129 = vld [vmem:[%s1126 + $0x8] sm:$0xf]
        %v1130 = vld [vmem:[%s1126 + $0xc] sm:$0xf]
        %v1131 = vld [vmem:[%s1126 + $0x10] sm:$0xf]
        %v1132 = vld [vmem:[%s1126 + $0x14] sm:$0xf]
        %v1133 = vld [vmem:[%s1126 + $0x18] sm:$0xf]
        %v1134 = vld [vmem:[%s1126 + $0x1c] sm:$0xf]
        %s1135 = scalar_lea.vmem %s5, 3
        %v1136 = vld [vmem:[%s1135] sm:$0x1]
        %v1138 = vlaneseq
        %v1139 = vshrl.u32 %v1138, 7
        %v1140 = vsub.s32 0, %v1139
        %v1141 = vrot.slane %v1136, %v1140
        %v1151 = vunpack.c.l.b16 %v1127
        %v1152 = vunpack.c.l.b16 %v1128
        %v1153 = vunpack.c.l.b16 %v1129
        %v1154 = vunpack.c.l.b16 %v1130
        %v1155 = vunpack.c.l.b16 %v1131
        %v1156 = vunpack.c.l.b16 %v1132
        %v1157 = vunpack.c.l.b16 %v1133
        %v1158 = vunpack.c.l.b16 %v1134
        %v1159 = vpack.c.b16 %v1152, %v1151
        %v1160 = vpack.c.b16 %v1154, %v1153
        %v1161 = vpack.c.b16 %v1156, %v1155
        %v1162 = vpack.c.b16 %v1158, %v1157
        %1167 = vmatprep.subr.bf16.mxu0 0
        %1168 = vmatpush1.bf16.msra.mxu0 %v1159
        %1169 = vmatprep.subr.bf16.mxu0 0
        %1170 = vmatpush1.bf16.msra.mxu0 %v1160
        %1171 = vmatprep.subr.bf16.mxu0 0
        %1172 = vmatpush1.bf16.msra.mxu0 %v1161
        %1173 = vmatprep.subr.bf16.mxu0 0
        %1174 = vmatpush1.bf16.msra.mxu0 %v1162
        %1175 = vmatprep.subr.bf16.mxu0 0
        %1176 = vmatpush1.bf16.msra.mxu0 0
        %1177 = vmatprep.subr.bf16.mxu0 0
        %1178 = vmatpush1.bf16.msra.mxu0 0
        %1179 = vmatprep.subr.bf16.mxu0 0
        %1180 = vmatpush1.bf16.msra.mxu0 0
        %1181 = vmatprep.subr.bf16.mxu0 0
        %1182 = vmatpush1.bf16.msra.mxu0 0
        %1183 = vmatprep.subr.bf16.mxu0 0
        %1184 = vmatpush1.bf16.msra.mxu0 0
        %1185 = vmatprep.subr.bf16.mxu0 0
        %1186 = vmatpush1.bf16.msra.mxu0 0
        %1187 = vmatprep.subr.bf16.mxu0 0
        %1188 = vmatpush1.bf16.msra.mxu0 0
        %1189 = vmatprep.subr.bf16.mxu0 0
        %1190 = vmatpush1.bf16.msra.mxu0 0
        %1191 = vmatprep.subr.bf16.mxu0 0
        %1192 = vmatpush1.bf16.msra.mxu0 0
        %1193 = vmatprep.subr.bf16.mxu0 0
        %1194 = vmatpush1.bf16.msra.mxu0 0
        %1195 = vmatprep.subr.bf16.mxu0 0
        %1196 = vmatpush1.bf16.msra.mxu0 0
        %1197 = vmatprep.subr.bf16.mxu0 0
        %1198 = vmatpush1.bf16.msra.mxu0 0
        %1199 = vmatprep.mubr.bf16.mxu0 0
        %1200 = vmatmul.mubr.bf16.gmra.mrb[0].mxu0 %v532
        %v1201 = vpop.f32.mrb[0].mxu0
        %v1202 = vadd.f32 %v1141, %v1201
        %v1203 = vpop.f32.mrb[0].mxu0
        %v1204 = vpop.f32.mrb[0].mxu0
        %v1205 = vadd.f32 %v1141, %v1204
        %v1206 = vpop.f32.mrb[0].mxu0
        %1207 = vdwg.mxu0
        %v1208 = vmax.f32 %v1202, 0.0
        %v1209 = vmax.f32 %v1205, 0.0
        %v1210 = vpack.c.bf16 %v1209, %v1208
        %s1211 = scalar_lea.vmem %s6, 192
        %v1212 = vld [vmem:[%s1211] sm:$0xf]
        %v1213 = vld [vmem:[%s1211 + $0x4] sm:$0xf]
        %v1214 = vld [vmem:[%s1211 + $0x8] sm:$0xf]
        %v1215 = vld [vmem:[%s1211 + $0xc] sm:$0xf]
        %v1216 = vld [vmem:[%s1211 + $0x10] sm:$0xf]
        %v1217 = vld [vmem:[%s1211 + $0x14] sm:$0xf]
        %v1218 = vld [vmem:[%s1211 + $0x18] sm:$0xf]
        %v1219 = vld [vmem:[%s1211 + $0x1c] sm:$0xf]
        %v1220 = vld [vmem:[%s1211 + $0x20] sm:$0xf]
        %v1221 = vld [vmem:[%s1211 + $0x24] sm:$0xf]
        %v1222 = vld [vmem:[%s1211 + $0x28] sm:$0xf]
        %v1223 = vld [vmem:[%s1211 + $0x2c] sm:$0xf]
        %v1224 = vld [vmem:[%s1211 + $0x30] sm:$0xf]
        %v1225 = vld [vmem:[%s1211 + $0x34] sm:$0xf]
        %v1226 = vld [vmem:[%s1211 + $0x38] sm:$0xf]
        %v1227 = vld [vmem:[%s1211 + $0x3c] sm:$0xf]
        %s1228 = scalar_lea.vmem %s7, 3
        %v1229 = vld [vmem:[%s1228] sm:$0x1]
        %v1231 = vlaneseq
        %v1232 = vshrl.u32 %v1231, 7
        %v1233 = vsub.s32 0, %v1232
        %v1234 = vrot.slane %v1229, %v1233
        %v1252 = vunpack.c.l.b16 %v1212
        %v1253 = vunpack.c.l.b16 %v1213
        %v1254 = vunpack.c.l.b16 %v1214
        %v1255 = vunpack.c.l.b16 %v1215
        %v1256 = vunpack.c.l.b16 %v1216
        %v1257 = vunpack.c.l.b16 %v1217
        %v1258 = vunpack.c.l.b16 %v1218
        %v1259 = vunpack.c.l.b16 %v1219
        %v1260 = vunpack.c.l.b16 %v1220
        %v1261 = vunpack.c.l.b16 %v1221
        %v1262 = vunpack.c.l.b16 %v1222
        %v1263 = vunpack.c.l.b16 %v1223
        %v1264 = vunpack.c.l.b16 %v1224
        %v1265 = vunpack.c.l.b16 %v1225
        %v1266 = vunpack.c.l.b16 %v1226
        %v1267 = vunpack.c.l.b16 %v1227
        %v1268 = vpack.c.b16 %v1253, %v1252
        %v1269 = vpack.c.b16 %v1255, %v1254
        %v1270 = vpack.c.b16 %v1257, %v1256
        %v1271 = vpack.c.b16 %v1259, %v1258
        %v1272 = vpack.c.b16 %v1261, %v1260
        %v1273 = vpack.c.b16 %v1263, %v1262
        %v1274 = vpack.c.b16 %v1265, %v1264
        %v1275 = vpack.c.b16 %v1267, %v1266
        %1284 = vmatprep.subr.bf16.mxu0 0
        %1285 = vmatpush1.bf16.msra.mxu0 %v1268
        %1286 = vmatprep.subr.bf16.mxu0 0
        %1287 = vmatpush1.bf16.msra.mxu0 %v1269
        %1288 = vmatprep.subr.bf16.mxu0 0
        %1289 = vmatpush1.bf16.msra.mxu0 %v1270
        %1290 = vmatprep.subr.bf16.mxu0 0
        %1291 = vmatpush1.bf16.msra.mxu0 %v1271
        %1292 = vmatprep.subr.bf16.mxu0 0
        %1293 = vmatpush1.bf16.msra.mxu0 %v1272
        %1294 = vmatprep.subr.bf16.mxu0 0
        %1295 = vmatpush1.bf16.msra.mxu0 %v1273
        %1296 = vmatprep.subr.bf16.mxu0 0
        %1297 = vmatpush1.bf16.msra.mxu0 %v1274
        %1298 = vmatprep.subr.bf16.mxu0 0
        %1299 = vmatpush1.bf16.msra.mxu0 %v1275
        %1300 = vmatprep.subr.bf16.mxu0 0
        %1301 = vmatpush1.bf16.msra.mxu0 0
        %1302 = vmatprep.subr.bf16.mxu0 0
        %1303 = vmatpush1.bf16.msra.mxu0 0
        %1304 = vmatprep.subr.bf16.mxu0 0
        %1305 = vmatpush1.bf16.msra.mxu0 0
        %1306 = vmatprep.subr.bf16.mxu0 0
        %1307 = vmatpush1.bf16.msra.mxu0 0
        %1308 = vmatprep.subr.bf16.mxu0 0
        %1309 = vmatpush1.bf16.msra.mxu0 0
        %1310 = vmatprep.subr.bf16.mxu0 0
        %1311 = vmatpush1.bf16.msra.mxu0 0
        %1312 = vmatprep.subr.bf16.mxu0 0
        %1313 = vmatpush1.bf16.msra.mxu0 0
        %1314 = vmatprep.subr.bf16.mxu0 0
        %1315 = vmatpush1.bf16.msra.mxu0 0
        %1316 = vmatprep.mubr.bf16.mxu0 0
        %1317 = vmatmul.mubr.bf16.gmra.mrb[0].mxu0 %v1210
        %v1318 = vpop.f32.mrb[0].mxu0
        %v1319 = vadd.f32 %v1234, %v1318
        %v1320 = vpop.f32.mrb[0].mxu0
        %v1321 = vpop.f32.mrb[0].mxu0
        %v1322 = vadd.f32 %v1234, %v1321
        %v1323 = vpop.f32.mrb[0].mxu0
        %1324 = vdwg.mxu0
        %1325 = vset.pattern.permute.xlu0 3
        %1326 = vperm.xlu0 %1325, %v489
        %v1327 = vpop.permute.xlu0 %1326
        %1329 = vset.pattern.permute.xlu0 3
        %1330 = vperm.xlu0 %1329, %v490
        %v1331 = vpop.permute.xlu0 %1330
        %v1333 = vmul.f32 %v1327, %v1319
        %v1334 = vmul.f32 %v1331, %v1322
        %v1335 = vadd.f32 %v1124, %v1333
        %v1336 = vadd.f32 %v1125, %v1334
        %s1337 = scalar_lea.vmem %s4, 128
        %v1338 = vld [vmem:[%s1337] sm:$0xf]
        %v1339 = vld [vmem:[%s1337 + $0x4] sm:$0xf]
        %v1340 = vld [vmem:[%s1337 + $0x8] sm:$0xf]
        %v1341 = vld [vmem:[%s1337 + $0xc] sm:$0xf]
        %v1342 = vld [vmem:[%s1337 + $0x10] sm:$0xf]
        %v1343 = vld [vmem:[%s1337 + $0x14] sm:$0xf]
        %v1344 = vld [vmem:[%s1337 + $0x18] sm:$0xf]
        %v1345 = vld [vmem:[%s1337 + $0x1c] sm:$0xf]
        %s1346 = scalar_lea.vmem %s5, 4
        %v1347 = vld [vmem:[%s1346] sm:$0x1]
        %v1349 = vlaneseq
        %v1350 = vshrl.u32 %v1349, 7
        %v1351 = vsub.s32 0, %v1350
        %v1352 = vrot.slane %v1347, %v1351
        %v1362 = vunpack.c.l.b16 %v1338
        %v1363 = vunpack.c.l.b16 %v1339
        %v1364 = vunpack.c.l.b16 %v1340
        %v1365 = vunpack.c.l.b16 %v1341
        %v1366 = vunpack.c.l.b16 %v1342
        %v1367 = vunpack.c.l.b16 %v1343
        %v1368 = vunpack.c.l.b16 %v1344
        %v1369 = vunpack.c.l.b16 %v1345
        %v1370 = vpack.c.b16 %v1363, %v1362
        %v1371 = vpack.c.b16 %v1365, %v1364
        %v1372 = vpack.c.b16 %v1367, %v1366
        %v1373 = vpack.c.b16 %v1369, %v1368
        %1378 = vmatprep.subr.bf16.mxu0 0
        %1379 = vmatpush1.bf16.msra.mxu0 %v1370
        %1380 = vmatprep.subr.bf16.mxu0 0
        %1381 = vmatpush1.bf16.msra.mxu0 %v1371
        %1382 = vmatprep.subr.bf16.mxu0 0
        %1383 = vmatpush1.bf16.msra.mxu0 %v1372
        %1384 = vmatprep.subr.bf16.mxu0 0
        %1385 = vmatpush1.bf16.msra.mxu0 %v1373
        %1386 = vmatprep.subr.bf16.mxu0 0
        %1387 = vmatpush1.bf16.msra.mxu0 0
        %1388 = vmatprep.subr.bf16.mxu0 0
        %1389 = vmatpush1.bf16.msra.mxu0 0
        %1390 = vmatprep.subr.bf16.mxu0 0
        %1391 = vmatpush1.bf16.msra.mxu0 0
        %1392 = vmatprep.subr.bf16.mxu0 0
        %1393 = vmatpush1.bf16.msra.mxu0 0
        %1394 = vmatprep.subr.bf16.mxu0 0
        %1395 = vmatpush1.bf16.msra.mxu0 0
        %1396 = vmatprep.subr.bf16.mxu0 0
        %1397 = vmatpush1.bf16.msra.mxu0 0
        %1398 = vmatprep.subr.bf16.mxu0 0
        %1399 = vmatpush1.bf16.msra.mxu0 0
        %1400 = vmatprep.subr.bf16.mxu0 0
        %1401 = vmatpush1.bf16.msra.mxu0 0
        %1402 = vmatprep.subr.bf16.mxu0 0
        %1403 = vmatpush1.bf16.msra.mxu0 0
        %1404 = vmatprep.subr.bf16.mxu0 0
        %1405 = vmatpush1.bf16.msra.mxu0 0
        %1406 = vmatprep.subr.bf16.mxu0 0
        %1407 = vmatpush1.bf16.msra.mxu0 0
        %1408 = vmatprep.subr.bf16.mxu0 0
        %1409 = vmatpush1.bf16.msra.mxu0 0
        %1410 = vmatprep.mubr.bf16.mxu0 0
        %1411 = vmatmul.mubr.bf16.gmra.mrb[0].mxu0 %v532
        %v1412 = vpop.f32.mrb[0].mxu0
        %v1413 = vadd.f32 %v1352, %v1412
        %v1414 = vpop.f32.mrb[0].mxu0
        %v1415 = vpop.f32.mrb[0].mxu0
        %v1416 = vadd.f32 %v1352, %v1415
        %v1417 = vpop.f32.mrb[0].mxu0
        %1418 = vdwg.mxu0
        %v1419 = vmax.f32 %v1413, 0.0
        %v1420 = vmax.f32 %v1416, 0.0
        %v1421 = vpack.c.bf16 %v1420, %v1419
        %s1422 = scalar_lea.vmem %s6, 256
        %v1423 = vld [vmem:[%s1422] sm:$0xf]
        %v1424 = vld [vmem:[%s1422 + $0x4] sm:$0xf]
        %v1425 = vld [vmem:[%s1422 + $0x8] sm:$0xf]
        %v1426 = vld [vmem:[%s1422 + $0xc] sm:$0xf]
        %v1427 = vld [vmem:[%s1422 + $0x10] sm:$0xf]
        %v1428 = vld [vmem:[%s1422 + $0x14] sm:$0xf]
        %v1429 = vld [vmem:[%s1422 + $0x18] sm:$0xf]
        %v1430 = vld [vmem:[%s1422 + $0x1c] sm:$0xf]
        %v1431 = vld [vmem:[%s1422 + $0x20] sm:$0xf]
        %v1432 = vld [vmem:[%s1422 + $0x24] sm:$0xf]
        %v1433 = vld [vmem:[%s1422 + $0x28] sm:$0xf]
        %v1434 = vld [vmem:[%s1422 + $0x2c] sm:$0xf]
        %v1435 = vld [vmem:[%s1422 + $0x30] sm:$0xf]
        %v1436 = vld [vmem:[%s1422 + $0x34] sm:$0xf]
        %v1437 = vld [vmem:[%s1422 + $0x38] sm:$0xf]
        %v1438 = vld [vmem:[%s1422 + $0x3c] sm:$0xf]
        %s1439 = scalar_lea.vmem %s7, 4
        %v1440 = vld [vmem:[%s1439] sm:$0x1]
        %v1442 = vlaneseq
        %v1443 = vshrl.u32 %v1442, 7
        %v1444 = vsub.s32 0, %v1443
        %v1445 = vrot.slane %v1440, %v1444
        %v1463 = vunpack.c.l.b16 %v1423
        %v1464 = vunpack.c.l.b16 %v1424
        %v1465 = vunpack.c.l.b16 %v1425
        %v1466 = vunpack.c.l.b16 %v1426
        %v1467 = vunpack.c.l.b16 %v1427
        %v1468 = vunpack.c.l.b16 %v1428
        %v1469 = vunpack.c.l.b16 %v1429
        %v1470 = vunpack.c.l.b16 %v1430
        %v1471 = vunpack.c.l.b16 %v1431
        %v1472 = vunpack.c.l.b16 %v1432
        %v1473 = vunpack.c.l.b16 %v1433
        %v1474 = vunpack.c.l.b16 %v1434
        %v1475 = vunpack.c.l.b16 %v1435
        %v1476 = vunpack.c.l.b16 %v1436
        %v1477 = vunpack.c.l.b16 %v1437
        %v1478 = vunpack.c.l.b16 %v1438
        %v1479 = vpack.c.b16 %v1464, %v1463
        %v1480 = vpack.c.b16 %v1466, %v1465
        %v1481 = vpack.c.b16 %v1468, %v1467
        %v1482 = vpack.c.b16 %v1470, %v1469
        %v1483 = vpack.c.b16 %v1472, %v1471
        %v1484 = vpack.c.b16 %v1474, %v1473
        %v1485 = vpack.c.b16 %v1476, %v1475
        %v1486 = vpack.c.b16 %v1478, %v1477
        %1495 = vmatprep.subr.bf16.mxu0 0
        %1496 = vmatpush1.bf16.msra.mxu0 %v1479
        %1497 = vmatprep.subr.bf16.mxu0 0
        %1498 = vmatpush1.bf16.msra.mxu0 %v1480
        %1499 = vmatprep.subr.bf16.mxu0 0
        %1500 = vmatpush1.bf16.msra.mxu0 %v1481
        %1501 = vmatprep.subr.bf16.mxu0 0
        %1502 = vmatpush1.bf16.msra.mxu0 %v1482
        %1503 = vmatprep.subr.bf16.mxu0 0
        %1504 = vmatpush1.bf16.msra.mxu0 %v1483
        %1505 = vmatprep.subr.bf16.mxu0 0
        %1506 = vmatpush1.bf16.msra.mxu0 %v1484
        %1507 = vmatprep.subr.bf16.mxu0 0
        %1508 = vmatpush1.bf16.msra.mxu0 %v1485
        %1509 = vmatprep.subr.bf16.mxu0 0
        %1510 = vmatpush1.bf16.msra.mxu0 %v1486
        %1511 = vmatprep.subr.bf16.mxu0 0
        %1512 = vmatpush1.bf16.msra.mxu0 0
        %1513 = vmatprep.subr.bf16.mxu0 0
        %1514 = vmatpush1.bf16.msra.mxu0 0
        %1515 = vmatprep.subr.bf16.mxu0 0
        %1516 = vmatpush1.bf16.msra.mxu0 0
        %1517 = vmatprep.subr.bf16.mxu0 0
        %1518 = vmatpush1.bf16.msra.mxu0 0
        %1519 = vmatprep.subr.bf16.mxu0 0
        %1520 = vmatpush1.bf16.msra.mxu0 0
        %1521 = vmatprep.subr.bf16.mxu0 0
        %1522 = vmatpush1.bf16.msra.mxu0 0
        %1523 = vmatprep.subr.bf16.mxu0 0
        %1524 = vmatpush1.bf16.msra.mxu0 0
        %1525 = vmatprep.subr.bf16.mxu0 0
        %1526 = vmatpush1.bf16.msra.mxu0 0
        %1527 = vmatprep.mubr.bf16.mxu0 0
        %1528 = vmatmul.mubr.bf16.gmra.mrb[0].mxu0 %v1421
        %v1529 = vpop.f32.mrb[0].mxu0
        %v1530 = vadd.f32 %v1445, %v1529
        %v1531 = vpop.f32.mrb[0].mxu0
        %v1532 = vpop.f32.mrb[0].mxu0
        %v1533 = vadd.f32 %v1445, %v1532
        %v1534 = vpop.f32.mrb[0].mxu0
        %1535 = vdwg.mxu0
        %1536 = vset.pattern.permute.xlu0 4
        %1537 = vperm.xlu0 %1536, %v489
        %v1538 = vpop.permute.xlu0 %1537
        %1540 = vset.pattern.permute.xlu0 4
        %1541 = vperm.xlu0 %1540, %v490
        %v1542 = vpop.permute.xlu0 %1541
        %v1544 = vmul.f32 %v1538, %v1530
        %v1545 = vmul.f32 %v1542, %v1533
        %v1546 = vadd.f32 %v1335, %v1544
        %v1547 = vadd.f32 %v1336, %v1545
        %v1548 = vpack.c.bf16 %v1547, %v1546
        %vm1549 = vcmask 130048
        %v1551 = vsel %vm1549, %v432, 0
        %1553 = vmatprep.subr.bf16.mxu0 0
        %1554 = vmatpush1.bf16.msra.mxu0 %v1548
        %1555 = vmatprep.subr.bf16.mxu0 0
        %1556 = vmatpush1.bf16.msra.mxu0 0
        %1557 = vmatprep.subr.bf16.mxu0 0
        %1558 = vmatpush1.bf16.msra.mxu0 0
        %1559 = vmatprep.subr.bf16.mxu0 0
        %1560 = vmatpush1.bf16.msra.mxu0 0
        %1561 = vmatprep.subr.bf16.mxu0 0
        %1562 = vmatpush1.bf16.msra.mxu0 0
        %1563 = vmatprep.subr.bf16.mxu0 0
        %1564 = vmatpush1.bf16.msra.mxu0 0
        %1565 = vmatprep.subr.bf16.mxu0 0
        %1566 = vmatpush1.bf16.msra.mxu0 0
        %1567 = vmatprep.subr.bf16.mxu0 0
        %1568 = vmatpush1.bf16.msra.mxu0 0
        %1569 = vmatprep.subr.bf16.mxu0 0
        %1570 = vmatpush1.bf16.msra.mxu0 0
        %1571 = vmatprep.subr.bf16.mxu0 0
        %1572 = vmatpush1.bf16.msra.mxu0 0
        %1573 = vmatprep.subr.bf16.mxu0 0
        %1574 = vmatpush1.bf16.msra.mxu0 0
        %1575 = vmatprep.subr.bf16.mxu0 0
        %1576 = vmatpush1.bf16.msra.mxu0 0
        %1577 = vmatprep.subr.bf16.mxu0 0
        %1578 = vmatpush1.bf16.msra.mxu0 0
        %1579 = vmatprep.subr.bf16.mxu0 0
        %1580 = vmatpush1.bf16.msra.mxu0 0
        %1581 = vmatprep.subr.bf16.mxu0 0
        %1582 = vmatpush1.bf16.msra.mxu0 0
        %1583 = vmatprep.subr.bf16.mxu0 0
        %1584 = vmatpush1.bf16.msra.mxu0 0
        %1585 = vmatprep.mubr.bf16.mxu0 0
        %1586 = vmatmul.mubr.bf16.gmra.mrb[0].mxu0 %v1551
        %v1587 = vpop.f32.mrb[0].mxu0
        %v1588 = vadd.f32 0.0, %v1587
        %v1589 = vpop.f32.mrb[0].mxu0
        %v1590 = vpop.f32.mrb[0].mxu0
        %v1591 = vpop.f32.mrb[0].mxu0
        %1592 = vdwg.mxu0
        %v1593 = vmul.f32 %v1588, 0.25
        %v1594 = vpack.c.bf16 %v1593, %v1593
        %v1595 = vunpack.c.l.bf16 %v433
        %v1596 = vmul.f32 %v1595, 0.25
        %v1597 = vpack.c.bf16 %v1596, %v1596
        %v1598 = vld [vmem:[%s8] sm:$0xf]
        %v1599 = vld [vmem:[%s8 + $0x4] sm:$0xf]
        %v1600 = vld [vmem:[%s8 + $0x8] sm:$0xf]
        %v1601 = vld [vmem:[%s8 + $0xc] sm:$0xf]
        %v1602 = vld [vmem:[%s8 + $0x10] sm:$0xf]
        %v1603 = vld [vmem:[%s8 + $0x14] sm:$0xf]
        %v1604 = vld [vmem:[%s8 + $0x18] sm:$0xf]
        %v1605 = vld [vmem:[%s8 + $0x1c] sm:$0xf]
        %v1606 = vld [vmem:[%s8 + $0x20] sm:$0xf]
        %v1607 = vld [vmem:[%s8 + $0x24] sm:$0xf]
        %v1608 = vld [vmem:[%s8 + $0x28] sm:$0xf]
        %v1609 = vld [vmem:[%s8 + $0x2c] sm:$0xf]
        %v1610 = vld [vmem:[%s8 + $0x30] sm:$0xf]
        %v1611 = vld [vmem:[%s8 + $0x34] sm:$0xf]
        %v1612 = vld [vmem:[%s8 + $0x38] sm:$0xf]
        %v1613 = vld [vmem:[%s8 + $0x3c] sm:$0xf]
        %v1622 = vunpack.c.l.b16 %v1606
        %v1623 = vunpack.c.l.b16 %v1607
        %v1624 = vunpack.c.l.b16 %v1608
        %v1625 = vunpack.c.l.b16 %v1609
        %v1626 = vunpack.c.l.b16 %v1610
        %v1627 = vunpack.c.l.b16 %v1611
        %v1628 = vunpack.c.l.b16 %v1612
        %v1629 = vunpack.c.l.b16 %v1613
        %v1630 = vpack.c.b16 %v1623, %v1622
        %v1631 = vpack.c.b16 %v1625, %v1624
        %v1632 = vpack.c.b16 %v1627, %v1626
        %v1633 = vpack.c.b16 %v1629, %v1628
        %v1639 = vsel %vm530, %v1597, 0
        %1641 = vmatprep.subr.bf16.mxu0 0
        %1642 = vmatpush1.bf16.msra.mxu0 %v1630
        %1643 = vmatprep.subr.bf16.mxu0 0
        %1644 = vmatpush1.bf16.msra.mxu0 %v1631
        %1645 = vmatprep.subr.bf16.mxu0 0
        %1646 = vmatpush1.bf16.msra.mxu0 %v1632
        %1647 = vmatprep.subr.bf16.mxu0 0
        %1648 = vmatpush1.bf16.msra.mxu0 %v1633
        %1649 = vmatprep.subr.bf16.mxu0 0
        %1650 = vmatpush1.bf16.msra.mxu0 0
        %1651 = vmatprep.subr.bf16.mxu0 0
        %1652 = vmatpush1.bf16.msra.mxu0 0
        %1653 = vmatprep.subr.bf16.mxu0 0
        %1654 = vmatpush1.bf16.msra.mxu0 0
        %1655 = vmatprep.subr.bf16.mxu0 0
        %1656 = vmatpush1.bf16.msra.mxu0 0
        %1657 = vmatprep.subr.bf16.mxu0 0
        %1658 = vmatpush1.bf16.msra.mxu0 0
        %1659 = vmatprep.subr.bf16.mxu0 0
        %1660 = vmatpush1.bf16.msra.mxu0 0
        %1661 = vmatprep.subr.bf16.mxu0 0
        %1662 = vmatpush1.bf16.msra.mxu0 0
        %1663 = vmatprep.subr.bf16.mxu0 0
        %1664 = vmatpush1.bf16.msra.mxu0 0
        %1665 = vmatprep.subr.bf16.mxu0 0
        %1666 = vmatpush1.bf16.msra.mxu0 0
        %1667 = vmatprep.subr.bf16.mxu0 0
        %1668 = vmatpush1.bf16.msra.mxu0 0
        %1669 = vmatprep.subr.bf16.mxu0 0
        %1670 = vmatpush1.bf16.msra.mxu0 0
        %1671 = vmatprep.subr.bf16.mxu0 0
        %1672 = vmatpush1.bf16.msra.mxu0 0
        %1673 = vmatprep.mubr.bf16.mxu0 0
        %1674 = vmatmul.mubr.bf16.gmra.mrb[0].mxu0 %v1639
        %v1675 = vpop.f32.mrb[0].mxu0
        %v1676 = vadd.f32 0.0, %v1675
        %v1677 = vpop.f32.mrb[0].mxu0
        %v1678 = vpop.f32.mrb[0].mxu0
        %v1679 = vpop.f32.mrb[0].mxu0
        %1680 = vdwg.mxu0
        %v1689 = vunpack.c.l.b16 %v1598
        %v1690 = vunpack.c.l.b16 %v1599
        %v1691 = vunpack.c.l.b16 %v1600
        %v1692 = vunpack.c.l.b16 %v1601
        %v1693 = vunpack.c.l.b16 %v1602
        %v1694 = vunpack.c.l.b16 %v1603
        %v1695 = vunpack.c.l.b16 %v1604
        %v1696 = vunpack.c.l.b16 %v1605
        %v1697 = vpack.c.b16 %v1690, %v1689
        %v1698 = vpack.c.b16 %v1692, %v1691
        %v1699 = vpack.c.b16 %v1694, %v1693
        %v1700 = vpack.c.b16 %v1696, %v1695
        %v1706 = vsel %vm530, %v1594, 0
        %1708 = vmatprep.subr.bf16.mxu0 0
        %1709 = vmatpush1.bf16.msra.mxu0 %v1697
        %1710 = vmatprep.subr.bf16.mxu0 0
        %1711 = vmatpush1.bf16.msra.mxu0 %v1698
        %1712 = vmatprep.subr.bf16.mxu0 0
        %1713 = vmatpush1.bf16.msra.mxu0 %v1699
        %1714 = vmatprep.subr.bf16.mxu0 0
        %1715 = vmatpush1.bf16.msra.mxu0 %v1700
        %1716 = vmatprep.subr.bf16.mxu0 0
        %1717 = vmatpush1.bf16.msra.mxu0 0
        %1718 = vmatprep.subr.bf16.mxu0 0
        %1719 = vmatpush1.bf16.msra.mxu0 0
        %1720 = vmatprep.subr.bf16.mxu0 0
        %1721 = vmatpush1.bf16.msra.mxu0 0
        %1722 = vmatprep.subr.bf16.mxu0 0
        %1723 = vmatpush1.bf16.msra.mxu0 0
        %1724 = vmatprep.subr.bf16.mxu0 0
        %1725 = vmatpush1.bf16.msra.mxu0 0
        %1726 = vmatprep.subr.bf16.mxu0 0
        %1727 = vmatpush1.bf16.msra.mxu0 0
        %1728 = vmatprep.subr.bf16.mxu0 0
        %1729 = vmatpush1.bf16.msra.mxu0 0
        %1730 = vmatprep.subr.bf16.mxu0 0
        %1731 = vmatpush1.bf16.msra.mxu0 0
        %1732 = vmatprep.subr.bf16.mxu0 0
        %1733 = vmatpush1.bf16.msra.mxu0 0
        %1734 = vmatprep.subr.bf16.mxu0 0
        %1735 = vmatpush1.bf16.msra.mxu0 0
        %1736 = vmatprep.subr.bf16.mxu0 0
        %1737 = vmatpush1.bf16.msra.mxu0 0
        %1738 = vmatprep.subr.bf16.mxu0 0
        %1739 = vmatpush1.bf16.msra.mxu0 0
        %1740 = vmatprep.mubr.bf16.mxu0 0
        %1741 = vmatmul.mubr.bf16.gmra.mrb[0].mxu0 %v1706
        %v1742 = vpop.f32.mrb[0].mxu0
        %v1743 = vadd.f32 %v1676, %v1742
        %v1744 = vpop.f32.mrb[0].mxu0
        %v1745 = vpop.f32.mrb[0].mxu0
        %v1746 = vpop.f32.mrb[0].mxu0
        %1747 = vdwg.mxu0
        %v1748 = vld [vmem:[%s9] sm:$0x1]
        %v1750 = vlaneseq
        %v1751 = vshrl.u32 %v1750, 7
        %v1752 = vsub.s32 0, %v1751
        %v1753 = vrot.slane %v1748, %v1752
        %v1755 = vadd.f32 %v1743, %v1753
        %v1756 = vmax.f32 %v1755, 0.0
        %v1757 = vpack.c.bf16 %v1756, %v1756
        %v1758 = vld [vmem:[%s10] sm:$0xf]
        %v1759 = vld [vmem:[%s10 + $0x4] sm:$0xf]
        %v1760 = vld [vmem:[%s10 + $0x8] sm:$0xf]
        %v1761 = vld [vmem:[%s10 + $0xc] sm:$0xf]
        %v1762 = vld [vmem:[%s10 + $0x10] sm:$0xf]
        %v1763 = vld [vmem:[%s10 + $0x14] sm:$0xf]
        %v1764 = vld [vmem:[%s10 + $0x18] sm:$0xf]
        %v1765 = vld [vmem:[%s10 + $0x1c] sm:$0xf]
        %v1766 = vld [vmem:[%s10 + $0x20] sm:$0xf]
        %v1767 = vld [vmem:[%s10 + $0x24] sm:$0xf]
        %v1768 = vld [vmem:[%s10 + $0x28] sm:$0xf]
        %v1769 = vld [vmem:[%s10 + $0x2c] sm:$0xf]
        %v1770 = vld [vmem:[%s10 + $0x30] sm:$0xf]
        %v1771 = vld [vmem:[%s10 + $0x34] sm:$0xf]
        %v1772 = vld [vmem:[%s10 + $0x38] sm:$0xf]
        %v1773 = vld [vmem:[%s10 + $0x3c] sm:$0xf]
        %v1774 = vld [vmem:[%s11] sm:$0x1]
        %v1776 = vlaneseq
        %v1777 = vshrl.u32 %v1776, 7
        %v1778 = vsub.s32 0, %v1777
        %v1779 = vrot.slane %v1774, %v1778
        %v1797 = vunpack.c.l.b16 %v1758
        %v1798 = vunpack.c.l.b16 %v1759
        %v1799 = vunpack.c.l.b16 %v1760
        %v1800 = vunpack.c.l.b16 %v1761
        %v1801 = vunpack.c.l.b16 %v1762
        %v1802 = vunpack.c.l.b16 %v1763
        %v1803 = vunpack.c.l.b16 %v1764
        %v1804 = vunpack.c.l.b16 %v1765
        %v1805 = vunpack.c.l.b16 %v1766
        %v1806 = vunpack.c.l.b16 %v1767
        %v1807 = vunpack.c.l.b16 %v1768
        %v1808 = vunpack.c.l.b16 %v1769
        %v1809 = vunpack.c.l.b16 %v1770
        %v1810 = vunpack.c.l.b16 %v1771
        %v1811 = vunpack.c.l.b16 %v1772
        %v1812 = vunpack.c.l.b16 %v1773
        %v1813 = vpack.c.b16 %v1798, %v1797
        %v1814 = vpack.c.b16 %v1800, %v1799
        %v1815 = vpack.c.b16 %v1802, %v1801
        %v1816 = vpack.c.b16 %v1804, %v1803
        %v1817 = vpack.c.b16 %v1806, %v1805
        %v1818 = vpack.c.b16 %v1808, %v1807
        %v1819 = vpack.c.b16 %v1810, %v1809
        %v1820 = vpack.c.b16 %v1812, %v1811
        %1829 = vmatprep.subr.bf16.mxu0 0
        %1830 = vmatpush1.bf16.msra.mxu0 %v1813
        %1831 = vmatprep.subr.bf16.mxu0 0
        %1832 = vmatpush1.bf16.msra.mxu0 %v1814
        %1833 = vmatprep.subr.bf16.mxu0 0
        %1834 = vmatpush1.bf16.msra.mxu0 %v1815
        %1835 = vmatprep.subr.bf16.mxu0 0
        %1836 = vmatpush1.bf16.msra.mxu0 %v1816
        %1837 = vmatprep.subr.bf16.mxu0 0
        %1838 = vmatpush1.bf16.msra.mxu0 %v1817
        %1839 = vmatprep.subr.bf16.mxu0 0
        %1840 = vmatpush1.bf16.msra.mxu0 %v1818
        %1841 = vmatprep.subr.bf16.mxu0 0
        %1842 = vmatpush1.bf16.msra.mxu0 %v1819
        %1843 = vmatprep.subr.bf16.mxu0 0
        %1844 = vmatpush1.bf16.msra.mxu0 %v1820
        %1845 = vmatprep.subr.bf16.mxu0 0
        %1846 = vmatpush1.bf16.msra.mxu0 0
        %1847 = vmatprep.subr.bf16.mxu0 0
        %1848 = vmatpush1.bf16.msra.mxu0 0
        %1849 = vmatprep.subr.bf16.mxu0 0
        %1850 = vmatpush1.bf16.msra.mxu0 0
        %1851 = vmatprep.subr.bf16.mxu0 0
        %1852 = vmatpush1.bf16.msra.mxu0 0
        %1853 = vmatprep.subr.bf16.mxu0 0
        %1854 = vmatpush1.bf16.msra.mxu0 0
        %1855 = vmatprep.subr.bf16.mxu0 0
        %1856 = vmatpush1.bf16.msra.mxu0 0
        %1857 = vmatprep.subr.bf16.mxu0 0
        %1858 = vmatpush1.bf16.msra.mxu0 0
        %1859 = vmatprep.subr.bf16.mxu0 0
        %1860 = vmatpush1.bf16.msra.mxu0 0
        %1861 = vmatprep.mubr.bf16.mxu0 0
        %1862 = vmatmul.mubr.bf16.gmra.mrb[0].mxu0 %v1757
        %v1863 = vpop.f32.mrb[0].mxu0
        %v1864 = vadd.f32 %v1779, %v1863
        %v1865 = vpop.f32.mrb[0].mxu0
        %v1866 = vpop.f32.mrb[0].mxu0
        %v1867 = vpop.f32.mrb[0].mxu0
        %1868 = vdwg.mxu0
        %1869 = vst [vmem:[%s419] sm:$0xf] %v1864
        %s1870 = sand.u32 %s296, 1
        %s1871 = scalar_lea.sflag [#allocation3], %s1870
        %s1872 = sand.u32 %s296, 1
        %s1873 = smul.addr %s1872, 4
        %s1874 = scalar_lea.vmem [#allocation2], %s1873
        // Predicated region
        $region69: #{ms_hgnn_forward.13} parent=67 // pred_check
          %p1875 = pneg %p306
        $region70: #{ms_hgnn_forward.13} parent=67 // pred_check_branch
          %1877 = sbr.rel (%p1875) target = $region72
        $region71: #{ms_hgnn_forward.13} parent=67 // pred_region
          %s1879 = ssub.s32 64, 64
          %1880 = vsyncadd %s1871, %s1879
          %s1881 = smul.addr %s26, 64
          %s1882 = scalar_lea.hbm %s12, %s1881
          %s1884 = sshll.u32 %s1874, 4
          %s1885 = int_to_ptr.vmem [resolvable:$true] %s1884
          %1887 = dma.vmem_to_hbm [thread:$0]  %s1885, 64, %s1882, %s1871
        $region72: #{ms_hgnn_forward.13} parent=67 // pred_fallthru
          _
      $region68: #{ms_hgnn_forward.13} parent=5 // pred_fallthru
        _
      %p1888 = scmp.le.s32.totalorder 2, %s21
      // Predicated region
      $region73: #{ms_hgnn_forward.13} parent=5 // pred_check
        %p1889 = pneg %p1888
      $region74: #{ms_hgnn_forward.13} parent=5 // pred_check_branch
        %1891 = sbr.rel (%p1889) target = $region76
      $region75: #{ms_hgnn_forward.13} parent=5 // pred_region
        %s1892 = ssub.s32 %s21, 2
        // Predicated region
        $region77: #{ms_hgnn_forward.13} parent=75 // pred_check
          %p1893 = pneg %p312
        $region78: #{ms_hgnn_forward.13} parent=75 // pred_check_branch
          %1895 = sbr.rel (%p1893) target = $region80
        $region79: #{ms_hgnn_forward.13} parent=75 // pred_region
          %s1896 = sand.u32 %s297, 1
          %s1897 = scalar_lea.sflag [#allocation3], %s1896
          %s1898 = sand.u32 %s297, 1
          %s1899 = smul.addr %s1898, 4
          %s1900 = scalar_lea.vmem [#allocation2], %s1899
          %1901 = dma.done %s1897, 64
        $region80: #{ms_hgnn_forward.13} parent=75 // pred_fallthru
          _
      $region76: #{ms_hgnn_forward.13} parent=5 // pred_fallthru
        _
    $region6: #{ms_hgnn_forward.13} parent=1 // loop_footer
      %s25 = sadd.s32 1, %s21
    $region7: #{ms_hgnn_forward.13} parent=1 // loop_footer_branch
      %20 = sbr.rel target = $region3
    $region8: #{ms_hgnn_forward.13} parent=1 // loop_exit
      _
    %1902 = vsyncpa [#allocation3], 1
    %s1903 = scalar_lea.sflag [#allocation3], 1
    %1904 = vsyncpa %s1903, 1

// kernel: ms_hgnn_forward.8
$region0: #{ms_hgnn_forward.8}
  #allocation0 [shape = 'u32[]', space=smem, size = 0x4, offset = 0x4, fixed_abs, tag = 'smem constant byte address 0x4 - core index']
  #allocation1 [shape = 'u32[144,128]{1,0:T(1,128)}', space=vmem, size = 0x12000, scoped, tag = 'internal scratch']
  #allocation2 [shape = 'f32[1,1]{1,0:T(1,128)S(1)}', space=vmem, size = 0x200, scoped, tag = 'scoped memory for ms_hgnn_forward.8']
  %s0 = inlined_call_operand.vmem [shape: bf16[2,4,64], index: 0, kind: input, shape index: {}]
  %s1 = inlined_call_operand.vmem [shape: f32[16,4], index: 1, kind: input, shape index: {}]
  %s2 = inlined_call_operand.vmem [shape: bf16[64,256], index: 2, kind: input, shape index: {}]
  %s3 = inlined_call_operand.vmem [shape: f32[1,256], index: 3, kind: input, shape index: {}]
  %s4 = inlined_call_operand.vmem [shape: bf16[256,64], index: 4, kind: input, shape index: {}]
  %s5 = inlined_call_operand.vmem [shape: f32[1,64], index: 5, kind: input, shape index: {}]
  %s6 = inlined_call_operand.vmem [shape: bf16[64,32], index: 6, kind: input, shape index: {}]
  %s7 = inlined_call_operand.vmem [shape: bf16[64,32], index: 7, kind: input, shape index: {}]
  %s8 = inlined_call_operand.vmem [shape: f32[1,32], index: 8, kind: input, shape index: {}]
  %s9 = inlined_call_operand.vmem [shape: f32[1,32], index: 9, kind: input, shape index: {}]
  %s10 = inlined_call_operand.<no memory space> [shape: f32[1,1], index: 10, kind: input, shape index: {}]
  %s11 = inlined_call_operand.vmem [shape: bf16[2,16,64], index: 11, kind: output, shape index: {}]
  %s12 = sld [smem:[#allocation0]]
  $region77: #{ms_hgnn_forward.8} parent=0
    _
  %s14 = ssub.s32 1, %s12
  %s15 = scalar_select 0, %s14, %s12
  %v16 = vstv %s10
  %17 = vst [vmem:[#allocation2] sm:$0x1] %v16
  loop: start=0, step=1, limit=4
  $region2: #{ms_hgnn_forward.8} parent=0 // loop_pre_header
    _
  $region3: #{ms_hgnn_forward.8} parent=0 // loop_header
    %s19 = sphi 0, %s23
    %p20 = scmp.ge.s32.totalorder %s19, 4
    %s29 = sphi 0, %s31
    %s32 = sphi 0, %s29
    %s33 = sphi 0, %s32
    %s49 = sphi 0, %s33
    %s53 = sphi 0, %s53
    %s55 = sphi 0, %s53
    %s56 = sphi 0, %s55
    %s70 = sphi 0, %s56
    %s74 = sphi 0, %s74
    %s76 = sphi 0, %s74
    %s77 = sphi 0, %s76
    %s91 = sphi 0, %s77
    %s95 = sphi 0, %s95
    %s97 = sphi 0, %s95
    %s98 = sphi 0, %s97
    %s112 = sphi 0, %s98
    %s116 = sphi 0, %s116
    %s118 = sphi 0, %s116
    %s119 = sphi 0, %s118
    %s133 = sphi 0, %s119
    %s137 = sphi 0, %s137
    %s139 = sphi 0, %s137
    %s140 = sphi 0, %s139
    %s154 = sphi 0, %s140
    %s158 = sphi 0, %s158
    %s160 = sphi 0, %s158
    %s161 = sphi 0, %s160
    %s175 = sphi 0, %s161
    %s179 = sphi 0, %s179
    %s181 = sphi 0, %s179
    %s182 = sphi 0, %s181
    %s196 = sphi 0, %s182
    %s200 = sphi 0, %s200
    %s202 = sphi 0, %s200
    %s203 = sphi 0, %s202
    %s217 = sphi 0, %s203
    %s221 = sphi 0, %s221
    %s223 = sphi 0, %s221
    %s224 = sphi 0, %s223
    %s238 = sphi 0, %s224
    %s242 = sphi 0, %s242
    %s244 = sphi 0, %s242
    %s245 = sphi 0, %s244
    %s259 = sphi 0, %s245
    %s265 = sphi 0, %s267
    %s268 = sphi 0, %s265
    %s269 = sphi 0, %s268
    %s285 = sphi 0, %s269
  $region4: #{ms_hgnn_forward.8} parent=0 // loop_header_branch
    %22 = sbr.rel (%p20) target = $region8
  $region5: #{ms_hgnn_forward.8} parent=0 // loop_body
    %s24 = ssub.s32 %s19, 1
    %s25 = ssub.s32 %s19, 2
    %s26 = sadd.s32 %s19, 1
    %s27 = ssub.s32 %s19, %s26
    %p28 = scmp.eq.s32.totalorder %s27, 0
    %s30 = sadd.s32 %s29, 1
    %s31 = scalar_select %p28, %s29, %s30
    %p34 = pneg %p28
    %p35 = scmp.eq.s32.totalorder %s19, 1
    %p36 = por %p34, %p35
    %p37 = scmp.ne.s32.totalorder %s29, %s32
    %p38 = scmp.eq.s32.totalorder %s19, 0
    %p39 = por %p37, %p38
    %p40 = scmp.ne.s32.totalorder %s29, %s32
    %p41 = scmp.eq.s32.totalorder %s24, 1
    %p42 = por %p40, %p41
    %p43 = scmp.ne.s32.totalorder %s32, %s33
    %p44 = scmp.eq.s32.totalorder %s24, 0
    %p45 = por %p43, %p44
    %p46 = scmp.ne.s32.totalorder %s32, %s33
    %p47 = scmp.eq.s32.totalorder %s25, 1
    %p48 = por %p46, %p47
    %p50 = scmp.ne.s32.totalorder %s33, %s49
    %p51 = scmp.eq.s32.totalorder %s25, 0
    %p52 = por %p50, %p51
    %s54 = sadd.s32 %s53, 1
    %p57 = scmp.eq.s32.totalorder %s19, 1
    %p58 = scmp.ne.s32.totalorder %s53, %s55
    %p59 = scmp.eq.s32.totalorder %s19, 0
    %p60 = por %p58, %p59
    %p61 = scmp.ne.s32.totalorder %s53, %s55
    %p62 = scmp.eq.s32.totalorder %s24, 1
    %p63 = por %p61, %p62
    %p64 = scmp.ne.s32.totalorder %s55, %s56
    %p65 = scmp.eq.s32.totalorder %s24, 0
    %p66 = por %p64, %p65
    %p67 = scmp.ne.s32.totalorder %s55, %s56
    %p68 = scmp.eq.s32.totalorder %s25, 1
    %p69 = por %p67, %p68
    %p71 = scmp.ne.s32.totalorder %s56, %s70
    %p72 = scmp.eq.s32.totalorder %s25, 0
    %p73 = por %p71, %p72
    %s75 = sadd.s32 %s74, 1
    %p78 = scmp.eq.s32.totalorder %s19, 1
    %p79 = scmp.ne.s32.totalorder %s74, %s76
    %p80 = scmp.eq.s32.totalorder %s19, 0
    %p81 = por %p79, %p80
    %p82 = scmp.ne.s32.totalorder %s74, %s76
    %p83 = scmp.eq.s32.totalorder %s24, 1
    %p84 = por %p82, %p83
    %p85 = scmp.ne.s32.totalorder %s76, %s77
    %p86 = scmp.eq.s32.totalorder %s24, 0
    %p87 = por %p85, %p86
    %p88 = scmp.ne.s32.totalorder %s76, %s77
    %p89 = scmp.eq.s32.totalorder %s25, 1
    %p90 = por %p88, %p89
    %p92 = scmp.ne.s32.totalorder %s77, %s91
    %p93 = scmp.eq.s32.totalorder %s25, 0
    %p94 = por %p92, %p93
    %s96 = sadd.s32 %s95, 1
    %p99 = scmp.eq.s32.totalorder %s19, 1
    %p100 = scmp.ne.s32.totalorder %s95, %s97
    %p101 = scmp.eq.s32.totalorder %s19, 0
    %p102 = por %p100, %p101
    %p103 = scmp.ne.s32.totalorder %s95, %s97
    %p104 = scmp.eq.s32.totalorder %s24, 1
    %p105 = por %p103, %p104
    %p106 = scmp.ne.s32.totalorder %s97, %s98
    %p107 = scmp.eq.s32.totalorder %s24, 0
    %p108 = por %p106, %p107
    %p109 = scmp.ne.s32.totalorder %s97, %s98
    %p110 = scmp.eq.s32.totalorder %s25, 1
    %p111 = por %p109, %p110
    %p113 = scmp.ne.s32.totalorder %s98, %s112
    %p114 = scmp.eq.s32.totalorder %s25, 0
    %p115 = por %p113, %p114
    %s117 = sadd.s32 %s116, 1
    %p120 = scmp.eq.s32.totalorder %s19, 1
    %p121 = scmp.ne.s32.totalorder %s116, %s118
    %p122 = scmp.eq.s32.totalorder %s19, 0
    %p123 = por %p121, %p122
    %p124 = scmp.ne.s32.totalorder %s116, %s118
    %p125 = scmp.eq.s32.totalorder %s24, 1
    %p126 = por %p124, %p125
    %p127 = scmp.ne.s32.totalorder %s118, %s119
    %p128 = scmp.eq.s32.totalorder %s24, 0
    %p129 = por %p127, %p128
    %p130 = scmp.ne.s32.totalorder %s118, %s119
    %p131 = scmp.eq.s32.totalorder %s25, 1
    %p132 = por %p130, %p131
    %p134 = scmp.ne.s32.totalorder %s119, %s133
    %p135 = scmp.eq.s32.totalorder %s25, 0
    %p136 = por %p134, %p135
    %s138 = sadd.s32 %s137, 1
    %p141 = scmp.eq.s32.totalorder %s19, 1
    %p142 = scmp.ne.s32.totalorder %s137, %s139
    %p143 = scmp.eq.s32.totalorder %s19, 0
    %p144 = por %p142, %p143
    %p145 = scmp.ne.s32.totalorder %s137, %s139
    %p146 = scmp.eq.s32.totalorder %s24, 1
    %p147 = por %p145, %p146
    %p148 = scmp.ne.s32.totalorder %s139, %s140
    %p149 = scmp.eq.s32.totalorder %s24, 0
    %p150 = por %p148, %p149
    %p151 = scmp.ne.s32.totalorder %s139, %s140
    %p152 = scmp.eq.s32.totalorder %s25, 1
    %p153 = por %p151, %p152
    %p155 = scmp.ne.s32.totalorder %s140, %s154
    %p156 = scmp.eq.s32.totalorder %s25, 0
    %p157 = por %p155, %p156
    %s159 = sadd.s32 %s158, 1
    %p162 = scmp.eq.s32.totalorder %s19, 1
    %p163 = scmp.ne.s32.totalorder %s158, %s160
    %p164 = scmp.eq.s32.totalorder %s19, 0
    %p165 = por %p163, %p164
    %p166 = scmp.ne.s32.totalorder %s158, %s160
    %p167 = scmp.eq.s32.totalorder %s24, 1
    %p168 = por %p166, %p167
    %p169 = scmp.ne.s32.totalorder %s160, %s161
    %p170 = scmp.eq.s32.totalorder %s24, 0
    %p171 = por %p169, %p170
    %p172 = scmp.ne.s32.totalorder %s160, %s161
    %p173 = scmp.eq.s32.totalorder %s25, 1
    %p174 = por %p172, %p173
    %p176 = scmp.ne.s32.totalorder %s161, %s175
    %p177 = scmp.eq.s32.totalorder %s25, 0
    %p178 = por %p176, %p177
    %s180 = sadd.s32 %s179, 1
    %p183 = scmp.eq.s32.totalorder %s19, 1
    %p184 = scmp.ne.s32.totalorder %s179, %s181
    %p185 = scmp.eq.s32.totalorder %s19, 0
    %p186 = por %p184, %p185
    %p187 = scmp.ne.s32.totalorder %s179, %s181
    %p188 = scmp.eq.s32.totalorder %s24, 1
    %p189 = por %p187, %p188
    %p190 = scmp.ne.s32.totalorder %s181, %s182
    %p191 = scmp.eq.s32.totalorder %s24, 0
    %p192 = por %p190, %p191
    %p193 = scmp.ne.s32.totalorder %s181, %s182
    %p194 = scmp.eq.s32.totalorder %s25, 1
    %p195 = por %p193, %p194
    %p197 = scmp.ne.s32.totalorder %s182, %s196
    %p198 = scmp.eq.s32.totalorder %s25, 0
    %p199 = por %p197, %p198
    %s201 = sadd.s32 %s200, 1
    %p204 = scmp.eq.s32.totalorder %s19, 1
    %p205 = scmp.ne.s32.totalorder %s200, %s202
    %p206 = scmp.eq.s32.totalorder %s19, 0
    %p207 = por %p205, %p206
    %p208 = scmp.ne.s32.totalorder %s200, %s202
    %p209 = scmp.eq.s32.totalorder %s24, 1
    %p210 = por %p208, %p209
    %p211 = scmp.ne.s32.totalorder %s202, %s203
    %p212 = scmp.eq.s32.totalorder %s24, 0
    %p213 = por %p211, %p212
    %p214 = scmp.ne.s32.totalorder %s202, %s203
    %p215 = scmp.eq.s32.totalorder %s25, 1
    %p216 = por %p214, %p215
    %p218 = scmp.ne.s32.totalorder %s203, %s217
    %p219 = scmp.eq.s32.totalorder %s25, 0
    %p220 = por %p218, %p219
    %s222 = sadd.s32 %s221, 1
    %p225 = scmp.eq.s32.totalorder %s19, 1
    %p226 = scmp.ne.s32.totalorder %s221, %s223
    %p227 = scmp.eq.s32.totalorder %s19, 0
    %p228 = por %p226, %p227
    %p229 = scmp.ne.s32.totalorder %s221, %s223
    %p230 = scmp.eq.s32.totalorder %s24, 1
    %p231 = por %p229, %p230
    %p232 = scmp.ne.s32.totalorder %s223, %s224
    %p233 = scmp.eq.s32.totalorder %s24, 0
    %p234 = por %p232, %p233
    %p235 = scmp.ne.s32.totalorder %s223, %s224
    %p236 = scmp.eq.s32.totalorder %s25, 1
    %p237 = por %p235, %p236
    %p239 = scmp.ne.s32.totalorder %s224, %s238
    %p240 = scmp.eq.s32.totalorder %s25, 0
    %p241 = por %p239, %p240
    %s243 = sadd.s32 %s242, 1
    %p246 = scmp.eq.s32.totalorder %s19, 1
    %p247 = scmp.ne.s32.totalorder %s242, %s244
    %p248 = scmp.eq.s32.totalorder %s19, 0
    %p249 = por %p247, %p248
    %p250 = scmp.ne.s32.totalorder %s242, %s244
    %p251 = scmp.eq.s32.totalorder %s24, 1
    %p252 = por %p250, %p251
    %p253 = scmp.ne.s32.totalorder %s244, %s245
    %p254 = scmp.eq.s32.totalorder %s24, 0
    %p255 = por %p253, %p254
    %p256 = scmp.ne.s32.totalorder %s244, %s245
    %p257 = scmp.eq.s32.totalorder %s25, 1
    %p258 = por %p256, %p257
    %p260 = scmp.ne.s32.totalorder %s245, %s259
    %p261 = scmp.eq.s32.totalorder %s25, 0
    %p262 = por %p260, %p261
    %s263 = ssub.s32 %s19, %s26
    %p264 = scmp.eq.s32.totalorder %s263, 0
    %s266 = sadd.s32 %s265, 1
    %s267 = scalar_select %p264, %s265, %s266
    %p270 = pneg %p264
    %p271 = scmp.eq.s32.totalorder %s19, 1
    %p272 = por %p270, %p271
    %p273 = scmp.ne.s32.totalorder %s265, %s268
    %p274 = scmp.eq.s32.totalorder %s19, 0
    %p275 = por %p273, %p274
    %p276 = scmp.ne.s32.totalorder %s265, %s268
    %p277 = scmp.eq.s32.totalorder %s24, 1
    %p278 = por %p276, %p277
    %p279 = scmp.ne.s32.totalorder %s268, %s269
    %p280 = scmp.eq.s32.totalorder %s24, 0
    %p281 = por %p279, %p280
    %p282 = scmp.ne.s32.totalorder %s268, %s269
    %p283 = scmp.eq.s32.totalorder %s25, 1
    %p284 = por %p282, %p283
    %p286 = scmp.ne.s32.totalorder %s269, %s285
    %p287 = scmp.eq.s32.totalorder %s25, 0
    %p288 = por %p286, %p287
    %p289 = scmp.le.s32.totalorder 1, %s19
    %p290 = scmp.lt.s32.totalorder %s19, 3
    %p291 = pnand %p289, %p290
    %p292 = pneg %p291
    // Predicated region
    $region9: #{ms_hgnn_forward.8} parent=5 // pred_check
      _
    $region10: #{ms_hgnn_forward.8} parent=5 // pred_check_branch
      %294 = sbr.rel (%p291) target = $region12
    $region11: #{ms_hgnn_forward.8} parent=5 // pred_region
      %s295 = ssub.s32 %s19, 1
      // Predicated region
      $region13: #{ms_hgnn_forward.8} parent=11 // pred_check
        %p296 = pneg %p66
      $region14: #{ms_hgnn_forward.8} parent=11 // pred_check_branch
        %298 = sbr.rel (%p296) target = $region16
      $region15: #{ms_hgnn_forward.8} parent=11 // pred_region
        _
      $region16: #{ms_hgnn_forward.8} parent=11 // pred_fallthru
        _
      // Predicated region
      $region17: #{ms_hgnn_forward.8} parent=11 // pred_check
        %p299 = pneg %p87
      $region18: #{ms_hgnn_forward.8} parent=11 // pred_check_branch
        %301 = sbr.rel (%p299) target = $region20
      $region19: #{ms_hgnn_forward.8} parent=11 // pred_region
        _
      $region20: #{ms_hgnn_forward.8} parent=11 // pred_fallthru
        _
      // Predicated region
      $region21: #{ms_hgnn_forward.8} parent=11 // pred_check
        %p302 = pneg %p108
      $region22: #{ms_hgnn_forward.8} parent=11 // pred_check_branch
        %304 = sbr.rel (%p302) target = $region24
      $region23: #{ms_hgnn_forward.8} parent=11 // pred_region
        _
      $region24: #{ms_hgnn_forward.8} parent=11 // pred_fallthru
        _
      // Predicated region
      $region25: #{ms_hgnn_forward.8} parent=11 // pred_check
        %p305 = pneg %p129
      $region26: #{ms_hgnn_forward.8} parent=11 // pred_check_branch
        %307 = sbr.rel (%p305) target = $region28
      $region27: #{ms_hgnn_forward.8} parent=11 // pred_region
        _
      $region28: #{ms_hgnn_forward.8} parent=11 // pred_fallthru
        _
      // Predicated region
      $region29: #{ms_hgnn_forward.8} parent=11 // pred_check
        %p308 = pneg %p150
      $region30: #{ms_hgnn_forward.8} parent=11 // pred_check_branch
        %310 = sbr.rel (%p308) target = $region32
      $region31: #{ms_hgnn_forward.8} parent=11 // pred_region
        _
      $region32: #{ms_hgnn_forward.8} parent=11 // pred_fallthru
        _
      // Predicated region
      $region33: #{ms_hgnn_forward.8} parent=11 // pred_check
        %p311 = pneg %p171
      $region34: #{ms_hgnn_forward.8} parent=11 // pred_check_branch
        %313 = sbr.rel (%p311) target = $region36
      $region35: #{ms_hgnn_forward.8} parent=11 // pred_region
        _
      $region36: #{ms_hgnn_forward.8} parent=11 // pred_fallthru
        _
      // Predicated region
      $region37: #{ms_hgnn_forward.8} parent=11 // pred_check
        %p314 = pneg %p192
      $region38: #{ms_hgnn_forward.8} parent=11 // pred_check_branch
        %316 = sbr.rel (%p314) target = $region40
      $region39: #{ms_hgnn_forward.8} parent=11 // pred_region
        _
      $region40: #{ms_hgnn_forward.8} parent=11 // pred_fallthru
        _
      // Predicated region
      $region41: #{ms_hgnn_forward.8} parent=11 // pred_check
        %p317 = pneg %p213
      $region42: #{ms_hgnn_forward.8} parent=11 // pred_check_branch
        %319 = sbr.rel (%p317) target = $region44
      $region43: #{ms_hgnn_forward.8} parent=11 // pred_region
        _
      $region44: #{ms_hgnn_forward.8} parent=11 // pred_fallthru
        _
      // Predicated region
      $region45: #{ms_hgnn_forward.8} parent=11 // pred_check
        %p320 = pneg %p234
      $region46: #{ms_hgnn_forward.8} parent=11 // pred_check_branch
        %322 = sbr.rel (%p320) target = $region48
      $region47: #{ms_hgnn_forward.8} parent=11 // pred_region
        _
      $region48: #{ms_hgnn_forward.8} parent=11 // pred_fallthru
        _
      // Predicated region
      $region49: #{ms_hgnn_forward.8} parent=11 // pred_check
        %p323 = pneg %p255
      $region50: #{ms_hgnn_forward.8} parent=11 // pred_check_branch
        %325 = sbr.rel (%p323) target = $region52
      $region51: #{ms_hgnn_forward.8} parent=11 // pred_region
        _
      $region52: #{ms_hgnn_forward.8} parent=11 // pred_fallthru
        _
    $region12: #{ms_hgnn_forward.8} parent=5 // pred_fallthru
      _
    %p326 = scmp.lt.s32.totalorder %s19, 2
    // Predicated region
    $region53: #{ms_hgnn_forward.8} parent=5 // pred_check
      %p327 = pneg %p326
    $region54: #{ms_hgnn_forward.8} parent=5 // pred_check_branch
      %329 = sbr.rel (%p327) target = $region56
    $region55: #{ms_hgnn_forward.8} parent=5 // pred_region
      // Predicated region
      $region57: #{ms_hgnn_forward.8} parent=55 // pred_check
        %p330 = pneg %p39
      $region58: #{ms_hgnn_forward.8} parent=55 // pred_check_branch
        %332 = sbr.rel (%p330) target = $region60
      $region59: #{ms_hgnn_forward.8} parent=55 // pred_region
        %p333 = scmp.lt.s32.totalorder %s19, 1
        %s334 = scalar_select %p333, %s19, 1
        %s335 = smul.addr %s334, 2
        %s336 = scalar_lea.vmem %s0, %s335
      $region60: #{ms_hgnn_forward.8} parent=55 // pred_fallthru
        _
    $region56: #{ms_hgnn_forward.8} parent=5 // pred_fallthru
      _
    %p337 = scmp.le.s32.totalorder 1, %s19
    %p338 = scmp.lt.s32.totalorder %s19, 3
    %p339 = pnand %p337, %p338
    %p340 = pneg %p339
    // Predicated region
    $region61: #{ms_hgnn_forward.8} parent=5 // pred_check
      _
    $region62: #{ms_hgnn_forward.8} parent=5 // pred_check_branch
      %342 = sbr.rel (%p339) target = $region64
    $region63: #{ms_hgnn_forward.8} parent=5 // pred_region
      %s343 = ssub.s32 %s19, 1
      %p344 = scmp.lt.s32.totalorder %s24, 1
      %s345 = scalar_select %p344, %s24, 1
      %s346 = smul.addr %s345, 2
      %s347 = scalar_lea.vmem %s0, %s346
      %p348 = pneg %p45
      %p349 = pneg %p42
      %p350 = pneg %p66
      %p351 = pneg %p63
      %p352 = pneg %p87
      %p353 = pneg %p84
      %p354 = pneg %p108
      %p355 = pneg %p105
      %p356 = pneg %p129
      %p357 = pneg %p126
      %p358 = pneg %p150
      %p359 = pneg %p147
      %p360 = pneg %p171
      %p361 = pneg %p168
      %p362 = pneg %p192
      %p363 = pneg %p189
      %p364 = pneg %p213
      %p365 = pneg %p210
      %p366 = pneg %p234
      %p367 = pneg %p231
      %p368 = pneg %p255
      %p369 = pneg %p252
      %p370 = pneg %p281
      %p371 = pneg %p278
      %p372 = scmp.lt.s32.totalorder %s24, 1
      %s373 = scalar_select %p372, %s24, 1
      %s374 = smul.addr %s373, 2
      %s375 = smul.addr %s374, 4
      %s376 = scalar_lea.vmem %s11, %s375
      %p377 = scmp.lt.s32.totalorder %s24, 1
      %s378 = scalar_select %p377, %s24, 1
      %s379 = smul.addr %s378, 2
      %s380 = scalar_lea.vmem %s0, %s379
      %p381 = scmp.lt.s32.totalorder %s24, 1
      %s382 = scalar_select %p381, %s24, 1
      %s383 = smul.addr %s382, 2
      %s384 = smul.addr %s383, 4
      %s385 = scalar_lea.vmem %s11, %s384
      %v387 = vld [vmem:[%s380] sm:$0x3]
      %v388 = vld [vmem:[%s2] sm:$0xff]
      %v389 = vld [vmem:[%s2 + $0x8] sm:$0xff]
      %v390 = vld [vmem:[%s2 + $0x10] sm:$0xff]
      %v391 = vld [vmem:[%s2 + $0x18] sm:$0xff]
      %v392 = vld [vmem:[%s2 + $0x20] sm:$0xff]
      %v393 = vld [vmem:[%s2 + $0x28] sm:$0xff]
      %v394 = vld [vmem:[%s2 + $0x30] sm:$0xff]
      %v395 = vld [vmem:[%s2 + $0x38] sm:$0xff]
      %v396 = vld [vmem:[%s3] sm:$0x3]
      %v398 = vlaneseq
      %v399 = vshrl.u32 %v398, 7
      %v400 = vsub.s32 0, %v399
      %v401 = vrot.slane %v396, %v400
      %v402 = vlaneseq
      %v403 = vshrl.u32 %v402, 7
      %v404 = vsub.s32 1, %v403
      %v405 = vrot.slane %v396, %v404
      %v416 = vunpack.c.l.b16 %v388
      %v417 = vunpack.c.h.b16 %v388
      %v418 = vunpack.c.l.b16 %v389
      %v419 = vunpack.c.h.b16 %v389
      %v420 = vunpack.c.l.b16 %v390
      %v421 = vunpack.c.h.b16 %v390
      %v422 = vunpack.c.l.b16 %v391
      %v423 = vunpack.c.h.b16 %v391
      %v424 = vunpack.c.l.b16 %v392
      %v425 = vunpack.c.h.b16 %v392
      %v426 = vunpack.c.l.b16 %v393
      %v427 = vunpack.c.h.b16 %v393
      %v428 = vunpack.c.l.b16 %v394
      %v429 = vunpack.c.h.b16 %v394
      %v430 = vunpack.c.l.b16 %v395
      %v431 = vunpack.c.h.b16 %v395
      %v432 = vpack.c.b16 %v418, %v416
      %v433 = vpack.c.b16 %v419, %v417
      %v434 = vpack.c.b16 %v422, %v420
      %v435 = vpack.c.b16 %v423, %v421
      %v436 = vpack.c.b16 %v426, %v424
      %v437 = vpack.c.b16 %v427, %v425
      %v438 = vpack.c.b16 %v430, %v428
      %v439 = vpack.c.b16 %v431, %v429
      %vm448 = vcmask 523264
      %v450 = vsel %vm448, %v387, 0
      %452 = vmatprep.subr.bf16.mxu0 %v433
      %453 = vmatpush1.bf16.msra.mxu0 %v432
      %454 = vmatprep.subr.bf16.mxu0 %v435
      %455 = vmatpush1.bf16.msra.mxu0 %v434
      %456 = vmatprep.subr.bf16.mxu0 %v437
      %457 = vmatpush1.bf16.msra.mxu0 %v436
      %458 = vmatprep.subr.bf16.mxu0 %v439
      %459 = vmatpush1.bf16.msra.mxu0 %v438
      %460 = vmatprep.subr.bf16.mxu0 0
      %461 = vmatpush1.bf16.msra.mxu0 0
      %462 = vmatprep.subr.bf16.mxu0 0
      %463 = vmatpush1.bf16.msra.mxu0 0
      %464 = vmatprep.subr.bf16.mxu0 0
      %465 = vmatpush1.bf16.msra.mxu0 0
      %466 = vmatprep.subr.bf16.mxu0 0
      %467 = vmatpush1.bf16.msra.mxu0 0
      %468 = vmatprep.subr.bf16.mxu0 0
      %469 = vmatpush1.bf16.msra.mxu0 0
      %470 = vmatprep.subr.bf16.mxu0 0
      %471 = vmatpush1.bf16.msra.mxu0 0
      %472 = vmatprep.subr.bf16.mxu0 0
      %473 = vmatpush1.bf16.msra.mxu0 0
      %474 = vmatprep.subr.bf16.mxu0 0
      %475 = vmatpush1.bf16.msra.mxu0 0
      %476 = vmatprep.subr.bf16.mxu0 0
      %477 = vmatpush1.bf16.msra.mxu0 0
      %478 = vmatprep.subr.bf16.mxu0 0
      %479 = vmatpush1.bf16.msra.mxu0 0
      %480 = vmatprep.subr.bf16.mxu0 0
      %481 = vmatpush1.bf16.msra.mxu0 0
      %482 = vmatprep.subr.bf16.mxu0 0
      %483 = vmatpush1.bf16.msra.mxu0 0
      %484 = vmatprep.mubr.bf16.mxu0 0
      %485 = vmatmul.mubr.bf16.gmra.mrb[0].mxu0 %v450
      %v486 = vpop.f32.mrb[0].mxu0
      %v487 = vadd.f32 %v401, %v486
      %v488 = vpop.f32.mrb[0].mxu0
      %v489 = vadd.f32 %v405, %v488
      %v490 = vpop.f32.mrb[0].mxu0
      %v491 = vpop.f32.mrb[0].mxu0
      %492 = vdwg.mxu0
      %v493 = vmax.f32 %v487, 0.0
      %v494 = vmax.f32 %v489, 0.0
      %v495 = vpack.c.bf16 %v493, %v493
      %v496 = vpack.c.bf16 %v494, %v494
      %v497 = vld [vmem:[%s4] sm:$0xf]
      %v498 = vld [vmem:[%s4 + $0x4] sm:$0xf]
      %v499 = vld [vmem:[%s4 + $0x8] sm:$0xf]
      %v500 = vld [vmem:[%s4 + $0xc] sm:$0xf]
      %v501 = vld [vmem:[%s4 + $0x10] sm:$0xf]
      %v502 = vld [vmem:[%s4 + $0x14] sm:$0xf]
      %v503 = vld [vmem:[%s4 + $0x18] sm:$0xf]
      %v504 = vld [vmem:[%s4 + $0x1c] sm:$0xf]
      %v505 = vld [vmem:[%s4 + $0x20] sm:$0xf]
      %v506 = vld [vmem:[%s4 + $0x24] sm:$0xf]
      %v507 = vld [vmem:[%s4 + $0x28] sm:$0xf]
      %v508 = vld [vmem:[%s4 + $0x2c] sm:$0xf]
      %v509 = vld [vmem:[%s4 + $0x30] sm:$0xf]
      %v510 = vld [vmem:[%s4 + $0x34] sm:$0xf]
      %v511 = vld [vmem:[%s4 + $0x38] sm:$0xf]
      %v512 = vld [vmem:[%s4 + $0x3c] sm:$0xf]
      %v513 = vld [vmem:[%s4 + $0x40] sm:$0xf]
      %v514 = vld [vmem:[%s4 + $0x44] sm:$0xf]
      %v515 = vld [vmem:[%s4 + $0x48] sm:$0xf]
      %v516 = vld [vmem:[%s4 + $0x4c] sm:$0xf]
      %v517 = vld [vmem:[%s4 + $0x50] sm:$0xf]
      %v518 = vld [vmem:[%s4 + $0x54] sm:$0xf]
      %v519 = vld [vmem:[%s4 + $0x58] sm:$0xf]
      %v520 = vld [vmem:[%s4 + $0x5c] sm:$0xf]
      %v521 = vld [vmem:[%s4 + $0x60] sm:$0xf]
      %v522 = vld [vmem:[%s4 + $0x64] sm:$0xf]
      %v523 = vld [vmem:[%s4 + $0x68] sm:$0xf]
      %v524 = vld [vmem:[%s4 + $0x6c] sm:$0xf]
      %v525 = vld [vmem:[%s4 + $0x70] sm:$0xf]
      %v526 = vld [vmem:[%s4 + $0x74] sm:$0xf]
      %v527 = vld [vmem:[%s4 + $0x78] sm:$0xf]
      %v528 = vld [vmem:[%s4 + $0x7c] sm:$0xf]
      %v529 = vld [vmem:[%s5] sm:$0x1]
      %v531 = vlaneseq
      %v532 = vshrl.u32 %v531, 7
      %v533 = vsub.s32 0, %v532
      %v534 = vrot.slane %v529, %v533
      %v568 = vunpack.c.l.b16 %v497
      %v569 = vunpack.c.l.b16 %v498
      %v570 = vunpack.c.l.b16 %v499
      %v571 = vunpack.c.l.b16 %v500
      %v572 = vunpack.c.l.b16 %v501
      %v573 = vunpack.c.l.b16 %v502
      %v574 = vunpack.c.l.b16 %v503
      %v575 = vunpack.c.l.b16 %v504
      %v576 = vunpack.c.l.b16 %v505
      %v577 = vunpack.c.l.b16 %v506
      %v578 = vunpack.c.l.b16 %v507
      %v579 = vunpack.c.l.b16 %v508
      %v580 = vunpack.c.l.b16 %v509
      %v581 = vunpack.c.l.b16 %v510
      %v582 = vunpack.c.l.b16 %v511
      %v583 = vunpack.c.l.b16 %v512
      %v584 = vunpack.c.l.b16 %v513
      %v585 = vunpack.c.l.b16 %v514
      %v586 = vunpack.c.l.b16 %v515
      %v587 = vunpack.c.l.b16 %v516
      %v588 = vunpack.c.l.b16 %v517
      %v589 = vunpack.c.l.b16 %v518
      %v590 = vunpack.c.l.b16 %v519
      %v591 = vunpack.c.l.b16 %v520
      %v592 = vunpack.c.l.b16 %v521
      %v593 = vunpack.c.l.b16 %v522
      %v594 = vunpack.c.l.b16 %v523
      %v595 = vunpack.c.l.b16 %v524
      %v596 = vunpack.c.l.b16 %v525
      %v597 = vunpack.c.l.b16 %v526
      %v598 = vunpack.c.l.b16 %v527
      %v599 = vunpack.c.l.b16 %v528
      %v600 = vpack.c.b16 %v569, %v568
      %v601 = vpack.c.b16 %v571, %v570
      %v602 = vpack.c.b16 %v573, %v572
      %v603 = vpack.c.b16 %v575, %v574
      %v604 = vpack.c.b16 %v577, %v576
      %v605 = vpack.c.b16 %v579, %v578
      %v606 = vpack.c.b16 %v581, %v580
      %v607 = vpack.c.b16 %v583, %v582
      %v608 = vpack.c.b16 %v585, %v584
      %v609 = vpack.c.b16 %v587, %v586
      %v610 = vpack.c.b16 %v589, %v588
      %v611 = vpack.c.b16 %v591, %v590
      %v612 = vpack.c.b16 %v593, %v592
      %v613 = vpack.c.b16 %v595, %v594
      %v614 = vpack.c.b16 %v597, %v596
      %v615 = vpack.c.b16 %v599, %v598
      %632 = vmatprep.subr.bf16.mxu0 0
      %633 = vmatpush1.bf16.msra.mxu0 %v600
      %634 = vmatprep.subr.bf16.mxu0 0
      %635 = vmatpush1.bf16.msra.mxu0 %v601
      %636 = vmatprep.subr.bf16.mxu0 0
      %637 = vmatpush1.bf16.msra.mxu0 %v602
      %638 = vmatprep.subr.bf16.mxu0 0
      %639 = vmatpush1.bf16.msra.mxu0 %v603
      %640 = vmatprep.subr.bf16.mxu0 0
      %641 = vmatpush1.bf16.msra.mxu0 %v604
      %642 = vmatprep.subr.bf16.mxu0 0
      %643 = vmatpush1.bf16.msra.mxu0 %v605
      %644 = vmatprep.subr.bf16.mxu0 0
      %645 = vmatpush1.bf16.msra.mxu0 %v606
      %646 = vmatprep.subr.bf16.mxu0 0
      %647 = vmatpush1.bf16.msra.mxu0 %v607
      %648 = vmatprep.subr.bf16.mxu0 0
      %649 = vmatpush1.bf16.msra.mxu0 %v608
      %650 = vmatprep.subr.bf16.mxu0 0
      %651 = vmatpush1.bf16.msra.mxu0 %v609
      %652 = vmatprep.subr.bf16.mxu0 0
      %653 = vmatpush1.bf16.msra.mxu0 %v610
      %654 = vmatprep.subr.bf16.mxu0 0
      %655 = vmatpush1.bf16.msra.mxu0 %v611
      %656 = vmatprep.subr.bf16.mxu0 0
      %657 = vmatpush1.bf16.msra.mxu0 %v612
      %658 = vmatprep.subr.bf16.mxu0 0
      %659 = vmatpush1.bf16.msra.mxu0 %v613
      %660 = vmatprep.subr.bf16.mxu0 0
      %661 = vmatpush1.bf16.msra.mxu0 %v614
      %662 = vmatprep.subr.bf16.mxu0 0
      %663 = vmatpush1.bf16.msra.mxu0 %v615
      %664 = vmatprep.mubr.bf16.mxu0 %v496
      %665 = vmatmul.mubr.bf16.gmra.mrb[0].mxu0 %v495
      %v666 = vpop.f32.mrb[0].mxu0
      %v667 = vadd.f32 %v534, %v666
      %v668 = vpop.f32.mrb[0].mxu0
      %v669 = vpop.f32.mrb[0].mxu0
      %v670 = vpop.f32.mrb[0].mxu0
      %671 = vdwg.mxu0
      %v672 = vpack.c.bf16 %v667, %v667
      %v673 = vld [vmem:[%s1] sm:$0xff]
      %v674 = vld [vmem:[%s1 + $0x8] sm:$0xff]
      %v675 = vpack.c.bf16 %v674, %v673
      %vm676 = vcmask 31744
      %v678 = vsel %vm676, %v675, 0
      %vm680 = vcmask 1041408
      %v682 = vsel %vm680, %v672, 0
      %684 = vmatprep.subr.bf16.mxu0 0
      %685 = vmatpush1.bf16.msra.mxu0 %v682
      %686 = vmatprep.subr.bf16.mxu0 0
      %687 = vmatpush1.bf16.msra.mxu0 0
      %688 = vmatprep.subr.bf16.mxu0 0
      %689 = vmatpush1.bf16.msra.mxu0 0
      %690 = vmatprep.subr.bf16.mxu0 0
      %691 = vmatpush1.bf16.msra.mxu0 0
      %692 = vmatprep.subr.bf16.mxu0 0
      %693 = vmatpush1.bf16.msra.mxu0 0
      %694 = vmatprep.subr.bf16.mxu0 0
      %695 = vmatpush1.bf16.msra.mxu0 0
      %696 = vmatprep.subr.bf16.mxu0 0
      %697 = vmatpush1.bf16.msra.mxu0 0
      %698 = vmatprep.subr.bf16.mxu0 0
      %699 = vmatpush1.bf16.msra.mxu0 0
      %700 = vmatprep.subr.bf16.mxu0 0
      %701 = vmatpush1.bf16.msra.mxu0 0
      %702 = vmatprep.subr.bf16.mxu0 0
      %703 = vmatpush1.bf16.msra.mxu0 0
      %704 = vmatprep.subr.bf16.mxu0 0
      %705 = vmatpush1.bf16.msra.mxu0 0
      %706 = vmatprep.subr.bf16.mxu0 0
      %707 = vmatpush1.bf16.msra.mxu0 0
      %708 = vmatprep.subr.bf16.mxu0 0
      %709 = vmatpush1.bf16.msra.mxu0 0
      %710 = vmatprep.subr.bf16.mxu0 0
      %711 = vmatpush1.bf16.msra.mxu0 0
      %712 = vmatprep.subr.bf16.mxu0 0
      %713 = vmatpush1.bf16.msra.mxu0 0
      %714 = vmatprep.subr.bf16.mxu0 0
      %715 = vmatpush1.bf16.msra.mxu0 0
      %716 = vmatprep.mubr.bf16.mxu0 0
      %717 = vmatmul.mubr.bf16.gmra.mrb[0].mxu0 %v678
      %v718 = vpop.f32.mrb[0].mxu0
      %v719 = vadd.f32 0.0, %v718
      %v720 = vpop.f32.mrb[0].mxu0
      %v721 = vpop.f32.mrb[0].mxu0
      %v722 = vadd.f32 0.0, %v721
      %v723 = vpop.f32.mrb[0].mxu0
      %724 = vdwg.mxu0
      %v725 = vld [vmem:[%s6] sm:$0xf]
      %v726 = vld [vmem:[%s6 + $0x4] sm:$0xf]
      %v727 = vld [vmem:[%s6 + $0x8] sm:$0xf]
      %v728 = vld [vmem:[%s6 + $0xc] sm:$0xf]
      %v729 = vld [vmem:[%s6 + $0x10] sm:$0xf]
      %v730 = vld [vmem:[%s6 + $0x14] sm:$0xf]
      %v731 = vld [vmem:[%s6 + $0x18] sm:$0xf]
      %v732 = vld [vmem:[%s6 + $0x1c] sm:$0xf]
      %v741 = vunpack.c.l.b16 %v725
      %v742 = vunpack.c.l.b16 %v726
      %v743 = vunpack.c.l.b16 %v727
      %v744 = vunpack.c.l.b16 %v728
      %v745 = vunpack.c.l.b16 %v729
      %v746 = vunpack.c.l.b16 %v730
      %v747 = vunpack.c.l.b16 %v731
      %v748 = vunpack.c.l.b16 %v732
      %v749 = vpack.c.b16 %v742, %v741
      %v750 = vpack.c.b16 %v744, %v743
      %v751 = vpack.c.b16 %v746, %v745
      %v752 = vpack.c.b16 %v748, %v747
      %v757 = vsel %vm448, %v672, 0
      %759 = vmatprep.subr.bf16.mxu0 0
      %760 = vmatpush1.bf16.msra.mxu0 %v749
      %761 = vmatprep.subr.bf16.mxu0 0
      %762 = vmatpush1.bf16.msra.mxu0 %v750
      %763 = vmatprep.subr.bf16.mxu0 0
      %764 = vmatpush1.bf16.msra.mxu0 %v751
      %765 = vmatprep.subr.bf16.mxu0 0
      %766 = vmatpush1.bf16.msra.mxu0 %v752
      %767 = vmatprep.subr.bf16.mxu0 0
      %768 = vmatpush1.bf16.msra.mxu0 0
      %769 = vmatprep.subr.bf16.mxu0 0
      %770 = vmatpush1.bf16.msra.mxu0 0
      %771 = vmatprep.subr.bf16.mxu0 0
      %772 = vmatpush1.bf16.msra.mxu0 0
      %773 = vmatprep.subr.bf16.mxu0 0
      %774 = vmatpush1.bf16.msra.mxu0 0
      %775 = vmatprep.subr.bf16.mxu0 0
      %776 = vmatpush1.bf16.msra.mxu0 0
      %777 = vmatprep.subr.bf16.mxu0 0
      %778 = vmatpush1.bf16.msra.mxu0 0
      %779 = vmatprep.subr.bf16.mxu0 0
      %780 = vmatpush1.bf16.msra.mxu0 0
      %781 = vmatprep.subr.bf16.mxu0 0
      %782 = vmatpush1.bf16.msra.mxu0 0
      %783 = vmatprep.subr.bf16.mxu0 0
      %784 = vmatpush1.bf16.msra.mxu0 0
      %785 = vmatprep.subr.bf16.mxu0 0
      %786 = vmatpush1.bf16.msra.mxu0 0
      %787 = vmatprep.subr.bf16.mxu0 0
      %788 = vmatpush1.bf16.msra.mxu0 0
      %789 = vmatprep.subr.bf16.mxu0 0
      %790 = vmatpush1.bf16.msra.mxu0 0
      %791 = vmatprep.mubr.bf16.mxu0 0
      %792 = vmatmul.mubr.bf16.gmra.mrb[0].mxu0 %v757
      %v793 = vpop.f32.mrb[0].mxu0
      %v794 = vadd.f32 0.0, %v793
      %v795 = vpop.f32.mrb[0].mxu0
      %v796 = vpop.f32.mrb[0].mxu0
      %v797 = vpop.f32.mrb[0].mxu0
      %798 = vdwg.mxu0
      %v799 = vpack.c.bf16 %v722, %v719
      %v800 = vld [vmem:[%s7] sm:$0xf]
      %v801 = vld [vmem:[%s7 + $0x4] sm:$0xf]
      %v802 = vld [vmem:[%s7 + $0x8] sm:$0xf]
      %v803 = vld [vmem:[%s7 + $0xc] sm:$0xf]
      %v804 = vld [vmem:[%s7 + $0x10] sm:$0xf]
      %v805 = vld [vmem:[%s7 + $0x14] sm:$0xf]
      %v806 = vld [vmem:[%s7 + $0x18] sm:$0xf]
      %v807 = vld [vmem:[%s7 + $0x1c] sm:$0xf]
      %v816 = vunpack.c.l.b16 %v800
      %v817 = vunpack.c.l.b16 %v801
      %v818 = vunpack.c.l.b16 %v802
      %v819 = vunpack.c.l.b16 %v803
      %v820 = vunpack.c.l.b16 %v804
      %v821 = vunpack.c.l.b16 %v805
      %v822 = vunpack.c.l.b16 %v806
      %v823 = vunpack.c.l.b16 %v807
      %v824 = vpack.c.b16 %v817, %v816
      %v825 = vpack.c.b16 %v819, %v818
      %v826 = vpack.c.b16 %v821, %v820
      %v827 = vpack.c.b16 %v823, %v822
      %v833 = vsel %vm448, %v799, 0
      %835 = vmatprep.subr.bf16.mxu0 0
      %836 = vmatpush1.bf16.msra.mxu0 %v824
      %837 = vmatprep.subr.bf16.mxu0 0
      %838 = vmatpush1.bf16.msra.mxu0 %v825
      %839 = vmatprep.subr.bf16.mxu0 0
      %840 = vmatpush1.bf16.msra.mxu0 %v826
      %841 = vmatprep.subr.bf16.mxu0 0
      %842 = vmatpush1.bf16.msra.mxu0 %v827
      %843 = vmatprep.subr.bf16.mxu0 0
      %844 = vmatpush1.bf16.msra.mxu0 0
      %845 = vmatprep.subr.bf16.mxu0 0
      %846 = vmatpush1.bf16.msra.mxu0 0
      %847 = vmatprep.subr.bf16.mxu0 0
      %848 = vmatpush1.bf16.msra.mxu0 0
      %849 = vmatprep.subr.bf16.mxu0 0
      %850 = vmatpush1.bf16.msra.mxu0 0
      %851 = vmatprep.subr.bf16.mxu0 0
      %852 = vmatpush1.bf16.msra.mxu0 0
      %853 = vmatprep.subr.bf16.mxu0 0
      %854 = vmatpush1.bf16.msra.mxu0 0
      %855 = vmatprep.subr.bf16.mxu0 0
      %856 = vmatpush1.bf16.msra.mxu0 0
      %857 = vmatprep.subr.bf16.mxu0 0
      %858 = vmatpush1.bf16.msra.mxu0 0
      %859 = vmatprep.subr.bf16.mxu0 0
      %860 = vmatpush1.bf16.msra.mxu0 0
      %861 = vmatprep.subr.bf16.mxu0 0
      %862 = vmatpush1.bf16.msra.mxu0 0
      %863 = vmatprep.subr.bf16.mxu0 0
      %864 = vmatpush1.bf16.msra.mxu0 0
      %865 = vmatprep.subr.bf16.mxu0 0
      %866 = vmatpush1.bf16.msra.mxu0 0
      %867 = vmatprep.mubr.bf16.mxu0 0
      %868 = vmatmul.mubr.bf16.gmra.mrb[0].mxu0 %v833
      %v869 = vpop.f32.mrb[0].mxu0
      %v870 = vadd.f32 0.0, %v869
      %v871 = vpop.f32.mrb[0].mxu0
      %v872 = vpop.f32.mrb[0].mxu0
      %v873 = vadd.f32 0.0, %v872
      %v874 = vpop.f32.mrb[0].mxu0
      %875 = vdwg.mxu0
      %v878 = vcombine.high %v870, %v870
      %v880 = vunpack.c.l.s4 1966171168
      %v881 = vunpack.c.0.s8 %v880
      %v882 = vlaneseq
      %v883 = vshrl.u32 %v882, 7
      %v884 = vsub.s32 %v881, %v883
      %v885 = vrot.slane %v870, %v884
      %v887 = vunpack.c.l.s4 1966171168
      %v888 = vunpack.c.0.s8 %v887
      %v889 = vlaneseq
      %v890 = vshrl.u32 %v889, 7
      %v891 = vsub.s32 %v888, %v890
      %v892 = vrot.slane %v878, %v891
      %v893 = vcombine.high %v885, %v885
      %v894 = vcombine.high %v892, %v892
      %v896 = vunpack.c.l.s4 1966171168
      %v897 = vunpack.c.0.s8 %v896
      %v898 = vlaneseq
      %v899 = vshrl.u32 %v898, 7
      %v900 = vsub.s32 %v897, %v899
      %v901 = vrot.slane %v885, %v900
      %v903 = vunpack.c.l.s4 1966171168
      %v904 = vunpack.c.0.s8 %v903
      %v905 = vlaneseq
      %v906 = vshrl.u32 %v905, 7
      %v907 = vsub.s32 %v904, %v906
      %v908 = vrot.slane %v892, %v907
      %v910 = vunpack.c.l.s4 1966171168
      %v911 = vunpack.c.0.s8 %v910
      %v912 = vlaneseq
      %v913 = vshrl.u32 %v912, 7
      %v914 = vsub.s32 %v911, %v913
      %v915 = vrot.slane %v893, %v914
      %v917 = vunpack.c.l.s4 1966171168
      %v918 = vunpack.c.0.s8 %v917
      %v919 = vlaneseq
      %v920 = vshrl.u32 %v919, 7
      %v921 = vsub.s32 %v918, %v920
      %v922 = vrot.slane %v894, %v921
      %v923 = vcombine.high %v901, %v901
      %v924 = vcombine.high %v908, %v908
      %v925 = vcombine.high %v915, %v915
      %v926 = vcombine.high %v922, %v922
      %v927 = vcombine.high %v873, %v873
      %v929 = vunpack.c.l.s4 1966171168
      %v930 = vunpack.c.0.s8 %v929
      %v931 = vlaneseq
      %v932 = vshrl.u32 %v931, 7
      %v933 = vsub.s32 %v930, %v932
      %v934 = vrot.slane %v873, %v933
      %v936 = vunpack.c.l.s4 1966171168
      %v937 = vunpack.c.0.s8 %v936
      %v938 = vlaneseq
      %v939 = vshrl.u32 %v938, 7
      %v940 = vsub.s32 %v937, %v939
      %v941 = vrot.slane %v927, %v940
      %v942 = vcombine.high %v934, %v934
      %v943 = vcombine.high %v941, %v941
      %v945 = vunpack.c.l.s4 1966171168
      %v946 = vunpack.c.0.s8 %v945
      %v947 = vlaneseq
      %v948 = vshrl.u32 %v947, 7
      %v949 = vsub.s32 %v946, %v948
      %v950 = vrot.slane %v934, %v949
      %v952 = vunpack.c.l.s4 1966171168
      %v953 = vunpack.c.0.s8 %v952
      %v954 = vlaneseq
      %v955 = vshrl.u32 %v954, 7
      %v956 = vsub.s32 %v953, %v955
      %v957 = vrot.slane %v941, %v956
      %v959 = vunpack.c.l.s4 1966171168
      %v960 = vunpack.c.0.s8 %v959
      %v961 = vlaneseq
      %v962 = vshrl.u32 %v961, 7
      %v963 = vsub.s32 %v960, %v962
      %v964 = vrot.slane %v942, %v963
      %v966 = vunpack.c.l.s4 1966171168
      %v967 = vunpack.c.0.s8 %v966
      %v968 = vlaneseq
      %v969 = vshrl.u32 %v968, 7
      %v970 = vsub.s32 %v967, %v969
      %v971 = vrot.slane %v943, %v970
      %v972 = vcombine.high %v950, %v950
      %v973 = vcombine.high %v957, %v957
      %v974 = vcombine.high %v964, %v964
      %v975 = vcombine.high %v971, %v971
      %v976 = vlaneseq
      %v977 = vshrl.u32 %v976, 7
      %v978 = vsub.s32 0, %v977
      %v979 = vrot.slane %v901, %v978
      %v980 = vlaneseq
      %v981 = vshrl.u32 %v980, 7
      %v982 = vsub.s32 0, %v981
      %v983 = vrot.slane %v915, %v982
      %v984 = vlaneseq
      %v985 = vshrl.u32 %v984, 7
      %v986 = vsub.s32 0, %v985
      %v987 = vrot.slane %v923, %v986
      %v988 = vlaneseq
      %v989 = vshrl.u32 %v988, 7
      %v990 = vsub.s32 0, %v989
      %v991 = vrot.slane %v925, %v990
      %v992 = vlaneseq
      %v993 = vshrl.u32 %v992, 7
      %v994 = vsub.s32 0, %v993
      %v995 = vrot.slane %v908, %v994
      %v996 = vlaneseq
      %v997 = vshrl.u32 %v996, 7
      %v998 = vsub.s32 0, %v997
      %v999 = vrot.slane %v922, %v998
      %v1000 = vlaneseq
      %v1001 = vshrl.u32 %v1000, 7
      %v1002 = vsub.s32 0, %v1001
      %v1003 = vrot.slane %v924, %v1002
      %v1004 = vlaneseq
      %v1005 = vshrl.u32 %v1004, 7
      %v1006 = vsub.s32 0, %v1005
      %v1007 = vrot.slane %v926, %v1006
      %v1008 = vlaneseq
      %v1009 = vshrl.u32 %v1008, 7
      %v1010 = vsub.s32 0, %v1009
      %v1011 = vrot.slane %v950, %v1010
      %v1012 = vlaneseq
      %v1013 = vshrl.u32 %v1012, 7
      %v1014 = vsub.s32 0, %v1013
      %v1015 = vrot.slane %v964, %v1014
      %v1016 = vlaneseq
      %v1017 = vshrl.u32 %v1016, 7
      %v1018 = vsub.s32 0, %v1017
      %v1019 = vrot.slane %v972, %v1018
      %v1020 = vlaneseq
      %v1021 = vshrl.u32 %v1020, 7
      %v1022 = vsub.s32 0, %v1021
      %v1023 = vrot.slane %v974, %v1022
      %v1024 = vlaneseq
      %v1025 = vshrl.u32 %v1024, 7
      %v1026 = vsub.s32 0, %v1025
      %v1027 = vrot.slane %v957, %v1026
      %v1028 = vlaneseq
      %v1029 = vshrl.u32 %v1028, 7
      %v1030 = vsub.s32 0, %v1029
      %v1031 = vrot.slane %v971, %v1030
      %v1032 = vlaneseq
      %v1033 = vshrl.u32 %v1032, 7
      %v1034 = vsub.s32 0, %v1033
      %v1035 = vrot.slane %v973, %v1034
      %v1036 = vlaneseq
      %v1037 = vshrl.u32 %v1036, 7
      %v1038 = vsub.s32 0, %v1037
      %v1039 = vrot.slane %v975, %v1038
      %v1056 = vadd.f32 %v979, %v794
      %v1057 = vadd.f32 %v983, %v794
      %v1058 = vadd.f32 %v987, %v794
      %v1059 = vadd.f32 %v991, %v794
      %v1060 = vadd.f32 %v995, %v794
      %v1061 = vadd.f32 %v999, %v794
      %v1062 = vadd.f32 %v1003, %v794
      %v1063 = vadd.f32 %v1007, %v794
      %v1064 = vadd.f32 %v1011, %v794
      %v1065 = vadd.f32 %v1015, %v794
      %v1066 = vadd.f32 %v1019, %v794
      %v1067 = vadd.f32 %v1023, %v794
      %v1068 = vadd.f32 %v1027, %v794
      %v1069 = vadd.f32 %v1031, %v794
      %v1070 = vadd.f32 %v1035, %v794
      %v1071 = vadd.f32 %v1039, %v794
      %v1072 = vld [vmem:[%s8] sm:$0x1]
      %v1074 = vlaneseq
      %v1075 = vshrl.u32 %v1074, 7
      %v1076 = vsub.s32 0, %v1075
      %v1077 = vrot.slane %v1072, %v1076
      %v1079 = vadd.f32 %v1056, %v1077
      %v1080 = vadd.f32 %v1057, %v1077
      %v1081 = vadd.f32 %v1058, %v1077
      %v1082 = vadd.f32 %v1059, %v1077
      %v1083 = vadd.f32 %v1060, %v1077
      %v1084 = vadd.f32 %v1061, %v1077
      %v1085 = vadd.f32 %v1062, %v1077
      %v1086 = vadd.f32 %v1063, %v1077
      %v1087 = vadd.f32 %v1064, %v1077
      %v1088 = vadd.f32 %v1065, %v1077
      %v1089 = vadd.f32 %v1066, %v1077
      %v1090 = vadd.f32 %v1067, %v1077
      %v1091 = vadd.f32 %v1068, %v1077
      %v1092 = vadd.f32 %v1069, %v1077
      %v1093 = vadd.f32 %v1070, %v1077
      %v1094 = vadd.f32 %v1071, %v1077
      %v1095 = vmax.f32 %v1079, 0.0
      %v1096 = vmax.f32 %v1080, 0.0
      %v1097 = vmax.f32 %v1081, 0.0
      %v1098 = vmax.f32 %v1082, 0.0
      %v1099 = vmax.f32 %v1083, 0.0
      %v1100 = vmax.f32 %v1084, 0.0
      %v1101 = vmax.f32 %v1085, 0.0
      %v1102 = vmax.f32 %v1086, 0.0
      %v1103 = vmax.f32 %v1087, 0.0
      %v1104 = vmax.f32 %v1088, 0.0
      %v1105 = vmax.f32 %v1089, 0.0
      %v1106 = vmax.f32 %v1090, 0.0
      %v1107 = vmax.f32 %v1091, 0.0
      %v1108 = vmax.f32 %v1092, 0.0
      %v1109 = vmax.f32 %v1093, 0.0
      %v1110 = vmax.f32 %v1094, 0.0
      %v1111 = vld [vmem:[%s9] sm:$0x1]
      %v1113 = vlaneseq
      %v1114 = vshrl.u32 %v1113, 7
      %v1115 = vsub.s32 0, %v1114
      %v1116 = vrot.slane %v1111, %v1115
      %v1118 = vmul.f32 %v1095, %v1116
      %v1119 = vmul.f32 %v1096, %v1116
      %v1120 = vmul.f32 %v1097, %v1116
      %v1121 = vmul.f32 %v1098, %v1116
      %v1122 = vmul.f32 %v1099, %v1116
      %v1123 = vmul.f32 %v1100, %v1116
      %v1124 = vmul.f32 %v1101, %v1116
      %v1125 = vmul.f32 %v1102, %v1116
      %v1126 = vmul.f32 %v1103, %v1116
      %v1127 = vmul.f32 %v1104, %v1116
      %v1128 = vmul.f32 %v1105, %v1116
      %v1129 = vmul.f32 %v1106, %v1116
      %v1130 = vmul.f32 %v1107, %v1116
      %v1131 = vmul.f32 %v1108, %v1116
      %v1132 = vmul.f32 %v1109, %v1116
      %v1133 = vmul.f32 %v1110, %v1116
      %vm1134 = vcmask 257024
      %v1135 = vsel %vm1134, %v1118, 0.0
      %1136 = vadd.xlane.f32.xlu0 %v1135
      %v1137 = vpop.xlane.xlu0 %1136
      %v1138 = vsel %vm1134, %v1119, 0.0
      %1139 = vadd.xlane.f32.xlu0 %v1138
      %v1140 = vpop.xlane.xlu0 %1139
      %v1141 = vsel %vm1134, %v1120, 0.0
      %1142 = vadd.xlane.f32.xlu0 %v1141
      %v1143 = vpop.xlane.xlu0 %1142
      %v1144 = vsel %vm1134, %v1121, 0.0
      %1145 = vadd.xlane.f32.xlu0 %v1144
      %v1146 = vpop.xlane.xlu0 %1145
      %v1147 = vsel %vm1134, %v1122, 0.0
      %1148 = vadd.xlane.f32.xlu0 %v1147
      %v1149 = vpop.xlane.xlu0 %1148
      %v1150 = vsel %vm1134, %v1123, 0.0
      %1151 = vadd.xlane.f32.xlu0 %v1150
      %v1152 = vpop.xlane.xlu0 %1151
      %v1153 = vsel %vm1134, %v1124, 0.0
      %1154 = vadd.xlane.f32.xlu0 %v1153
      %v1155 = vpop.xlane.xlu0 %1154
      %v1156 = vsel %vm1134, %v1125, 0.0
      %1157 = vadd.xlane.f32.xlu0 %v1156
      %v1158 = vpop.xlane.xlu0 %1157
      %v1159 = vsel %vm1134, %v1126, 0.0
      %1160 = vadd.xlane.f32.xlu0 %v1159
      %v1161 = vpop.xlane.xlu0 %1160
      %v1162 = vsel %vm1134, %v1127, 0.0
      %1163 = vadd.xlane.f32.xlu0 %v1162
      %v1164 = vpop.xlane.xlu0 %1163
      %v1165 = vsel %vm1134, %v1128, 0.0
      %1166 = vadd.xlane.f32.xlu0 %v1165
      %v1167 = vpop.xlane.xlu0 %1166
      %v1168 = vsel %vm1134, %v1129, 0.0
      %1169 = vadd.xlane.f32.xlu0 %v1168
      %v1170 = vpop.xlane.xlu0 %1169
      %v1171 = vsel %vm1134, %v1130, 0.0
      %1172 = vadd.xlane.f32.xlu0 %v1171
      %v1173 = vpop.xlane.xlu0 %1172
      %v1174 = vsel %vm1134, %v1131, 0.0
      %1175 = vadd.xlane.f32.xlu0 %v1174
      %v1176 = vpop.xlane.xlu0 %1175
      %v1177 = vsel %vm1134, %v1132, 0.0
      %1178 = vadd.xlane.f32.xlu0 %v1177
      %v1179 = vpop.xlane.xlu0 %1178
      %v1180 = vsel %vm1134, %v1133, 0.0
      %1181 = vadd.xlane.f32.xlu0 %v1180
      %v1182 = vpop.xlane.xlu0 %1181
      %v1183 = vld [vmem:[#allocation2] sm:$0x1]
      %v1185 = vlaneseq
      %v1186 = vshrl.u32 %v1185, 7
      %v1187 = vsub.s32 0, %v1186
      %v1188 = vrot.slane %v1183, %v1187
      %1189 = vset.pattern.permute.xlu0 0
      %1190 = vperm.xlu0 %1189, %v1188
      %v1191 = vpop.permute.xlu0 %1190
      %v1193 = vadd.f32 %v1137, %v1191
      %v1194 = vadd.f32 %v1140, %v1191
      %v1195 = vadd.f32 %v1143, %v1191
      %v1196 = vadd.f32 %v1146, %v1191
      %v1197 = vadd.f32 %v1149, %v1191
      %v1198 = vadd.f32 %v1152, %v1191
      %v1199 = vadd.f32 %v1155, %v1191
      %v1200 = vadd.f32 %v1158, %v1191
      %v1201 = vadd.f32 %v1161, %v1191
      %v1202 = vadd.f32 %v1164, %v1191
      %v1203 = vadd.f32 %v1167, %v1191
      %v1204 = vadd.f32 %v1170, %v1191
      %v1205 = vadd.f32 %v1173, %v1191
      %v1206 = vadd.f32 %v1176, %v1191
      %v1207 = vadd.f32 %v1179, %v1191
      %v1208 = vadd.f32 %v1182, %v1191
      %v1211 = vlaneseq
      %v1212 = vshrl.u32 %v1211, 7
      %v1213 = vsub.s32 0, %v1212
      %v1214 = vrot.slane %v673, %v1213
      %1216 = vbcast.lane.b32.xlu0 %v1214, 256
      %v1217 = vpop.permute.xlu0 %1216
      %v1218 = vlaneseq
      %v1219 = vshrl.u32 %v1218, 7
      %v1220 = vsub.s32 1, %v1219
      %v1221 = vrot.slane %v673, %v1220
      %1223 = vbcast.lane.b32.xlu0 %v1221, 256
      %v1224 = vpop.permute.xlu0 %1223
      %v1225 = vlaneseq
      %v1226 = vshrl.u32 %v1225, 7
      %v1227 = vsub.s32 2, %v1226
      %v1228 = vrot.slane %v673, %v1227
      %1230 = vbcast.lane.b32.xlu0 %v1228, 256
      %v1231 = vpop.permute.xlu0 %1230
      %v1232 = vlaneseq
      %v1233 = vshrl.u32 %v1232, 7
      %v1234 = vsub.s32 3, %v1233
      %v1235 = vrot.slane %v673, %v1234
      %1237 = vbcast.lane.b32.xlu0 %v1235, 256
      %v1238 = vpop.permute.xlu0 %1237
      %v1239 = vlaneseq
      %v1240 = vshrl.u32 %v1239, 7
      %v1241 = vsub.s32 4, %v1240
      %v1242 = vrot.slane %v673, %v1241
      %1244 = vbcast.lane.b32.xlu0 %v1242, 256
      %v1245 = vpop.permute.xlu0 %1244
      %v1246 = vlaneseq
      %v1247 = vshrl.u32 %v1246, 7
      %v1248 = vsub.s32 5, %v1247
      %v1249 = vrot.slane %v673, %v1248
      %1251 = vbcast.lane.b32.xlu0 %v1249, 256
      %v1252 = vpop.permute.xlu0 %1251
      %v1253 = vlaneseq
      %v1254 = vshrl.u32 %v1253, 7
      %v1255 = vsub.s32 6, %v1254
      %v1256 = vrot.slane %v673, %v1255
      %1258 = vbcast.lane.b32.xlu0 %v1256, 256
      %v1259 = vpop.permute.xlu0 %1258
      %v1260 = vlaneseq
      %v1261 = vshrl.u32 %v1260, 7
      %v1262 = vsub.s32 7, %v1261
      %v1263 = vrot.slane %v673, %v1262
      %1265 = vbcast.lane.b32.xlu0 %v1263, 256
      %v1266 = vpop.permute.xlu0 %1265
      %v1267 = vlaneseq
      %v1268 = vshrl.u32 %v1267, 7
      %v1269 = vsub.s32 0, %v1268
      %v1270 = vrot.slane %v674, %v1269
      %1272 = vbcast.lane.b32.xlu0 %v1270, 256
      %v1273 = vpop.permute.xlu0 %1272
      %v1274 = vlaneseq
      %v1275 = vshrl.u32 %v1274, 7
      %v1276 = vsub.s32 1, %v1275
      %v1277 = vrot.slane %v674, %v1276
      %1279 = vbcast.lane.b32.xlu0 %v1277, 256
      %v1280 = vpop.permute.xlu0 %1279
      %v1281 = vlaneseq
      %v1282 = vshrl.u32 %v1281, 7
      %v1283 = vsub.s32 2, %v1282
      %v1284 = vrot.slane %v674, %v1283
      %1286 = vbcast.lane.b32.xlu0 %v1284, 256
      %v1287 = vpop.permute.xlu0 %1286
      %v1288 = vlaneseq
      %v1289 = vshrl.u32 %v1288, 7
      %v1290 = vsub.s32 3, %v1289
      %v1291 = vrot.slane %v674, %v1290
      %1293 = vbcast.lane.b32.xlu0 %v1291, 256
      %v1294 = vpop.permute.xlu0 %1293
      %v1295 = vlaneseq
      %v1296 = vshrl.u32 %v1295, 7
      %v1297 = vsub.s32 4, %v1296
      %v1298 = vrot.slane %v674, %v1297
      %1300 = vbcast.lane.b32.xlu0 %v1298, 256
      %v1301 = vpop.permute.xlu0 %1300
      %v1302 = vlaneseq
      %v1303 = vshrl.u32 %v1302, 7
      %v1304 = vsub.s32 5, %v1303
      %v1305 = vrot.slane %v674, %v1304
      %1307 = vbcast.lane.b32.xlu0 %v1305, 256
      %v1308 = vpop.permute.xlu0 %1307
      %v1309 = vlaneseq
      %v1310 = vshrl.u32 %v1309, 7
      %v1311 = vsub.s32 6, %v1310
      %v1312 = vrot.slane %v674, %v1311
      %1314 = vbcast.lane.b32.xlu0 %v1312, 256
      %v1315 = vpop.permute.xlu0 %1314
      %v1316 = vlaneseq
      %v1317 = vshrl.u32 %v1316, 7
      %v1318 = vsub.s32 7, %v1317
      %v1319 = vrot.slane %v674, %v1318
      %1321 = vbcast.lane.b32.xlu0 %v1319, 256
      %v1322 = vpop.permute.xlu0 %1321
      %v1339 = vmul.f32 %v1193, %v1217
      %v1340 = vmul.f32 %v1194, %v1224
      %v1341 = vmul.f32 %v1195, %v1231
      %v1342 = vmul.f32 %v1196, %v1238
      %v1343 = vmul.f32 %v1197, %v1245
      %v1344 = vmul.f32 %v1198, %v1252
      %v1345 = vmul.f32 %v1199, %v1259
      %v1346 = vmul.f32 %v1200, %v1266
      %v1347 = vmul.f32 %v1201, %v1273
      %v1348 = vmul.f32 %v1202, %v1280
      %v1349 = vmul.f32 %v1203, %v1287
      %v1350 = vmul.f32 %v1204, %v1294
      %v1351 = vmul.f32 %v1205, %v1301
      %v1352 = vmul.f32 %v1206, %v1308
      %v1353 = vmul.f32 %v1207, %v1315
      %v1354 = vmul.f32 %v1208, %v1322
      %1371 = vset.pattern.permute.xlu0 0
      %1372 = vperm.xlu0 %1371, %v1339
      %v1373 = vpop.permute.xlu0 %1372
      %1374 = vset.pattern.permute.xlu0 0
      %1375 = vperm.xlu0 %1374, %v1340
      %v1376 = vpop.permute.xlu0 %1375
      %1377 = vset.pattern.permute.xlu0 0
      %1378 = vperm.xlu0 %1377, %v1341
      %v1379 = vpop.permute.xlu0 %1378
      %1380 = vset.pattern.permute.xlu0 0
      %1381 = vperm.xlu0 %1380, %v1342
      %v1382 = vpop.permute.xlu0 %1381
      %1383 = vset.pattern.permute.xlu0 0
      %1384 = vperm.xlu0 %1383, %v1343
      %v1385 = vpop.permute.xlu0 %1384
      %1386 = vset.pattern.permute.xlu0 0
      %1387 = vperm.xlu0 %1386, %v1344
      %v1388 = vpop.permute.xlu0 %1387
      %1389 = vset.pattern.permute.xlu0 0
      %1390 = vperm.xlu0 %1389, %v1345
      %v1391 = vpop.permute.xlu0 %1390
      %1392 = vset.pattern.permute.xlu0 0
      %1393 = vperm.xlu0 %1392, %v1346
      %v1394 = vpop.permute.xlu0 %1393
      %1395 = vset.pattern.permute.xlu0 0
      %1396 = vperm.xlu0 %1395, %v1347
      %v1397 = vpop.permute.xlu0 %1396
      %1398 = vset.pattern.permute.xlu0 0
      %1399 = vperm.xlu0 %1398, %v1348
      %v1400 = vpop.permute.xlu0 %1399
      %1401 = vset.pattern.permute.xlu0 0
      %1402 = vperm.xlu0 %1401, %v1349
      %v1403 = vpop.permute.xlu0 %1402
      %1404 = vset.pattern.permute.xlu0 0
      %1405 = vperm.xlu0 %1404, %v1350
      %v1406 = vpop.permute.xlu0 %1405
      %1407 = vset.pattern.permute.xlu0 0
      %1408 = vperm.xlu0 %1407, %v1351
      %v1409 = vpop.permute.xlu0 %1408
      %1410 = vset.pattern.permute.xlu0 0
      %1411 = vperm.xlu0 %1410, %v1352
      %v1412 = vpop.permute.xlu0 %1411
      %1413 = vset.pattern.permute.xlu0 0
      %1414 = vperm.xlu0 %1413, %v1353
      %v1415 = vpop.permute.xlu0 %1414
      %1416 = vset.pattern.permute.xlu0 0
      %1417 = vperm.xlu0 %1416, %v1354
      %v1418 = vpop.permute.xlu0 %1417
      %v1419 = vlaneseq
      %v1420 = vand.u32 %v1419, 127
      %v1421 = vlaneseq
      %v1422 = vshrl.u32 %v1421, 7
      %v1423 = vsub.s32 %v1420, %v1422
      %v1424 = vrot.slane %v1373, %v1423
      %v1425 = vlaneseq
      %v1426 = vshrl.u32 %v1425, 7
      %v1427 = vsub.s32 %v1420, %v1426
      %v1428 = vrot.slane %v1376, %v1427
      %v1429 = vlaneseq
      %v1430 = vshrl.u32 %v1429, 7
      %v1431 = vsub.s32 %v1420, %v1430
      %v1432 = vrot.slane %v1379, %v1431
      %v1433 = vlaneseq
      %v1434 = vshrl.u32 %v1433, 7
      %v1435 = vsub.s32 %v1420, %v1434
      %v1436 = vrot.slane %v1382, %v1435
      %v1437 = vlaneseq
      %v1438 = vshrl.u32 %v1437, 7
      %v1439 = vsub.s32 %v1420, %v1438
      %v1440 = vrot.slane %v1385, %v1439
      %v1441 = vlaneseq
      %v1442 = vshrl.u32 %v1441, 7
      %v1443 = vsub.s32 %v1420, %v1442
      %v1444 = vrot.slane %v1388, %v1443
      %v1445 = vlaneseq
      %v1446 = vshrl.u32 %v1445, 7
      %v1447 = vsub.s32 %v1420, %v1446
      %v1448 = vrot.slane %v1391, %v1447
      %v1449 = vlaneseq
      %v1450 = vshrl.u32 %v1449, 7
      %v1451 = vsub.s32 %v1420, %v1450
      %v1452 = vrot.slane %v1394, %v1451
      %v1453 = vlaneseq
      %v1454 = vshrl.u32 %v1453, 7
      %v1455 = vsub.s32 %v1420, %v1454
      %v1456 = vrot.slane %v1397, %v1455
      %v1457 = vlaneseq
      %v1458 = vshrl.u32 %v1457, 7
      %v1459 = vsub.s32 %v1420, %v1458
      %v1460 = vrot.slane %v1400, %v1459
      %v1461 = vlaneseq
      %v1462 = vshrl.u32 %v1461, 7
      %v1463 = vsub.s32 %v1420, %v1462
      %v1464 = vrot.slane %v1403, %v1463
      %v1465 = vlaneseq
      %v1466 = vshrl.u32 %v1465, 7
      %v1467 = vsub.s32 %v1420, %v1466
      %v1468 = vrot.slane %v1406, %v1467
      %v1469 = vlaneseq
      %v1470 = vshrl.u32 %v1469, 7
      %v1471 = vsub.s32 %v1420, %v1470
      %v1472 = vrot.slane %v1409, %v1471
      %v1473 = vlaneseq
      %v1474 = vshrl.u32 %v1473, 7
      %v1475 = vsub.s32 %v1420, %v1474
      %v1476 = vrot.slane %v1412, %v1475
      %v1477 = vlaneseq
      %v1478 = vshrl.u32 %v1477, 7
      %v1479 = vsub.s32 %v1420, %v1478
      %v1480 = vrot.slane %v1415, %v1479
      %v1481 = vlaneseq
      %v1482 = vshrl.u32 %v1481, 7
      %v1483 = vsub.s32 %v1420, %v1482
      %v1484 = vrot.slane %v1418, %v1483
      %vm1485 = vcmask 1041409
      %v1486 = vsel %vm1485, %v1428, %v1424
      %vm1487 = vcmask 1042434
      %v1488 = vsel %vm1487, %v1432, %v1486
      %vm1489 = vcmask 1043459
      %v1490 = vsel %vm1489, %v1436, %v1488
      %vm1491 = vcmask 1044484
      %v1492 = vsel %vm1491, %v1440, %v1490
      %vm1493 = vcmask 1045509
      %v1494 = vsel %vm1493, %v1444, %v1492
      %vm1495 = vcmask 1046534
      %v1496 = vsel %vm1495, %v1448, %v1494
      %vm1497 = vcmask 1047559
      %v1498 = vsel %vm1497, %v1452, %v1496
      %v1499 = vsel %vm1485, %v1460, %v1456
      %v1500 = vsel %vm1487, %v1464, %v1499
      %v1501 = vsel %vm1489, %v1468, %v1500
      %v1502 = vsel %vm1491, %v1472, %v1501
      %v1503 = vsel %vm1493, %v1476, %v1502
      %v1504 = vsel %vm1495, %v1480, %v1503
      %v1505 = vsel %vm1497, %v1484, %v1504
      %v1508 = vsel %vm676, %v1498, -inf
      %1509 = vmax.xlane.f32.xlu0 %v1508
      %v1510 = vpop.xlane.xlu0 %1509
      %v1511 = vsel %vm676, %v1505, -inf
      %1512 = vmax.xlane.f32.xlu0 %v1511
      %v1513 = vpop.xlane.xlu0 %1512
      %v1516 = vlaneseq
      %v1517 = vshrl.u32 %v1516, 7
      %v1518 = vsub.s32 0, %v1517
      %v1519 = vrot.slane %v1510, %v1518
      %v1520 = vlaneseq
      %v1521 = vshrl.u32 %v1520, 7
      %v1522 = vsub.s32 1, %v1521
      %v1523 = vrot.slane %v1510, %v1522
      %v1524 = vlaneseq
      %v1525 = vshrl.u32 %v1524, 7
      %v1526 = vsub.s32 2, %v1525
      %v1527 = vrot.slane %v1510, %v1526
      %v1528 = vlaneseq
      %v1529 = vshrl.u32 %v1528, 7
      %v1530 = vsub.s32 3, %v1529
      %v1531 = vrot.slane %v1510, %v1530
      %v1532 = vlaneseq
      %v1533 = vshrl.u32 %v1532, 7
      %v1534 = vsub.s32 4, %v1533
      %v1535 = vrot.slane %v1510, %v1534
      %v1536 = vlaneseq
      %v1537 = vshrl.u32 %v1536, 7
      %v1538 = vsub.s32 5, %v1537
      %v1539 = vrot.slane %v1510, %v1538
      %v1540 = vlaneseq
      %v1541 = vshrl.u32 %v1540, 7
      %v1542 = vsub.s32 6, %v1541
      %v1543 = vrot.slane %v1510, %v1542
      %v1544 = vlaneseq
      %v1545 = vshrl.u32 %v1544, 7
      %v1546 = vsub.s32 7, %v1545
      %v1547 = vrot.slane %v1510, %v1546
      %v1548 = vlaneseq
      %v1549 = vshrl.u32 %v1548, 7
      %v1550 = vsub.s32 0, %v1549
      %v1551 = vrot.slane %v1513, %v1550
      %v1552 = vlaneseq
      %v1553 = vshrl.u32 %v1552, 7
      %v1554 = vsub.s32 1, %v1553
      %v1555 = vrot.slane %v1513, %v1554
      %v1556 = vlaneseq
      %v1557 = vshrl.u32 %v1556, 7
      %v1558 = vsub.s32 2, %v1557
      %v1559 = vrot.slane %v1513, %v1558
      %v1560 = vlaneseq
      %v1561 = vshrl.u32 %v1560, 7
      %v1562 = vsub.s32 3, %v1561
      %v1563 = vrot.slane %v1513, %v1562
      %v1564 = vlaneseq
      %v1565 = vshrl.u32 %v1564, 7
      %v1566 = vsub.s32 4, %v1565
      %v1567 = vrot.slane %v1513, %v1566
      %v1568 = vlaneseq
      %v1569 = vshrl.u32 %v1568, 7
      %v1570 = vsub.s32 5, %v1569
      %v1571 = vrot.slane %v1513, %v1570
      %v1572 = vlaneseq
      %v1573 = vshrl.u32 %v1572, 7
      %v1574 = vsub.s32 6, %v1573
      %v1575 = vrot.slane %v1513, %v1574
      %v1576 = vlaneseq
      %v1577 = vshrl.u32 %v1576, 7
      %v1578 = vsub.s32 7, %v1577
      %v1579 = vrot.slane %v1513, %v1578
      %v1596 = vsub.f32 %v1339, %v1519
      %v1597 = vsub.f32 %v1340, %v1523
      %v1598 = vsub.f32 %v1341, %v1527
      %v1599 = vsub.f32 %v1342, %v1531
      %v1600 = vsub.f32 %v1343, %v1535
      %v1601 = vsub.f32 %v1344, %v1539
      %v1602 = vsub.f32 %v1345, %v1543
      %v1603 = vsub.f32 %v1346, %v1547
      %v1604 = vsub.f32 %v1347, %v1551
      %v1605 = vsub.f32 %v1348, %v1555
      %v1606 = vsub.f32 %v1349, %v1559
      %v1607 = vsub.f32 %v1350, %v1563
      %v1608 = vsub.f32 %v1351, %v1567
      %v1609 = vsub.f32 %v1352, %v1571
      %v1610 = vsub.f32 %v1353, %v1575
      %v1611 = vsub.f32 %v1354, %v1579
      %v1612 = vmul.f32 %v1596, 1.442695
      %v1613 = vpow.pop %v1612
      %v1614 = vmul.f32 %v1597, 1.442695
      %v1615 = vpow.pop %v1614
      %v1616 = vmul.f32 %v1598, 1.442695
      %v1617 = vpow.pop %v1616
      %v1618 = vmul.f32 %v1599, 1.442695
      %v1619 = vpow.pop %v1618
      %v1620 = vmul.f32 %v1600, 1.442695
      %v1621 = vpow.pop %v1620
      %v1622 = vmul.f32 %v1601, 1.442695
      %v1623 = vpow.pop %v1622
      %v1624 = vmul.f32 %v1602, 1.442695
      %v1625 = vpow.pop %v1624
      %v1626 = vmul.f32 %v1603, 1.442695
      %v1627 = vpow.pop %v1626
      %v1628 = vmul.f32 %v1604, 1.442695
      %v1629 = vpow.pop %v1628
      %v1630 = vmul.f32 %v1605, 1.442695
      %v1631 = vpow.pop %v1630
      %v1632 = vmul.f32 %v1606, 1.442695
      %v1633 = vpow.pop %v1632
      %v1634 = vmul.f32 %v1607, 1.442695
      %v1635 = vpow.pop %v1634
      %v1636 = vmul.f32 %v1608, 1.442695
      %v1637 = vpow.pop %v1636
      %v1638 = vmul.f32 %v1609, 1.442695
      %v1639 = vpow.pop %v1638
      %v1640 = vmul.f32 %v1610, 1.442695
      %v1641 = vpow.pop %v1640
      %v1642 = vmul.f32 %v1611, 1.442695
      %v1643 = vpow.pop %v1642
      %1660 = vset.pattern.permute.xlu0 0
      %1661 = vperm.xlu0 %1660, %v1613
      %v1662 = vpop.permute.xlu0 %1661
      %1663 = vset.pattern.permute.xlu0 0
      %1664 = vperm.xlu0 %1663, %v1615
      %v1665 = vpop.permute.xlu0 %1664
      %1666 = vset.pattern.permute.xlu0 0
      %1667 = vperm.xlu0 %1666, %v1617
      %v1668 = vpop.permute.xlu0 %1667
      %1669 = vset.pattern.permute.xlu0 0
      %1670 = vperm.xlu0 %1669, %v1619
      %v1671 = vpop.permute.xlu0 %1670
      %1672 = vset.pattern.permute.xlu0 0
      %1673 = vperm.xlu0 %1672, %v1621
      %v1674 = vpop.permute.xlu0 %1673
      %1675 = vset.pattern.permute.xlu0 0
      %1676 = vperm.xlu0 %1675, %v1623
      %v1677 = vpop.permute.xlu0 %1676
      %1678 = vset.pattern.permute.xlu0 0
      %1679 = vperm.xlu0 %1678, %v1625
      %v1680 = vpop.permute.xlu0 %1679
      %1681 = vset.pattern.permute.xlu0 0
      %1682 = vperm.xlu0 %1681, %v1627
      %v1683 = vpop.permute.xlu0 %1682
      %1684 = vset.pattern.permute.xlu0 0
      %1685 = vperm.xlu0 %1684, %v1629
      %v1686 = vpop.permute.xlu0 %1685
      %1687 = vset.pattern.permute.xlu0 0
      %1688 = vperm.xlu0 %1687, %v1631
      %v1689 = vpop.permute.xlu0 %1688
      %1690 = vset.pattern.permute.xlu0 0
      %1691 = vperm.xlu0 %1690, %v1633
      %v1692 = vpop.permute.xlu0 %1691
      %1693 = vset.pattern.permute.xlu0 0
      %1694 = vperm.xlu0 %1693, %v1635
      %v1695 = vpop.permute.xlu0 %1694
      %1696 = vset.pattern.permute.xlu0 0
      %1697 = vperm.xlu0 %1696, %v1637
      %v1698 = vpop.permute.xlu0 %1697
      %1699 = vset.pattern.permute.xlu0 0
      %1700 = vperm.xlu0 %1699, %v1639
      %v1701 = vpop.permute.xlu0 %1700
      %1702 = vset.pattern.permute.xlu0 0
      %1703 = vperm.xlu0 %1702, %v1641
      %v1704 = vpop.permute.xlu0 %1703
      %1705 = vset.pattern.permute.xlu0 0
      %1706 = vperm.xlu0 %1705, %v1643
      %v1707 = vpop.permute.xlu0 %1706
      %v1708 = vlaneseq
      %v1709 = vshrl.u32 %v1708, 7
      %v1710 = vsub.s32 %v1420, %v1709
      %v1711 = vrot.slane %v1662, %v1710
      %v1712 = vlaneseq
      %v1713 = vshrl.u32 %v1712, 7
      %v1714 = vsub.s32 %v1420, %v1713
      %v1715 = vrot.slane %v1665, %v1714
      %v1716 = vlaneseq
      %v1717 = vshrl.u32 %v1716, 7
      %v1718 = vsub.s32 %v1420, %v1717
      %v1719 = vrot.slane %v1668, %v1718
      %v1720 = vlaneseq
      %v1721 = vshrl.u32 %v1720, 7
      %v1722 = vsub.s32 %v1420, %v1721
      %v1723 = vrot.slane %v1671, %v1722
      %v1724 = vlaneseq
      %v1725 = vshrl.u32 %v1724, 7
      %v1726 = vsub.s32 %v1420, %v1725
      %v1727 = vrot.slane %v1674, %v1726
      %v1728 = vlaneseq
      %v1729 = vshrl.u32 %v1728, 7
      %v1730 = vsub.s32 %v1420, %v1729
      %v1731 = vrot.slane %v1677, %v1730
      %v1732 = vlaneseq
      %v1733 = vshrl.u32 %v1732, 7
      %v1734 = vsub.s32 %v1420, %v1733
      %v1735 = vrot.slane %v1680, %v1734
      %v1736 = vlaneseq
      %v1737 = vshrl.u32 %v1736, 7
      %v1738 = vsub.s32 %v1420, %v1737
      %v1739 = vrot.slane %v1683, %v1738
      %v1740 = vlaneseq
      %v1741 = vshrl.u32 %v1740, 7
      %v1742 = vsub.s32 %v1420, %v1741
      %v1743 = vrot.slane %v1686, %v1742
      %v1744 = vlaneseq
      %v1745 = vshrl.u32 %v1744, 7
      %v1746 = vsub.s32 %v1420, %v1745
      %v1747 = vrot.slane %v1689, %v1746
      %v1748 = vlaneseq
      %v1749 = vshrl.u32 %v1748, 7
      %v1750 = vsub.s32 %v1420, %v1749
      %v1751 = vrot.slane %v1692, %v1750
      %v1752 = vlaneseq
      %v1753 = vshrl.u32 %v1752, 7
      %v1754 = vsub.s32 %v1420, %v1753
      %v1755 = vrot.slane %v1695, %v1754
      %v1756 = vlaneseq
      %v1757 = vshrl.u32 %v1756, 7
      %v1758 = vsub.s32 %v1420, %v1757
      %v1759 = vrot.slane %v1698, %v1758
      %v1760 = vlaneseq
      %v1761 = vshrl.u32 %v1760, 7
      %v1762 = vsub.s32 %v1420, %v1761
      %v1763 = vrot.slane %v1701, %v1762
      %v1764 = vlaneseq
      %v1765 = vshrl.u32 %v1764, 7
      %v1766 = vsub.s32 %v1420, %v1765
      %v1767 = vrot.slane %v1704, %v1766
      %v1768 = vlaneseq
      %v1769 = vshrl.u32 %v1768, 7
      %v1770 = vsub.s32 %v1420, %v1769
      %v1771 = vrot.slane %v1707, %v1770
      %v1772 = vsel %vm1485, %v1715, %v1711
      %v1773 = vsel %vm1487, %v1719, %v1772
      %v1774 = vsel %vm1489, %v1723, %v1773
      %v1775 = vsel %vm1491, %v1727, %v1774
      %v1776 = vsel %vm1493, %v1731, %v1775
      %v1777 = vsel %vm1495, %v1735, %v1776
      %v1778 = vsel %vm1497, %v1739, %v1777
      %v1779 = vsel %vm1485, %v1747, %v1743
      %v1780 = vsel %vm1487, %v1751, %v1779
      %v1781 = vsel %vm1489, %v1755, %v1780
      %v1782 = vsel %vm1491, %v1759, %v1781
      %v1783 = vsel %vm1493, %v1763, %v1782
      %v1784 = vsel %vm1495, %v1767, %v1783
      %v1785 = vsel %vm1497, %v1771, %v1784
      %v1788 = vsel %vm676, %v1778, 0.0
      %1789 = vadd.xlane.f32.xlu0 %v1788
      %v1790 = vpop.xlane.xlu0 %1789
      %v1791 = vsel %vm676, %v1785, 0.0
      %1792 = vadd.xlane.f32.xlu0 %v1791
      %v1793 = vpop.xlane.xlu0 %1792
      %v1794 = vrcp.pop %v1790
      %v1795 = vrcp.pop %v1793
      %v1798 = vlaneseq
      %v1799 = vshrl.u32 %v1798, 7
      %v1800 = vsub.s32 0, %v1799
      %v1801 = vrot.slane %v1794, %v1800
      %v1802 = vlaneseq
      %v1803 = vshrl.u32 %v1802, 7
      %v1804 = vsub.s32 1, %v1803
      %v1805 = vrot.slane %v1794, %v1804
      %v1806 = vlaneseq
      %v1807 = vshrl.u32 %v1806, 7
      %v1808 = vsub.s32 2, %v1807
      %v1809 = vrot.slane %v1794, %v1808
      %v1810 = vlaneseq
      %v1811 = vshrl.u32 %v1810, 7
      %v1812 = vsub.s32 3, %v1811
      %v1813 = vrot.slane %v1794, %v1812
      %v1814 = vlaneseq
      %v1815 = vshrl.u32 %v1814, 7
      %v1816 = vsub.s32 4, %v1815
      %v1817 = vrot.slane %v1794, %v1816
      %v1818 = vlaneseq
      %v1819 = vshrl.u32 %v1818, 7
      %v1820 = vsub.s32 5, %v1819
      %v1821 = vrot.slane %v1794, %v1820
      %v1822 = vlaneseq
      %v1823 = vshrl.u32 %v1822, 7
      %v1824 = vsub.s32 6, %v1823
      %v1825 = vrot.slane %v1794, %v1824
      %v1826 = vlaneseq
      %v1827 = vshrl.u32 %v1826, 7
      %v1828 = vsub.s32 7, %v1827
      %v1829 = vrot.slane %v1794, %v1828
      %v1830 = vlaneseq
      %v1831 = vshrl.u32 %v1830, 7
      %v1832 = vsub.s32 0, %v1831
      %v1833 = vrot.slane %v1795, %v1832
      %v1834 = vlaneseq
      %v1835 = vshrl.u32 %v1834, 7
      %v1836 = vsub.s32 1, %v1835
      %v1837 = vrot.slane %v1795, %v1836
      %v1838 = vlaneseq
      %v1839 = vshrl.u32 %v1838, 7
      %v1840 = vsub.s32 2, %v1839
      %v1841 = vrot.slane %v1795, %v1840
      %v1842 = vlaneseq
      %v1843 = vshrl.u32 %v1842, 7
      %v1844 = vsub.s32 3, %v1843
      %v1845 = vrot.slane %v1795, %v1844
      %v1846 = vlaneseq
      %v1847 = vshrl.u32 %v1846, 7
      %v1848 = vsub.s32 4, %v1847
      %v1849 = vrot.slane %v1795, %v1848
      %v1850 = vlaneseq
      %v1851 = vshrl.u32 %v1850, 7
      %v1852 = vsub.s32 5, %v1851
      %v1853 = vrot.slane %v1795, %v1852
      %v1854 = vlaneseq
      %v1855 = vshrl.u32 %v1854, 7
      %v1856 = vsub.s32 6, %v1855
      %v1857 = vrot.slane %v1795, %v1856
      %v1858 = vlaneseq
      %v1859 = vshrl.u32 %v1858, 7
      %v1860 = vsub.s32 7, %v1859
      %v1861 = vrot.slane %v1795, %v1860
      %v1878 = vmul.f32 %v1613, %v1801
      %v1879 = vmul.f32 %v1615, %v1805
      %v1880 = vmul.f32 %v1617, %v1809
      %v1881 = vmul.f32 %v1619, %v1813
      %v1882 = vmul.f32 %v1621, %v1817
      %v1883 = vmul.f32 %v1623, %v1821
      %v1884 = vmul.f32 %v1625, %v1825
      %v1885 = vmul.f32 %v1627, %v1829
      %v1886 = vmul.f32 %v1629, %v1833
      %v1887 = vmul.f32 %v1631, %v1837
      %v1888 = vmul.f32 %v1633, %v1841
      %v1889 = vmul.f32 %v1635, %v1845
      %v1890 = vmul.f32 %v1637, %v1849
      %v1891 = vmul.f32 %v1639, %v1853
      %v1892 = vmul.f32 %v1641, %v1857
      %v1893 = vmul.f32 %v1643, %v1861
      %v1894 = vmul.f32 %v1878, %v1217
      %v1895 = vmul.f32 %v1879, %v1224
      %v1896 = vmul.f32 %v1880, %v1231
      %v1897 = vmul.f32 %v1881, %v1238
      %v1898 = vmul.f32 %v1882, %v1245
      %v1899 = vmul.f32 %v1883, %v1252
      %v1900 = vmul.f32 %v1884, %v1259
      %v1901 = vmul.f32 %v1885, %v1266
      %v1902 = vmul.f32 %v1886, %v1273
      %v1903 = vmul.f32 %v1887, %v1280
      %v1904 = vmul.f32 %v1888, %v1287
      %v1905 = vmul.f32 %v1889, %v1294
      %v1906 = vmul.f32 %v1890, %v1301
      %v1907 = vmul.f32 %v1891, %v1308
      %v1908 = vmul.f32 %v1892, %v1315
      %v1909 = vmul.f32 %v1893, %v1322
      %v1910 = vpack.c.bf16 %v1894, %v1894
      %v1911 = vpack.c.bf16 %v1895, %v1895
      %v1912 = vpack.c.bf16 %v1896, %v1896
      %v1913 = vpack.c.bf16 %v1897, %v1897
      %v1914 = vpack.c.bf16 %v1898, %v1898
      %v1915 = vpack.c.bf16 %v1899, %v1899
      %v1916 = vpack.c.bf16 %v1900, %v1900
      %v1917 = vpack.c.bf16 %v1901, %v1901
      %v1918 = vpack.c.bf16 %v1902, %v1902
      %v1919 = vpack.c.bf16 %v1903, %v1903
      %v1920 = vpack.c.bf16 %v1904, %v1904
      %v1921 = vpack.c.bf16 %v1905, %v1905
      %v1922 = vpack.c.bf16 %v1906, %v1906
      %v1923 = vpack.c.bf16 %v1907, %v1907
      %v1924 = vpack.c.bf16 %v1908, %v1908
      %v1925 = vpack.c.bf16 %v1909, %v1909
      %v1942 = vunpack.c.l.b16 %v1910
      %v1943 = vunpack.c.l.b16 %v1911
      %v1944 = vunpack.c.l.b16 %v1912
      %v1945 = vunpack.c.l.b16 %v1913
      %v1946 = vunpack.c.l.b16 %v1914
      %v1947 = vunpack.c.l.b16 %v1915
      %v1948 = vunpack.c.l.b16 %v1916
      %v1949 = vunpack.c.l.b16 %v1917
      %v1950 = vunpack.c.l.b16 %v1918
      %v1951 = vunpack.c.l.b16 %v1919
      %v1952 = vunpack.c.l.b16 %v1920
      %v1953 = vunpack.c.l.b16 %v1921
      %v1954 = vunpack.c.l.b16 %v1922
      %v1955 = vunpack.c.l.b16 %v1923
      %v1956 = vunpack.c.l.b16 %v1924
      %v1957 = vunpack.c.l.b16 %v1925
      %1958 = vset.pattern.permute.xlu0 0
      %1959 = vperm.xlu0 %1958, %v1942
      %v1960 = vpop.permute.xlu0 %1959
      %1961 = vset.pattern.permute.xlu0 0
      %1962 = vperm.xlu0 %1961, %v1943
      %v1963 = vpop.permute.xlu0 %1962
      %1964 = vset.pattern.permute.xlu0 0
      %1965 = vperm.xlu0 %1964, %v1944
      %v1966 = vpop.permute.xlu0 %1965
      %1967 = vset.pattern.permute.xlu0 0
      %1968 = vperm.xlu0 %1967, %v1945
      %v1969 = vpop.permute.xlu0 %1968
      %1970 = vset.pattern.permute.xlu0 0
      %1971 = vperm.xlu0 %1970, %v1946
      %v1972 = vpop.permute.xlu0 %1971
      %1973 = vset.pattern.permute.xlu0 0
      %1974 = vperm.xlu0 %1973, %v1947
      %v1975 = vpop.permute.xlu0 %1974
      %1976 = vset.pattern.permute.xlu0 0
      %1977 = vperm.xlu0 %1976, %v1948
      %v1978 = vpop.permute.xlu0 %1977
      %1979 = vset.pattern.permute.xlu0 0
      %1980 = vperm.xlu0 %1979, %v1949
      %v1981 = vpop.permute.xlu0 %1980
      %1982 = vset.pattern.permute.xlu0 0
      %1983 = vperm.xlu0 %1982, %v1950
      %v1984 = vpop.permute.xlu0 %1983
      %1985 = vset.pattern.permute.xlu0 0
      %1986 = vperm.xlu0 %1985, %v1951
      %v1987 = vpop.permute.xlu0 %1986
      %1988 = vset.pattern.permute.xlu0 0
      %1989 = vperm.xlu0 %1988, %v1952
      %v1990 = vpop.permute.xlu0 %1989
      %1991 = vset.pattern.permute.xlu0 0
      %1992 = vperm.xlu0 %1991, %v1953
      %v1993 = vpop.permute.xlu0 %1992
      %1994 = vset.pattern.permute.xlu0 0
      %1995 = vperm.xlu0 %1994, %v1954
      %v1996 = vpop.permute.xlu0 %1995
      %1997 = vset.pattern.permute.xlu0 0
      %1998 = vperm.xlu0 %1997, %v1955
      %v1999 = vpop.permute.xlu0 %1998
      %2000 = vset.pattern.permute.xlu0 0
      %2001 = vperm.xlu0 %2000, %v1956
      %v2002 = vpop.permute.xlu0 %2001
      %2003 = vset.pattern.permute.xlu0 0
      %2004 = vperm.xlu0 %2003, %v1957
      %v2005 = vpop.permute.xlu0 %2004
      %v2006 = vlaneseq
      %v2007 = vshrl.u32 %v2006, 7
      %v2008 = vsub.s32 %v1420, %v2007
      %v2009 = vrot.slane %v1960, %v2008
      %v2010 = vlaneseq
      %v2011 = vshrl.u32 %v2010, 7
      %v2012 = vsub.s32 %v1420, %v2011
      %v2013 = vrot.slane %v1963, %v2012
      %v2014 = vlaneseq
      %v2015 = vshrl.u32 %v2014, 7
      %v2016 = vsub.s32 %v1420, %v2015
      %v2017 = vrot.slane %v1966, %v2016
      %v2018 = vlaneseq
      %v2019 = vshrl.u32 %v2018, 7
      %v2020 = vsub.s32 %v1420, %v2019
      %v2021 = vrot.slane %v1969, %v2020
      %v2022 = vlaneseq
      %v2023 = vshrl.u32 %v2022, 7
      %v2024 = vsub.s32 %v1420, %v2023
      %v2025 = vrot.slane %v1972, %v2024
      %v2026 = vlaneseq
      %v2027 = vshrl.u32 %v2026, 7
      %v2028 = vsub.s32 %v1420, %v2027
      %v2029 = vrot.slane %v1975, %v2028
      %v2030 = vlaneseq
      %v2031 = vshrl.u32 %v2030, 7
      %v2032 = vsub.s32 %v1420, %v2031
      %v2033 = vrot.slane %v1978, %v2032
      %v2034 = vlaneseq
      %v2035 = vshrl.u32 %v2034, 7
      %v2036 = vsub.s32 %v1420, %v2035
      %v2037 = vrot.slane %v1981, %v2036
      %v2038 = vlaneseq
      %v2039 = vshrl.u32 %v2038, 7
      %v2040 = vsub.s32 %v1420, %v2039
      %v2041 = vrot.slane %v1984, %v2040
      %v2042 = vlaneseq
      %v2043 = vshrl.u32 %v2042, 7
      %v2044 = vsub.s32 %v1420, %v2043
      %v2045 = vrot.slane %v1987, %v2044
      %v2046 = vlaneseq
      %v2047 = vshrl.u32 %v2046, 7
      %v2048 = vsub.s32 %v1420, %v2047
      %v2049 = vrot.slane %v1990, %v2048
      %v2050 = vlaneseq
      %v2051 = vshrl.u32 %v2050, 7
      %v2052 = vsub.s32 %v1420, %v2051
      %v2053 = vrot.slane %v1993, %v2052
      %v2054 = vlaneseq
      %v2055 = vshrl.u32 %v2054, 7
      %v2056 = vsub.s32 %v1420, %v2055
      %v2057 = vrot.slane %v1996, %v2056
      %v2058 = vlaneseq
      %v2059 = vshrl.u32 %v2058, 7
      %v2060 = vsub.s32 %v1420, %v2059
      %v2061 = vrot.slane %v1999, %v2060
      %v2062 = vlaneseq
      %v2063 = vshrl.u32 %v2062, 7
      %v2064 = vsub.s32 %v1420, %v2063
      %v2065 = vrot.slane %v2002, %v2064
      %v2066 = vlaneseq
      %v2067 = vshrl.u32 %v2066, 7
      %v2068 = vsub.s32 %v1420, %v2067
      %v2069 = vrot.slane %v2005, %v2068
      %v2070 = vsel %vm1485, %v2013, %v2009
      %v2071 = vsel %vm1487, %v2017, %v2070
      %v2072 = vsel %vm1489, %v2021, %v2071
      %v2073 = vsel %vm1491, %v2025, %v2072
      %v2074 = vsel %vm1493, %v2029, %v2073
      %v2075 = vsel %vm1495, %v2033, %v2074
      %v2076 = vsel %vm1497, %v2037, %v2075
      %v2077 = vsel %vm1485, %v2045, %v2041
      %v2078 = vsel %vm1487, %v2049, %v2077
      %v2079 = vsel %vm1489, %v2053, %v2078
      %v2080 = vsel %vm1491, %v2057, %v2079
      %v2081 = vsel %vm1493, %v2061, %v2080
      %v2082 = vsel %vm1495, %v2065, %v2081
      %v2083 = vsel %vm1497, %v2069, %v2082
      %v2084 = vpack.c.b16 %v2083, %v2076
      %v2086 = vsel %vm676, %v2084, 0
      %2088 = vmatprep.subr.bf16.mxu0 0
      %2089 = vmatpush1.bf16.msra.mxu0 %v682
      %2090 = vmatprep.subr.bf16.mxu0 0
      %2091 = vmatpush1.bf16.msra.mxu0 0
      %2092 = vmatprep.subr.bf16.mxu0 0
      %2093 = vmatpush1.bf16.msra.mxu0 0
      %2094 = vmatprep.subr.bf16.mxu0 0
      %2095 = vmatpush1.bf16.msra.mxu0 0
      %2096 = vmatprep.subr.bf16.mxu0 0
      %2097 = vmatpush1.bf16.msra.mxu0 0
      %2098 = vmatprep.subr.bf16.mxu0 0
      %2099 = vmatpush1.bf16.msra.mxu0 0
      %2100 = vmatprep.subr.bf16.mxu0 0
      %2101 = vmatpush1.bf16.msra.mxu0 0
      %2102 = vmatprep.subr.bf16.mxu0 0
      %2103 = vmatpush1.bf16.msra.mxu0 0
      %2104 = vmatprep.subr.bf16.mxu0 0
      %2105 = vmatpush1.bf16.msra.mxu0 0
      %2106 = vmatprep.subr.bf16.mxu0 0
      %2107 = vmatpush1.bf16.msra.mxu0 0
      %2108 = vmatprep.subr.bf16.mxu0 0
      %2109 = vmatpush1.bf16.msra.mxu0 0
      %2110 = vmatprep.subr.bf16.mxu0 0
      %2111 = vmatpush1.bf16.msra.mxu0 0
      %2112 = vmatprep.subr.bf16.mxu0 0
      %2113 = vmatpush1.bf16.msra.mxu0 0
      %2114 = vmatprep.subr.bf16.mxu0 0
      %2115 = vmatpush1.bf16.msra.mxu0 0
      %2116 = vmatprep.subr.bf16.mxu0 0
      %2117 = vmatpush1.bf16.msra.mxu0 0
      %2118 = vmatprep.subr.bf16.mxu0 0
      %2119 = vmatpush1.bf16.msra.mxu0 0
      %2120 = vmatprep.mubr.bf16.mxu0 0
      %2121 = vmatmul.mubr.bf16.gmra.mrb[0].mxu0 %v2086
      %v2122 = vpop.f32.mrb[0].mxu0
      %v2123 = vadd.f32 0.0, %v2122
      %v2124 = vpop.f32.mrb[0].mxu0
      %v2125 = vpop.f32.mrb[0].mxu0
      %v2126 = vadd.f32 0.0, %v2125
      %v2127 = vpop.f32.mrb[0].mxu0
      %2128 = vdwg.mxu0
      %v2129 = vpack.c.bf16 %v2126, %v2123
      %v2131 = vunpack.c.l.b16 %v2129
      %v2132 = vunpack.c.h.b16 %v2129
      %v2133 = vpack.c.b16 %v2131, %v2131
      %v2134 = vpack.c.b16 %v2132, %v2132
      %vm2137 = vcmask 519168
      %2138 = vst.msk [vmem:[%s385] sm:$0xf] %vm2137, %v2133
      %2139 = vst.msk [vmem:[%s385 + $0x4] sm:$0xf] %vm2137, %v2134
      %p2140 = scmp.lt.s32.totalorder %s24, 1
      %s2141 = scalar_select %p2140, %s24, 1
      %s2142 = smul.addr %s2141, 2
      %s2143 = smul.addr %s2142, 4
      %s2144 = scalar_lea.vmem %s11, %s2143
      // Predicated region
      $region65: #{ms_hgnn_forward.8} parent=63 // pred_check
        %p2145 = pneg %p278
      $region66: #{ms_hgnn_forward.8} parent=63 // pred_check_branch
        %2147 = sbr.rel (%p2145) target = $region68
      $region67: #{ms_hgnn_forward.8} parent=63 // pred_region
        _
      $region68: #{ms_hgnn_forward.8} parent=63 // pred_fallthru
        _
    $region64: #{ms_hgnn_forward.8} parent=5 // pred_fallthru
      _
    %p2148 = scmp.le.s32.totalorder 2, %s19
    // Predicated region
    $region69: #{ms_hgnn_forward.8} parent=5 // pred_check
      %p2149 = pneg %p2148
    $region70: #{ms_hgnn_forward.8} parent=5 // pred_check_branch
      %2151 = sbr.rel (%p2149) target = $region72
    $region71: #{ms_hgnn_forward.8} parent=5 // pred_region
      %s2152 = ssub.s32 %s19, 2
      // Predicated region
      $region73: #{ms_hgnn_forward.8} parent=71 // pred_check
        %p2153 = pneg %p284
      $region74: #{ms_hgnn_forward.8} parent=71 // pred_check_branch
        %2155 = sbr.rel (%p2153) target = $region76
      $region75: #{ms_hgnn_forward.8} parent=71 // pred_region
        %p2156 = scmp.lt.s32.totalorder %s25, 1
        %s2157 = scalar_select %p2156, %s25, 1
        %s2158 = smul.addr %s2157, 2
        %s2159 = smul.addr %s2158, 4
        %s2160 = scalar_lea.vmem %s11, %s2159
      $region76: #{ms_hgnn_forward.8} parent=71 // pred_fallthru
        _
    $region72: #{ms_hgnn_forward.8} parent=5 // pred_fallthru
      _
  $region6: #{ms_hgnn_forward.8} parent=0 // loop_footer
    %s23 = sadd.s32 1, %s19
  $region7: #{ms_hgnn_forward.8} parent=0 // loop_footer_branch
    %18 = sbr.rel target = $region3
  $region8: #{ms_hgnn_forward.8} parent=0 // loop_exit
    _

// kernel: ms_hgnn_forward.10
$region0: #{ms_hgnn_forward.10}
  #allocation0 [shape = 'u32[]', space=smem, size = 0x4, offset = 0x4, fixed_abs, tag = 'smem constant byte address 0x4 - core index']
  #allocation1 [shape = 'u32[144,128]{1,0:T(1,128)}', space=vmem, size = 0x12000, scoped, tag = 'internal scratch']
  %s0 = inlined_call_operand.vmem [shape: f32[2,16,5], index: 0, kind: input, shape index: {}]
  %s1 = inlined_call_operand.vmem [shape: bf16[16,4], index: 1, kind: input, shape index: {}]
  %s2 = inlined_call_operand.vmem [shape: bf16[4,16], index: 2, kind: input, shape index: {}]
  %s3 = inlined_call_operand.vmem [shape: bf16[2,4,64], index: 3, kind: input, shape index: {}]
  %s4 = inlined_call_operand.vmem [shape: bf16[5,64,128], index: 4, kind: input, shape index: {}]
  %s5 = inlined_call_operand.vmem [shape: f32[5,1,128], index: 5, kind: input, shape index: {}]
  %s6 = inlined_call_operand.vmem [shape: bf16[5,128,64], index: 6, kind: input, shape index: {}]
  %s7 = inlined_call_operand.vmem [shape: f32[5,1,64], index: 7, kind: input, shape index: {}]
  %s8 = inlined_call_operand.vmem [shape: bf16[128,128], index: 8, kind: input, shape index: {}]
  %s9 = inlined_call_operand.vmem [shape: f32[1,128], index: 9, kind: input, shape index: {}]
  %s10 = inlined_call_operand.vmem [shape: bf16[128,64], index: 10, kind: input, shape index: {}]
  %s11 = inlined_call_operand.vmem [shape: f32[1,64], index: 11, kind: input, shape index: {}]
  %s12 = inlined_call_operand.vmem [shape: bf16[2,4,64], index: 12, kind: output, shape index: {}]
  %s13 = sld [smem:[#allocation0]]
  $region81: #{ms_hgnn_forward.10} parent=0
    _
  %s15 = ssub.s32 1, %s13
  %s16 = scalar_select 0, %s15, %s13
  loop: start=0, step=1, limit=4
  $region2: #{ms_hgnn_forward.10} parent=0 // loop_pre_header
    _
  $region3: #{ms_hgnn_forward.10} parent=0 // loop_header
    %s18 = sphi 0, %s22
    %p19 = scmp.ge.s32.totalorder %s18, 4
    %s28 = sphi 0, %s30
    %s31 = sphi 0, %s28
    %s32 = sphi 0, %s31
    %s48 = sphi 0, %s32
    %s52 = sphi 0, %s52
    %s54 = sphi 0, %s52
    %s55 = sphi 0, %s54
    %s69 = sphi 0, %s55
    %s73 = sphi 0, %s73
    %s75 = sphi 0, %s73
    %s76 = sphi 0, %s75
    %s90 = sphi 0, %s76
    %s96 = sphi 0, %s98
    %s99 = sphi 0, %s96
    %s100 = sphi 0, %s99
    %s116 = sphi 0, %s100
    %s120 = sphi 0, %s120
    %s122 = sphi 0, %s120
    %s123 = sphi 0, %s122
    %s137 = sphi 0, %s123
    %s141 = sphi 0, %s141
    %s143 = sphi 0, %s141
    %s144 = sphi 0, %s143
    %s158 = sphi 0, %s144
    %s162 = sphi 0, %s162
    %s164 = sphi 0, %s162
    %s165 = sphi 0, %s164
    %s179 = sphi 0, %s165
    %s183 = sphi 0, %s183
    %s185 = sphi 0, %s183
    %s186 = sphi 0, %s185
    %s200 = sphi 0, %s186
    %s204 = sphi 0, %s204
    %s206 = sphi 0, %s204
    %s207 = sphi 0, %s206
    %s221 = sphi 0, %s207
    %s225 = sphi 0, %s225
    %s227 = sphi 0, %s225
    %s228 = sphi 0, %s227
    %s242 = sphi 0, %s228
    %s246 = sphi 0, %s246
    %s248 = sphi 0, %s246
    %s249 = sphi 0, %s248
    %s263 = sphi 0, %s249
    %s267 = sphi 0, %s267
    %s269 = sphi 0, %s267
    %s270 = sphi 0, %s269
    %s284 = sphi 0, %s270
    %s290 = sphi 0, %s292
    %s293 = sphi 0, %s290
    %s294 = sphi 0, %s293
    %s310 = sphi 0, %s294
  $region4: #{ms_hgnn_forward.10} parent=0 // loop_header_branch
    %21 = sbr.rel (%p19) target = $region8
  $region5: #{ms_hgnn_forward.10} parent=0 // loop_body
    %s23 = ssub.s32 %s18, 1
    %s24 = ssub.s32 %s18, 2
    %s25 = sadd.s32 %s18, 1
    %s26 = ssub.s32 %s18, %s25
    %p27 = scmp.eq.s32.totalorder %s26, 0
    %s29 = sadd.s32 %s28, 1
    %s30 = scalar_select %p27, %s28, %s29
    %p33 = pneg %p27
    %p34 = scmp.eq.s32.totalorder %s18, 1
    %p35 = por %p33, %p34
    %p36 = scmp.ne.s32.totalorder %s28, %s31
    %p37 = scmp.eq.s32.totalorder %s18, 0
    %p38 = por %p36, %p37
    %p39 = scmp.ne.s32.totalorder %s28, %s31
    %p40 = scmp.eq.s32.totalorder %s23, 1
    %p41 = por %p39, %p40
    %p42 = scmp.ne.s32.totalorder %s31, %s32
    %p43 = scmp.eq.s32.totalorder %s23, 0
    %p44 = por %p42, %p43
    %p45 = scmp.ne.s32.totalorder %s31, %s32
    %p46 = scmp.eq.s32.totalorder %s24, 1
    %p47 = por %p45, %p46
    %p49 = scmp.ne.s32.totalorder %s32, %s48
    %p50 = scmp.eq.s32.totalorder %s24, 0
    %p51 = por %p49, %p50
    %s53 = sadd.s32 %s52, 1
    %p56 = scmp.eq.s32.totalorder %s18, 1
    %p57 = scmp.ne.s32.totalorder %s52, %s54
    %p58 = scmp.eq.s32.totalorder %s18, 0
    %p59 = por %p57, %p58
    %p60 = scmp.ne.s32.totalorder %s52, %s54
    %p61 = scmp.eq.s32.totalorder %s23, 1
    %p62 = por %p60, %p61
    %p63 = scmp.ne.s32.totalorder %s54, %s55
    %p64 = scmp.eq.s32.totalorder %s23, 0
    %p65 = por %p63, %p64
    %p66 = scmp.ne.s32.totalorder %s54, %s55
    %p67 = scmp.eq.s32.totalorder %s24, 1
    %p68 = por %p66, %p67
    %p70 = scmp.ne.s32.totalorder %s55, %s69
    %p71 = scmp.eq.s32.totalorder %s24, 0
    %p72 = por %p70, %p71
    %s74 = sadd.s32 %s73, 1
    %p77 = scmp.eq.s32.totalorder %s18, 1
    %p78 = scmp.ne.s32.totalorder %s73, %s75
    %p79 = scmp.eq.s32.totalorder %s18, 0
    %p80 = por %p78, %p79
    %p81 = scmp.ne.s32.totalorder %s73, %s75
    %p82 = scmp.eq.s32.totalorder %s23, 1
    %p83 = por %p81, %p82
    %p84 = scmp.ne.s32.totalorder %s75, %s76
    %p85 = scmp.eq.s32.totalorder %s23, 0
    %p86 = por %p84, %p85
    %p87 = scmp.ne.s32.totalorder %s75, %s76
    %p88 = scmp.eq.s32.totalorder %s24, 1
    %p89 = por %p87, %p88
    %p91 = scmp.ne.s32.totalorder %s76, %s90
    %p92 = scmp.eq.s32.totalorder %s24, 0
    %p93 = por %p91, %p92
    %s94 = ssub.s32 %s18, %s25
    %p95 = scmp.eq.s32.totalorder %s94, 0
    %s97 = sadd.s32 %s96, 1
    %s98 = scalar_select %p95, %s96, %s97
    %p101 = pneg %p95
    %p102 = scmp.eq.s32.totalorder %s18, 1
    %p103 = por %p101, %p102
    %p104 = scmp.ne.s32.totalorder %s96, %s99
    %p105 = scmp.eq.s32.totalorder %s18, 0
    %p106 = por %p104, %p105
    %p107 = scmp.ne.s32.totalorder %s96, %s99
    %p108 = scmp.eq.s32.totalorder %s23, 1
    %p109 = por %p107, %p108
    %p110 = scmp.ne.s32.totalorder %s99, %s100
    %p111 = scmp.eq.s32.totalorder %s23, 0
    %p112 = por %p110, %p111
    %p113 = scmp.ne.s32.totalorder %s99, %s100
    %p114 = scmp.eq.s32.totalorder %s24, 1
    %p115 = por %p113, %p114
    %p117 = scmp.ne.s32.totalorder %s100, %s116
    %p118 = scmp.eq.s32.totalorder %s24, 0
    %p119 = por %p117, %p118
    %s121 = sadd.s32 %s120, 1
    %p124 = scmp.eq.s32.totalorder %s18, 1
    %p125 = scmp.ne.s32.totalorder %s120, %s122
    %p126 = scmp.eq.s32.totalorder %s18, 0
    %p127 = por %p125, %p126
    %p128 = scmp.ne.s32.totalorder %s120, %s122
    %p129 = scmp.eq.s32.totalorder %s23, 1
    %p130 = por %p128, %p129
    %p131 = scmp.ne.s32.totalorder %s122, %s123
    %p132 = scmp.eq.s32.totalorder %s23, 0
    %p133 = por %p131, %p132
    %p134 = scmp.ne.s32.totalorder %s122, %s123
    %p135 = scmp.eq.s32.totalorder %s24, 1
    %p136 = por %p134, %p135
    %p138 = scmp.ne.s32.totalorder %s123, %s137
    %p139 = scmp.eq.s32.totalorder %s24, 0
    %p140 = por %p138, %p139
    %s142 = sadd.s32 %s141, 1
    %p145 = scmp.eq.s32.totalorder %s18, 1
    %p146 = scmp.ne.s32.totalorder %s141, %s143
    %p147 = scmp.eq.s32.totalorder %s18, 0
    %p148 = por %p146, %p147
    %p149 = scmp.ne.s32.totalorder %s141, %s143
    %p150 = scmp.eq.s32.totalorder %s23, 1
    %p151 = por %p149, %p150
    %p152 = scmp.ne.s32.totalorder %s143, %s144
    %p153 = scmp.eq.s32.totalorder %s23, 0
    %p154 = por %p152, %p153
    %p155 = scmp.ne.s32.totalorder %s143, %s144
    %p156 = scmp.eq.s32.totalorder %s24, 1
    %p157 = por %p155, %p156
    %p159 = scmp.ne.s32.totalorder %s144, %s158
    %p160 = scmp.eq.s32.totalorder %s24, 0
    %p161 = por %p159, %p160
    %s163 = sadd.s32 %s162, 1
    %p166 = scmp.eq.s32.totalorder %s18, 1
    %p167 = scmp.ne.s32.totalorder %s162, %s164
    %p168 = scmp.eq.s32.totalorder %s18, 0
    %p169 = por %p167, %p168
    %p170 = scmp.ne.s32.totalorder %s162, %s164
    %p171 = scmp.eq.s32.totalorder %s23, 1
    %p172 = por %p170, %p171
    %p173 = scmp.ne.s32.totalorder %s164, %s165
    %p174 = scmp.eq.s32.totalorder %s23, 0
    %p175 = por %p173, %p174
    %p176 = scmp.ne.s32.totalorder %s164, %s165
    %p177 = scmp.eq.s32.totalorder %s24, 1
    %p178 = por %p176, %p177
    %p180 = scmp.ne.s32.totalorder %s165, %s179
    %p181 = scmp.eq.s32.totalorder %s24, 0
    %p182 = por %p180, %p181
    %s184 = sadd.s32 %s183, 1
    %p187 = scmp.eq.s32.totalorder %s18, 1
    %p188 = scmp.ne.s32.totalorder %s183, %s185
    %p189 = scmp.eq.s32.totalorder %s18, 0
    %p190 = por %p188, %p189
    %p191 = scmp.ne.s32.totalorder %s183, %s185
    %p192 = scmp.eq.s32.totalorder %s23, 1
    %p193 = por %p191, %p192
    %p194 = scmp.ne.s32.totalorder %s185, %s186
    %p195 = scmp.eq.s32.totalorder %s23, 0
    %p196 = por %p194, %p195
    %p197 = scmp.ne.s32.totalorder %s185, %s186
    %p198 = scmp.eq.s32.totalorder %s24, 1
    %p199 = por %p197, %p198
    %p201 = scmp.ne.s32.totalorder %s186, %s200
    %p202 = scmp.eq.s32.totalorder %s24, 0
    %p203 = por %p201, %p202
    %s205 = sadd.s32 %s204, 1
    %p208 = scmp.eq.s32.totalorder %s18, 1
    %p209 = scmp.ne.s32.totalorder %s204, %s206
    %p210 = scmp.eq.s32.totalorder %s18, 0
    %p211 = por %p209, %p210
    %p212 = scmp.ne.s32.totalorder %s204, %s206
    %p213 = scmp.eq.s32.totalorder %s23, 1
    %p214 = por %p212, %p213
    %p215 = scmp.ne.s32.totalorder %s206, %s207
    %p216 = scmp.eq.s32.totalorder %s23, 0
    %p217 = por %p215, %p216
    %p218 = scmp.ne.s32.totalorder %s206, %s207
    %p219 = scmp.eq.s32.totalorder %s24, 1
    %p220 = por %p218, %p219
    %p222 = scmp.ne.s32.totalorder %s207, %s221
    %p223 = scmp.eq.s32.totalorder %s24, 0
    %p224 = por %p222, %p223
    %s226 = sadd.s32 %s225, 1
    %p229 = scmp.eq.s32.totalorder %s18, 1
    %p230 = scmp.ne.s32.totalorder %s225, %s227
    %p231 = scmp.eq.s32.totalorder %s18, 0
    %p232 = por %p230, %p231
    %p233 = scmp.ne.s32.totalorder %s225, %s227
    %p234 = scmp.eq.s32.totalorder %s23, 1
    %p235 = por %p233, %p234
    %p236 = scmp.ne.s32.totalorder %s227, %s228
    %p237 = scmp.eq.s32.totalorder %s23, 0
    %p238 = por %p236, %p237
    %p239 = scmp.ne.s32.totalorder %s227, %s228
    %p240 = scmp.eq.s32.totalorder %s24, 1
    %p241 = por %p239, %p240
    %p243 = scmp.ne.s32.totalorder %s228, %s242
    %p244 = scmp.eq.s32.totalorder %s24, 0
    %p245 = por %p243, %p244
    %s247 = sadd.s32 %s246, 1
    %p250 = scmp.eq.s32.totalorder %s18, 1
    %p251 = scmp.ne.s32.totalorder %s246, %s248
    %p252 = scmp.eq.s32.totalorder %s18, 0
    %p253 = por %p251, %p252
    %p254 = scmp.ne.s32.totalorder %s246, %s248
    %p255 = scmp.eq.s32.totalorder %s23, 1
    %p256 = por %p254, %p255
    %p257 = scmp.ne.s32.totalorder %s248, %s249
    %p258 = scmp.eq.s32.totalorder %s23, 0
    %p259 = por %p257, %p258
    %p260 = scmp.ne.s32.totalorder %s248, %s249
    %p261 = scmp.eq.s32.totalorder %s24, 1
    %p262 = por %p260, %p261
    %p264 = scmp.ne.s32.totalorder %s249, %s263
    %p265 = scmp.eq.s32.totalorder %s24, 0
    %p266 = por %p264, %p265
    %s268 = sadd.s32 %s267, 1
    %p271 = scmp.eq.s32.totalorder %s18, 1
    %p272 = scmp.ne.s32.totalorder %s267, %s269
    %p273 = scmp.eq.s32.totalorder %s18, 0
    %p274 = por %p272, %p273
    %p275 = scmp.ne.s32.totalorder %s267, %s269
    %p276 = scmp.eq.s32.totalorder %s23, 1
    %p277 = por %p275, %p276
    %p278 = scmp.ne.s32.totalorder %s269, %s270
    %p279 = scmp.eq.s32.totalorder %s23, 0
    %p280 = por %p278, %p279
    %p281 = scmp.ne.s32.totalorder %s269, %s270
    %p282 = scmp.eq.s32.totalorder %s24, 1
    %p283 = por %p281, %p282
    %p285 = scmp.ne.s32.totalorder %s270, %s284
    %p286 = scmp.eq.s32.totalorder %s24, 0
    %p287 = por %p285, %p286
    %s288 = ssub.s32 %s18, %s25
    %p289 = scmp.eq.s32.totalorder %s288, 0
    %s291 = sadd.s32 %s290, 1
    %s292 = scalar_select %p289, %s290, %s291
    %p295 = pneg %p289
    %p296 = scmp.eq.s32.totalorder %s18, 1
    %p297 = por %p295, %p296
    %p298 = scmp.ne.s32.totalorder %s290, %s293
    %p299 = scmp.eq.s32.totalorder %s18, 0
    %p300 = por %p298, %p299
    %p301 = scmp.ne.s32.totalorder %s290, %s293
    %p302 = scmp.eq.s32.totalorder %s23, 1
    %p303 = por %p301, %p302
    %p304 = scmp.ne.s32.totalorder %s293, %s294
    %p305 = scmp.eq.s32.totalorder %s23, 0
    %p306 = por %p304, %p305
    %p307 = scmp.ne.s32.totalorder %s293, %s294
    %p308 = scmp.eq.s32.totalorder %s24, 1
    %p309 = por %p307, %p308
    %p311 = scmp.ne.s32.totalorder %s294, %s310
    %p312 = scmp.eq.s32.totalorder %s24, 0
    %p313 = por %p311, %p312
    %p314 = scmp.le.s32.totalorder 1, %s18
    %p315 = scmp.lt.s32.totalorder %s18, 3
    %p316 = pnand %p314, %p315
    %p317 = pneg %p316
    // Predicated region
    $region9: #{ms_hgnn_forward.10} parent=5 // pred_check
      _
    $region10: #{ms_hgnn_forward.10} parent=5 // pred_check_branch
      %319 = sbr.rel (%p316) target = $region12
    $region11: #{ms_hgnn_forward.10} parent=5 // pred_region
      %s320 = ssub.s32 %s18, 1
      // Predicated region
      $region13: #{ms_hgnn_forward.10} parent=11 // pred_check
        %p321 = pneg %p65
      $region14: #{ms_hgnn_forward.10} parent=11 // pred_check_branch
        %323 = sbr.rel (%p321) target = $region16
      $region15: #{ms_hgnn_forward.10} parent=11 // pred_region
        _
      $region16: #{ms_hgnn_forward.10} parent=11 // pred_fallthru
        _
      // Predicated region
      $region17: #{ms_hgnn_forward.10} parent=11 // pred_check
        %p324 = pneg %p86
      $region18: #{ms_hgnn_forward.10} parent=11 // pred_check_branch
        %326 = sbr.rel (%p324) target = $region20
      $region19: #{ms_hgnn_forward.10} parent=11 // pred_region
        _
      $region20: #{ms_hgnn_forward.10} parent=11 // pred_fallthru
        _
      // Predicated region
      $region21: #{ms_hgnn_forward.10} parent=11 // pred_check
        %p327 = pneg %p133
      $region22: #{ms_hgnn_forward.10} parent=11 // pred_check_branch
        %329 = sbr.rel (%p327) target = $region24
      $region23: #{ms_hgnn_forward.10} parent=11 // pred_region
        _
      $region24: #{ms_hgnn_forward.10} parent=11 // pred_fallthru
        _
      // Predicated region
      $region25: #{ms_hgnn_forward.10} parent=11 // pred_check
        %p330 = pneg %p154
      $region26: #{ms_hgnn_forward.10} parent=11 // pred_check_branch
        %332 = sbr.rel (%p330) target = $region28
      $region27: #{ms_hgnn_forward.10} parent=11 // pred_region
        _
      $region28: #{ms_hgnn_forward.10} parent=11 // pred_fallthru
        _
      // Predicated region
      $region29: #{ms_hgnn_forward.10} parent=11 // pred_check
        %p333 = pneg %p175
      $region30: #{ms_hgnn_forward.10} parent=11 // pred_check_branch
        %335 = sbr.rel (%p333) target = $region32
      $region31: #{ms_hgnn_forward.10} parent=11 // pred_region
        _
      $region32: #{ms_hgnn_forward.10} parent=11 // pred_fallthru
        _
      // Predicated region
      $region33: #{ms_hgnn_forward.10} parent=11 // pred_check
        %p336 = pneg %p196
      $region34: #{ms_hgnn_forward.10} parent=11 // pred_check_branch
        %338 = sbr.rel (%p336) target = $region36
      $region35: #{ms_hgnn_forward.10} parent=11 // pred_region
        _
      $region36: #{ms_hgnn_forward.10} parent=11 // pred_fallthru
        _
      // Predicated region
      $region37: #{ms_hgnn_forward.10} parent=11 // pred_check
        %p339 = pneg %p217
      $region38: #{ms_hgnn_forward.10} parent=11 // pred_check_branch
        %341 = sbr.rel (%p339) target = $region40
      $region39: #{ms_hgnn_forward.10} parent=11 // pred_region
        _
      $region40: #{ms_hgnn_forward.10} parent=11 // pred_fallthru
        _
      // Predicated region
      $region41: #{ms_hgnn_forward.10} parent=11 // pred_check
        %p342 = pneg %p238
      $region42: #{ms_hgnn_forward.10} parent=11 // pred_check_branch
        %344 = sbr.rel (%p342) target = $region44
      $region43: #{ms_hgnn_forward.10} parent=11 // pred_region
        _
      $region44: #{ms_hgnn_forward.10} parent=11 // pred_fallthru
        _
      // Predicated region
      $region45: #{ms_hgnn_forward.10} parent=11 // pred_check
        %p345 = pneg %p259
      $region46: #{ms_hgnn_forward.10} parent=11 // pred_check_branch
        %347 = sbr.rel (%p345) target = $region48
      $region47: #{ms_hgnn_forward.10} parent=11 // pred_region
        _
      $region48: #{ms_hgnn_forward.10} parent=11 // pred_fallthru
        _
      // Predicated region
      $region49: #{ms_hgnn_forward.10} parent=11 // pred_check
        %p348 = pneg %p280
      $region50: #{ms_hgnn_forward.10} parent=11 // pred_check_branch
        %350 = sbr.rel (%p348) target = $region52
      $region51: #{ms_hgnn_forward.10} parent=11 // pred_region
        _
      $region52: #{ms_hgnn_forward.10} parent=11 // pred_fallthru
        _
    $region12: #{ms_hgnn_forward.10} parent=5 // pred_fallthru
      _
    %p351 = scmp.lt.s32.totalorder %s18, 2
    // Predicated region
    $region53: #{ms_hgnn_forward.10} parent=5 // pred_check
      %p352 = pneg %p351
    $region54: #{ms_hgnn_forward.10} parent=5 // pred_check_branch
      %354 = sbr.rel (%p352) target = $region56
    $region55: #{ms_hgnn_forward.10} parent=5 // pred_region
      // Predicated region
      $region57: #{ms_hgnn_forward.10} parent=55 // pred_check
        %p355 = pneg %p38
      $region58: #{ms_hgnn_forward.10} parent=55 // pred_check_branch
        %357 = sbr.rel (%p355) target = $region60
      $region59: #{ms_hgnn_forward.10} parent=55 // pred_region
        %p358 = scmp.lt.s32.totalorder %s18, 1
        %s359 = scalar_select %p358, %s18, 1
        %s360 = smul.addr %s359, 2
        %s361 = smul.addr %s360, 8
        %s362 = scalar_lea.vmem %s0, %s361
      $region60: #{ms_hgnn_forward.10} parent=55 // pred_fallthru
        _
      // Predicated region
      $region61: #{ms_hgnn_forward.10} parent=55 // pred_check
        %p363 = pneg %p106
      $region62: #{ms_hgnn_forward.10} parent=55 // pred_check_branch
        %365 = sbr.rel (%p363) target = $region64
      $region63: #{ms_hgnn_forward.10} parent=55 // pred_region
        %p366 = scmp.lt.s32.totalorder %s18, 1
        %s367 = scalar_select %p366, %s18, 1
        %s368 = smul.addr %s367, 2
        %s369 = scalar_lea.vmem %s3, %s368
      $region64: #{ms_hgnn_forward.10} parent=55 // pred_fallthru
        _
    $region56: #{ms_hgnn_forward.10} parent=5 // pred_fallthru
      _
    %p370 = scmp.le.s32.totalorder 1, %s18
    %p371 = scmp.lt.s32.totalorder %s18, 3
    %p372 = pnand %p370, %p371
    %p373 = pneg %p372
    // Predicated region
    $region65: #{ms_hgnn_forward.10} parent=5 // pred_check
      _
    $region66: #{ms_hgnn_forward.10} parent=5 // pred_check_branch
      %375 = sbr.rel (%p372) target = $region68
    $region67: #{ms_hgnn_forward.10} parent=5 // pred_region
      %s376 = ssub.s32 %s18, 1
      %p377 = scmp.lt.s32.totalorder %s23, 1
      %s378 = scalar_select %p377, %s23, 1
      %s379 = smul.addr %s378, 2
      %s380 = smul.addr %s379, 8
      %s381 = scalar_lea.vmem %s0, %s380
      %p382 = pneg %p44
      %p383 = pneg %p41
      %p384 = pneg %p65
      %p385 = pneg %p62
      %p386 = pneg %p86
      %p387 = pneg %p83
      %p388 = scmp.lt.s32.totalorder %s23, 1
      %s389 = scalar_select %p388, %s23, 1
      %s390 = smul.addr %s389, 2
      %s391 = scalar_lea.vmem %s3, %s390
      %p392 = pneg %p112
      %p393 = pneg %p109
      %p394 = pneg %p133
      %p395 = pneg %p130
      %p396 = pneg %p154
      %p397 = pneg %p151
      %p398 = pneg %p175
      %p399 = pneg %p172
      %p400 = pneg %p196
      %p401 = pneg %p193
      %p402 = pneg %p217
      %p403 = pneg %p214
      %p404 = pneg %p238
      %p405 = pneg %p235
      %p406 = pneg %p259
      %p407 = pneg %p256
      %p408 = pneg %p280
      %p409 = pneg %p277
      %p410 = pneg %p306
      %p411 = pneg %p303
      %p412 = scmp.lt.s32.totalorder %s23, 1
      %s413 = scalar_select %p412, %s23, 1
      %s414 = smul.addr %s413, 2
      %s415 = scalar_lea.vmem %s12, %s414
      %p416 = scmp.lt.s32.totalorder %s23, 1
      %s417 = scalar_select %p416, %s23, 1
      %s418 = smul.addr %s417, 2
      %s419 = smul.addr %s418, 8
      %s420 = scalar_lea.vmem %s0, %s419
      %p421 = scmp.lt.s32.totalorder %s23, 1
      %s422 = scalar_select %p421, %s23, 1
      %s423 = smul.addr %s422, 2
      %s424 = scalar_lea.vmem %s3, %s423
      %p425 = scmp.lt.s32.totalorder %s23, 1
      %s426 = scalar_select %p425, %s23, 1
      %s427 = smul.addr %s426, 2
      %s428 = scalar_lea.vmem %s12, %s427
      %v430 = vld [vmem:[%s1] sm:$0xf]
      %v431 = vld [vmem:[%s1 + $0x4] sm:$0xf]
      %v432 = vld [vmem:[%s2] sm:$0x3]
      %v433 = vld [vmem:[%s424] sm:$0x3]
      %v436 = vunpack.c.l.b16 %v430
      %v437 = vunpack.c.l.b16 %v431
      %v438 = vpack.c.b16 %v437, %v436
      %vm439 = vcmask 31744
      %v441 = vsel %vm439, %v438, 0
      %vm443 = vcmask 1041408
      %v445 = vsel %vm443, %v433, 0
      %447 = vmatprep.subr.bf16.mxu0 0
      %448 = vmatpush1.bf16.msra.mxu0 %v445
      %449 = vmatprep.subr.bf16.mxu0 0
      %450 = vmatpush1.bf16.msra.mxu0 0
      %451 = vmatprep.subr.bf16.mxu0 0
      %452 = vmatpush1.bf16.msra.mxu0 0
      %453 = vmatprep.subr.bf16.mxu0 0
      %454 = vmatpush1.bf16.msra.mxu0 0
      %455 = vmatprep.subr.bf16.mxu0 0
      %456 = vmatpush1.bf16.msra.mxu0 0
      %457 = vmatprep.subr.bf16.mxu0 0
      %458 = vmatpush1.bf16.msra.mxu0 0
      %459 = vmatprep.subr.bf16.mxu0 0
      %460 = vmatpush1.bf16.msra.mxu0 0
      %461 = vmatprep.subr.bf16.mxu0 0
      %462 = vmatpush1.bf16.msra.mxu0 0
      %463 = vmatprep.subr.bf16.mxu0 0
      %464 = vmatpush1.bf16.msra.mxu0 0
      %465 = vmatprep.subr.bf16.mxu0 0
      %466 = vmatpush1.bf16.msra.mxu0 0
      %467 = vmatprep.subr.bf16.mxu0 0
      %468 = vmatpush1.bf16.msra.mxu0 0
      %469 = vmatprep.subr.bf16.mxu0 0
      %470 = vmatpush1.bf16.msra.mxu0 0
      %471 = vmatprep.subr.bf16.mxu0 0
      %472 = vmatpush1.bf16.msra.mxu0 0
      %473 = vmatprep.subr.bf16.mxu0 0
      %474 = vmatpush1.bf16.msra.mxu0 0
      %475 = vmatprep.subr.bf16.mxu0 0
      %476 = vmatpush1.bf16.msra.mxu0 0
      %477 = vmatprep.subr.bf16.mxu0 0
      %478 = vmatpush1.bf16.msra.mxu0 0
      %479 = vmatprep.mubr.bf16.mxu0 0
      %480 = vmatmul.mubr.bf16.gmra.mrb[0].mxu0 %v441
      %v481 = vpop.f32.mrb[0].mxu0
      %v482 = vadd.f32 0.0, %v481
      %v483 = vpop.f32.mrb[0].mxu0
      %v484 = vpop.f32.mrb[0].mxu0
      %v485 = vadd.f32 0.0, %v484
      %v486 = vpop.f32.mrb[0].mxu0
      %487 = vdwg.mxu0
      %v488 = vpack.c.bf16 %v485, %v482
      %v489 = vld [vmem:[%s420] sm:$0xff]
      %v490 = vld [vmem:[%s420 + $0x8] sm:$0xff]
      %v491 = vld [vmem:[%s4] sm:$0xf]
      %v492 = vld [vmem:[%s4 + $0x4] sm:$0xf]
      %v493 = vld [vmem:[%s4 + $0x8] sm:$0xf]
      %v494 = vld [vmem:[%s4 + $0xc] sm:$0xf]
      %v495 = vld [vmem:[%s4 + $0x10] sm:$0xf]
      %v496 = vld [vmem:[%s4 + $0x14] sm:$0xf]
      %v497 = vld [vmem:[%s4 + $0x18] sm:$0xf]
      %v498 = vld [vmem:[%s4 + $0x1c] sm:$0xf]
      %v499 = vld [vmem:[%s5] sm:$0x1]
      %v501 = vlaneseq
      %v502 = vshrl.u32 %v501, 7
      %v503 = vsub.s32 0, %v502
      %v504 = vrot.slane %v499, %v503
      %v514 = vunpack.c.l.b16 %v491
      %v515 = vunpack.c.l.b16 %v492
      %v516 = vunpack.c.l.b16 %v493
      %v517 = vunpack.c.l.b16 %v494
      %v518 = vunpack.c.l.b16 %v495
      %v519 = vunpack.c.l.b16 %v496
      %v520 = vunpack.c.l.b16 %v497
      %v521 = vunpack.c.l.b16 %v498
      %v522 = vpack.c.b16 %v515, %v514
      %v523 = vpack.c.b16 %v517, %v516
      %v524 = vpack.c.b16 %v519, %v518
      %v525 = vpack.c.b16 %v521, %v520
      %vm530 = vcmask 523264
      %v532 = vsel %vm530, %v488, 0
      %534 = vmatprep.subr.bf16.mxu0 0
      %535 = vmatpush1.bf16.msra.mxu0 %v522
      %536 = vmatprep.subr.bf16.mxu0 0
      %537 = vmatpush1.bf16.msra.mxu0 %v523
      %538 = vmatprep.subr.bf16.mxu0 0
      %539 = vmatpush1.bf16.msra.mxu0 %v524
      %540 = vmatprep.subr.bf16.mxu0 0
      %541 = vmatpush1.bf16.msra.mxu0 %v525
      %542 = vmatprep.subr.bf16.mxu0 0
      %543 = vmatpush1.bf16.msra.mxu0 0
      %544 = vmatprep.subr.bf16.mxu0 0
      %545 = vmatpush1.bf16.msra.mxu0 0
      %546 = vmatprep.subr.bf16.mxu0 0
      %547 = vmatpush1.bf16.msra.mxu0 0
      %548 = vmatprep.subr.bf16.mxu0 0
      %549 = vmatpush1.bf16.msra.mxu0 0
      %550 = vmatprep.subr.bf16.mxu0 0
      %551 = vmatpush1.bf16.msra.mxu0 0
      %552 = vmatprep.subr.bf16.mxu0 0
      %553 = vmatpush1.bf16.msra.mxu0 0
      %554 = vmatprep.subr.bf16.mxu0 0
      %555 = vmatpush1.bf16.msra.mxu0 0
      %556 = vmatprep.subr.bf16.mxu0 0
      %557 = vmatpush1.bf16.msra.mxu0 0
      %558 = vmatprep.subr.bf16.mxu0 0
      %559 = vmatpush1.bf16.msra.mxu0 0
      %560 = vmatprep.subr.bf16.mxu0 0
      %561 = vmatpush1.bf16.msra.mxu0 0
      %562 = vmatprep.subr.bf16.mxu0 0
      %563 = vmatpush1.bf16.msra.mxu0 0
      %564 = vmatprep.subr.bf16.mxu0 0
      %565 = vmatpush1.bf16.msra.mxu0 0
      %566 = vmatprep.mubr.bf16.mxu0 0
      %567 = vmatmul.mubr.bf16.gmra.mrb[0].mxu0 %v532
      %v568 = vpop.f32.mrb[0].mxu0
      %v569 = vadd.f32 %v504, %v568
      %v570 = vpop.f32.mrb[0].mxu0
      %v571 = vpop.f32.mrb[0].mxu0
      %v572 = vadd.f32 %v504, %v571
      %v573 = vpop.f32.mrb[0].mxu0
      %574 = vdwg.mxu0
      %v575 = vmax.f32 %v569, 0.0
      %v576 = vmax.f32 %v572, 0.0
      %v577 = vpack.c.bf16 %v576, %v575
      %v578 = vld [vmem:[%s6] sm:$0xf]
      %v579 = vld [vmem:[%s6 + $0x4] sm:$0xf]
      %v580 = vld [vmem:[%s6 + $0x8] sm:$0xf]
      %v581 = vld [vmem:[%s6 + $0xc] sm:$0xf]
      %v582 = vld [vmem:[%s6 + $0x10] sm:$0xf]
      %v583 = vld [vmem:[%s6 + $0x14] sm:$0xf]
      %v584 = vld [vmem:[%s6 + $0x18] sm:$0xf]
      %v585 = vld [vmem:[%s6 + $0x1c] sm:$0xf]
      %v586 = vld [vmem:[%s6 + $0x20] sm:$0xf]
      %v587 = vld [vmem:[%s6 + $0x24] sm:$0xf]
      %v588 = vld [vmem:[%s6 + $0x28] sm:$0xf]
      %v589 = vld [vmem:[%s6 + $0x2c] sm:$0xf]
      %v590 = vld [vmem:[%s6 + $0x30] sm:$0xf]
      %v591 = vld [vmem:[%s6 + $0x34] sm:$0xf]
      %v592 = vld [vmem:[%s6 + $0x38] sm:$0xf]
      %v593 = vld [vmem:[%s6 + $0x3c] sm:$0xf]
      %v594 = vld [vmem:[%s7] sm:$0x1]
      %v596 = vlaneseq
      %v597 = vshrl.u32 %v596, 7
      %v598 = vsub.s32 0, %v597
      %v599 = vrot.slane %v594, %v598
      %v617 = vunpack.c.l.b16 %v578
      %v618 = vunpack.c.l.b16 %v579
      %v619 = vunpack.c.l.b16 %v580
      %v620 = vunpack.c.l.b16 %v581
      %v621 = vunpack.c.l.b16 %v582
      %v622 = vunpack.c.l.b16 %v583
      %v623 = vunpack.c.l.b16 %v584
      %v624 = vunpack.c.l.b16 %v585
      %v625 = vunpack.c.l.b16 %v586
      %v626 = vunpack.c.l.b16 %v587
      %v627 = vunpack.c.l.b16 %v588
      %v628 = vunpack.c.l.b16 %v589
      %v629 = vunpack.c.l.b16 %v590
      %v630 = vunpack.c.l.b16 %v591
      %v631 = vunpack.c.l.b16 %v592
      %v632 = vunpack.c.l.b16 %v593
      %v633 = vpack.c.b16 %v618, %v617
      %v634 = vpack.c.b16 %v620, %v619
      %v635 = vpack.c.b16 %v622, %v621
      %v636 = vpack.c.b16 %v624, %v623
      %v637 = vpack.c.b16 %v626, %v625
      %v638 = vpack.c.b16 %v628, %v627
      %v639 = vpack.c.b16 %v630, %v629
      %v640 = vpack.c.b16 %v632, %v631
      %649 = vmatprep.subr.bf16.mxu0 0
      %650 = vmatpush1.bf16.msra.mxu0 %v633
      %651 = vmatprep.subr.bf16.mxu0 0
      %652 = vmatpush1.bf16.msra.mxu0 %v634
      %653 = vmatprep.subr.bf16.mxu0 0
      %654 = vmatpush1.bf16.msra.mxu0 %v635
      %655 = vmatprep.subr.bf16.mxu0 0
      %656 = vmatpush1.bf16.msra.mxu0 %v636
      %657 = vmatprep.subr.bf16.mxu0 0
      %658 = vmatpush1.bf16.msra.mxu0 %v637
      %659 = vmatprep.subr.bf16.mxu0 0
      %660 = vmatpush1.bf16.msra.mxu0 %v638
      %661 = vmatprep.subr.bf16.mxu0 0
      %662 = vmatpush1.bf16.msra.mxu0 %v639
      %663 = vmatprep.subr.bf16.mxu0 0
      %664 = vmatpush1.bf16.msra.mxu0 %v640
      %665 = vmatprep.subr.bf16.mxu0 0
      %666 = vmatpush1.bf16.msra.mxu0 0
      %667 = vmatprep.subr.bf16.mxu0 0
      %668 = vmatpush1.bf16.msra.mxu0 0
      %669 = vmatprep.subr.bf16.mxu0 0
      %670 = vmatpush1.bf16.msra.mxu0 0
      %671 = vmatprep.subr.bf16.mxu0 0
      %672 = vmatpush1.bf16.msra.mxu0 0
      %673 = vmatprep.subr.bf16.mxu0 0
      %674 = vmatpush1.bf16.msra.mxu0 0
      %675 = vmatprep.subr.bf16.mxu0 0
      %676 = vmatpush1.bf16.msra.mxu0 0
      %677 = vmatprep.subr.bf16.mxu0 0
      %678 = vmatpush1.bf16.msra.mxu0 0
      %679 = vmatprep.subr.bf16.mxu0 0
      %680 = vmatpush1.bf16.msra.mxu0 0
      %681 = vmatprep.mubr.bf16.mxu0 0
      %682 = vmatmul.mubr.bf16.gmra.mrb[0].mxu0 %v577
      %v683 = vpop.f32.mrb[0].mxu0
      %v684 = vadd.f32 %v599, %v683
      %v685 = vpop.f32.mrb[0].mxu0
      %v686 = vpop.f32.mrb[0].mxu0
      %v687 = vadd.f32 %v599, %v686
      %v688 = vpop.f32.mrb[0].mxu0
      %689 = vdwg.mxu0
      %691 = vset.pattern.permute.xlu0 0
      %692 = vperm.xlu0 %691, %v489
      %v693 = vpop.permute.xlu0 %692
      %696 = vset.pattern.permute.xlu0 0
      %697 = vperm.xlu0 %696, %v490
      %v698 = vpop.permute.xlu0 %697
      %v700 = vmul.f32 %v693, %v684
      %v701 = vmul.f32 %v698, %v687
      %v702 = vadd.f32 %v700, 0.0
      %v703 = vadd.f32 %v701, 0.0
      %s704 = scalar_lea.vmem %s4, 32
      %v705 = vld [vmem:[%s704] sm:$0xf]
      %v706 = vld [vmem:[%s704 + $0x4] sm:$0xf]
      %v707 = vld [vmem:[%s704 + $0x8] sm:$0xf]
      %v708 = vld [vmem:[%s704 + $0xc] sm:$0xf]
      %v709 = vld [vmem:[%s704 + $0x10] sm:$0xf]
      %v710 = vld [vmem:[%s704 + $0x14] sm:$0xf]
      %v711 = vld [vmem:[%s704 + $0x18] sm:$0xf]
      %v712 = vld [vmem:[%s704 + $0x1c] sm:$0xf]
      %s713 = scalar_lea.vmem %s5, 1
      %v714 = vld [vmem:[%s713] sm:$0x1]
      %v716 = vlaneseq
      %v717 = vshrl.u32 %v716, 7
      %v718 = vsub.s32 0, %v717
      %v719 = vrot.slane %v714, %v718
      %v729 = vunpack.c.l.b16 %v705
      %v730 = vunpack.c.l.b16 %v706
      %v731 = vunpack.c.l.b16 %v707
      %v732 = vunpack.c.l.b16 %v708
      %v733 = vunpack.c.l.b16 %v709
      %v734 = vunpack.c.l.b16 %v710
      %v735 = vunpack.c.l.b16 %v711
      %v736 = vunpack.c.l.b16 %v712
      %v737 = vpack.c.b16 %v730, %v729
      %v738 = vpack.c.b16 %v732, %v731
      %v739 = vpack.c.b16 %v734, %v733
      %v740 = vpack.c.b16 %v736, %v735
      %745 = vmatprep.subr.bf16.mxu0 0
      %746 = vmatpush1.bf16.msra.mxu0 %v737
      %747 = vmatprep.subr.bf16.mxu0 0
      %748 = vmatpush1.bf16.msra.mxu0 %v738
      %749 = vmatprep.subr.bf16.mxu0 0
      %750 = vmatpush1.bf16.msra.mxu0 %v739
      %751 = vmatprep.subr.bf16.mxu0 0
      %752 = vmatpush1.bf16.msra.mxu0 %v740
      %753 = vmatprep.subr.bf16.mxu0 0
      %754 = vmatpush1.bf16.msra.mxu0 0
      %755 = vmatprep.subr.bf16.mxu0 0
      %756 = vmatpush1.bf16.msra.mxu0 0
      %757 = vmatprep.subr.bf16.mxu0 0
      %758 = vmatpush1.bf16.msra.mxu0 0
      %759 = vmatprep.subr.bf16.mxu0 0
      %760 = vmatpush1.bf16.msra.mxu0 0
      %761 = vmatprep.subr.bf16.mxu0 0
      %762 = vmatpush1.bf16.msra.mxu0 0
      %763 = vmatprep.subr.bf16.mxu0 0
      %764 = vmatpush1.bf16.msra.mxu0 0
      %765 = vmatprep.subr.bf16.mxu0 0
      %766 = vmatpush1.bf16.msra.mxu0 0
      %767 = vmatprep.subr.bf16.mxu0 0
      %768 = vmatpush1.bf16.msra.mxu0 0
      %769 = vmatprep.subr.bf16.mxu0 0
      %770 = vmatpush1.bf16.msra.mxu0 0
      %771 = vmatprep.subr.bf16.mxu0 0
      %772 = vmatpush1.bf16.msra.mxu0 0
      %773 = vmatprep.subr.bf16.mxu0 0
      %774 = vmatpush1.bf16.msra.mxu0 0
      %775 = vmatprep.subr.bf16.mxu0 0
      %776 = vmatpush1.bf16.msra.mxu0 0
      %777 = vmatprep.mubr.bf16.mxu0 0
      %778 = vmatmul.mubr.bf16.gmra.mrb[0].mxu0 %v532
      %v779 = vpop.f32.mrb[0].mxu0
      %v780 = vadd.f32 %v719, %v779
      %v781 = vpop.f32.mrb[0].mxu0
      %v782 = vpop.f32.mrb[0].mxu0
      %v783 = vadd.f32 %v719, %v782
      %v784 = vpop.f32.mrb[0].mxu0
      %785 = vdwg.mxu0
      %v786 = vmax.f32 %v780, 0.0
      %v787 = vmax.f32 %v783, 0.0
      %v788 = vpack.c.bf16 %v787, %v786
      %s789 = scalar_lea.vmem %s6, 64
      %v790 = vld [vmem:[%s789] sm:$0xf]
      %v791 = vld [vmem:[%s789 + $0x4] sm:$0xf]
      %v792 = vld [vmem:[%s789 + $0x8] sm:$0xf]
      %v793 = vld [vmem:[%s789 + $0xc] sm:$0xf]
      %v794 = vld [vmem:[%s789 + $0x10] sm:$0xf]
      %v795 = vld [vmem:[%s789 + $0x14] sm:$0xf]
      %v796 = vld [vmem:[%s789 + $0x18] sm:$0xf]
      %v797 = vld [vmem:[%s789 + $0x1c] sm:$0xf]
      %v798 = vld [vmem:[%s789 + $0x20] sm:$0xf]
      %v799 = vld [vmem:[%s789 + $0x24] sm:$0xf]
      %v800 = vld [vmem:[%s789 + $0x28] sm:$0xf]
      %v801 = vld [vmem:[%s789 + $0x2c] sm:$0xf]
      %v802 = vld [vmem:[%s789 + $0x30] sm:$0xf]
      %v803 = vld [vmem:[%s789 + $0x34] sm:$0xf]
      %v804 = vld [vmem:[%s789 + $0x38] sm:$0xf]
      %v805 = vld [vmem:[%s789 + $0x3c] sm:$0xf]
      %s806 = scalar_lea.vmem %s7, 1
      %v807 = vld [vmem:[%s806] sm:$0x1]
      %v809 = vlaneseq
      %v810 = vshrl.u32 %v809, 7
      %v811 = vsub.s32 0, %v810
      %v812 = vrot.slane %v807, %v811
      %v830 = vunpack.c.l.b16 %v790
      %v831 = vunpack.c.l.b16 %v791
      %v832 = vunpack.c.l.b16 %v792
      %v833 = vunpack.c.l.b16 %v793
      %v834 = vunpack.c.l.b16 %v794
      %v835 = vunpack.c.l.b16 %v795
      %v836 = vunpack.c.l.b16 %v796
      %v837 = vunpack.c.l.b16 %v797
      %v838 = vunpack.c.l.b16 %v798
      %v839 = vunpack.c.l.b16 %v799
      %v840 = vunpack.c.l.b16 %v800
      %v841 = vunpack.c.l.b16 %v801
      %v842 = vunpack.c.l.b16 %v802
      %v843 = vunpack.c.l.b16 %v803
      %v844 = vunpack.c.l.b16 %v804
      %v845 = vunpack.c.l.b16 %v805
      %v846 = vpack.c.b16 %v831, %v830
      %v847 = vpack.c.b16 %v833, %v832
      %v848 = vpack.c.b16 %v835, %v834
      %v849 = vpack.c.b16 %v837, %v836
      %v850 = vpack.c.b16 %v839, %v838
      %v851 = vpack.c.b16 %v841, %v840
      %v852 = vpack.c.b16 %v843, %v842
      %v853 = vpack.c.b16 %v845, %v844
      %862 = vmatprep.subr.bf16.mxu0 0
      %863 = vmatpush1.bf16.msra.mxu0 %v846
      %864 = vmatprep.subr.bf16.mxu0 0
      %865 = vmatpush1.bf16.msra.mxu0 %v847
      %866 = vmatprep.subr.bf16.mxu0 0
      %867 = vmatpush1.bf16.msra.mxu0 %v848
      %868 = vmatprep.subr.bf16.mxu0 0
      %869 = vmatpush1.bf16.msra.mxu0 %v849
      %870 = vmatprep.subr.bf16.mxu0 0
      %871 = vmatpush1.bf16.msra.mxu0 %v850
      %872 = vmatprep.subr.bf16.mxu0 0
      %873 = vmatpush1.bf16.msra.mxu0 %v851
      %874 = vmatprep.subr.bf16.mxu0 0
      %875 = vmatpush1.bf16.msra.mxu0 %v852
      %876 = vmatprep.subr.bf16.mxu0 0
      %877 = vmatpush1.bf16.msra.mxu0 %v853
      %878 = vmatprep.subr.bf16.mxu0 0
      %879 = vmatpush1.bf16.msra.mxu0 0
      %880 = vmatprep.subr.bf16.mxu0 0
      %881 = vmatpush1.bf16.msra.mxu0 0
      %882 = vmatprep.subr.bf16.mxu0 0
      %883 = vmatpush1.bf16.msra.mxu0 0
      %884 = vmatprep.subr.bf16.mxu0 0
      %885 = vmatpush1.bf16.msra.mxu0 0
      %886 = vmatprep.subr.bf16.mxu0 0
      %887 = vmatpush1.bf16.msra.mxu0 0
      %888 = vmatprep.subr.bf16.mxu0 0
      %889 = vmatpush1.bf16.msra.mxu0 0
      %890 = vmatprep.subr.bf16.mxu0 0
      %891 = vmatpush1.bf16.msra.mxu0 0
      %892 = vmatprep.subr.bf16.mxu0 0
      %893 = vmatpush1.bf16.msra.mxu0 0
      %894 = vmatprep.mubr.bf16.mxu0 0
      %895 = vmatmul.mubr.bf16.gmra.mrb[0].mxu0 %v788
      %v896 = vpop.f32.mrb[0].mxu0
      %v897 = vadd.f32 %v812, %v896
      %v898 = vpop.f32.mrb[0].mxu0
      %v899 = vpop.f32.mrb[0].mxu0
      %v900 = vadd.f32 %v812, %v899
      %v901 = vpop.f32.mrb[0].mxu0
      %902 = vdwg.mxu0
      %903 = vset.pattern.permute.xlu0 1
      %904 = vperm.xlu0 %903, %v489
      %v905 = vpop.permute.xlu0 %904
      %907 = vset.pattern.permute.xlu0 1
      %908 = vperm.xlu0 %907, %v490
      %v909 = vpop.permute.xlu0 %908
      %v911 = vmul.f32 %v905, %v897
      %v912 = vmul.f32 %v909, %v900
      %v913 = vadd.f32 %v702, %v911
      %v914 = vadd.f32 %v703, %v912
      %s915 = scalar_lea.vmem %s4, 64
      %v916 = vld [vmem:[%s915] sm:$0xf]
      %v917 = vld [vmem:[%s915 + $0x4] sm:$0xf]
      %v918 = vld [vmem:[%s915 + $0x8] sm:$0xf]
      %v919 = vld [vmem:[%s915 + $0xc] sm:$0xf]
      %v920 = vld [vmem:[%s915 + $0x10] sm:$0xf]
      %v921 = vld [vmem:[%s915 + $0x14] sm:$0xf]
      %v922 = vld [vmem:[%s915 + $0x18] sm:$0xf]
      %v923 = vld [vmem:[%s915 + $0x1c] sm:$0xf]
      %s924 = scalar_lea.vmem %s5, 2
      %v925 = vld [vmem:[%s924] sm:$0x1]
      %v927 = vlaneseq
      %v928 = vshrl.u32 %v927, 7
      %v929 = vsub.s32 0, %v928
      %v930 = vrot.slane %v925, %v929
      %v940 = vunpack.c.l.b16 %v916
      %v941 = vunpack.c.l.b16 %v917
      %v942 = vunpack.c.l.b16 %v918
      %v943 = vunpack.c.l.b16 %v919
      %v944 = vunpack.c.l.b16 %v920
      %v945 = vunpack.c.l.b16 %v921
      %v946 = vunpack.c.l.b16 %v922
      %v947 = vunpack.c.l.b16 %v923
      %v948 = vpack.c.b16 %v941, %v940
      %v949 = vpack.c.b16 %v943, %v942
      %v950 = vpack.c.b16 %v945, %v944
      %v951 = vpack.c.b16 %v947, %v946
      %956 = vmatprep.subr.bf16.mxu0 0
      %957 = vmatpush1.bf16.msra.mxu0 %v948
      %958 = vmatprep.subr.bf16.mxu0 0
      %959 = vmatpush1.bf16.msra.mxu0 %v949
      %960 = vmatprep.subr.bf16.mxu0 0
      %961 = vmatpush1.bf16.msra.mxu0 %v950
      %962 = vmatprep.subr.bf16.mxu0 0
      %963 = vmatpush1.bf16.msra.mxu0 %v951
      %964 = vmatprep.subr.bf16.mxu0 0
      %965 = vmatpush1.bf16.msra.mxu0 0
      %966 = vmatprep.subr.bf16.mxu0 0
      %967 = vmatpush1.bf16.msra.mxu0 0
      %968 = vmatprep.subr.bf16.mxu0 0
      %969 = vmatpush1.bf16.msra.mxu0 0
      %970 = vmatprep.subr.bf16.mxu0 0
      %971 = vmatpush1.bf16.msra.mxu0 0
      %972 = vmatprep.subr.bf16.mxu0 0
      %973 = vmatpush1.bf16.msra.mxu0 0
      %974 = vmatprep.subr.bf16.mxu0 0
      %975 = vmatpush1.bf16.msra.mxu0 0
      %976 = vmatprep.subr.bf16.mxu0 0
      %977 = vmatpush1.bf16.msra.mxu0 0
      %978 = vmatprep.subr.bf16.mxu0 0
      %979 = vmatpush1.bf16.msra.mxu0 0
      %980 = vmatprep.subr.bf16.mxu0 0
      %981 = vmatpush1.bf16.msra.mxu0 0
      %982 = vmatprep.subr.bf16.mxu0 0
      %983 = vmatpush1.bf16.msra.mxu0 0
      %984 = vmatprep.subr.bf16.mxu0 0
      %985 = vmatpush1.bf16.msra.mxu0 0
      %986 = vmatprep.subr.bf16.mxu0 0
      %987 = vmatpush1.bf16.msra.mxu0 0
      %988 = vmatprep.mubr.bf16.mxu0 0
      %989 = vmatmul.mubr.bf16.gmra.mrb[0].mxu0 %v532
      %v990 = vpop.f32.mrb[0].mxu0
      %v991 = vadd.f32 %v930, %v990
      %v992 = vpop.f32.mrb[0].mxu0
      %v993 = vpop.f32.mrb[0].mxu0
      %v994 = vadd.f32 %v930, %v993
      %v995 = vpop.f32.mrb[0].mxu0
      %996 = vdwg.mxu0
      %v997 = vmax.f32 %v991, 0.0
      %v998 = vmax.f32 %v994, 0.0
      %v999 = vpack.c.bf16 %v998, %v997
      %s1000 = scalar_lea.vmem %s6, 128
      %v1001 = vld [vmem:[%s1000] sm:$0xf]
      %v1002 = vld [vmem:[%s1000 + $0x4] sm:$0xf]
      %v1003 = vld [vmem:[%s1000 + $0x8] sm:$0xf]
      %v1004 = vld [vmem:[%s1000 + $0xc] sm:$0xf]
      %v1005 = vld [vmem:[%s1000 + $0x10] sm:$0xf]
      %v1006 = vld [vmem:[%s1000 + $0x14] sm:$0xf]
      %v1007 = vld [vmem:[%s1000 + $0x18] sm:$0xf]
      %v1008 = vld [vmem:[%s1000 + $0x1c] sm:$0xf]
      %v1009 = vld [vmem:[%s1000 + $0x20] sm:$0xf]
      %v1010 = vld [vmem:[%s1000 + $0x24] sm:$0xf]
      %v1011 = vld [vmem:[%s1000 + $0x28] sm:$0xf]
      %v1012 = vld [vmem:[%s1000 + $0x2c] sm:$0xf]
      %v1013 = vld [vmem:[%s1000 + $0x30] sm:$0xf]
      %v1014 = vld [vmem:[%s1000 + $0x34] sm:$0xf]
      %v1015 = vld [vmem:[%s1000 + $0x38] sm:$0xf]
      %v1016 = vld [vmem:[%s1000 + $0x3c] sm:$0xf]
      %s1017 = scalar_lea.vmem %s7, 2
      %v1018 = vld [vmem:[%s1017] sm:$0x1]
      %v1020 = vlaneseq
      %v1021 = vshrl.u32 %v1020, 7
      %v1022 = vsub.s32 0, %v1021
      %v1023 = vrot.slane %v1018, %v1022
      %v1041 = vunpack.c.l.b16 %v1001
      %v1042 = vunpack.c.l.b16 %v1002
      %v1043 = vunpack.c.l.b16 %v1003
      %v1044 = vunpack.c.l.b16 %v1004
      %v1045 = vunpack.c.l.b16 %v1005
      %v1046 = vunpack.c.l.b16 %v1006
      %v1047 = vunpack.c.l.b16 %v1007
      %v1048 = vunpack.c.l.b16 %v1008
      %v1049 = vunpack.c.l.b16 %v1009
      %v1050 = vunpack.c.l.b16 %v1010
      %v1051 = vunpack.c.l.b16 %v1011
      %v1052 = vunpack.c.l.b16 %v1012
      %v1053 = vunpack.c.l.b16 %v1013
      %v1054 = vunpack.c.l.b16 %v1014
      %v1055 = vunpack.c.l.b16 %v1015
      %v1056 = vunpack.c.l.b16 %v1016
      %v1057 = vpack.c.b16 %v1042, %v1041
      %v1058 = vpack.c.b16 %v1044, %v1043
      %v1059 = vpack.c.b16 %v1046, %v1045
      %v1060 = vpack.c.b16 %v1048, %v1047
      %v1061 = vpack.c.b16 %v1050, %v1049
      %v1062 = vpack.c.b16 %v1052, %v1051
      %v1063 = vpack.c.b16 %v1054, %v1053
      %v1064 = vpack.c.b16 %v1056, %v1055
      %1073 = vmatprep.subr.bf16.mxu0 0
      %1074 = vmatpush1.bf16.msra.mxu0 %v1057
      %1075 = vmatprep.subr.bf16.mxu0 0
      %1076 = vmatpush1.bf16.msra.mxu0 %v1058
      %1077 = vmatprep.subr.bf16.mxu0 0
      %1078 = vmatpush1.bf16.msra.mxu0 %v1059
      %1079 = vmatprep.subr.bf16.mxu0 0
      %1080 = vmatpush1.bf16.msra.mxu0 %v1060
      %1081 = vmatprep.subr.bf16.mxu0 0
      %1082 = vmatpush1.bf16.msra.mxu0 %v1061
      %1083 = vmatprep.subr.bf16.mxu0 0
      %1084 = vmatpush1.bf16.msra.mxu0 %v1062
      %1085 = vmatprep.subr.bf16.mxu0 0
      %1086 = vmatpush1.bf16.msra.mxu0 %v1063
      %1087 = vmatprep.subr.bf16.mxu0 0
      %1088 = vmatpush1.bf16.msra.mxu0 %v1064
      %1089 = vmatprep.subr.bf16.mxu0 0
      %1090 = vmatpush1.bf16.msra.mxu0 0
      %1091 = vmatprep.subr.bf16.mxu0 0
      %1092 = vmatpush1.bf16.msra.mxu0 0
      %1093 = vmatprep.subr.bf16.mxu0 0
      %1094 = vmatpush1.bf16.msra.mxu0 0
      %1095 = vmatprep.subr.bf16.mxu0 0
      %1096 = vmatpush1.bf16.msra.mxu0 0
      %1097 = vmatprep.subr.bf16.mxu0 0
      %1098 = vmatpush1.bf16.msra.mxu0 0
      %1099 = vmatprep.subr.bf16.mxu0 0
      %1100 = vmatpush1.bf16.msra.mxu0 0
      %1101 = vmatprep.subr.bf16.mxu0 0
      %1102 = vmatpush1.bf16.msra.mxu0 0
      %1103 = vmatprep.subr.bf16.mxu0 0
      %1104 = vmatpush1.bf16.msra.mxu0 0
      %1105 = vmatprep.mubr.bf16.mxu0 0
      %1106 = vmatmul.mubr.bf16.gmra.mrb[0].mxu0 %v999
      %v1107 = vpop.f32.mrb[0].mxu0
      %v1108 = vadd.f32 %v1023, %v1107
      %v1109 = vpop.f32.mrb[0].mxu0
      %v1110 = vpop.f32.mrb[0].mxu0
      %v1111 = vadd.f32 %v1023, %v1110
      %v1112 = vpop.f32.mrb[0].mxu0
      %1113 = vdwg.mxu0
      %1114 = vset.pattern.permute.xlu0 2
      %1115 = vperm.xlu0 %1114, %v489
      %v1116 = vpop.permute.xlu0 %1115
      %1118 = vset.pattern.permute.xlu0 2
      %1119 = vperm.xlu0 %1118, %v490
      %v1120 = vpop.permute.xlu0 %1119
      %v1122 = vmul.f32 %v1116, %v1108
      %v1123 = vmul.f32 %v1120, %v1111
      %v1124 = vadd.f32 %v913, %v1122
      %v1125 = vadd.f32 %v914, %v1123
      %s1126 = scalar_lea.vmem %s4, 96
      %v1127 = vld [vmem:[%s1126] sm:$0xf]
      %v1128 = vld [vmem:[%s1126 + $0x4] sm:$0xf]
      %v1129 = vld [vmem:[%s1126 + $0x8] sm:$0xf]
      %v1130 = vld [vmem:[%s1126 + $0xc] sm:$0xf]
      %v1131 = vld [vmem:[%s1126 + $0x10] sm:$0xf]
      %v1132 = vld [vmem:[%s1126 + $0x14] sm:$0xf]
      %v1133 = vld [vmem:[%s1126 + $0x18] sm:$0xf]
      %v1134 = vld [vmem:[%s1126 + $0x1c] sm:$0xf]
      %s1135 = scalar_lea.vmem %s5, 3
      %v1136 = vld [vmem:[%s1135] sm:$0x1]
      %v1138 = vlaneseq
      %v1139 = vshrl.u32 %v1138, 7
      %v1140 = vsub.s32 0, %v1139
      %v1141 = vrot.slane %v1136, %v1140
      %v1151 = vunpack.c.l.b16 %v1127
      %v1152 = vunpack.c.l.b16 %v1128
      %v1153 = vunpack.c.l.b16 %v1129
      %v1154 = vunpack.c.l.b16 %v1130
      %v1155 = vunpack.c.l.b16 %v1131
      %v1156 = vunpack.c.l.b16 %v1132
      %v1157 = vunpack.c.l.b16 %v1133
      %v1158 = vunpack.c.l.b16 %v1134
      %v1159 = vpack.c.b16 %v1152, %v1151
      %v1160 = vpack.c.b16 %v1154, %v1153
      %v1161 = vpack.c.b16 %v1156, %v1155
      %v1162 = vpack.c.b16 %v1158, %v1157
      %1167 = vmatprep.subr.bf16.mxu0 0
      %1168 = vmatpush1.bf16.msra.mxu0 %v1159
      %1169 = vmatprep.subr.bf16.mxu0 0
      %1170 = vmatpush1.bf16.msra.mxu0 %v1160
      %1171 = vmatprep.subr.bf16.mxu0 0
      %1172 = vmatpush1.bf16.msra.mxu0 %v1161
      %1173 = vmatprep.subr.bf16.mxu0 0
      %1174 = vmatpush1.bf16.msra.mxu0 %v1162
      %1175 = vmatprep.subr.bf16.mxu0 0
      %1176 = vmatpush1.bf16.msra.mxu0 0
      %1177 = vmatprep.subr.bf16.mxu0 0
      %1178 = vmatpush1.bf16.msra.mxu0 0
      %1179 = vmatprep.subr.bf16.mxu0 0
      %1180 = vmatpush1.bf16.msra.mxu0 0
      %1181 = vmatprep.subr.bf16.mxu0 0
      %1182 = vmatpush1.bf16.msra.mxu0 0
      %1183 = vmatprep.subr.bf16.mxu0 0
      %1184 = vmatpush1.bf16.msra.mxu0 0
      %1185 = vmatprep.subr.bf16.mxu0 0
      %1186 = vmatpush1.bf16.msra.mxu0 0
      %1187 = vmatprep.subr.bf16.mxu0 0
      %1188 = vmatpush1.bf16.msra.mxu0 0
      %1189 = vmatprep.subr.bf16.mxu0 0
      %1190 = vmatpush1.bf16.msra.mxu0 0
      %1191 = vmatprep.subr.bf16.mxu0 0
      %1192 = vmatpush1.bf16.msra.mxu0 0
      %1193 = vmatprep.subr.bf16.mxu0 0
      %1194 = vmatpush1.bf16.msra.mxu0 0
      %1195 = vmatprep.subr.bf16.mxu0 0
      %1196 = vmatpush1.bf16.msra.mxu0 0
      %1197 = vmatprep.subr.bf16.mxu0 0
      %1198 = vmatpush1.bf16.msra.mxu0 0
      %1199 = vmatprep.mubr.bf16.mxu0 0
      %1200 = vmatmul.mubr.bf16.gmra.mrb[0].mxu0 %v532
      %v1201 = vpop.f32.mrb[0].mxu0
      %v1202 = vadd.f32 %v1141, %v1201
      %v1203 = vpop.f32.mrb[0].mxu0
      %v1204 = vpop.f32.mrb[0].mxu0
      %v1205 = vadd.f32 %v1141, %v1204
      %v1206 = vpop.f32.mrb[0].mxu0
      %1207 = vdwg.mxu0
      %v1208 = vmax.f32 %v1202, 0.0
      %v1209 = vmax.f32 %v1205, 0.0
      %v1210 = vpack.c.bf16 %v1209, %v1208
      %s1211 = scalar_lea.vmem %s6, 192
      %v1212 = vld [vmem:[%s1211] sm:$0xf]
      %v1213 = vld [vmem:[%s1211 + $0x4] sm:$0xf]
      %v1214 = vld [vmem:[%s1211 + $0x8] sm:$0xf]
      %v1215 = vld [vmem:[%s1211 + $0xc] sm:$0xf]
      %v1216 = vld [vmem:[%s1211 + $0x10] sm:$0xf]
      %v1217 = vld [vmem:[%s1211 + $0x14] sm:$0xf]
      %v1218 = vld [vmem:[%s1211 + $0x18] sm:$0xf]
      %v1219 = vld [vmem:[%s1211 + $0x1c] sm:$0xf]
      %v1220 = vld [vmem:[%s1211 + $0x20] sm:$0xf]
      %v1221 = vld [vmem:[%s1211 + $0x24] sm:$0xf]
      %v1222 = vld [vmem:[%s1211 + $0x28] sm:$0xf]
      %v1223 = vld [vmem:[%s1211 + $0x2c] sm:$0xf]
      %v1224 = vld [vmem:[%s1211 + $0x30] sm:$0xf]
      %v1225 = vld [vmem:[%s1211 + $0x34] sm:$0xf]
      %v1226 = vld [vmem:[%s1211 + $0x38] sm:$0xf]
      %v1227 = vld [vmem:[%s1211 + $0x3c] sm:$0xf]
      %s1228 = scalar_lea.vmem %s7, 3
      %v1229 = vld [vmem:[%s1228] sm:$0x1]
      %v1231 = vlaneseq
      %v1232 = vshrl.u32 %v1231, 7
      %v1233 = vsub.s32 0, %v1232
      %v1234 = vrot.slane %v1229, %v1233
      %v1252 = vunpack.c.l.b16 %v1212
      %v1253 = vunpack.c.l.b16 %v1213
      %v1254 = vunpack.c.l.b16 %v1214
      %v1255 = vunpack.c.l.b16 %v1215
      %v1256 = vunpack.c.l.b16 %v1216
      %v1257 = vunpack.c.l.b16 %v1217
      %v1258 = vunpack.c.l.b16 %v1218
      %v1259 = vunpack.c.l.b16 %v1219
      %v1260 = vunpack.c.l.b16 %v1220
      %v1261 = vunpack.c.l.b16 %v1221
      %v1262 = vunpack.c.l.b16 %v1222
      %v1263 = vunpack.c.l.b16 %v1223
      %v1264 = vunpack.c.l.b16 %v1224
      %v1265 = vunpack.c.l.b16 %v1225
      %v1266 = vunpack.c.l.b16 %v1226
      %v1267 = vunpack.c.l.b16 %v1227
      %v1268 = vpack.c.b16 %v1253, %v1252
      %v1269 = vpack.c.b16 %v1255, %v1254
      %v1270 = vpack.c.b16 %v1257, %v1256
      %v1271 = vpack.c.b16 %v1259, %v1258
      %v1272 = vpack.c.b16 %v1261, %v1260
      %v1273 = vpack.c.b16 %v1263, %v1262
      %v1274 = vpack.c.b16 %v1265, %v1264
      %v1275 = vpack.c.b16 %v1267, %v1266
      %1284 = vmatprep.subr.bf16.mxu0 0
      %1285 = vmatpush1.bf16.msra.mxu0 %v1268
      %1286 = vmatprep.subr.bf16.mxu0 0
      %1287 = vmatpush1.bf16.msra.mxu0 %v1269
      %1288 = vmatprep.subr.bf16.mxu0 0
      %1289 = vmatpush1.bf16.msra.mxu0 %v1270
      %1290 = vmatprep.subr.bf16.mxu0 0
      %1291 = vmatpush1.bf16.msra.mxu0 %v1271
      %1292 = vmatprep.subr.bf16.mxu0 0
      %1293 = vmatpush1.bf16.msra.mxu0 %v1272
      %1294 = vmatprep.subr.bf16.mxu0 0
      %1295 = vmatpush1.bf16.msra.mxu0 %v1273
      %1296 = vmatprep.subr.bf16.mxu0 0
      %1297 = vmatpush1.bf16.msra.mxu0 %v1274
      %1298 = vmatprep.subr.bf16.mxu0 0
      %1299 = vmatpush1.bf16.msra.mxu0 %v1275
      %1300 = vmatprep.subr.bf16.mxu0 0
      %1301 = vmatpush1.bf16.msra.mxu0 0
      %1302 = vmatprep.subr.bf16.mxu0 0
      %1303 = vmatpush1.bf16.msra.mxu0 0
      %1304 = vmatprep.subr.bf16.mxu0 0
      %1305 = vmatpush1.bf16.msra.mxu0 0
      %1306 = vmatprep.subr.bf16.mxu0 0
      %1307 = vmatpush1.bf16.msra.mxu0 0
      %1308 = vmatprep.subr.bf16.mxu0 0
      %1309 = vmatpush1.bf16.msra.mxu0 0
      %1310 = vmatprep.subr.bf16.mxu0 0
      %1311 = vmatpush1.bf16.msra.mxu0 0
      %1312 = vmatprep.subr.bf16.mxu0 0
      %1313 = vmatpush1.bf16.msra.mxu0 0
      %1314 = vmatprep.subr.bf16.mxu0 0
      %1315 = vmatpush1.bf16.msra.mxu0 0
      %1316 = vmatprep.mubr.bf16.mxu0 0
      %1317 = vmatmul.mubr.bf16.gmra.mrb[0].mxu0 %v1210
      %v1318 = vpop.f32.mrb[0].mxu0
      %v1319 = vadd.f32 %v1234, %v1318
      %v1320 = vpop.f32.mrb[0].mxu0
      %v1321 = vpop.f32.mrb[0].mxu0
      %v1322 = vadd.f32 %v1234, %v1321
      %v1323 = vpop.f32.mrb[0].mxu0
      %1324 = vdwg.mxu0
      %1325 = vset.pattern.permute.xlu0 3
      %1326 = vperm.xlu0 %1325, %v489
      %v1327 = vpop.permute.xlu0 %1326
      %1329 = vset.pattern.permute.xlu0 3
      %1330 = vperm.xlu0 %1329, %v490
      %v1331 = vpop.permute.xlu0 %1330
      %v1333 = vmul.f32 %v1327, %v1319
      %v1334 = vmul.f32 %v1331, %v1322
      %v1335 = vadd.f32 %v1124, %v1333
      %v1336 = vadd.f32 %v1125, %v1334
      %s1337 = scalar_lea.vmem %s4, 128
      %v1338 = vld [vmem:[%s1337] sm:$0xf]
      %v1339 = vld [vmem:[%s1337 + $0x4] sm:$0xf]
      %v1340 = vld [vmem:[%s1337 + $0x8] sm:$0xf]
      %v1341 = vld [vmem:[%s1337 + $0xc] sm:$0xf]
      %v1342 = vld [vmem:[%s1337 + $0x10] sm:$0xf]
      %v1343 = vld [vmem:[%s1337 + $0x14] sm:$0xf]
      %v1344 = vld [vmem:[%s1337 + $0x18] sm:$0xf]
      %v1345 = vld [vmem:[%s1337 + $0x1c] sm:$0xf]
      %s1346 = scalar_lea.vmem %s5, 4
      %v1347 = vld [vmem:[%s1346] sm:$0x1]
      %v1349 = vlaneseq
      %v1350 = vshrl.u32 %v1349, 7
      %v1351 = vsub.s32 0, %v1350
      %v1352 = vrot.slane %v1347, %v1351
      %v1362 = vunpack.c.l.b16 %v1338
      %v1363 = vunpack.c.l.b16 %v1339
      %v1364 = vunpack.c.l.b16 %v1340
      %v1365 = vunpack.c.l.b16 %v1341
      %v1366 = vunpack.c.l.b16 %v1342
      %v1367 = vunpack.c.l.b16 %v1343
      %v1368 = vunpack.c.l.b16 %v1344
      %v1369 = vunpack.c.l.b16 %v1345
      %v1370 = vpack.c.b16 %v1363, %v1362
      %v1371 = vpack.c.b16 %v1365, %v1364
      %v1372 = vpack.c.b16 %v1367, %v1366
      %v1373 = vpack.c.b16 %v1369, %v1368
      %1378 = vmatprep.subr.bf16.mxu0 0
      %1379 = vmatpush1.bf16.msra.mxu0 %v1370
      %1380 = vmatprep.subr.bf16.mxu0 0
      %1381 = vmatpush1.bf16.msra.mxu0 %v1371
      %1382 = vmatprep.subr.bf16.mxu0 0
      %1383 = vmatpush1.bf16.msra.mxu0 %v1372
      %1384 = vmatprep.subr.bf16.mxu0 0
      %1385 = vmatpush1.bf16.msra.mxu0 %v1373
      %1386 = vmatprep.subr.bf16.mxu0 0
      %1387 = vmatpush1.bf16.msra.mxu0 0
      %1388 = vmatprep.subr.bf16.mxu0 0
      %1389 = vmatpush1.bf16.msra.mxu0 0
      %1390 = vmatprep.subr.bf16.mxu0 0
      %1391 = vmatpush1.bf16.msra.mxu0 0
      %1392 = vmatprep.subr.bf16.mxu0 0
      %1393 = vmatpush1.bf16.msra.mxu0 0
      %1394 = vmatprep.subr.bf16.mxu0 0
      %1395 = vmatpush1.bf16.msra.mxu0 0
      %1396 = vmatprep.subr.bf16.mxu0 0
      %1397 = vmatpush1.bf16.msra.mxu0 0
      %1398 = vmatprep.subr.bf16.mxu0 0
      %1399 = vmatpush1.bf16.msra.mxu0 0
      %1400 = vmatprep.subr.bf16.mxu0 0
      %1401 = vmatpush1.bf16.msra.mxu0 0
      %1402 = vmatprep.subr.bf16.mxu0 0
      %1403 = vmatpush1.bf16.msra.mxu0 0
      %1404 = vmatprep.subr.bf16.mxu0 0
      %1405 = vmatpush1.bf16.msra.mxu0 0
      %1406 = vmatprep.subr.bf16.mxu0 0
      %1407 = vmatpush1.bf16.msra.mxu0 0
      %1408 = vmatprep.subr.bf16.mxu0 0
      %1409 = vmatpush1.bf16.msra.mxu0 0
      %1410 = vmatprep.mubr.bf16.mxu0 0
      %1411 = vmatmul.mubr.bf16.gmra.mrb[0].mxu0 %v532
      %v1412 = vpop.f32.mrb[0].mxu0
      %v1413 = vadd.f32 %v1352, %v1412
      %v1414 = vpop.f32.mrb[0].mxu0
      %v1415 = vpop.f32.mrb[0].mxu0
      %v1416 = vadd.f32 %v1352, %v1415
      %v1417 = vpop.f32.mrb[0].mxu0
      %1418 = vdwg.mxu0
      %v1419 = vmax.f32 %v1413, 0.0
      %v1420 = vmax.f32 %v1416, 0.0
      %v1421 = vpack.c.bf16 %v1420, %v1419
      %s1422 = scalar_lea.vmem %s6, 256
      %v1423 = vld [vmem:[%s1422] sm:$0xf]
      %v1424 = vld [vmem:[%s1422 + $0x4] sm:$0xf]
      %v1425 = vld [vmem:[%s1422 + $0x8] sm:$0xf]
      %v1426 = vld [vmem:[%s1422 + $0xc] sm:$0xf]
      %v1427 = vld [vmem:[%s1422 + $0x10] sm:$0xf]
      %v1428 = vld [vmem:[%s1422 + $0x14] sm:$0xf]
      %v1429 = vld [vmem:[%s1422 + $0x18] sm:$0xf]
      %v1430 = vld [vmem:[%s1422 + $0x1c] sm:$0xf]
      %v1431 = vld [vmem:[%s1422 + $0x20] sm:$0xf]
      %v1432 = vld [vmem:[%s1422 + $0x24] sm:$0xf]
      %v1433 = vld [vmem:[%s1422 + $0x28] sm:$0xf]
      %v1434 = vld [vmem:[%s1422 + $0x2c] sm:$0xf]
      %v1435 = vld [vmem:[%s1422 + $0x30] sm:$0xf]
      %v1436 = vld [vmem:[%s1422 + $0x34] sm:$0xf]
      %v1437 = vld [vmem:[%s1422 + $0x38] sm:$0xf]
      %v1438 = vld [vmem:[%s1422 + $0x3c] sm:$0xf]
      %s1439 = scalar_lea.vmem %s7, 4
      %v1440 = vld [vmem:[%s1439] sm:$0x1]
      %v1442 = vlaneseq
      %v1443 = vshrl.u32 %v1442, 7
      %v1444 = vsub.s32 0, %v1443
      %v1445 = vrot.slane %v1440, %v1444
      %v1463 = vunpack.c.l.b16 %v1423
      %v1464 = vunpack.c.l.b16 %v1424
      %v1465 = vunpack.c.l.b16 %v1425
      %v1466 = vunpack.c.l.b16 %v1426
      %v1467 = vunpack.c.l.b16 %v1427
      %v1468 = vunpack.c.l.b16 %v1428
      %v1469 = vunpack.c.l.b16 %v1429
      %v1470 = vunpack.c.l.b16 %v1430
      %v1471 = vunpack.c.l.b16 %v1431
      %v1472 = vunpack.c.l.b16 %v1432
      %v1473 = vunpack.c.l.b16 %v1433
      %v1474 = vunpack.c.l.b16 %v1434
      %v1475 = vunpack.c.l.b16 %v1435
      %v1476 = vunpack.c.l.b16 %v1436
      %v1477 = vunpack.c.l.b16 %v1437
      %v1478 = vunpack.c.l.b16 %v1438
      %v1479 = vpack.c.b16 %v1464, %v1463
      %v1480 = vpack.c.b16 %v1466, %v1465
      %v1481 = vpack.c.b16 %v1468, %v1467
      %v1482 = vpack.c.b16 %v1470, %v1469
      %v1483 = vpack.c.b16 %v1472, %v1471
      %v1484 = vpack.c.b16 %v1474, %v1473
      %v1485 = vpack.c.b16 %v1476, %v1475
      %v1486 = vpack.c.b16 %v1478, %v1477
      %1495 = vmatprep.subr.bf16.mxu0 0
      %1496 = vmatpush1.bf16.msra.mxu0 %v1479
      %1497 = vmatprep.subr.bf16.mxu0 0
      %1498 = vmatpush1.bf16.msra.mxu0 %v1480
      %1499 = vmatprep.subr.bf16.mxu0 0
      %1500 = vmatpush1.bf16.msra.mxu0 %v1481
      %1501 = vmatprep.subr.bf16.mxu0 0
      %1502 = vmatpush1.bf16.msra.mxu0 %v1482
      %1503 = vmatprep.subr.bf16.mxu0 0
      %1504 = vmatpush1.bf16.msra.mxu0 %v1483
      %1505 = vmatprep.subr.bf16.mxu0 0
      %1506 = vmatpush1.bf16.msra.mxu0 %v1484
      %1507 = vmatprep.subr.bf16.mxu0 0
      %1508 = vmatpush1.bf16.msra.mxu0 %v1485
      %1509 = vmatprep.subr.bf16.mxu0 0
      %1510 = vmatpush1.bf16.msra.mxu0 %v1486
      %1511 = vmatprep.subr.bf16.mxu0 0
      %1512 = vmatpush1.bf16.msra.mxu0 0
      %1513 = vmatprep.subr.bf16.mxu0 0
      %1514 = vmatpush1.bf16.msra.mxu0 0
      %1515 = vmatprep.subr.bf16.mxu0 0
      %1516 = vmatpush1.bf16.msra.mxu0 0
      %1517 = vmatprep.subr.bf16.mxu0 0
      %1518 = vmatpush1.bf16.msra.mxu0 0
      %1519 = vmatprep.subr.bf16.mxu0 0
      %1520 = vmatpush1.bf16.msra.mxu0 0
      %1521 = vmatprep.subr.bf16.mxu0 0
      %1522 = vmatpush1.bf16.msra.mxu0 0
      %1523 = vmatprep.subr.bf16.mxu0 0
      %1524 = vmatpush1.bf16.msra.mxu0 0
      %1525 = vmatprep.subr.bf16.mxu0 0
      %1526 = vmatpush1.bf16.msra.mxu0 0
      %1527 = vmatprep.mubr.bf16.mxu0 0
      %1528 = vmatmul.mubr.bf16.gmra.mrb[0].mxu0 %v1421
      %v1529 = vpop.f32.mrb[0].mxu0
      %v1530 = vadd.f32 %v1445, %v1529
      %v1531 = vpop.f32.mrb[0].mxu0
      %v1532 = vpop.f32.mrb[0].mxu0
      %v1533 = vadd.f32 %v1445, %v1532
      %v1534 = vpop.f32.mrb[0].mxu0
      %1535 = vdwg.mxu0
      %1536 = vset.pattern.permute.xlu0 4
      %1537 = vperm.xlu0 %1536, %v489
      %v1538 = vpop.permute.xlu0 %1537
      %1540 = vset.pattern.permute.xlu0 4
      %1541 = vperm.xlu0 %1540, %v490
      %v1542 = vpop.permute.xlu0 %1541
      %v1544 = vmul.f32 %v1538, %v1530
      %v1545 = vmul.f32 %v1542, %v1533
      %v1546 = vadd.f32 %v1335, %v1544
      %v1547 = vadd.f32 %v1336, %v1545
      %v1548 = vpack.c.bf16 %v1547, %v1546
      %vm1549 = vcmask 130048
      %v1551 = vsel %vm1549, %v432, 0
      %1553 = vmatprep.subr.bf16.mxu0 0
      %1554 = vmatpush1.bf16.msra.mxu0 %v1548
      %1555 = vmatprep.subr.bf16.mxu0 0
      %1556 = vmatpush1.bf16.msra.mxu0 0
      %1557 = vmatprep.subr.bf16.mxu0 0
      %1558 = vmatpush1.bf16.msra.mxu0 0
      %1559 = vmatprep.subr.bf16.mxu0 0
      %1560 = vmatpush1.bf16.msra.mxu0 0
      %1561 = vmatprep.subr.bf16.mxu0 0
      %1562 = vmatpush1.bf16.msra.mxu0 0
      %1563 = vmatprep.subr.bf16.mxu0 0
      %1564 = vmatpush1.bf16.msra.mxu0 0
      %1565 = vmatprep.subr.bf16.mxu0 0
      %1566 = vmatpush1.bf16.msra.mxu0 0
      %1567 = vmatprep.subr.bf16.mxu0 0
      %1568 = vmatpush1.bf16.msra.mxu0 0
      %1569 = vmatprep.subr.bf16.mxu0 0
      %1570 = vmatpush1.bf16.msra.mxu0 0
      %1571 = vmatprep.subr.bf16.mxu0 0
      %1572 = vmatpush1.bf16.msra.mxu0 0
      %1573 = vmatprep.subr.bf16.mxu0 0
      %1574 = vmatpush1.bf16.msra.mxu0 0
      %1575 = vmatprep.subr.bf16.mxu0 0
      %1576 = vmatpush1.bf16.msra.mxu0 0
      %1577 = vmatprep.subr.bf16.mxu0 0
      %1578 = vmatpush1.bf16.msra.mxu0 0
      %1579 = vmatprep.subr.bf16.mxu0 0
      %1580 = vmatpush1.bf16.msra.mxu0 0
      %1581 = vmatprep.subr.bf16.mxu0 0
      %1582 = vmatpush1.bf16.msra.mxu0 0
      %1583 = vmatprep.subr.bf16.mxu0 0
      %1584 = vmatpush1.bf16.msra.mxu0 0
      %1585 = vmatprep.mubr.bf16.mxu0 0
      %1586 = vmatmul.mubr.bf16.gmra.mrb[0].mxu0 %v1551
      %v1587 = vpop.f32.mrb[0].mxu0
      %v1588 = vadd.f32 0.0, %v1587
      %v1589 = vpop.f32.mrb[0].mxu0
      %v1590 = vpop.f32.mrb[0].mxu0
      %v1591 = vpop.f32.mrb[0].mxu0
      %1592 = vdwg.mxu0
      %v1593 = vmul.f32 %v1588, 0.25
      %v1594 = vpack.c.bf16 %v1593, %v1593
      %v1595 = vunpack.c.l.bf16 %v433
      %v1596 = vmul.f32 %v1595, 0.25
      %v1597 = vpack.c.bf16 %v1596, %v1596
      %v1598 = vld [vmem:[%s8] sm:$0xf]
      %v1599 = vld [vmem:[%s8 + $0x4] sm:$0xf]
      %v1600 = vld [vmem:[%s8 + $0x8] sm:$0xf]
      %v1601 = vld [vmem:[%s8 + $0xc] sm:$0xf]
      %v1602 = vld [vmem:[%s8 + $0x10] sm:$0xf]
      %v1603 = vld [vmem:[%s8 + $0x14] sm:$0xf]
      %v1604 = vld [vmem:[%s8 + $0x18] sm:$0xf]
      %v1605 = vld [vmem:[%s8 + $0x1c] sm:$0xf]
      %v1606 = vld [vmem:[%s8 + $0x20] sm:$0xf]
      %v1607 = vld [vmem:[%s8 + $0x24] sm:$0xf]
      %v1608 = vld [vmem:[%s8 + $0x28] sm:$0xf]
      %v1609 = vld [vmem:[%s8 + $0x2c] sm:$0xf]
      %v1610 = vld [vmem:[%s8 + $0x30] sm:$0xf]
      %v1611 = vld [vmem:[%s8 + $0x34] sm:$0xf]
      %v1612 = vld [vmem:[%s8 + $0x38] sm:$0xf]
      %v1613 = vld [vmem:[%s8 + $0x3c] sm:$0xf]
      %v1622 = vunpack.c.l.b16 %v1606
      %v1623 = vunpack.c.l.b16 %v1607
      %v1624 = vunpack.c.l.b16 %v1608
      %v1625 = vunpack.c.l.b16 %v1609
      %v1626 = vunpack.c.l.b16 %v1610
      %v1627 = vunpack.c.l.b16 %v1611
      %v1628 = vunpack.c.l.b16 %v1612
      %v1629 = vunpack.c.l.b16 %v1613
      %v1630 = vpack.c.b16 %v1623, %v1622
      %v1631 = vpack.c.b16 %v1625, %v1624
      %v1632 = vpack.c.b16 %v1627, %v1626
      %v1633 = vpack.c.b16 %v1629, %v1628
      %v1639 = vsel %vm530, %v1597, 0
      %1641 = vmatprep.subr.bf16.mxu0 0
      %1642 = vmatpush1.bf16.msra.mxu0 %v1630
      %1643 = vmatprep.subr.bf16.mxu0 0
      %1644 = vmatpush1.bf16.msra.mxu0 %v1631
      %1645 = vmatprep.subr.bf16.mxu0 0
      %1646 = vmatpush1.bf16.msra.mxu0 %v1632
      %1647 = vmatprep.subr.bf16.mxu0 0
      %1648 = vmatpush1.bf16.msra.mxu0 %v1633
      %1649 = vmatprep.subr.bf16.mxu0 0
      %1650 = vmatpush1.bf16.msra.mxu0 0
      %1651 = vmatprep.subr.bf16.mxu0 0
      %1652 = vmatpush1.bf16.msra.mxu0 0
      %1653 = vmatprep.subr.bf16.mxu0 0
      %1654 = vmatpush1.bf16.msra.mxu0 0
      %1655 = vmatprep.subr.bf16.mxu0 0
      %1656 = vmatpush1.bf16.msra.mxu0 0
      %1657 = vmatprep.subr.bf16.mxu0 0
      %1658 = vmatpush1.bf16.msra.mxu0 0
      %1659 = vmatprep.subr.bf16.mxu0 0
      %1660 = vmatpush1.bf16.msra.mxu0 0
      %1661 = vmatprep.subr.bf16.mxu0 0
      %1662 = vmatpush1.bf16.msra.mxu0 0
      %1663 = vmatprep.subr.bf16.mxu0 0
      %1664 = vmatpush1.bf16.msra.mxu0 0
      %1665 = vmatprep.subr.bf16.mxu0 0
      %1666 = vmatpush1.bf16.msra.mxu0 0
      %1667 = vmatprep.subr.bf16.mxu0 0
      %1668 = vmatpush1.bf16.msra.mxu0 0
      %1669 = vmatprep.subr.bf16.mxu0 0
      %1670 = vmatpush1.bf16.msra.mxu0 0
      %1671 = vmatprep.subr.bf16.mxu0 0
      %1672 = vmatpush1.bf16.msra.mxu0 0
      %1673 = vmatprep.mubr.bf16.mxu0 0
      %1674 = vmatmul.mubr.bf16.gmra.mrb[0].mxu0 %v1639
      %v1675 = vpop.f32.mrb[0].mxu0
      %v1676 = vadd.f32 0.0, %v1675
      %v1677 = vpop.f32.mrb[0].mxu0
      %v1678 = vpop.f32.mrb[0].mxu0
      %v1679 = vpop.f32.mrb[0].mxu0
      %1680 = vdwg.mxu0
      %v1689 = vunpack.c.l.b16 %v1598
      %v1690 = vunpack.c.l.b16 %v1599
      %v1691 = vunpack.c.l.b16 %v1600
      %v1692 = vunpack.c.l.b16 %v1601
      %v1693 = vunpack.c.l.b16 %v1602
      %v1694 = vunpack.c.l.b16 %v1603
      %v1695 = vunpack.c.l.b16 %v1604
      %v1696 = vunpack.c.l.b16 %v1605
      %v1697 = vpack.c.b16 %v1690, %v1689
      %v1698 = vpack.c.b16 %v1692, %v1691
      %v1699 = vpack.c.b16 %v1694, %v1693
      %v1700 = vpack.c.b16 %v1696, %v1695
      %v1706 = vsel %vm530, %v1594, 0
      %1708 = vmatprep.subr.bf16.mxu0 0
      %1709 = vmatpush1.bf16.msra.mxu0 %v1697
      %1710 = vmatprep.subr.bf16.mxu0 0
      %1711 = vmatpush1.bf16.msra.mxu0 %v1698
      %1712 = vmatprep.subr.bf16.mxu0 0
      %1713 = vmatpush1.bf16.msra.mxu0 %v1699
      %1714 = vmatprep.subr.bf16.mxu0 0
      %1715 = vmatpush1.bf16.msra.mxu0 %v1700
      %1716 = vmatprep.subr.bf16.mxu0 0
      %1717 = vmatpush1.bf16.msra.mxu0 0
      %1718 = vmatprep.subr.bf16.mxu0 0
      %1719 = vmatpush1.bf16.msra.mxu0 0
      %1720 = vmatprep.subr.bf16.mxu0 0
      %1721 = vmatpush1.bf16.msra.mxu0 0
      %1722 = vmatprep.subr.bf16.mxu0 0
      %1723 = vmatpush1.bf16.msra.mxu0 0
      %1724 = vmatprep.subr.bf16.mxu0 0
      %1725 = vmatpush1.bf16.msra.mxu0 0
      %1726 = vmatprep.subr.bf16.mxu0 0
      %1727 = vmatpush1.bf16.msra.mxu0 0
      %1728 = vmatprep.subr.bf16.mxu0 0
      %1729 = vmatpush1.bf16.msra.mxu0 0
      %1730 = vmatprep.subr.bf16.mxu0 0
      %1731 = vmatpush1.bf16.msra.mxu0 0
      %1732 = vmatprep.subr.bf16.mxu0 0
      %1733 = vmatpush1.bf16.msra.mxu0 0
      %1734 = vmatprep.subr.bf16.mxu0 0
      %1735 = vmatpush1.bf16.msra.mxu0 0
      %1736 = vmatprep.subr.bf16.mxu0 0
      %1737 = vmatpush1.bf16.msra.mxu0 0
      %1738 = vmatprep.subr.bf16.mxu0 0
      %1739 = vmatpush1.bf16.msra.mxu0 0
      %1740 = vmatprep.mubr.bf16.mxu0 0
      %1741 = vmatmul.mubr.bf16.gmra.mrb[0].mxu0 %v1706
      %v1742 = vpop.f32.mrb[0].mxu0
      %v1743 = vadd.f32 %v1676, %v1742
      %v1744 = vpop.f32.mrb[0].mxu0
      %v1745 = vpop.f32.mrb[0].mxu0
      %v1746 = vpop.f32.mrb[0].mxu0
      %1747 = vdwg.mxu0
      %v1748 = vld [vmem:[%s9] sm:$0x1]
      %v1750 = vlaneseq
      %v1751 = vshrl.u32 %v1750, 7
      %v1752 = vsub.s32 0, %v1751
      %v1753 = vrot.slane %v1748, %v1752
      %v1755 = vadd.f32 %v1743, %v1753
      %v1756 = vmax.f32 %v1755, 0.0
      %v1757 = vpack.c.bf16 %v1756, %v1756
      %v1758 = vld [vmem:[%s10] sm:$0xf]
      %v1759 = vld [vmem:[%s10 + $0x4] sm:$0xf]
      %v1760 = vld [vmem:[%s10 + $0x8] sm:$0xf]
      %v1761 = vld [vmem:[%s10 + $0xc] sm:$0xf]
      %v1762 = vld [vmem:[%s10 + $0x10] sm:$0xf]
      %v1763 = vld [vmem:[%s10 + $0x14] sm:$0xf]
      %v1764 = vld [vmem:[%s10 + $0x18] sm:$0xf]
      %v1765 = vld [vmem:[%s10 + $0x1c] sm:$0xf]
      %v1766 = vld [vmem:[%s10 + $0x20] sm:$0xf]
      %v1767 = vld [vmem:[%s10 + $0x24] sm:$0xf]
      %v1768 = vld [vmem:[%s10 + $0x28] sm:$0xf]
      %v1769 = vld [vmem:[%s10 + $0x2c] sm:$0xf]
      %v1770 = vld [vmem:[%s10 + $0x30] sm:$0xf]
      %v1771 = vld [vmem:[%s10 + $0x34] sm:$0xf]
      %v1772 = vld [vmem:[%s10 + $0x38] sm:$0xf]
      %v1773 = vld [vmem:[%s10 + $0x3c] sm:$0xf]
      %v1774 = vld [vmem:[%s11] sm:$0x1]
      %v1776 = vlaneseq
      %v1777 = vshrl.u32 %v1776, 7
      %v1778 = vsub.s32 0, %v1777
      %v1779 = vrot.slane %v1774, %v1778
      %v1797 = vunpack.c.l.b16 %v1758
      %v1798 = vunpack.c.l.b16 %v1759
      %v1799 = vunpack.c.l.b16 %v1760
      %v1800 = vunpack.c.l.b16 %v1761
      %v1801 = vunpack.c.l.b16 %v1762
      %v1802 = vunpack.c.l.b16 %v1763
      %v1803 = vunpack.c.l.b16 %v1764
      %v1804 = vunpack.c.l.b16 %v1765
      %v1805 = vunpack.c.l.b16 %v1766
      %v1806 = vunpack.c.l.b16 %v1767
      %v1807 = vunpack.c.l.b16 %v1768
      %v1808 = vunpack.c.l.b16 %v1769
      %v1809 = vunpack.c.l.b16 %v1770
      %v1810 = vunpack.c.l.b16 %v1771
      %v1811 = vunpack.c.l.b16 %v1772
      %v1812 = vunpack.c.l.b16 %v1773
      %v1813 = vpack.c.b16 %v1798, %v1797
      %v1814 = vpack.c.b16 %v1800, %v1799
      %v1815 = vpack.c.b16 %v1802, %v1801
      %v1816 = vpack.c.b16 %v1804, %v1803
      %v1817 = vpack.c.b16 %v1806, %v1805
      %v1818 = vpack.c.b16 %v1808, %v1807
      %v1819 = vpack.c.b16 %v1810, %v1809
      %v1820 = vpack.c.b16 %v1812, %v1811
      %1829 = vmatprep.subr.bf16.mxu0 0
      %1830 = vmatpush1.bf16.msra.mxu0 %v1813
      %1831 = vmatprep.subr.bf16.mxu0 0
      %1832 = vmatpush1.bf16.msra.mxu0 %v1814
      %1833 = vmatprep.subr.bf16.mxu0 0
      %1834 = vmatpush1.bf16.msra.mxu0 %v1815
      %1835 = vmatprep.subr.bf16.mxu0 0
      %1836 = vmatpush1.bf16.msra.mxu0 %v1816
      %1837 = vmatprep.subr.bf16.mxu0 0
      %1838 = vmatpush1.bf16.msra.mxu0 %v1817
      %1839 = vmatprep.subr.bf16.mxu0 0
      %1840 = vmatpush1.bf16.msra.mxu0 %v1818
      %1841 = vmatprep.subr.bf16.mxu0 0
      %1842 = vmatpush1.bf16.msra.mxu0 %v1819
      %1843 = vmatprep.subr.bf16.mxu0 0
      %1844 = vmatpush1.bf16.msra.mxu0 %v1820
      %1845 = vmatprep.subr.bf16.mxu0 0
      %1846 = vmatpush1.bf16.msra.mxu0 0
      %1847 = vmatprep.subr.bf16.mxu0 0
      %1848 = vmatpush1.bf16.msra.mxu0 0
      %1849 = vmatprep.subr.bf16.mxu0 0
      %1850 = vmatpush1.bf16.msra.mxu0 0
      %1851 = vmatprep.subr.bf16.mxu0 0
      %1852 = vmatpush1.bf16.msra.mxu0 0
      %1853 = vmatprep.subr.bf16.mxu0 0
      %1854 = vmatpush1.bf16.msra.mxu0 0
      %1855 = vmatprep.subr.bf16.mxu0 0
      %1856 = vmatpush1.bf16.msra.mxu0 0
      %1857 = vmatprep.subr.bf16.mxu0 0
      %1858 = vmatpush1.bf16.msra.mxu0 0
      %1859 = vmatprep.subr.bf16.mxu0 0
      %1860 = vmatpush1.bf16.msra.mxu0 0
      %1861 = vmatprep.mubr.bf16.mxu0 0
      %1862 = vmatmul.mubr.bf16.gmra.mrb[0].mxu0 %v1757
      %v1863 = vpop.f32.mrb[0].mxu0
      %v1864 = vadd.f32 %v1779, %v1863
      %v1865 = vpop.f32.mrb[0].mxu0
      %v1866 = vpop.f32.mrb[0].mxu0
      %v1867 = vpop.f32.mrb[0].mxu0
      %1868 = vdwg.mxu0
      %v1869 = vpack.c.bf16 %v1864, %v1864
      %vm1870 = vcmask 517120
      %1871 = vst.msk [vmem:[%s428] sm:$0x3] %vm1870, %v1869
      %p1872 = scmp.lt.s32.totalorder %s23, 1
      %s1873 = scalar_select %p1872, %s23, 1
      %s1874 = smul.addr %s1873, 2
      %s1875 = scalar_lea.vmem %s12, %s1874
      // Predicated region
      $region69: #{ms_hgnn_forward.10} parent=67 // pred_check
        %p1876 = pneg %p303
      $region70: #{ms_hgnn_forward.10} parent=67 // pred_check_branch
        %1878 = sbr.rel (%p1876) target = $region72
      $region71: #{ms_hgnn_forward.10} parent=67 // pred_region
        _
      $region72: #{ms_hgnn_forward.10} parent=67 // pred_fallthru
        _
    $region68: #{ms_hgnn_forward.10} parent=5 // pred_fallthru
      _
    %p1879 = scmp.le.s32.totalorder 2, %s18
    // Predicated region
    $region73: #{ms_hgnn_forward.10} parent=5 // pred_check
      %p1880 = pneg %p1879
    $region74: #{ms_hgnn_forward.10} parent=5 // pred_check_branch
      %1882 = sbr.rel (%p1880) target = $region76
    $region75: #{ms_hgnn_forward.10} parent=5 // pred_region
      %s1883 = ssub.s32 %s18, 2
      // Predicated region
      $region77: #{ms_hgnn_forward.10} parent=75 // pred_check
        %p1884 = pneg %p309
      $region78: #{ms_hgnn_forward.10} parent=75 // pred_check_branch
        %1886 = sbr.rel (%p1884) target = $region80
      $region79: #{ms_hgnn_forward.10} parent=75 // pred_region
        %p1887 = scmp.lt.s32.totalorder %s24, 1
        %s1888 = scalar_select %p1887, %s24, 1
        %s1889 = smul.addr %s1888, 2
        %s1890 = scalar_lea.vmem %s12, %s1889
      $region80: #{ms_hgnn_forward.10} parent=75 // pred_fallthru
        _
    $region76: #{ms_hgnn_forward.10} parent=5 // pred_fallthru
      _
  $region6: #{ms_hgnn_forward.10} parent=0 // loop_footer
    %s22 = sadd.s32 1, %s18
  $region7: #{ms_hgnn_forward.10} parent=0 // loop_footer_branch
    %17 = sbr.rel target = $region3
  $region8: #{ms_hgnn_forward.10} parent=0 // loop_exit
    _

</llo_original>
